<compile_context>
chip_gen: v6e
topology: v6e:2x2x1
jax: 0.10.0
libtpu: 0.0.40
codegen_flags: <defaults>
</compile_context>

<pallas_src>
import math
from functools import partial

import jax
import jax.numpy as jnp
from jax.experimental import pallas as pl
from jax.experimental.pallas import tpu as pltpu


# ---------------------------------------------------------------------------
# Fused attention kernel (one batch *block* per grid step)
# ---------------------------------------------------------------------------

def _make_fused_attention_kernel(num_heads, head_dim, scale, b_blk, N, C):
    R = b_blk * N  # flattened rows per grid step

    def kernel(x_ref, wqkv_ref, wproj_ref, bproj_ref, o_ref):
        # Flatten the batch block -> (R, C) so the big matmuls see >=128 rows.
        x = x_ref[...].reshape(R, C).astype(jnp.bfloat16)               # (R, C)
        wqkv = wqkv_ref[...]                                            # (C, 3C) bf16
        wproj = wproj_ref[...]                                          # (C, C)  bf16

        # qkv projection (qkv_bias=False, module default): bf16 in, f32 acc.
        qkv = jnp.dot(x, wqkv, preferred_element_type=jnp.float32)      # (R, 3C)

        # Per-head attention, batched over the b_blk batch elements inside the
        # block, with the output projection fused into the head loop so there
        # is no lane-concatenate of head outputs.
        acc = jnp.zeros((R, C), dtype=jnp.float32)
        for h in range(num_heads):
            lo = h * head_dim
            q = qkv[:, lo:lo + head_dim].reshape(b_blk, N, head_dim)
            k = qkv[:, C + lo:C + lo + head_dim].reshape(b_blk, N, head_dim)
            v = qkv[:, 2 * C + lo:2 * C + lo + head_dim].reshape(b_blk, N, head_dim)

            # scores = q @ k^T * scale (contraction over head_dim, batched
            # over the batch block).
            s = jax.lax.dot_general(
                q.astype(jnp.bfloat16), k.astype(jnp.bfloat16),
                (((2,), (2,)), ((0,), (0,))),
                preferred_element_type=jnp.float32) * scale             # (b, N, N)

            # Numerically-stable softmax; elementwise math kept in f32.
            # TODO(synk): heads could be packed lane-dense (N, H*N) for fewer
            # narrow XLU reductions; moderate win, skipped for clarity.
            s = s - jnp.max(s, axis=-1, keepdims=True)
            p = jnp.exp(s)
            denom = jnp.sum(p, axis=-1, keepdims=True)
            p = p * pl.reciprocal(denom, approx=True)
            # attn_drop is identity at the module default attn_drop=0.0.

            o_h = jax.lax.dot_general(
                p.astype(jnp.bfloat16), v.astype(jnp.bfloat16),
                (((2,), (1,)), ((0,), (0,))),
                preferred_element_type=jnp.float32)                     # (b, N, hd)

            # Fused output projection for this head: (R, hd) @ (hd, C),
            # lane-dense, accumulated in f32 (replaces the head concat +
            # single big attn_out @ Wproj).
            acc = acc + jnp.dot(
                o_h.reshape(R, head_dim).astype(jnp.bfloat16),
                wproj[lo:lo + head_dim, :],
                preferred_element_type=jnp.float32)

        y = acc + bproj_ref[...]                                        # + proj bias
        # proj_drop is identity at the module default proj_drop=0.0.
        o_ref[...] = y.reshape(b_blk, N, C).astype(o_ref.dtype)

    return kernel


def attention_forward(x, wqkv, wproj, bproj, *, num_heads, qk_scale=None,
                      b_blk=None):
    """x: (B, N, C); wqkv: (C, 3C); wproj: (C, C); bproj: (C,).

    Weights are (in, out): transpose PyTorch nn.Linear's (out, in) weights.
    """
    B, N, C = x.shape
    assert C % num_heads == 0
    head_dim = C // num_heads
    scale = float(qk_scale) if qk_scale is not None else head_dim ** (-0.5)

    # Batch blocking: largest divisor of B whose flattened row count stays
    # within one 128-row MXU pass worth of rows (and keeps >=2 grid steps when
    # possible for core parallelism).
    if b_blk is None:
        b_blk = 1
        for cand in range(1, B + 1):
            if B % cand == 0 and cand * N <= 128:
                b_blk = cand
    assert B % b_blk == 0, (B, b_blk)
    grid = (B // b_blk,)

    # bf16 weights: halves weight DMA volume and resident VMEM; matmuls
    # accumulate in f32 inside the kernel.
    wqkv_bf = wqkv.astype(jnp.bfloat16)
    wproj_bf = wproj.astype(jnp.bfloat16)
    bproj2d = bproj.reshape(1, C).astype(jnp.float32)

    H = num_heads
    flops = (2 * B * N * C * (3 * C)          # qkv projection
             + 2 * B * N * C * C              # output projection (fused per head)
             + 4 * B * H * N * N * head_dim)  # q@k^T and p@v
    transcendentals = B * H * N * N           # exp in softmax
    bytes_accessed = (x.size * x.dtype.itemsize        # read x
                      + x.size * x.dtype.itemsize      # write out
                      + wqkv_bf.size * 2 + wproj_bf.size * 2
                      + bproj2d.size * 4)
    cost = pl.CostEstimate(flops=flops, transcendentals=transcendentals,
                           bytes_accessed=bytes_accessed)

    return pl.pallas_call(
        _make_fused_attention_kernel(num_heads, head_dim, scale, b_blk, N, C),
        out_shape=jax.ShapeDtypeStruct((B, N, C), x.dtype),
        grid=grid,
        in_specs=[
            pl.BlockSpec((b_blk, N, C), lambda b: (b, 0, 0)),   # x (batch block)
            pl.BlockSpec((C, 3 * C), lambda b: (0, 0)),         # Wqkv (resident)
            pl.BlockSpec((C, C), lambda b: (0, 0)),             # Wproj (resident)
            pl.BlockSpec((1, C), lambda b: (0, 0)),             # proj bias
        ],
        out_specs=pl.BlockSpec((b_blk, N, C), lambda b: (b, 0, 0)),
        compiler_params=pltpu.CompilerParams(
            dimension_semantics=(pltpu.PARALLEL,)),
        cost_estimate=cost,
    )(x, wqkv_bf, wproj_bf, bproj2d)


# ---------------------------------------------------------------------------
# Pure-JAX reference (mirrors the PyTorch forward exactly, in f32)
# ---------------------------------------------------------------------------

def attention_ref(x, wqkv, wproj, bproj, *, num_heads):
    B, N, C = x.shape
    hd = C // num_heads
    scale = hd ** (-0.5)
    qkv = (x @ wqkv).reshape(B, N, 3, num_heads, hd).transpose(2, 0, 3, 1, 4)
    q, k, v = qkv[0], qkv[1], qkv[2]
    attn = jnp.einsum("bhnd,bhmd->bhnm", q, k) * scale
    attn = jax.nn.softmax(attn, axis=-1)
    o = jnp.einsum("bhnm,bhmd->bhnd", attn, v)
    o = o.transpose(0, 2, 1, 3).reshape(B, N, C)
    return o @ wproj + bproj


# ---------------------------------------------------------------------------
# Demo
# ---------------------------------------------------------------------------

if __name__ == "__main__":
    # head_dim = 16; b_blk auto-selects 8 -> 128 flattened rows/step, grid=(2,)
    B, N, C, num_heads = 16, 16, 128, 8

    key = jax.random.PRNGKey(0)
    kx, kq, kp, kb = jax.random.split(key, 4)
    x = jax.random.normal(kx, (B, N, C), dtype=jnp.float32)
    wqkv = (jax.random.normal(kq, (C, 3 * C)) / math.sqrt(C)).astype(jnp.float32)
    wproj = (jax.random.normal(kp, (C, C)) / math.sqrt(C)).astype(jnp.float32)
    bproj = (0.02 * jax.random.normal(kb, (C,))).astype(jnp.float32)

    fwd = jax.jit(partial(attention_forward, num_heads=num_heads))
    out = jax.block_until_ready(fwd(x, wqkv, wproj, bproj))

    ref = attention_ref(x, wqkv, wproj, bproj, num_heads=num_heads)
    assert out.shape == (B, N, C), out.shape
    assert bool(jnp.all(jnp.isfinite(out)))
    # loose tolerance: bf16 MXU operands + approx reciprocal (EUP vrcp) in the
    # softmax denominator vs. the exact f32 reference
    assert bool(jnp.allclose(out, ref, rtol=1e-1, atol=1e-1)), \
        float(jnp.max(jnp.abs(out - ref)))
    print("KERNEL_OK")
</pallas_src>

<mosaic_0001>
module attributes {stable_mosaic.version = 11 : i64} {
  func.func @kernel(%arg0: i32, %arg1: memref<8x16x128xf32, #tpu.memory_space<vmem>>, %arg2: memref<128x384xbf16, #tpu.memory_space<vmem>>, %arg3: memref<128x128xbf16, #tpu.memory_space<vmem>>, %arg4: memref<1x128xf32, #tpu.memory_space<vmem>>, %arg5: memref<8x16x128xf32, #tpu.memory_space<vmem>>) attributes {dimension_semantics = [#tpu.dimension_semantics<parallel>], iteration_bounds = array<i64: 2>, scalar_prefetch = 0 : i64, scratch_operands = 0 : i64, tpu.core_type = #tpu.core_type<tc>, window_params = [{transform_indices = @transform_0, window_bounds = array<i64: 8, 16, 128>}, {pipeline_mode = #tpu.pipeline_mode<synchronous>, transform_indices = @transform_1, window_bounds = array<i64: 128, 384>}, {pipeline_mode = #tpu.pipeline_mode<synchronous>, transform_indices = @transform_2, window_bounds = array<i64: 128, 128>}, {pipeline_mode = #tpu.pipeline_mode<synchronous>, transform_indices = @transform_3, window_bounds = array<i64: 1, 128>}, {transform_indices = @transform_4, window_bounds = array<i64: 8, 16, 128>}]} {
    %c0 = arith.constant 0 : index
    %c0_0 = arith.constant 0 : index
    %c0_1 = arith.constant 0 : index
    %0 = vector.load %arg1[%c0, %c0_0, %c0_1] : memref<8x16x128xf32, #tpu.memory_space<vmem>>, vector<8x16x128xf32>
    %1 = vector.shape_cast %0 : vector<8x16x128xf32> to vector<128x128xf32>
    %2 = arith.truncf %1 : vector<128x128xf32> to vector<128x128xbf16>
    %c0_2 = arith.constant 0 : index
    %c0_3 = arith.constant 0 : index
    %3 = vector.load %arg2[%c0_2, %c0_3] : memref<128x384xbf16, #tpu.memory_space<vmem>>, vector<128x384xbf16>
    %c0_4 = arith.constant 0 : index
    %c0_5 = arith.constant 0 : index
    %4 = vector.load %arg3[%c0_4, %c0_5] : memref<128x128xbf16, #tpu.memory_space<vmem>>, vector<128x128xbf16>
    %cst = arith.constant dense<0.000000e+00> : vector<128x384xf32>
    %5 = tpu.matmul %2, %3, %cst {dimension_numbers = #tpu.dot_dimension_numbers<[1], [0], [0], [1], [0, 0, 1, 1], [], []>} : vector<128x128xbf16>, vector<128x384xbf16>, vector<128x384xf32> -> vector<128x384xf32>
    %cst_6 = arith.constant 0.000000e+00 : f32
    %6 = vector.broadcast %cst_6 : f32 to vector<128x128xf32>
    %7 = vector.extract_strided_slice %5 {offsets = [0, 0], sizes = [128, 16], strides = [1, 1]} : vector<128x384xf32> to vector<128x16xf32>
    %8 = vector.shape_cast %7 : vector<128x16xf32> to vector<8x16x16xf32>
    %9 = vector.extract_strided_slice %5 {offsets = [0, 128], sizes = [128, 16], strides = [1, 1]} : vector<128x384xf32> to vector<128x16xf32>
    %10 = vector.shape_cast %9 : vector<128x16xf32> to vector<8x16x16xf32>
    %11 = vector.extract_strided_slice %5 {offsets = [0, 256], sizes = [128, 16], strides = [1, 1]} : vector<128x384xf32> to vector<128x16xf32>
    %12 = vector.shape_cast %11 : vector<128x16xf32> to vector<8x16x16xf32>
    %13 = arith.truncf %8 : vector<8x16x16xf32> to vector<8x16x16xbf16>
    %14 = arith.truncf %10 : vector<8x16x16xf32> to vector<8x16x16xbf16>
    %cst_7 = arith.constant dense<0.000000e+00> : vector<8x16x16xf32>
    %15 = tpu.matmul %13, %14, %cst_7 {dimension_numbers = #tpu.dot_dimension_numbers<[2], [2], [1], [1], [0, 0, 0, 1, 1, 1], [0], [0]>} : vector<8x16x16xbf16>, vector<8x16x16xbf16>, vector<8x16x16xf32> -> vector<8x16x16xf32>
    %cst_8 = arith.constant 2.500000e-01 : f32
    %16 = vector.broadcast %cst_8 : f32 to vector<8x16x16xf32>
    %17 = arith.mulf %15, %16 : vector<8x16x16xf32>
    %cst_9 = arith.constant dense<0xFF800000> : vector<8x16xf32>
    %18 = vector.multi_reduction <maximumf>, %17, %cst_9 [2] : vector<8x16x16xf32> to vector<8x16xf32>
    %19 = vector.shape_cast %18 : vector<8x16xf32> to vector<8x16x1xf32>
    %20 = vector.broadcast %19 : vector<8x16x1xf32> to vector<8x16x16xf32>
    %21 = arith.subf %17, %20 : vector<8x16x16xf32>
    %22 = math.exp %21 : vector<8x16x16xf32>
    %cst_10 = arith.constant dense<0.000000e+00> : vector<8x16xf32>
    %23 = vector.multi_reduction <add>, %22, %cst_10 [2] : vector<8x16x16xf32> to vector<8x16xf32>
    %24 = vector.shape_cast %23 : vector<8x16xf32> to vector<8x16x1xf32>
    %25 = tpu.reciprocal %24 {approx = true} : vector<8x16x1xf32> -> vector<8x16x1xf32>
    %26 = vector.broadcast %25 : vector<8x16x1xf32> to vector<8x16x16xf32>
    %27 = arith.mulf %22, %26 : vector<8x16x16xf32>
    %28 = arith.truncf %27 : vector<8x16x16xf32> to vector<8x16x16xbf16>
    %29 = arith.truncf %12 : vector<8x16x16xf32> to vector<8x16x16xbf16>
    %cst_11 = arith.constant dense<0.000000e+00> : vector<8x16x16xf32>
    %30 = tpu.matmul %28, %29, %cst_11 {dimension_numbers = #tpu.dot_dimension_numbers<[2], [1], [1], [2], [0, 0, 0, 1, 1, 2], [0], [0]>} : vector<8x16x16xbf16>, vector<8x16x16xbf16>, vector<8x16x16xf32> -> vector<8x16x16xf32>
    %31 = vector.shape_cast %30 : vector<8x16x16xf32> to vector<128x16xf32>
    %32 = arith.truncf %31 : vector<128x16xf32> to vector<128x16xbf16>
    %33 = vector.extract_strided_slice %4 {offsets = [0, 0], sizes = [16, 128], strides = [1, 1]} : vector<128x128xbf16> to vector<16x128xbf16>
    %cst_12 = arith.constant dense<0.000000e+00> : vector<128x128xf32>
    %34 = tpu.matmul %32, %33, %cst_12 {dimension_numbers = #tpu.dot_dimension_numbers<[1], [0], [0], [1], [0, 0, 1, 1], [], []>} : vector<128x16xbf16>, vector<16x128xbf16>, vector<128x128xf32> -> vector<128x128xf32>
    %35 = arith.addf %6, %34 : vector<128x128xf32>
    %36 = vector.extract_strided_slice %5 {offsets = [0, 16], sizes = [128, 16], strides = [1, 1]} : vector<128x384xf32> to vector<128x16xf32>
    %37 = vector.shape_cast %36 : vector<128x16xf32> to vector<8x16x16xf32>
    %38 = vector.extract_strided_slice %5 {offsets = [0, 144], sizes = [128, 16], strides = [1, 1]} : vector<128x384xf32> to vector<128x16xf32>
    %39 = vector.shape_cast %38 : vector<128x16xf32> to vector<8x16x16xf32>
    %40 = vector.extract_strided_slice %5 {offsets = [0, 272], sizes = [128, 16], strides = [1, 1]} : vector<128x384xf32> to vector<128x16xf32>
    %41 = vector.shape_cast %40 : vector<128x16xf32> to vector<8x16x16xf32>
    %42 = arith.truncf %37 : vector<8x16x16xf32> to vector<8x16x16xbf16>
    %43 = arith.truncf %39 : vector<8x16x16xf32> to vector<8x16x16xbf16>
    %cst_13 = arith.constant dense<0.000000e+00> : vector<8x16x16xf32>
    %44 = tpu.matmul %42, %43, %cst_13 {dimension_numbers = #tpu.dot_dimension_numbers<[2], [2], [1], [1], [0, 0, 0, 1, 1, 1], [0], [0]>} : vector<8x16x16xbf16>, vector<8x16x16xbf16>, vector<8x16x16xf32> -> vector<8x16x16xf32>
    %cst_14 = arith.constant 2.500000e-01 : f32
    %45 = vector.broadcast %cst_14 : f32 to vector<8x16x16xf32>
    %46 = arith.mulf %44, %45 : vector<8x16x16xf32>
    %cst_15 = arith.constant dense<0xFF800000> : vector<8x16xf32>
    %47 = vector.multi_reduction <maximumf>, %46, %cst_15 [2] : vector<8x16x16xf32> to vector<8x16xf32>
    %48 = vector.shape_cast %47 : vector<8x16xf32> to vector<8x16x1xf32>
    %49 = vector.broadcast %48 : vector<8x16x1xf32> to vector<8x16x16xf32>
    %50 = arith.subf %46, %49 : vector<8x16x16xf32>
    %51 = math.exp %50 : vector<8x16x16xf32>
    %cst_16 = arith.constant dense<0.000000e+00> : vector<8x16xf32>
    %52 = vector.multi_reduction <add>, %51, %cst_16 [2] : vector<8x16x16xf32> to vector<8x16xf32>
    %53 = vector.shape_cast %52 : vector<8x16xf32> to vector<8x16x1xf32>
    %54 = tpu.reciprocal %53 {approx = true} : vector<8x16x1xf32> -> vector<8x16x1xf32>
    %55 = vector.broadcast %54 : vector<8x16x1xf32> to vector<8x16x16xf32>
    %56 = arith.mulf %51, %55 : vector<8x16x16xf32>
    %57 = arith.truncf %56 : vector<8x16x16xf32> to vector<8x16x16xbf16>
    %58 = arith.truncf %41 : vector<8x16x16xf32> to vector<8x16x16xbf16>
    %cst_17 = arith.constant dense<0.000000e+00> : vector<8x16x16xf32>
    %59 = tpu.matmul %57, %58, %cst_17 {dimension_numbers = #tpu.dot_dimension_numbers<[2], [1], [1], [2], [0, 0, 0, 1, 1, 2], [0], [0]>} : vector<8x16x16xbf16>, vector<8x16x16xbf16>, vector<8x16x16xf32> -> vector<8x16x16xf32>
    %60 = vector.shape_cast %59 : vector<8x16x16xf32> to vector<128x16xf32>
    %61 = arith.truncf %60 : vector<128x16xf32> to vector<128x16xbf16>
    %62 = vector.extract_strided_slice %4 {offsets = [16, 0], sizes = [16, 128], strides = [1, 1]} : vector<128x128xbf16> to vector<16x128xbf16>
    %cst_18 = arith.constant dense<0.000000e+00> : vector<128x128xf32>
    %63 = tpu.matmul %61, %62, %cst_18 {dimension_numbers = #tpu.dot_dimension_numbers<[1], [0], [0], [1], [0, 0, 1, 1], [], []>} : vector<128x16xbf16>, vector<16x128xbf16>, vector<128x128xf32> -> vector<128x128xf32>
    %64 = arith.addf %35, %63 : vector<128x128xf32>
    %65 = vector.extract_strided_slice %5 {offsets = [0, 32], sizes = [128, 16], strides = [1, 1]} : vector<128x384xf32> to vector<128x16xf32>
    %66 = vector.shape_cast %65 : vector<128x16xf32> to vector<8x16x16xf32>
    %67 = vector.extract_strided_slice %5 {offsets = [0, 160], sizes = [128, 16], strides = [1, 1]} : vector<128x384xf32> to vector<128x16xf32>
    %68 = vector.shape_cast %67 : vector<128x16xf32> to vector<8x16x16xf32>
    %69 = vector.extract_strided_slice %5 {offsets = [0, 288], sizes = [128, 16], strides = [1, 1]} : vector<128x384xf32> to vector<128x16xf32>
    %70 = vector.shape_cast %69 : vector<128x16xf32> to vector<8x16x16xf32>
    %71 = arith.truncf %66 : vector<8x16x16xf32> to vector<8x16x16xbf16>
    %72 = arith.truncf %68 : vector<8x16x16xf32> to vector<8x16x16xbf16>
    %cst_19 = arith.constant dense<0.000000e+00> : vector<8x16x16xf32>
    %73 = tpu.matmul %71, %72, %cst_19 {dimension_numbers = #tpu.dot_dimension_numbers<[2], [2], [1], [1], [0, 0, 0, 1, 1, 1], [0], [0]>} : vector<8x16x16xbf16>, vector<8x16x16xbf16>, vector<8x16x16xf32> -> vector<8x16x16xf32>
    %cst_20 = arith.constant 2.500000e-01 : f32
    %74 = vector.broadcast %cst_20 : f32 to vector<8x16x16xf32>
    %75 = arith.mulf %73, %74 : vector<8x16x16xf32>
    %cst_21 = arith.constant dense<0xFF800000> : vector<8x16xf32>
    %76 = vector.multi_reduction <maximumf>, %75, %cst_21 [2] : vector<8x16x16xf32> to vector<8x16xf32>
    %77 = vector.shape_cast %76 : vector<8x16xf32> to vector<8x16x1xf32>
    %78 = vector.broadcast %77 : vector<8x16x1xf32> to vector<8x16x16xf32>
    %79 = arith.subf %75, %78 : vector<8x16x16xf32>
    %80 = math.exp %79 : vector<8x16x16xf32>
    %cst_22 = arith.constant dense<0.000000e+00> : vector<8x16xf32>
    %81 = vector.multi_reduction <add>, %80, %cst_22 [2] : vector<8x16x16xf32> to vector<8x16xf32>
    %82 = vector.shape_cast %81 : vector<8x16xf32> to vector<8x16x1xf32>
    %83 = tpu.reciprocal %82 {approx = true} : vector<8x16x1xf32> -> vector<8x16x1xf32>
    %84 = vector.broadcast %83 : vector<8x16x1xf32> to vector<8x16x16xf32>
    %85 = arith.mulf %80, %84 : vector<8x16x16xf32>
    %86 = arith.truncf %85 : vector<8x16x16xf32> to vector<8x16x16xbf16>
    %87 = arith.truncf %70 : vector<8x16x16xf32> to vector<8x16x16xbf16>
    %cst_23 = arith.constant dense<0.000000e+00> : vector<8x16x16xf32>
    %88 = tpu.matmul %86, %87, %cst_23 {dimension_numbers = #tpu.dot_dimension_numbers<[2], [1], [1], [2], [0, 0, 0, 1, 1, 2], [0], [0]>} : vector<8x16x16xbf16>, vector<8x16x16xbf16>, vector<8x16x16xf32> -> vector<8x16x16xf32>
    %89 = vector.shape_cast %88 : vector<8x16x16xf32> to vector<128x16xf32>
    %90 = arith.truncf %89 : vector<128x16xf32> to vector<128x16xbf16>
    %91 = vector.extract_strided_slice %4 {offsets = [32, 0], sizes = [16, 128], strides = [1, 1]} : vector<128x128xbf16> to vector<16x128xbf16>
    %cst_24 = arith.constant dense<0.000000e+00> : vector<128x128xf32>
    %92 = tpu.matmul %90, %91, %cst_24 {dimension_numbers = #tpu.dot_dimension_numbers<[1], [0], [0], [1], [0, 0, 1, 1], [], []>} : vector<128x16xbf16>, vector<16x128xbf16>, vector<128x128xf32> -> vector<128x128xf32>
    %93 = arith.addf %64, %92 : vector<128x128xf32>
    %94 = vector.extract_strided_slice %5 {offsets = [0, 48], sizes = [128, 16], strides = [1, 1]} : vector<128x384xf32> to vector<128x16xf32>
    %95 = vector.shape_cast %94 : vector<128x16xf32> to vector<8x16x16xf32>
    %96 = vector.extract_strided_slice %5 {offsets = [0, 176], sizes = [128, 16], strides = [1, 1]} : vector<128x384xf32> to vector<128x16xf32>
    %97 = vector.shape_cast %96 : vector<128x16xf32> to vector<8x16x16xf32>
    %98 = vector.extract_strided_slice %5 {offsets = [0, 304], sizes = [128, 16], strides = [1, 1]} : vector<128x384xf32> to vector<128x16xf32>
    %99 = vector.shape_cast %98 : vector<128x16xf32> to vector<8x16x16xf32>
    %100 = arith.truncf %95 : vector<8x16x16xf32> to vector<8x16x16xbf16>
    %101 = arith.truncf %97 : vector<8x16x16xf32> to vector<8x16x16xbf16>
    %cst_25 = arith.constant dense<0.000000e+00> : vector<8x16x16xf32>
    %102 = tpu.matmul %100, %101, %cst_25 {dimension_numbers = #tpu.dot_dimension_numbers<[2], [2], [1], [1], [0, 0, 0, 1, 1, 1], [0], [0]>} : vector<8x16x16xbf16>, vector<8x16x16xbf16>, vector<8x16x16xf32> -> vector<8x16x16xf32>
    %cst_26 = arith.constant 2.500000e-01 : f32
    %103 = vector.broadcast %cst_26 : f32 to vector<8x16x16xf32>
    %104 = arith.mulf %102, %103 : vector<8x16x16xf32>
    %cst_27 = arith.constant dense<0xFF800000> : vector<8x16xf32>
    %105 = vector.multi_reduction <maximumf>, %104, %cst_27 [2] : vector<8x16x16xf32> to vector<8x16xf32>
    %106 = vector.shape_cast %105 : vector<8x16xf32> to vector<8x16x1xf32>
    %107 = vector.broadcast %106 : vector<8x16x1xf32> to vector<8x16x16xf32>
    %108 = arith.subf %104, %107 : vector<8x16x16xf32>
    %109 = math.exp %108 : vector<8x16x16xf32>
    %cst_28 = arith.constant dense<0.000000e+00> : vector<8x16xf32>
    %110 = vector.multi_reduction <add>, %109, %cst_28 [2] : vector<8x16x16xf32> to vector<8x16xf32>
    %111 = vector.shape_cast %110 : vector<8x16xf32> to vector<8x16x1xf32>
    %112 = tpu.reciprocal %111 {approx = true} : vector<8x16x1xf32> -> vector<8x16x1xf32>
    %113 = vector.broadcast %112 : vector<8x16x1xf32> to vector<8x16x16xf32>
    %114 = arith.mulf %109, %113 : vector<8x16x16xf32>
    %115 = arith.truncf %114 : vector<8x16x16xf32> to vector<8x16x16xbf16>
    %116 = arith.truncf %99 : vector<8x16x16xf32> to vector<8x16x16xbf16>
    %cst_29 = arith.constant dense<0.000000e+00> : vector<8x16x16xf32>
    %117 = tpu.matmul %115, %116, %cst_29 {dimension_numbers = #tpu.dot_dimension_numbers<[2], [1], [1], [2], [0, 0, 0, 1, 1, 2], [0], [0]>} : vector<8x16x16xbf16>, vector<8x16x16xbf16>, vector<8x16x16xf32> -> vector<8x16x16xf32>
    %118 = vector.shape_cast %117 : vector<8x16x16xf32> to vector<128x16xf32>
    %119 = arith.truncf %118 : vector<128x16xf32> to vector<128x16xbf16>
    %120 = vector.extract_strided_slice %4 {offsets = [48, 0], sizes = [16, 128], strides = [1, 1]} : vector<128x128xbf16> to vector<16x128xbf16>
    %cst_30 = arith.constant dense<0.000000e+00> : vector<128x128xf32>
    %121 = tpu.matmul %119, %120, %cst_30 {dimension_numbers = #tpu.dot_dimension_numbers<[1], [0], [0], [1], [0, 0, 1, 1], [], []>} : vector<128x16xbf16>, vector<16x128xbf16>, vector<128x128xf32> -> vector<128x128xf32>
    %122 = arith.addf %93, %121 : vector<128x128xf32>
    %123 = vector.extract_strided_slice %5 {offsets = [0, 64], sizes = [128, 16], strides = [1, 1]} : vector<128x384xf32> to vector<128x16xf32>
    %124 = vector.shape_cast %123 : vector<128x16xf32> to vector<8x16x16xf32>
    %125 = vector.extract_strided_slice %5 {offsets = [0, 192], sizes = [128, 16], strides = [1, 1]} : vector<128x384xf32> to vector<128x16xf32>
    %126 = vector.shape_cast %125 : vector<128x16xf32> to vector<8x16x16xf32>
    %127 = vector.extract_strided_slice %5 {offsets = [0, 320], sizes = [128, 16], strides = [1, 1]} : vector<128x384xf32> to vector<128x16xf32>
    %128 = vector.shape_cast %127 : vector<128x16xf32> to vector<8x16x16xf32>
    %129 = arith.truncf %124 : vector<8x16x16xf32> to vector<8x16x16xbf16>
    %130 = arith.truncf %126 : vector<8x16x16xf32> to vector<8x16x16xbf16>
    %cst_31 = arith.constant dense<0.000000e+00> : vector<8x16x16xf32>
    %131 = tpu.matmul %129, %130, %cst_31 {dimension_numbers = #tpu.dot_dimension_numbers<[2], [2], [1], [1], [0, 0, 0, 1, 1, 1], [0], [0]>} : vector<8x16x16xbf16>, vector<8x16x16xbf16>, vector<8x16x16xf32> -> vector<8x16x16xf32>
    %cst_32 = arith.constant 2.500000e-01 : f32
    %132 = vector.broadcast %cst_32 : f32 to vector<8x16x16xf32>
    %133 = arith.mulf %131, %132 : vector<8x16x16xf32>
    %cst_33 = arith.constant dense<0xFF800000> : vector<8x16xf32>
    %134 = vector.multi_reduction <maximumf>, %133, %cst_33 [2] : vector<8x16x16xf32> to vector<8x16xf32>
    %135 = vector.shape_cast %134 : vector<8x16xf32> to vector<8x16x1xf32>
    %136 = vector.broadcast %135 : vector<8x16x1xf32> to vector<8x16x16xf32>
    %137 = arith.subf %133, %136 : vector<8x16x16xf32>
    %138 = math.exp %137 : vector<8x16x16xf32>
    %cst_34 = arith.constant dense<0.000000e+00> : vector<8x16xf32>
    %139 = vector.multi_reduction <add>, %138, %cst_34 [2] : vector<8x16x16xf32> to vector<8x16xf32>
    %140 = vector.shape_cast %139 : vector<8x16xf32> to vector<8x16x1xf32>
    %141 = tpu.reciprocal %140 {approx = true} : vector<8x16x1xf32> -> vector<8x16x1xf32>
    %142 = vector.broadcast %141 : vector<8x16x1xf32> to vector<8x16x16xf32>
    %143 = arith.mulf %138, %142 : vector<8x16x16xf32>
    %144 = arith.truncf %143 : vector<8x16x16xf32> to vector<8x16x16xbf16>
    %145 = arith.truncf %128 : vector<8x16x16xf32> to vector<8x16x16xbf16>
    %cst_35 = arith.constant dense<0.000000e+00> : vector<8x16x16xf32>
    %146 = tpu.matmul %144, %145, %cst_35 {dimension_numbers = #tpu.dot_dimension_numbers<[2], [1], [1], [2], [0, 0, 0, 1, 1, 2], [0], [0]>} : vector<8x16x16xbf16>, vector<8x16x16xbf16>, vector<8x16x16xf32> -> vector<8x16x16xf32>
    %147 = vector.shape_cast %146 : vector<8x16x16xf32> to vector<128x16xf32>
    %148 = arith.truncf %147 : vector<128x16xf32> to vector<128x16xbf16>
    %149 = vector.extract_strided_slice %4 {offsets = [64, 0], sizes = [16, 128], strides = [1, 1]} : vector<128x128xbf16> to vector<16x128xbf16>
    %cst_36 = arith.constant dense<0.000000e+00> : vector<128x128xf32>
    %150 = tpu.matmul %148, %149, %cst_36 {dimension_numbers = #tpu.dot_dimension_numbers<[1], [0], [0], [1], [0, 0, 1, 1], [], []>} : vector<128x16xbf16>, vector<16x128xbf16>, vector<128x128xf32> -> vector<128x128xf32>
    %151 = arith.addf %122, %150 : vector<128x128xf32>
    %152 = vector.extract_strided_slice %5 {offsets = [0, 80], sizes = [128, 16], strides = [1, 1]} : vector<128x384xf32> to vector<128x16xf32>
    %153 = vector.shape_cast %152 : vector<128x16xf32> to vector<8x16x16xf32>
    %154 = vector.extract_strided_slice %5 {offsets = [0, 208], sizes = [128, 16], strides = [1, 1]} : vector<128x384xf32> to vector<128x16xf32>
    %155 = vector.shape_cast %154 : vector<128x16xf32> to vector<8x16x16xf32>
    %156 = vector.extract_strided_slice %5 {offsets = [0, 336], sizes = [128, 16], strides = [1, 1]} : vector<128x384xf32> to vector<128x16xf32>
    %157 = vector.shape_cast %156 : vector<128x16xf32> to vector<8x16x16xf32>
    %158 = arith.truncf %153 : vector<8x16x16xf32> to vector<8x16x16xbf16>
    %159 = arith.truncf %155 : vector<8x16x16xf32> to vector<8x16x16xbf16>
    %cst_37 = arith.constant dense<0.000000e+00> : vector<8x16x16xf32>
    %160 = tpu.matmul %158, %159, %cst_37 {dimension_numbers = #tpu.dot_dimension_numbers<[2], [2], [1], [1], [0, 0, 0, 1, 1, 1], [0], [0]>} : vector<8x16x16xbf16>, vector<8x16x16xbf16>, vector<8x16x16xf32> -> vector<8x16x16xf32>
    %cst_38 = arith.constant 2.500000e-01 : f32
    %161 = vector.broadcast %cst_38 : f32 to vector<8x16x16xf32>
    %162 = arith.mulf %160, %161 : vector<8x16x16xf32>
    %cst_39 = arith.constant dense<0xFF800000> : vector<8x16xf32>
    %163 = vector.multi_reduction <maximumf>, %162, %cst_39 [2] : vector<8x16x16xf32> to vector<8x16xf32>
    %164 = vector.shape_cast %163 : vector<8x16xf32> to vector<8x16x1xf32>
    %165 = vector.broadcast %164 : vector<8x16x1xf32> to vector<8x16x16xf32>
    %166 = arith.subf %162, %165 : vector<8x16x16xf32>
    %167 = math.exp %166 : vector<8x16x16xf32>
    %cst_40 = arith.constant dense<0.000000e+00> : vector<8x16xf32>
    %168 = vector.multi_reduction <add>, %167, %cst_40 [2] : vector<8x16x16xf32> to vector<8x16xf32>
    %169 = vector.shape_cast %168 : vector<8x16xf32> to vector<8x16x1xf32>
    %170 = tpu.reciprocal %169 {approx = true} : vector<8x16x1xf32> -> vector<8x16x1xf32>
    %171 = vector.broadcast %170 : vector<8x16x1xf32> to vector<8x16x16xf32>
    %172 = arith.mulf %167, %171 : vector<8x16x16xf32>
    %173 = arith.truncf %172 : vector<8x16x16xf32> to vector<8x16x16xbf16>
    %174 = arith.truncf %157 : vector<8x16x16xf32> to vector<8x16x16xbf16>
    %cst_41 = arith.constant dense<0.000000e+00> : vector<8x16x16xf32>
    %175 = tpu.matmul %173, %174, %cst_41 {dimension_numbers = #tpu.dot_dimension_numbers<[2], [1], [1], [2], [0, 0, 0, 1, 1, 2], [0], [0]>} : vector<8x16x16xbf16>, vector<8x16x16xbf16>, vector<8x16x16xf32> -> vector<8x16x16xf32>
    %176 = vector.shape_cast %175 : vector<8x16x16xf32> to vector<128x16xf32>
    %177 = arith.truncf %176 : vector<128x16xf32> to vector<128x16xbf16>
    %178 = vector.extract_strided_slice %4 {offsets = [80, 0], sizes = [16, 128], strides = [1, 1]} : vector<128x128xbf16> to vector<16x128xbf16>
    %cst_42 = arith.constant dense<0.000000e+00> : vector<128x128xf32>
    %179 = tpu.matmul %177, %178, %cst_42 {dimension_numbers = #tpu.dot_dimension_numbers<[1], [0], [0], [1], [0, 0, 1, 1], [], []>} : vector<128x16xbf16>, vector<16x128xbf16>, vector<128x128xf32> -> vector<128x128xf32>
    %180 = arith.addf %151, %179 : vector<128x128xf32>
    %181 = vector.extract_strided_slice %5 {offsets = [0, 96], sizes = [128, 16], strides = [1, 1]} : vector<128x384xf32> to vector<128x16xf32>
    %182 = vector.shape_cast %181 : vector<128x16xf32> to vector<8x16x16xf32>
    %183 = vector.extract_strided_slice %5 {offsets = [0, 224], sizes = [128, 16], strides = [1, 1]} : vector<128x384xf32> to vector<128x16xf32>
    %184 = vector.shape_cast %183 : vector<128x16xf32> to vector<8x16x16xf32>
    %185 = vector.extract_strided_slice %5 {offsets = [0, 352], sizes = [128, 16], strides = [1, 1]} : vector<128x384xf32> to vector<128x16xf32>
    %186 = vector.shape_cast %185 : vector<128x16xf32> to vector<8x16x16xf32>
    %187 = arith.truncf %182 : vector<8x16x16xf32> to vector<8x16x16xbf16>
    %188 = arith.truncf %184 : vector<8x16x16xf32> to vector<8x16x16xbf16>
    %cst_43 = arith.constant dense<0.000000e+00> : vector<8x16x16xf32>
    %189 = tpu.matmul %187, %188, %cst_43 {dimension_numbers = #tpu.dot_dimension_numbers<[2], [2], [1], [1], [0, 0, 0, 1, 1, 1], [0], [0]>} : vector<8x16x16xbf16>, vector<8x16x16xbf16>, vector<8x16x16xf32> -> vector<8x16x16xf32>
    %cst_44 = arith.constant 2.500000e-01 : f32
    %190 = vector.broadcast %cst_44 : f32 to vector<8x16x16xf32>
    %191 = arith.mulf %189, %190 : vector<8x16x16xf32>
    %cst_45 = arith.constant dense<0xFF800000> : vector<8x16xf32>
    %192 = vector.multi_reduction <maximumf>, %191, %cst_45 [2] : vector<8x16x16xf32> to vector<8x16xf32>
    %193 = vector.shape_cast %192 : vector<8x16xf32> to vector<8x16x1xf32>
    %194 = vector.broadcast %193 : vector<8x16x1xf32> to vector<8x16x16xf32>
    %195 = arith.subf %191, %194 : vector<8x16x16xf32>
    %196 = math.exp %195 : vector<8x16x16xf32>
    %cst_46 = arith.constant dense<0.000000e+00> : vector<8x16xf32>
    %197 = vector.multi_reduction <add>, %196, %cst_46 [2] : vector<8x16x16xf32> to vector<8x16xf32>
    %198 = vector.shape_cast %197 : vector<8x16xf32> to vector<8x16x1xf32>
    %199 = tpu.reciprocal %198 {approx = true} : vector<8x16x1xf32> -> vector<8x16x1xf32>
    %200 = vector.broadcast %199 : vector<8x16x1xf32> to vector<8x16x16xf32>
    %201 = arith.mulf %196, %200 : vector<8x16x16xf32>
    %202 = arith.truncf %201 : vector<8x16x16xf32> to vector<8x16x16xbf16>
    %203 = arith.truncf %186 : vector<8x16x16xf32> to vector<8x16x16xbf16>
    %cst_47 = arith.constant dense<0.000000e+00> : vector<8x16x16xf32>
    %204 = tpu.matmul %202, %203, %cst_47 {dimension_numbers = #tpu.dot_dimension_numbers<[2], [1], [1], [2], [0, 0, 0, 1, 1, 2], [0], [0]>} : vector<8x16x16xbf16>, vector<8x16x16xbf16>, vector<8x16x16xf32> -> vector<8x16x16xf32>
    %205 = vector.shape_cast %204 : vector<8x16x16xf32> to vector<128x16xf32>
    %206 = arith.truncf %205 : vector<128x16xf32> to vector<128x16xbf16>
    %207 = vector.extract_strided_slice %4 {offsets = [96, 0], sizes = [16, 128], strides = [1, 1]} : vector<128x128xbf16> to vector<16x128xbf16>
    %cst_48 = arith.constant dense<0.000000e+00> : vector<128x128xf32>
    %208 = tpu.matmul %206, %207, %cst_48 {dimension_numbers = #tpu.dot_dimension_numbers<[1], [0], [0], [1], [0, 0, 1, 1], [], []>} : vector<128x16xbf16>, vector<16x128xbf16>, vector<128x128xf32> -> vector<128x128xf32>
    %209 = arith.addf %180, %208 : vector<128x128xf32>
    %210 = vector.extract_strided_slice %5 {offsets = [0, 112], sizes = [128, 16], strides = [1, 1]} : vector<128x384xf32> to vector<128x16xf32>
    %211 = vector.shape_cast %210 : vector<128x16xf32> to vector<8x16x16xf32>
    %212 = vector.extract_strided_slice %5 {offsets = [0, 240], sizes = [128, 16], strides = [1, 1]} : vector<128x384xf32> to vector<128x16xf32>
    %213 = vector.shape_cast %212 : vector<128x16xf32> to vector<8x16x16xf32>
    %214 = vector.extract_strided_slice %5 {offsets = [0, 368], sizes = [128, 16], strides = [1, 1]} : vector<128x384xf32> to vector<128x16xf32>
    %215 = vector.shape_cast %214 : vector<128x16xf32> to vector<8x16x16xf32>
    %216 = arith.truncf %211 : vector<8x16x16xf32> to vector<8x16x16xbf16>
    %217 = arith.truncf %213 : vector<8x16x16xf32> to vector<8x16x16xbf16>
    %cst_49 = arith.constant dense<0.000000e+00> : vector<8x16x16xf32>
    %218 = tpu.matmul %216, %217, %cst_49 {dimension_numbers = #tpu.dot_dimension_numbers<[2], [2], [1], [1], [0, 0, 0, 1, 1, 1], [0], [0]>} : vector<8x16x16xbf16>, vector<8x16x16xbf16>, vector<8x16x16xf32> -> vector<8x16x16xf32>
    %cst_50 = arith.constant 2.500000e-01 : f32
    %219 = vector.broadcast %cst_50 : f32 to vector<8x16x16xf32>
    %220 = arith.mulf %218, %219 : vector<8x16x16xf32>
    %cst_51 = arith.constant dense<0xFF800000> : vector<8x16xf32>
    %221 = vector.multi_reduction <maximumf>, %220, %cst_51 [2] : vector<8x16x16xf32> to vector<8x16xf32>
    %222 = vector.shape_cast %221 : vector<8x16xf32> to vector<8x16x1xf32>
    %223 = vector.broadcast %222 : vector<8x16x1xf32> to vector<8x16x16xf32>
    %224 = arith.subf %220, %223 : vector<8x16x16xf32>
    %225 = math.exp %224 : vector<8x16x16xf32>
    %cst_52 = arith.constant dense<0.000000e+00> : vector<8x16xf32>
    %226 = vector.multi_reduction <add>, %225, %cst_52 [2] : vector<8x16x16xf32> to vector<8x16xf32>
    %227 = vector.shape_cast %226 : vector<8x16xf32> to vector<8x16x1xf32>
    %228 = tpu.reciprocal %227 {approx = true} : vector<8x16x1xf32> -> vector<8x16x1xf32>
    %229 = vector.broadcast %228 : vector<8x16x1xf32> to vector<8x16x16xf32>
    %230 = arith.mulf %225, %229 : vector<8x16x16xf32>
    %231 = arith.truncf %230 : vector<8x16x16xf32> to vector<8x16x16xbf16>
    %232 = arith.truncf %215 : vector<8x16x16xf32> to vector<8x16x16xbf16>
    %cst_53 = arith.constant dense<0.000000e+00> : vector<8x16x16xf32>
    %233 = tpu.matmul %231, %232, %cst_53 {dimension_numbers = #tpu.dot_dimension_numbers<[2], [1], [1], [2], [0, 0, 0, 1, 1, 2], [0], [0]>} : vector<8x16x16xbf16>, vector<8x16x16xbf16>, vector<8x16x16xf32> -> vector<8x16x16xf32>
    %234 = vector.shape_cast %233 : vector<8x16x16xf32> to vector<128x16xf32>
    %235 = arith.truncf %234 : vector<128x16xf32> to vector<128x16xbf16>
    %236 = vector.extract_strided_slice %4 {offsets = [112, 0], sizes = [16, 128], strides = [1, 1]} : vector<128x128xbf16> to vector<16x128xbf16>
    %cst_54 = arith.constant dense<0.000000e+00> : vector<128x128xf32>
    %237 = tpu.matmul %235, %236, %cst_54 {dimension_numbers = #tpu.dot_dimension_numbers<[1], [0], [0], [1], [0, 0, 1, 1], [], []>} : vector<128x16xbf16>, vector<16x128xbf16>, vector<128x128xf32> -> vector<128x128xf32>
    %238 = arith.addf %209, %237 : vector<128x128xf32>
    %c0_55 = arith.constant 0 : index
    %c0_56 = arith.constant 0 : index
    %239 = vector.load %arg4[%c0_55, %c0_56] : memref<1x128xf32, #tpu.memory_space<vmem>>, vector<1x128xf32>
    %240 = vector.broadcast %239 : vector<1x128xf32> to vector<128x128xf32>
    %241 = arith.addf %238, %240 : vector<128x128xf32>
    %242 = vector.shape_cast %241 : vector<128x128xf32> to vector<8x16x128xf32>
    %c0_57 = arith.constant 0 : index
    %c0_58 = arith.constant 0 : index
    %c0_59 = arith.constant 0 : index
    %243 = vector.load %arg5[%c0_57, %c0_58, %c0_59] : memref<8x16x128xf32, #tpu.memory_space<vmem>>, vector<8x16x128xf32>
    tpu.vector_store %arg5[%c0_57, %c0_58, %c0_59], %242 {strides = array<i32>} : memref<8x16x128xf32, #tpu.memory_space<vmem>>, vector<8x16x128xf32>,
    return
  }
  func.func @transform_0(%arg0: i32) -> (i32, i32, i32) {
    %c0_i32 = arith.constant 0 : i32
    %c0_i32_0 = arith.constant 0 : i32
    %c0_i32_1 = arith.constant 0 : i32
    return %arg0, %c0_i32, %c0_i32_0 : i32, i32, i32
  }
  func.func @transform_1(%arg0: i32) -> (i32, i32) {
    %c0_i32 = arith.constant 0 : i32
    %c0_i32_0 = arith.constant 0 : i32
    %c0_i32_1 = arith.constant 0 : i32
    return %c0_i32, %c0_i32_0 : i32, i32
  }
  func.func @transform_2(%arg0: i32) -> (i32, i32) {
    %c0_i32 = arith.constant 0 : i32
    %c0_i32_0 = arith.constant 0 : i32
    %c0_i32_1 = arith.constant 0 : i32
    return %c0_i32, %c0_i32_0 : i32, i32
  }
  func.func @transform_3(%arg0: i32) -> (i32, i32) {
    %c0_i32 = arith.constant 0 : i32
    %c0_i32_0 = arith.constant 0 : i32
    %c0_i32_1 = arith.constant 0 : i32
    return %c0_i32, %c0_i32_0 : i32, i32
  }
  func.func @transform_4(%arg0: i32) -> (i32, i32, i32) {
    %c0_i32 = arith.constant 0 : i32
    %c0_i32_0 = arith.constant 0 : i32
    %c0_i32_1 = arith.constant 0 : i32
    return %arg0, %c0_i32, %c0_i32_0 : i32, i32, i32
  }
}

</mosaic_0001>

<llo_original>
// kernel: attention_forward.1
$region0: #{attention_forward.1}
  #allocation0 [shape = 'u32[]', space=smem, size = 0x4, offset = 0x4, fixed_abs, tag = 'smem constant byte address 0x4 - core index']
  #allocation1 [shape = 'u32[144,128]{1,0:T(1,128)}', space=vmem, size = 0x12000, scoped, tag = 'internal scratch']
  %s0 = inlined_call_operand.vmem [shape: f32[16,16,128], index: 0, kind: input, shape index: {}]
  %s1 = inlined_call_operand.vmem [shape: bf16[128,384], index: 1, kind: input, shape index: {}]
  %s2 = inlined_call_operand.vmem [shape: bf16[128,128], index: 2, kind: input, shape index: {}]
  %s3 = inlined_call_operand.vmem [shape: f32[1,128], index: 3, kind: input, shape index: {}]
  %s4 = inlined_call_operand.hbm [shape: f32[16,16,128], index: 4, kind: output, shape index: {}]
  %s5 = sld [smem:[#allocation0]]
  $region49: #{attention_forward.1} parent=0
    _
  %s7 = ssub.s32 1, %s5
  %s8 = scalar_select 0, %s7, %s5
  $region1: #{attention_forward.1} parent=0
    #allocation2 [shape = 'u8[131072]{0}', space=vmem, size = 0x20000, scoped, tag = 'output window, operand 0']
    #allocation3 [shape = 's32[2]{0}', space=sflag, size = 0x8, scoped, tag = 'scoped memory for attention_forward.1']
    %9 = vsyncpa [#allocation3], 0
    %s10 = scalar_lea.sflag [#allocation3], 1
    %11 = vsyncpa %s10, 0
    loop: start=0, step=1, limit=4
    $region2: #{attention_forward.1} parent=1 // loop_pre_header
      _
    $region3: #{attention_forward.1} parent=1 // loop_header
      %s13 = sphi 0, %s17
      %p14 = scmp.ge.s32.totalorder %s13, 4
      %s23 = sphi 0, %s25
      %s26 = sphi 0, %s23
      %s27 = sphi 0, %s26
      %s43 = sphi 0, %s27
      %s47 = sphi 0, %s47
      %s49 = sphi 0, %s47
      %s50 = sphi 0, %s49
      %s64 = sphi 0, %s50
      %s68 = sphi 0, %s68
      %s70 = sphi 0, %s68
      %s71 = sphi 0, %s70
      %s85 = sphi 0, %s71
      %s89 = sphi 0, %s89
      %s91 = sphi 0, %s89
      %s92 = sphi 0, %s91
      %s106 = sphi 0, %s92
      %s112 = sphi 0, %s114
      %s115 = sphi 0, %s112
      %s116 = sphi 0, %s115
      %s132 = sphi 0, %s116
    $region4: #{attention_forward.1} parent=1 // loop_header_branch
      %16 = sbr.rel (%p14) target = $region8
    $region5: #{attention_forward.1} parent=1 // loop_body
      %s18 = ssub.s32 %s13, 1
      %s19 = ssub.s32 %s13, 2
      %s20 = sadd.s32 %s13, 1
      %s21 = ssub.s32 %s13, %s20
      %p22 = scmp.eq.s32.totalorder %s21, 0
      %s24 = sadd.s32 %s23, 1
      %s25 = scalar_select %p22, %s23, %s24
      %p28 = pneg %p22
      %p29 = scmp.eq.s32.totalorder %s13, 1
      %p30 = por %p28, %p29
      %p31 = scmp.ne.s32.totalorder %s23, %s26
      %p32 = scmp.eq.s32.totalorder %s13, 0
      %p33 = por %p31, %p32
      %p34 = scmp.ne.s32.totalorder %s23, %s26
      %p35 = scmp.eq.s32.totalorder %s18, 1
      %p36 = por %p34, %p35
      %p37 = scmp.ne.s32.totalorder %s26, %s27
      %p38 = scmp.eq.s32.totalorder %s18, 0
      %p39 = por %p37, %p38
      %p40 = scmp.ne.s32.totalorder %s26, %s27
      %p41 = scmp.eq.s32.totalorder %s19, 1
      %p42 = por %p40, %p41
      %p44 = scmp.ne.s32.totalorder %s27, %s43
      %p45 = scmp.eq.s32.totalorder %s19, 0
      %p46 = por %p44, %p45
      %s48 = sadd.s32 %s47, 1
      %p51 = scmp.eq.s32.totalorder %s13, 1
      %p52 = scmp.ne.s32.totalorder %s47, %s49
      %p53 = scmp.eq.s32.totalorder %s13, 0
      %p54 = por %p52, %p53
      %p55 = scmp.ne.s32.totalorder %s47, %s49
      %p56 = scmp.eq.s32.totalorder %s18, 1
      %p57 = por %p55, %p56
      %p58 = scmp.ne.s32.totalorder %s49, %s50
      %p59 = scmp.eq.s32.totalorder %s18, 0
      %p60 = por %p58, %p59
      %p61 = scmp.ne.s32.totalorder %s49, %s50
      %p62 = scmp.eq.s32.totalorder %s19, 1
      %p63 = por %p61, %p62
      %p65 = scmp.ne.s32.totalorder %s50, %s64
      %p66 = scmp.eq.s32.totalorder %s19, 0
      %p67 = por %p65, %p66
      %s69 = sadd.s32 %s68, 1
      %p72 = scmp.eq.s32.totalorder %s13, 1
      %p73 = scmp.ne.s32.totalorder %s68, %s70
      %p74 = scmp.eq.s32.totalorder %s13, 0
      %p75 = por %p73, %p74
      %p76 = scmp.ne.s32.totalorder %s68, %s70
      %p77 = scmp.eq.s32.totalorder %s18, 1
      %p78 = por %p76, %p77
      %p79 = scmp.ne.s32.totalorder %s70, %s71
      %p80 = scmp.eq.s32.totalorder %s18, 0
      %p81 = por %p79, %p80
      %p82 = scmp.ne.s32.totalorder %s70, %s71
      %p83 = scmp.eq.s32.totalorder %s19, 1
      %p84 = por %p82, %p83
      %p86 = scmp.ne.s32.totalorder %s71, %s85
      %p87 = scmp.eq.s32.totalorder %s19, 0
      %p88 = por %p86, %p87
      %s90 = sadd.s32 %s89, 1
      %p93 = scmp.eq.s32.totalorder %s13, 1
      %p94 = scmp.ne.s32.totalorder %s89, %s91
      %p95 = scmp.eq.s32.totalorder %s13, 0
      %p96 = por %p94, %p95
      %p97 = scmp.ne.s32.totalorder %s89, %s91
      %p98 = scmp.eq.s32.totalorder %s18, 1
      %p99 = por %p97, %p98
      %p100 = scmp.ne.s32.totalorder %s91, %s92
      %p101 = scmp.eq.s32.totalorder %s18, 0
      %p102 = por %p100, %p101
      %p103 = scmp.ne.s32.totalorder %s91, %s92
      %p104 = scmp.eq.s32.totalorder %s19, 1
      %p105 = por %p103, %p104
      %p107 = scmp.ne.s32.totalorder %s92, %s106
      %p108 = scmp.eq.s32.totalorder %s19, 0
      %p109 = por %p107, %p108
      %s110 = ssub.s32 %s13, %s20
      %p111 = scmp.eq.s32.totalorder %s110, 0
      %s113 = sadd.s32 %s112, 1
      %s114 = scalar_select %p111, %s112, %s113
      %p117 = pneg %p111
      %p118 = scmp.eq.s32.totalorder %s13, 1
      %p119 = por %p117, %p118
      %p120 = scmp.ne.s32.totalorder %s112, %s115
      %p121 = scmp.eq.s32.totalorder %s13, 0
      %p122 = por %p120, %p121
      %p123 = scmp.ne.s32.totalorder %s112, %s115
      %p124 = scmp.eq.s32.totalorder %s18, 1
      %p125 = por %p123, %p124
      %p126 = scmp.ne.s32.totalorder %s115, %s116
      %p127 = scmp.eq.s32.totalorder %s18, 0
      %p128 = por %p126, %p127
      %p129 = scmp.ne.s32.totalorder %s115, %s116
      %p130 = scmp.eq.s32.totalorder %s19, 1
      %p131 = por %p129, %p130
      %p133 = scmp.ne.s32.totalorder %s116, %s132
      %p134 = scmp.eq.s32.totalorder %s19, 0
      %p135 = por %p133, %p134
      %p136 = scmp.le.s32.totalorder 1, %s13
      %p137 = scmp.lt.s32.totalorder %s13, 3
      %p138 = pnand %p136, %p137
      %p139 = pneg %p138
      // Predicated region
      $region9: #{attention_forward.1} parent=5 // pred_check
        _
      $region10: #{attention_forward.1} parent=5 // pred_check_branch
        %141 = sbr.rel (%p138) target = $region12
      $region11: #{attention_forward.1} parent=5 // pred_region
        %s142 = ssub.s32 %s13, 1
        // Predicated region
        $region13: #{attention_forward.1} parent=11 // pred_check
          %p143 = pneg %p60
        $region14: #{attention_forward.1} parent=11 // pred_check_branch
          %145 = sbr.rel (%p143) target = $region16
        $region15: #{attention_forward.1} parent=11 // pred_region
          _
        $region16: #{attention_forward.1} parent=11 // pred_fallthru
          _
        // Predicated region
        $region17: #{attention_forward.1} parent=11 // pred_check
          %p146 = pneg %p81
        $region18: #{attention_forward.1} parent=11 // pred_check_branch
          %148 = sbr.rel (%p146) target = $region20
        $region19: #{attention_forward.1} parent=11 // pred_region
          _
        $region20: #{attention_forward.1} parent=11 // pred_fallthru
          _
        // Predicated region
        $region21: #{attention_forward.1} parent=11 // pred_check
          %p149 = pneg %p102
        $region22: #{attention_forward.1} parent=11 // pred_check_branch
          %151 = sbr.rel (%p149) target = $region24
        $region23: #{attention_forward.1} parent=11 // pred_region
          _
        $region24: #{attention_forward.1} parent=11 // pred_fallthru
          _
      $region12: #{attention_forward.1} parent=5 // pred_fallthru
        _
      %p152 = scmp.lt.s32.totalorder %s13, 2
      // Predicated region
      $region25: #{attention_forward.1} parent=5 // pred_check
        %p153 = pneg %p152
      $region26: #{attention_forward.1} parent=5 // pred_check_branch
        %155 = sbr.rel (%p153) target = $region28
      $region27: #{attention_forward.1} parent=5 // pred_region
        // Predicated region
        $region29: #{attention_forward.1} parent=27 // pred_check
          %p156 = pneg %p33
        $region30: #{attention_forward.1} parent=27 // pred_check_branch
          %158 = sbr.rel (%p156) target = $region32
        $region31: #{attention_forward.1} parent=27 // pred_region
          %s159 = smul.u32 8, %s13
          %p160 = scmp.lt.s32.totalorder %s159, 15
          %s161 = scalar_select %p160, %s159, 15
          %s162 = smul.addr %s161, 2
          %s163 = smul.addr %s162, 8
          %s164 = scalar_lea.vmem %s0, %s163
          %s165 = smul.u32 8, %s13
        $region32: #{attention_forward.1} parent=27 // pred_fallthru
          _
      $region28: #{attention_forward.1} parent=5 // pred_fallthru
        _
      %p166 = scmp.le.s32.totalorder 1, %s13
      %p167 = scmp.lt.s32.totalorder %s13, 3
      %p168 = pnand %p166, %p167
      %p169 = pneg %p168
      // Predicated region
      $region33: #{attention_forward.1} parent=5 // pred_check
        _
      $region34: #{attention_forward.1} parent=5 // pred_check_branch
        %171 = sbr.rel (%p168) target = $region36
      $region35: #{attention_forward.1} parent=5 // pred_region
        %s172 = ssub.s32 %s13, 1
        %s173 = smul.u32 8, %s18
        %p174 = scmp.lt.s32.totalorder %s173, 15
        %s175 = scalar_select %p174, %s173, 15
        %s176 = smul.addr %s175, 2
        %s177 = smul.addr %s176, 8
        %s178 = scalar_lea.vmem %s0, %s177
        %p179 = pneg %p39
        %p180 = pneg %p36
        %p181 = pneg %p60
        %p182 = pneg %p57
        %p183 = pneg %p81
        %p184 = pneg %p78
        %p185 = pneg %p102
        %p186 = pneg %p99
        %p187 = pneg %p128
        %p188 = pneg %p125
        %s189 = sand.u32 %s115, 1
        %s190 = scalar_lea.sflag [#allocation3], %s189
        %s191 = sand.u32 %s115, 1
        %s192 = smul.addr %s191, 128
        %s193 = scalar_lea.vmem [#allocation2], %s192
        %s194 = smul.u32 8, %s18
        %p195 = scmp.lt.s32.totalorder %s194, 15
        %s196 = scalar_select %p195, %s194, 15
        %s197 = smul.addr %s196, 2
        %s198 = smul.addr %s197, 8
        %s199 = scalar_lea.vmem %s0, %s198
        %s200 = smul.u32 8, %s18
        %s201 = smul.u32 8, %s18
        %v203 = vld [vmem:[%s199] sm:$0xff]
        %v204 = vld [vmem:[%s199 + $0x8] sm:$0xff]
        %v205 = vld [vmem:[%s199 + $0x10] sm:$0xff]
        %v206 = vld [vmem:[%s199 + $0x18] sm:$0xff]
        %v207 = vld [vmem:[%s199 + $0x20] sm:$0xff]
        %v208 = vld [vmem:[%s199 + $0x28] sm:$0xff]
        %v209 = vld [vmem:[%s199 + $0x30] sm:$0xff]
        %v210 = vld [vmem:[%s199 + $0x38] sm:$0xff]
        %v211 = vld [vmem:[%s199 + $0x40] sm:$0xff]
        %v212 = vld [vmem:[%s199 + $0x48] sm:$0xff]
        %v213 = vld [vmem:[%s199 + $0x50] sm:$0xff]
        %v214 = vld [vmem:[%s199 + $0x58] sm:$0xff]
        %v215 = vld [vmem:[%s199 + $0x60] sm:$0xff]
        %v216 = vld [vmem:[%s199 + $0x68] sm:$0xff]
        %v217 = vld [vmem:[%s199 + $0x70] sm:$0xff]
        %v218 = vld [vmem:[%s199 + $0x78] sm:$0xff]
        %v219 = vpack.c.bf16 %v204, %v203
        %v220 = vpack.c.bf16 %v206, %v205
        %v221 = vpack.c.bf16 %v208, %v207
        %v222 = vpack.c.bf16 %v210, %v209
        %v223 = vpack.c.bf16 %v212, %v211
        %v224 = vpack.c.bf16 %v214, %v213
        %v225 = vpack.c.bf16 %v216, %v215
        %v226 = vpack.c.bf16 %v218, %v217
        %v227 = vld [vmem:[%s1] sm:$0xff]
        %v228 = vld [vmem:[%s1 + $0x8] sm:$0xf]
        %v229 = vld [vmem:[%s1 + $0xc] sm:$0xff]
        %v230 = vld [vmem:[%s1 + $0x14] sm:$0xf]
        %v231 = vld [vmem:[%s1 + $0x18] sm:$0xff]
        %v232 = vld [vmem:[%s1 + $0x20] sm:$0xf]
        %v233 = vld [vmem:[%s1 + $0x24] sm:$0xff]
        %v234 = vld [vmem:[%s1 + $0x2c] sm:$0xf]
        %v235 = vld [vmem:[%s1 + $0x30] sm:$0xff]
        %v236 = vld [vmem:[%s1 + $0x38] sm:$0xf]
        %v237 = vld [vmem:[%s1 + $0x3c] sm:$0xff]
        %v238 = vld [vmem:[%s1 + $0x44] sm:$0xf]
        %v239 = vld [vmem:[%s1 + $0x48] sm:$0xff]
        %v240 = vld [vmem:[%s1 + $0x50] sm:$0xf]
        %v241 = vld [vmem:[%s1 + $0x54] sm:$0xff]
        %v242 = vld [vmem:[%s1 + $0x5c] sm:$0xf]
        %v243 = vld [vmem:[%s1 + $0x60] sm:$0xff]
        %v244 = vld [vmem:[%s1 + $0x68] sm:$0xf]
        %v245 = vld [vmem:[%s1 + $0x6c] sm:$0xff]
        %v246 = vld [vmem:[%s1 + $0x74] sm:$0xf]
        %v247 = vld [vmem:[%s1 + $0x78] sm:$0xff]
        %v248 = vld [vmem:[%s1 + $0x80] sm:$0xf]
        %v249 = vld [vmem:[%s1 + $0x84] sm:$0xff]
        %v250 = vld [vmem:[%s1 + $0x8c] sm:$0xf]
        %v251 = vld [vmem:[%s1 + $0x90] sm:$0xff]
        %v252 = vld [vmem:[%s1 + $0x98] sm:$0xf]
        %v253 = vld [vmem:[%s1 + $0x9c] sm:$0xff]
        %v254 = vld [vmem:[%s1 + $0xa4] sm:$0xf]
        %v255 = vld [vmem:[%s1 + $0xa8] sm:$0xff]
        %v256 = vld [vmem:[%s1 + $0xb0] sm:$0xf]
        %v257 = vld [vmem:[%s1 + $0xb4] sm:$0xff]
        %v258 = vld [vmem:[%s1 + $0xbc] sm:$0xf]
        %v259 = vld [vmem:[%s2] sm:$0xf]
        %v260 = vld [vmem:[%s2 + $0x4] sm:$0xf]
        %v261 = vld [vmem:[%s2 + $0x8] sm:$0xf]
        %v262 = vld [vmem:[%s2 + $0xc] sm:$0xf]
        %v263 = vld [vmem:[%s2 + $0x10] sm:$0xf]
        %v264 = vld [vmem:[%s2 + $0x14] sm:$0xf]
        %v265 = vld [vmem:[%s2 + $0x18] sm:$0xf]
        %v266 = vld [vmem:[%s2 + $0x1c] sm:$0xf]
        %v267 = vld [vmem:[%s2 + $0x20] sm:$0xf]
        %v268 = vld [vmem:[%s2 + $0x24] sm:$0xf]
        %v269 = vld [vmem:[%s2 + $0x28] sm:$0xf]
        %v270 = vld [vmem:[%s2 + $0x2c] sm:$0xf]
        %v271 = vld [vmem:[%s2 + $0x30] sm:$0xf]
        %v272 = vld [vmem:[%s2 + $0x34] sm:$0xf]
        %v273 = vld [vmem:[%s2 + $0x38] sm:$0xf]
        %v274 = vld [vmem:[%s2 + $0x3c] sm:$0xf]
        %v307 = vunpack.c.l.b16 %v227
        %v308 = vunpack.c.h.b16 %v227
        %v309 = vunpack.c.l.b16 %v228
        %v310 = vunpack.c.l.b16 %v229
        %v311 = vunpack.c.h.b16 %v229
        %v312 = vunpack.c.l.b16 %v230
        %v313 = vunpack.c.l.b16 %v231
        %v314 = vunpack.c.h.b16 %v231
        %v315 = vunpack.c.l.b16 %v232
        %v316 = vunpack.c.l.b16 %v233
        %v317 = vunpack.c.h.b16 %v233
        %v318 = vunpack.c.l.b16 %v234
        %v319 = vunpack.c.l.b16 %v235
        %v320 = vunpack.c.h.b16 %v235
        %v321 = vunpack.c.l.b16 %v236
        %v322 = vunpack.c.l.b16 %v237
        %v323 = vunpack.c.h.b16 %v237
        %v324 = vunpack.c.l.b16 %v238
        %v325 = vunpack.c.l.b16 %v239
        %v326 = vunpack.c.h.b16 %v239
        %v327 = vunpack.c.l.b16 %v240
        %v328 = vunpack.c.l.b16 %v241
        %v329 = vunpack.c.h.b16 %v241
        %v330 = vunpack.c.l.b16 %v242
        %v331 = vunpack.c.l.b16 %v243
        %v332 = vunpack.c.h.b16 %v243
        %v333 = vunpack.c.l.b16 %v244
        %v334 = vunpack.c.l.b16 %v245
        %v335 = vunpack.c.h.b16 %v245
        %v336 = vunpack.c.l.b16 %v246
        %v337 = vunpack.c.l.b16 %v247
        %v338 = vunpack.c.h.b16 %v247
        %v339 = vunpack.c.l.b16 %v248
        %v340 = vunpack.c.l.b16 %v249
        %v341 = vunpack.c.h.b16 %v249
        %v342 = vunpack.c.l.b16 %v250
        %v343 = vunpack.c.l.b16 %v251
        %v344 = vunpack.c.h.b16 %v251
        %v345 = vunpack.c.l.b16 %v252
        %v346 = vunpack.c.l.b16 %v253
        %v347 = vunpack.c.h.b16 %v253
        %v348 = vunpack.c.l.b16 %v254
        %v349 = vunpack.c.l.b16 %v255
        %v350 = vunpack.c.h.b16 %v255
        %v351 = vunpack.c.l.b16 %v256
        %v352 = vunpack.c.l.b16 %v257
        %v353 = vunpack.c.h.b16 %v257
        %v354 = vunpack.c.l.b16 %v258
        %v355 = vpack.c.b16 %v310, %v307
        %v356 = vpack.c.b16 %v311, %v308
        %v357 = vpack.c.b16 %v312, %v309
        %v358 = vpack.c.b16 %v316, %v313
        %v359 = vpack.c.b16 %v317, %v314
        %v360 = vpack.c.b16 %v318, %v315
        %v361 = vpack.c.b16 %v322, %v319
        %v362 = vpack.c.b16 %v323, %v320
        %v363 = vpack.c.b16 %v324, %v321
        %v364 = vpack.c.b16 %v328, %v325
        %v365 = vpack.c.b16 %v329, %v326
        %v366 = vpack.c.b16 %v330, %v327
        %v367 = vpack.c.b16 %v334, %v331
        %v368 = vpack.c.b16 %v335, %v332
        %v369 = vpack.c.b16 %v336, %v333
        %v370 = vpack.c.b16 %v340, %v337
        %v371 = vpack.c.b16 %v341, %v338
        %v372 = vpack.c.b16 %v342, %v339
        %v373 = vpack.c.b16 %v346, %v343
        %v374 = vpack.c.b16 %v347, %v344
        %v375 = vpack.c.b16 %v348, %v345
        %v376 = vpack.c.b16 %v352, %v349
        %v377 = vpack.c.b16 %v353, %v350
        %v378 = vpack.c.b16 %v354, %v351
        %403 = vmatprep.subr.bf16.mxu0 %v377
        %404 = vmatpush1.bf16.msra.mxu0 %v376
        %405 = vmatprep.subr.bf16.mxu0 %v374
        %406 = vmatpush1.bf16.msra.mxu0 %v373
        %407 = vmatprep.subr.bf16.mxu0 %v371
        %408 = vmatpush1.bf16.msra.mxu0 %v370
        %409 = vmatprep.subr.bf16.mxu0 %v368
        %410 = vmatpush1.bf16.msra.mxu0 %v367
        %411 = vmatprep.subr.bf16.mxu0 %v365
        %412 = vmatpush1.bf16.msra.mxu0 %v364
        %413 = vmatprep.subr.bf16.mxu0 %v362
        %414 = vmatpush1.bf16.msra.mxu0 %v361
        %415 = vmatprep.subr.bf16.mxu0 %v359
        %416 = vmatpush1.bf16.msra.mxu0 %v358
        %417 = vmatprep.subr.bf16.mxu0 %v356
        %418 = vmatpush1.bf16.msra.mxu0 %v355
        %419 = vmatprep.subr.bf16.mxu0 0
        %420 = vmatpush2.bf16.msra.mxu0 0
        %421 = vmatprep.subr.bf16.mxu0 0
        %422 = vmatpush2.bf16.msra.mxu0 0
        %423 = vmatprep.subr.bf16.mxu0 0
        %424 = vmatpush2.bf16.msra.mxu0 0
        %425 = vmatprep.subr.bf16.mxu0 0
        %426 = vmatpush2.bf16.msra.mxu0 0
        %427 = vmatprep.subr.bf16.mxu0 0
        %428 = vmatpush2.bf16.msra.mxu0 0
        %429 = vmatprep.subr.bf16.mxu0 0
        %430 = vmatpush2.bf16.msra.mxu0 0
        %431 = vmatprep.subr.bf16.mxu0 0
        %432 = vmatpush2.bf16.msra.mxu0 0
        %433 = vmatprep.subr.bf16.mxu0 0
        %434 = vmatpush2.bf16.msra.mxu0 0
        %435 = vmatprep.mubr.bf16.mxu0 0
        %436 = vmatmul.mubr.bf16.gmra.mxu0 %v219
        %v437 = vpop.f32.mrf.mxu0
        %v438 = vadd.f32 0.0, %v437
        %v439 = vpop.f32.mrf.mxu0
        %v440 = vadd.f32 0.0, %v439
        %v441 = vpop.f32.mrf.mxu0
        %v442 = vadd.f32 0.0, %v441
        %v443 = vpop.f32.mrf.mxu0
        %v444 = vadd.f32 0.0, %v443
        %445 = vmatprep.mubr.bf16.mxu0 0
        %446 = vmatmul.mubr.bf16.gmra.mxu0 %v220
        %v447 = vpop.f32.mrf.mxu0
        %v448 = vadd.f32 0.0, %v447
        %v449 = vpop.f32.mrf.mxu0
        %v450 = vadd.f32 0.0, %v449
        %v451 = vpop.f32.mrf.mxu0
        %v452 = vadd.f32 0.0, %v451
        %v453 = vpop.f32.mrf.mxu0
        %v454 = vadd.f32 0.0, %v453
        %455 = vmatprep.mubr.bf16.mxu0 0
        %456 = vmatmul.mubr.bf16.gmra.mxu0 %v221
        %v457 = vpop.f32.mrf.mxu0
        %v458 = vadd.f32 0.0, %v457
        %v459 = vpop.f32.mrf.mxu0
        %v460 = vadd.f32 0.0, %v459
        %v461 = vpop.f32.mrf.mxu0
        %v462 = vadd.f32 0.0, %v461
        %v463 = vpop.f32.mrf.mxu0
        %v464 = vadd.f32 0.0, %v463
        %465 = vmatprep.mubr.bf16.mxu0 0
        %466 = vmatmul.mubr.bf16.gmra.mxu0 %v222
        %v467 = vpop.f32.mrf.mxu0
        %v468 = vadd.f32 0.0, %v467
        %v469 = vpop.f32.mrf.mxu0
        %v470 = vadd.f32 0.0, %v469
        %v471 = vpop.f32.mrf.mxu0
        %v472 = vadd.f32 0.0, %v471
        %v473 = vpop.f32.mrf.mxu0
        %v474 = vadd.f32 0.0, %v473
        %475 = vmatprep.mubr.bf16.mxu0 0
        %476 = vmatmul.mubr.bf16.gmra.mxu0 %v223
        %v477 = vpop.f32.mrf.mxu0
        %v478 = vadd.f32 0.0, %v477
        %v479 = vpop.f32.mrf.mxu0
        %v480 = vadd.f32 0.0, %v479
        %v481 = vpop.f32.mrf.mxu0
        %v482 = vadd.f32 0.0, %v481
        %v483 = vpop.f32.mrf.mxu0
        %v484 = vadd.f32 0.0, %v483
        %485 = vmatprep.mubr.bf16.mxu0 0
        %486 = vmatmul.mubr.bf16.gmra.mxu0 %v224
        %v487 = vpop.f32.mrf.mxu0
        %v488 = vadd.f32 0.0, %v487
        %v489 = vpop.f32.mrf.mxu0
        %v490 = vadd.f32 0.0, %v489
        %v491 = vpop.f32.mrf.mxu0
        %v492 = vadd.f32 0.0, %v491
        %v493 = vpop.f32.mrf.mxu0
        %v494 = vadd.f32 0.0, %v493
        %495 = vmatprep.mubr.bf16.mxu0 0
        %496 = vmatmul.mubr.bf16.gmra.mxu0 %v225
        %v497 = vpop.f32.mrf.mxu0
        %v498 = vadd.f32 0.0, %v497
        %v499 = vpop.f32.mrf.mxu0
        %v500 = vadd.f32 0.0, %v499
        %v501 = vpop.f32.mrf.mxu0
        %v502 = vadd.f32 0.0, %v501
        %v503 = vpop.f32.mrf.mxu0
        %v504 = vadd.f32 0.0, %v503
        %505 = vmatprep.mubr.bf16.mxu0 0
        %506 = vmatmul.mubr.bf16.gmra.mxu0 %v226
        %v507 = vpop.f32.mrf.mxu0
        %v508 = vadd.f32 0.0, %v507
        %v509 = vpop.f32.mrf.mxu0
        %v510 = vadd.f32 0.0, %v509
        %v511 = vpop.f32.mrf.mxu0
        %v512 = vadd.f32 0.0, %v511
        %v513 = vpop.f32.mrf.mxu0
        %v514 = vadd.f32 0.0, %v513
        %515 = vdwg.mxu0
        %516 = vmatprep.subr.bf16.mxu0 0
        %517 = vmatpush1.bf16.msra.mxu0 %v378
        %518 = vmatprep.subr.bf16.mxu0 0
        %519 = vmatpush1.bf16.msra.mxu0 %v375
        %520 = vmatprep.subr.bf16.mxu0 0
        %521 = vmatpush1.bf16.msra.mxu0 %v372
        %522 = vmatprep.subr.bf16.mxu0 0
        %523 = vmatpush1.bf16.msra.mxu0 %v369
        %524 = vmatprep.subr.bf16.mxu0 0
        %525 = vmatpush1.bf16.msra.mxu0 %v366
        %526 = vmatprep.subr.bf16.mxu0 0
        %527 = vmatpush1.bf16.msra.mxu0 %v363
        %528 = vmatprep.subr.bf16.mxu0 0
        %529 = vmatpush1.bf16.msra.mxu0 %v360
        %530 = vmatprep.subr.bf16.mxu0 0
        %531 = vmatpush1.bf16.msra.mxu0 %v357
        %532 = vmatprep.subr.bf16.mxu0 0
        %533 = vmatpush2.bf16.msra.mxu0 0
        %534 = vmatprep.subr.bf16.mxu0 0
        %535 = vmatpush2.bf16.msra.mxu0 0
        %536 = vmatprep.subr.bf16.mxu0 0
        %537 = vmatpush2.bf16.msra.mxu0 0
        %538 = vmatprep.subr.bf16.mxu0 0
        %539 = vmatpush2.bf16.msra.mxu0 0
        %540 = vmatprep.subr.bf16.mxu0 0
        %541 = vmatpush2.bf16.msra.mxu0 0
        %542 = vmatprep.subr.bf16.mxu0 0
        %543 = vmatpush2.bf16.msra.mxu0 0
        %544 = vmatprep.subr.bf16.mxu0 0
        %545 = vmatpush2.bf16.msra.mxu0 0
        %546 = vmatprep.subr.bf16.mxu0 0
        %547 = vmatpush2.bf16.msra.mxu0 0
        %548 = vmatprep.mubr.bf16.mxu0 0
        %549 = vmatmul.mubr.bf16.gmra.mxu0 %v219
        %v550 = vpop.f32.mrf.mxu0
        %v551 = vadd.f32 0.0, %v550
        %v552 = vpop.f32.mrf.mxu0
        %v553 = vpop.f32.mrf.mxu0
        %v554 = vadd.f32 0.0, %v553
        %v555 = vpop.f32.mrf.mxu0
        %556 = vmatprep.mubr.bf16.mxu0 0
        %557 = vmatmul.mubr.bf16.gmra.mxu0 %v220
        %v558 = vpop.f32.mrf.mxu0
        %v559 = vadd.f32 0.0, %v558
        %v560 = vpop.f32.mrf.mxu0
        %v561 = vpop.f32.mrf.mxu0
        %v562 = vadd.f32 0.0, %v561
        %v563 = vpop.f32.mrf.mxu0
        %564 = vmatprep.mubr.bf16.mxu0 0
        %565 = vmatmul.mubr.bf16.gmra.mxu0 %v221
        %v566 = vpop.f32.mrf.mxu0
        %v567 = vadd.f32 0.0, %v566
        %v568 = vpop.f32.mrf.mxu0
        %v569 = vpop.f32.mrf.mxu0
        %v570 = vadd.f32 0.0, %v569
        %v571 = vpop.f32.mrf.mxu0
        %572 = vmatprep.mubr.bf16.mxu0 0
        %573 = vmatmul.mubr.bf16.gmra.mxu0 %v222
        %v574 = vpop.f32.mrf.mxu0
        %v575 = vadd.f32 0.0, %v574
        %v576 = vpop.f32.mrf.mxu0
        %v577 = vpop.f32.mrf.mxu0
        %v578 = vadd.f32 0.0, %v577
        %v579 = vpop.f32.mrf.mxu0
        %580 = vmatprep.mubr.bf16.mxu0 0
        %581 = vmatmul.mubr.bf16.gmra.mxu0 %v223
        %v582 = vpop.f32.mrf.mxu0
        %v583 = vadd.f32 0.0, %v582
        %v584 = vpop.f32.mrf.mxu0
        %v585 = vpop.f32.mrf.mxu0
        %v586 = vadd.f32 0.0, %v585
        %v587 = vpop.f32.mrf.mxu0
        %588 = vmatprep.mubr.bf16.mxu0 0
        %589 = vmatmul.mubr.bf16.gmra.mxu0 %v224
        %v590 = vpop.f32.mrf.mxu0
        %v591 = vadd.f32 0.0, %v590
        %v592 = vpop.f32.mrf.mxu0
        %v593 = vpop.f32.mrf.mxu0
        %v594 = vadd.f32 0.0, %v593
        %v595 = vpop.f32.mrf.mxu0
        %596 = vmatprep.mubr.bf16.mxu0 0
        %597 = vmatmul.mubr.bf16.gmra.mxu0 %v225
        %v598 = vpop.f32.mrf.mxu0
        %v599 = vadd.f32 0.0, %v598
        %v600 = vpop.f32.mrf.mxu0
        %v601 = vpop.f32.mrf.mxu0
        %v602 = vadd.f32 0.0, %v601
        %v603 = vpop.f32.mrf.mxu0
        %604 = vmatprep.mubr.bf16.mxu0 0
        %605 = vmatmul.mubr.bf16.gmra.mxu0 %v226
        %v606 = vpop.f32.mrf.mxu0
        %v607 = vadd.f32 0.0, %v606
        %v608 = vpop.f32.mrf.mxu0
        %v609 = vpop.f32.mrf.mxu0
        %v610 = vadd.f32 0.0, %v609
        %v611 = vpop.f32.mrf.mxu0
        %612 = vdwg.mxu0
        %v613 = vpack.c.bf16 %v442, %v438
        %v614 = vpack.c.bf16 %v452, %v448
        %v615 = vpack.c.bf16 %v462, %v458
        %v616 = vpack.c.bf16 %v472, %v468
        %v617 = vpack.c.bf16 %v482, %v478
        %v618 = vpack.c.bf16 %v492, %v488
        %v619 = vpack.c.bf16 %v502, %v498
        %v620 = vpack.c.bf16 %v512, %v508
        %v621 = vpack.c.bf16 %v444, %v440
        %v622 = vpack.c.bf16 %v454, %v450
        %v623 = vpack.c.bf16 %v464, %v460
        %v624 = vpack.c.bf16 %v474, %v470
        %v625 = vpack.c.bf16 %v484, %v480
        %v626 = vpack.c.bf16 %v494, %v490
        %v627 = vpack.c.bf16 %v504, %v500
        %v628 = vpack.c.bf16 %v514, %v510
        %vm629 = vcmask 130048
        %v631 = vsel %vm629, %v613, 0
        %v634 = vsel %vm629, %v621, 0
        %636 = vmatprep.subr.bf16.mxu0 0
        %637 = vmatpush1.bf16.xpose.msra.mxu0 0
        %638 = vmatprep.subr.bf16.mxu0 0
        %639 = vmatpush1.bf16.xpose.msra.mxu0 0
        %640 = vmatprep.subr.bf16.mxu0 0
        %641 = vmatpush1.bf16.xpose.msra.mxu0 0
        %642 = vmatprep.subr.bf16.mxu0 0
        %643 = vmatpush1.bf16.xpose.msra.mxu0 0
        %644 = vmatprep.subr.bf16.mxu0 0
        %645 = vmatpush1.bf16.xpose.msra.mxu0 0
        %646 = vmatprep.subr.bf16.mxu0 0
        %647 = vmatpush1.bf16.xpose.msra.mxu0 0
        %648 = vmatprep.subr.bf16.mxu0 0
        %649 = vmatpush1.bf16.xpose.msra.mxu0 0
        %650 = vmatprep.subr.bf16.mxu0 0
        %651 = vmatpush1.bf16.xpose.msra.mxu0 %v634
        %652 = vmatprep.subr.bf16.mxu0 0
        %653 = vmatpush2.bf16.xpose.msra.mxu0 0
        %654 = vmatprep.subr.bf16.mxu0 0
        %655 = vmatpush2.bf16.xpose.msra.mxu0 0
        %656 = vmatprep.subr.bf16.mxu0 0
        %657 = vmatpush2.bf16.xpose.msra.mxu0 0
        %658 = vmatprep.subr.bf16.mxu0 0
        %659 = vmatpush2.bf16.xpose.msra.mxu0 0
        %660 = vmatprep.subr.bf16.mxu0 0
        %661 = vmatpush2.bf16.xpose.msra.mxu0 0
        %662 = vmatprep.subr.bf16.mxu0 0
        %663 = vmatpush2.bf16.xpose.msra.mxu0 0
        %664 = vmatprep.subr.bf16.mxu0 0
        %665 = vmatpush2.bf16.xpose.msra.mxu0 0
        %666 = vmatprep.subr.bf16.mxu0 0
        %667 = vmatpush2.bf16.xpose.msra.mxu0 0
        %668 = vmatprep.mubr.bf16.mxu0 0
        %669 = vmatmul.mubr.bf16.gmra.mxu0 %v631
        %v670 = vpop.f32.mrf.mxu0
        %v671 = vadd.f32 0.0, %v670
        %v672 = vpop.f32.mrf.mxu0
        %v673 = vpop.f32.mrf.mxu0
        %v674 = vadd.f32 0.0, %v673
        %v675 = vpop.f32.mrf.mxu0
        %676 = vdwg.mxu0
        %v678 = vsel %vm629, %v614, 0
        %v681 = vsel %vm629, %v622, 0
        %683 = vmatprep.subr.bf16.mxu0 0
        %684 = vmatpush1.bf16.xpose.msra.mxu0 0
        %685 = vmatprep.subr.bf16.mxu0 0
        %686 = vmatpush1.bf16.xpose.msra.mxu0 0
        %687 = vmatprep.subr.bf16.mxu0 0
        %688 = vmatpush1.bf16.xpose.msra.mxu0 0
        %689 = vmatprep.subr.bf16.mxu0 0
        %690 = vmatpush1.bf16.xpose.msra.mxu0 0
        %691 = vmatprep.subr.bf16.mxu0 0
        %692 = vmatpush1.bf16.xpose.msra.mxu0 0
        %693 = vmatprep.subr.bf16.mxu0 0
        %694 = vmatpush1.bf16.xpose.msra.mxu0 0
        %695 = vmatprep.subr.bf16.mxu0 0
        %696 = vmatpush1.bf16.xpose.msra.mxu0 0
        %697 = vmatprep.subr.bf16.mxu0 0
        %698 = vmatpush1.bf16.xpose.msra.mxu0 %v681
        %699 = vmatprep.subr.bf16.mxu0 0
        %700 = vmatpush2.bf16.xpose.msra.mxu0 0
        %701 = vmatprep.subr.bf16.mxu0 0
        %702 = vmatpush2.bf16.xpose.msra.mxu0 0
        %703 = vmatprep.subr.bf16.mxu0 0
        %704 = vmatpush2.bf16.xpose.msra.mxu0 0
        %705 = vmatprep.subr.bf16.mxu0 0
        %706 = vmatpush2.bf16.xpose.msra.mxu0 0
        %707 = vmatprep.subr.bf16.mxu0 0
        %708 = vmatpush2.bf16.xpose.msra.mxu0 0
        %709 = vmatprep.subr.bf16.mxu0 0
        %710 = vmatpush2.bf16.xpose.msra.mxu0 0
        %711 = vmatprep.subr.bf16.mxu0 0
        %712 = vmatpush2.bf16.xpose.msra.mxu0 0
        %713 = vmatprep.subr.bf16.mxu0 0
        %714 = vmatpush2.bf16.xpose.msra.mxu0 0
        %715 = vmatprep.mubr.bf16.mxu0 0
        %716 = vmatmul.mubr.bf16.gmra.mxu0 %v678
        %v717 = vpop.f32.mrf.mxu0
        %v718 = vadd.f32 0.0, %v717
        %v719 = vpop.f32.mrf.mxu0
        %v720 = vpop.f32.mrf.mxu0
        %v721 = vadd.f32 0.0, %v720
        %v722 = vpop.f32.mrf.mxu0
        %723 = vdwg.mxu0
        %v725 = vsel %vm629, %v615, 0
        %v728 = vsel %vm629, %v623, 0
        %730 = vmatprep.subr.bf16.mxu0 0
        %731 = vmatpush1.bf16.xpose.msra.mxu0 0
        %732 = vmatprep.subr.bf16.mxu0 0
        %733 = vmatpush1.bf16.xpose.msra.mxu0 0
        %734 = vmatprep.subr.bf16.mxu0 0
        %735 = vmatpush1.bf16.xpose.msra.mxu0 0
        %736 = vmatprep.subr.bf16.mxu0 0
        %737 = vmatpush1.bf16.xpose.msra.mxu0 0
        %738 = vmatprep.subr.bf16.mxu0 0
        %739 = vmatpush1.bf16.xpose.msra.mxu0 0
        %740 = vmatprep.subr.bf16.mxu0 0
        %741 = vmatpush1.bf16.xpose.msra.mxu0 0
        %742 = vmatprep.subr.bf16.mxu0 0
        %743 = vmatpush1.bf16.xpose.msra.mxu0 0
        %744 = vmatprep.subr.bf16.mxu0 0
        %745 = vmatpush1.bf16.xpose.msra.mxu0 %v728
        %746 = vmatprep.subr.bf16.mxu0 0
        %747 = vmatpush2.bf16.xpose.msra.mxu0 0
        %748 = vmatprep.subr.bf16.mxu0 0
        %749 = vmatpush2.bf16.xpose.msra.mxu0 0
        %750 = vmatprep.subr.bf16.mxu0 0
        %751 = vmatpush2.bf16.xpose.msra.mxu0 0
        %752 = vmatprep.subr.bf16.mxu0 0
        %753 = vmatpush2.bf16.xpose.msra.mxu0 0
        %754 = vmatprep.subr.bf16.mxu0 0
        %755 = vmatpush2.bf16.xpose.msra.mxu0 0
        %756 = vmatprep.subr.bf16.mxu0 0
        %757 = vmatpush2.bf16.xpose.msra.mxu0 0
        %758 = vmatprep.subr.bf16.mxu0 0
        %759 = vmatpush2.bf16.xpose.msra.mxu0 0
        %760 = vmatprep.subr.bf16.mxu0 0
        %761 = vmatpush2.bf16.xpose.msra.mxu0 0
        %762 = vmatprep.mubr.bf16.mxu0 0
        %763 = vmatmul.mubr.bf16.gmra.mxu0 %v725
        %v764 = vpop.f32.mrf.mxu0
        %v765 = vadd.f32 0.0, %v764
        %v766 = vpop.f32.mrf.mxu0
        %v767 = vpop.f32.mrf.mxu0
        %v768 = vadd.f32 0.0, %v767
        %v769 = vpop.f32.mrf.mxu0
        %770 = vdwg.mxu0
        %v772 = vsel %vm629, %v616, 0
        %v775 = vsel %vm629, %v624, 0
        %777 = vmatprep.subr.bf16.mxu0 0
        %778 = vmatpush1.bf16.xpose.msra.mxu0 0
        %779 = vmatprep.subr.bf16.mxu0 0
        %780 = vmatpush1.bf16.xpose.msra.mxu0 0
        %781 = vmatprep.subr.bf16.mxu0 0
        %782 = vmatpush1.bf16.xpose.msra.mxu0 0
        %783 = vmatprep.subr.bf16.mxu0 0
        %784 = vmatpush1.bf16.xpose.msra.mxu0 0
        %785 = vmatprep.subr.bf16.mxu0 0
        %786 = vmatpush1.bf16.xpose.msra.mxu0 0
        %787 = vmatprep.subr.bf16.mxu0 0
        %788 = vmatpush1.bf16.xpose.msra.mxu0 0
        %789 = vmatprep.subr.bf16.mxu0 0
        %790 = vmatpush1.bf16.xpose.msra.mxu0 0
        %791 = vmatprep.subr.bf16.mxu0 0
        %792 = vmatpush1.bf16.xpose.msra.mxu0 %v775
        %793 = vmatprep.subr.bf16.mxu0 0
        %794 = vmatpush2.bf16.xpose.msra.mxu0 0
        %795 = vmatprep.subr.bf16.mxu0 0
        %796 = vmatpush2.bf16.xpose.msra.mxu0 0
        %797 = vmatprep.subr.bf16.mxu0 0
        %798 = vmatpush2.bf16.xpose.msra.mxu0 0
        %799 = vmatprep.subr.bf16.mxu0 0
        %800 = vmatpush2.bf16.xpose.msra.mxu0 0
        %801 = vmatprep.subr.bf16.mxu0 0
        %802 = vmatpush2.bf16.xpose.msra.mxu0 0
        %803 = vmatprep.subr.bf16.mxu0 0
        %804 = vmatpush2.bf16.xpose.msra.mxu0 0
        %805 = vmatprep.subr.bf16.mxu0 0
        %806 = vmatpush2.bf16.xpose.msra.mxu0 0
        %807 = vmatprep.subr.bf16.mxu0 0
        %808 = vmatpush2.bf16.xpose.msra.mxu0 0
        %809 = vmatprep.mubr.bf16.mxu0 0
        %810 = vmatmul.mubr.bf16.gmra.mxu0 %v772
        %v811 = vpop.f32.mrf.mxu0
        %v812 = vadd.f32 0.0, %v811
        %v813 = vpop.f32.mrf.mxu0
        %v814 = vpop.f32.mrf.mxu0
        %v815 = vadd.f32 0.0, %v814
        %v816 = vpop.f32.mrf.mxu0
        %817 = vdwg.mxu0
        %v819 = vsel %vm629, %v617, 0
        %v822 = vsel %vm629, %v625, 0
        %824 = vmatprep.subr.bf16.mxu0 0
        %825 = vmatpush1.bf16.xpose.msra.mxu0 0
        %826 = vmatprep.subr.bf16.mxu0 0
        %827 = vmatpush1.bf16.xpose.msra.mxu0 0
        %828 = vmatprep.subr.bf16.mxu0 0
        %829 = vmatpush1.bf16.xpose.msra.mxu0 0
        %830 = vmatprep.subr.bf16.mxu0 0
        %831 = vmatpush1.bf16.xpose.msra.mxu0 0
        %832 = vmatprep.subr.bf16.mxu0 0
        %833 = vmatpush1.bf16.xpose.msra.mxu0 0
        %834 = vmatprep.subr.bf16.mxu0 0
        %835 = vmatpush1.bf16.xpose.msra.mxu0 0
        %836 = vmatprep.subr.bf16.mxu0 0
        %837 = vmatpush1.bf16.xpose.msra.mxu0 0
        %838 = vmatprep.subr.bf16.mxu0 0
        %839 = vmatpush1.bf16.xpose.msra.mxu0 %v822
        %840 = vmatprep.subr.bf16.mxu0 0
        %841 = vmatpush2.bf16.xpose.msra.mxu0 0
        %842 = vmatprep.subr.bf16.mxu0 0
        %843 = vmatpush2.bf16.xpose.msra.mxu0 0
        %844 = vmatprep.subr.bf16.mxu0 0
        %845 = vmatpush2.bf16.xpose.msra.mxu0 0
        %846 = vmatprep.subr.bf16.mxu0 0
        %847 = vmatpush2.bf16.xpose.msra.mxu0 0
        %848 = vmatprep.subr.bf16.mxu0 0
        %849 = vmatpush2.bf16.xpose.msra.mxu0 0
        %850 = vmatprep.subr.bf16.mxu0 0
        %851 = vmatpush2.bf16.xpose.msra.mxu0 0
        %852 = vmatprep.subr.bf16.mxu0 0
        %853 = vmatpush2.bf16.xpose.msra.mxu0 0
        %854 = vmatprep.subr.bf16.mxu0 0
        %855 = vmatpush2.bf16.xpose.msra.mxu0 0
        %856 = vmatprep.mubr.bf16.mxu0 0
        %857 = vmatmul.mubr.bf16.gmra.mxu0 %v819
        %v858 = vpop.f32.mrf.mxu0
        %v859 = vadd.f32 0.0, %v858
        %v860 = vpop.f32.mrf.mxu0
        %v861 = vpop.f32.mrf.mxu0
        %v862 = vadd.f32 0.0, %v861
        %v863 = vpop.f32.mrf.mxu0
        %864 = vdwg.mxu0
        %v866 = vsel %vm629, %v618, 0
        %v869 = vsel %vm629, %v626, 0
        %871 = vmatprep.subr.bf16.mxu0 0
        %872 = vmatpush1.bf16.xpose.msra.mxu0 0
        %873 = vmatprep.subr.bf16.mxu0 0
        %874 = vmatpush1.bf16.xpose.msra.mxu0 0
        %875 = vmatprep.subr.bf16.mxu0 0
        %876 = vmatpush1.bf16.xpose.msra.mxu0 0
        %877 = vmatprep.subr.bf16.mxu0 0
        %878 = vmatpush1.bf16.xpose.msra.mxu0 0
        %879 = vmatprep.subr.bf16.mxu0 0
        %880 = vmatpush1.bf16.xpose.msra.mxu0 0
        %881 = vmatprep.subr.bf16.mxu0 0
        %882 = vmatpush1.bf16.xpose.msra.mxu0 0
        %883 = vmatprep.subr.bf16.mxu0 0
        %884 = vmatpush1.bf16.xpose.msra.mxu0 0
        %885 = vmatprep.subr.bf16.mxu0 0
        %886 = vmatpush1.bf16.xpose.msra.mxu0 %v869
        %887 = vmatprep.subr.bf16.mxu0 0
        %888 = vmatpush2.bf16.xpose.msra.mxu0 0
        %889 = vmatprep.subr.bf16.mxu0 0
        %890 = vmatpush2.bf16.xpose.msra.mxu0 0
        %891 = vmatprep.subr.bf16.mxu0 0
        %892 = vmatpush2.bf16.xpose.msra.mxu0 0
        %893 = vmatprep.subr.bf16.mxu0 0
        %894 = vmatpush2.bf16.xpose.msra.mxu0 0
        %895 = vmatprep.subr.bf16.mxu0 0
        %896 = vmatpush2.bf16.xpose.msra.mxu0 0
        %897 = vmatprep.subr.bf16.mxu0 0
        %898 = vmatpush2.bf16.xpose.msra.mxu0 0
        %899 = vmatprep.subr.bf16.mxu0 0
        %900 = vmatpush2.bf16.xpose.msra.mxu0 0
        %901 = vmatprep.subr.bf16.mxu0 0
        %902 = vmatpush2.bf16.xpose.msra.mxu0 0
        %903 = vmatprep.mubr.bf16.mxu0 0
        %904 = vmatmul.mubr.bf16.gmra.mxu0 %v866
        %v905 = vpop.f32.mrf.mxu0
        %v906 = vadd.f32 0.0, %v905
        %v907 = vpop.f32.mrf.mxu0
        %v908 = vpop.f32.mrf.mxu0
        %v909 = vadd.f32 0.0, %v908
        %v910 = vpop.f32.mrf.mxu0
        %911 = vdwg.mxu0
        %v913 = vsel %vm629, %v619, 0
        %v916 = vsel %vm629, %v627, 0
        %918 = vmatprep.subr.bf16.mxu0 0
        %919 = vmatpush1.bf16.xpose.msra.mxu0 0
        %920 = vmatprep.subr.bf16.mxu0 0
        %921 = vmatpush1.bf16.xpose.msra.mxu0 0
        %922 = vmatprep.subr.bf16.mxu0 0
        %923 = vmatpush1.bf16.xpose.msra.mxu0 0
        %924 = vmatprep.subr.bf16.mxu0 0
        %925 = vmatpush1.bf16.xpose.msra.mxu0 0
        %926 = vmatprep.subr.bf16.mxu0 0
        %927 = vmatpush1.bf16.xpose.msra.mxu0 0
        %928 = vmatprep.subr.bf16.mxu0 0
        %929 = vmatpush1.bf16.xpose.msra.mxu0 0
        %930 = vmatprep.subr.bf16.mxu0 0
        %931 = vmatpush1.bf16.xpose.msra.mxu0 0
        %932 = vmatprep.subr.bf16.mxu0 0
        %933 = vmatpush1.bf16.xpose.msra.mxu0 %v916
        %934 = vmatprep.subr.bf16.mxu0 0
        %935 = vmatpush2.bf16.xpose.msra.mxu0 0
        %936 = vmatprep.subr.bf16.mxu0 0
        %937 = vmatpush2.bf16.xpose.msra.mxu0 0
        %938 = vmatprep.subr.bf16.mxu0 0
        %939 = vmatpush2.bf16.xpose.msra.mxu0 0
        %940 = vmatprep.subr.bf16.mxu0 0
        %941 = vmatpush2.bf16.xpose.msra.mxu0 0
        %942 = vmatprep.subr.bf16.mxu0 0
        %943 = vmatpush2.bf16.xpose.msra.mxu0 0
        %944 = vmatprep.subr.bf16.mxu0 0
        %945 = vmatpush2.bf16.xpose.msra.mxu0 0
        %946 = vmatprep.subr.bf16.mxu0 0
        %947 = vmatpush2.bf16.xpose.msra.mxu0 0
        %948 = vmatprep.subr.bf16.mxu0 0
        %949 = vmatpush2.bf16.xpose.msra.mxu0 0
        %950 = vmatprep.mubr.bf16.mxu0 0
        %951 = vmatmul.mubr.bf16.gmra.mxu0 %v913
        %v952 = vpop.f32.mrf.mxu0
        %v953 = vadd.f32 0.0, %v952
        %v954 = vpop.f32.mrf.mxu0
        %v955 = vpop.f32.mrf.mxu0
        %v956 = vadd.f32 0.0, %v955
        %v957 = vpop.f32.mrf.mxu0
        %958 = vdwg.mxu0
        %v960 = vsel %vm629, %v620, 0
        %v963 = vsel %vm629, %v628, 0
        %965 = vmatprep.subr.bf16.mxu0 0
        %966 = vmatpush1.bf16.xpose.msra.mxu0 0
        %967 = vmatprep.subr.bf16.mxu0 0
        %968 = vmatpush1.bf16.xpose.msra.mxu0 0
        %969 = vmatprep.subr.bf16.mxu0 0
        %970 = vmatpush1.bf16.xpose.msra.mxu0 0
        %971 = vmatprep.subr.bf16.mxu0 0
        %972 = vmatpush1.bf16.xpose.msra.mxu0 0
        %973 = vmatprep.subr.bf16.mxu0 0
        %974 = vmatpush1.bf16.xpose.msra.mxu0 0
        %975 = vmatprep.subr.bf16.mxu0 0
        %976 = vmatpush1.bf16.xpose.msra.mxu0 0
        %977 = vmatprep.subr.bf16.mxu0 0
        %978 = vmatpush1.bf16.xpose.msra.mxu0 0
        %979 = vmatprep.subr.bf16.mxu0 0
        %980 = vmatpush1.bf16.xpose.msra.mxu0 %v963
        %981 = vmatprep.subr.bf16.mxu0 0
        %982 = vmatpush2.bf16.xpose.msra.mxu0 0
        %983 = vmatprep.subr.bf16.mxu0 0
        %984 = vmatpush2.bf16.xpose.msra.mxu0 0
        %985 = vmatprep.subr.bf16.mxu0 0
        %986 = vmatpush2.bf16.xpose.msra.mxu0 0
        %987 = vmatprep.subr.bf16.mxu0 0
        %988 = vmatpush2.bf16.xpose.msra.mxu0 0
        %989 = vmatprep.subr.bf16.mxu0 0
        %990 = vmatpush2.bf16.xpose.msra.mxu0 0
        %991 = vmatprep.subr.bf16.mxu0 0
        %992 = vmatpush2.bf16.xpose.msra.mxu0 0
        %993 = vmatprep.subr.bf16.mxu0 0
        %994 = vmatpush2.bf16.xpose.msra.mxu0 0
        %995 = vmatprep.subr.bf16.mxu0 0
        %996 = vmatpush2.bf16.xpose.msra.mxu0 0
        %997 = vmatprep.mubr.bf16.mxu0 0
        %998 = vmatmul.mubr.bf16.gmra.mxu0 %v960
        %v999 = vpop.f32.mrf.mxu0
        %v1000 = vadd.f32 0.0, %v999
        %v1001 = vpop.f32.mrf.mxu0
        %v1002 = vpop.f32.mrf.mxu0
        %v1003 = vadd.f32 0.0, %v1002
        %v1004 = vpop.f32.mrf.mxu0
        %1005 = vdwg.mxu0
        %v1006 = vmul.f32 %v671, 0.25
        %v1007 = vmul.f32 %v674, 0.25
        %v1008 = vmul.f32 %v718, 0.25
        %v1009 = vmul.f32 %v721, 0.25
        %v1010 = vmul.f32 %v765, 0.25
        %v1011 = vmul.f32 %v768, 0.25
        %v1012 = vmul.f32 %v812, 0.25
        %v1013 = vmul.f32 %v815, 0.25
        %v1014 = vmul.f32 %v859, 0.25
        %v1015 = vmul.f32 %v862, 0.25
        %v1016 = vmul.f32 %v906, 0.25
        %v1017 = vmul.f32 %v909, 0.25
        %v1018 = vmul.f32 %v953, 0.25
        %v1019 = vmul.f32 %v956, 0.25
        %v1020 = vmul.f32 %v1000, 0.25
        %v1021 = vmul.f32 %v1003, 0.25
        %v1022 = vsel %vm629, %v1006, -inf
        %1023 = vmax.xlane.f32.xlu0 %v1022
        %v1024 = vpop.xlane.xlu0 %1023
        %v1025 = vsel %vm629, %v1007, -inf
        %1026 = vmax.xlane.f32.xlu0 %v1025
        %v1027 = vpop.xlane.xlu0 %1026
        %v1028 = vsel %vm629, %v1008, -inf
        %1029 = vmax.xlane.f32.xlu0 %v1028
        %v1030 = vpop.xlane.xlu0 %1029
        %v1031 = vsel %vm629, %v1009, -inf
        %1032 = vmax.xlane.f32.xlu0 %v1031
        %v1033 = vpop.xlane.xlu0 %1032
        %v1034 = vsel %vm629, %v1010, -inf
        %1035 = vmax.xlane.f32.xlu0 %v1034
        %v1036 = vpop.xlane.xlu0 %1035
        %v1037 = vsel %vm629, %v1011, -inf
        %1038 = vmax.xlane.f32.xlu0 %v1037
        %v1039 = vpop.xlane.xlu0 %1038
        %v1040 = vsel %vm629, %v1012, -inf
        %1041 = vmax.xlane.f32.xlu0 %v1040
        %v1042 = vpop.xlane.xlu0 %1041
        %v1043 = vsel %vm629, %v1013, -inf
        %1044 = vmax.xlane.f32.xlu0 %v1043
        %v1045 = vpop.xlane.xlu0 %1044
        %v1046 = vsel %vm629, %v1014, -inf
        %1047 = vmax.xlane.f32.xlu0 %v1046
        %v1048 = vpop.xlane.xlu0 %1047
        %v1049 = vsel %vm629, %v1015, -inf
        %1050 = vmax.xlane.f32.xlu0 %v1049
        %v1051 = vpop.xlane.xlu0 %1050
        %v1052 = vsel %vm629, %v1016, -inf
        %1053 = vmax.xlane.f32.xlu0 %v1052
        %v1054 = vpop.xlane.xlu0 %1053
        %v1055 = vsel %vm629, %v1017, -inf
        %1056 = vmax.xlane.f32.xlu0 %v1055
        %v1057 = vpop.xlane.xlu0 %1056
        %v1058 = vsel %vm629, %v1018, -inf
        %1059 = vmax.xlane.f32.xlu0 %v1058
        %v1060 = vpop.xlane.xlu0 %1059
        %v1061 = vsel %vm629, %v1019, -inf
        %1062 = vmax.xlane.f32.xlu0 %v1061
        %v1063 = vpop.xlane.xlu0 %1062
        %v1064 = vsel %vm629, %v1020, -inf
        %1065 = vmax.xlane.f32.xlu0 %v1064
        %v1066 = vpop.xlane.xlu0 %1065
        %v1067 = vsel %vm629, %v1021, -inf
        %1068 = vmax.xlane.f32.xlu0 %v1067
        %v1069 = vpop.xlane.xlu0 %1068
        %v1070 = vsub.f32 %v1006, %v1024
        %v1071 = vsub.f32 %v1007, %v1027
        %v1072 = vsub.f32 %v1008, %v1030
        %v1073 = vsub.f32 %v1009, %v1033
        %v1074 = vsub.f32 %v1010, %v1036
        %v1075 = vsub.f32 %v1011, %v1039
        %v1076 = vsub.f32 %v1012, %v1042
        %v1077 = vsub.f32 %v1013, %v1045
        %v1078 = vsub.f32 %v1014, %v1048
        %v1079 = vsub.f32 %v1015, %v1051
        %v1080 = vsub.f32 %v1016, %v1054
        %v1081 = vsub.f32 %v1017, %v1057
        %v1082 = vsub.f32 %v1018, %v1060
        %v1083 = vsub.f32 %v1019, %v1063
        %v1084 = vsub.f32 %v1020, %v1066
        %v1085 = vsub.f32 %v1021, %v1069
        %v1086 = vmul.f32 %v1070, 1.442695
        %v1087 = vpow.pop %v1086
        %v1088 = vmul.f32 %v1071, 1.442695
        %v1089 = vpow.pop %v1088
        %v1090 = vmul.f32 %v1072, 1.442695
        %v1091 = vpow.pop %v1090
        %v1092 = vmul.f32 %v1073, 1.442695
        %v1093 = vpow.pop %v1092
        %v1094 = vmul.f32 %v1074, 1.442695
        %v1095 = vpow.pop %v1094
        %v1096 = vmul.f32 %v1075, 1.442695
        %v1097 = vpow.pop %v1096
        %v1098 = vmul.f32 %v1076, 1.442695
        %v1099 = vpow.pop %v1098
        %v1100 = vmul.f32 %v1077, 1.442695
        %v1101 = vpow.pop %v1100
        %v1102 = vmul.f32 %v1078, 1.442695
        %v1103 = vpow.pop %v1102
        %v1104 = vmul.f32 %v1079, 1.442695
        %v1105 = vpow.pop %v1104
        %v1106 = vmul.f32 %v1080, 1.442695
        %v1107 = vpow.pop %v1106
        %v1108 = vmul.f32 %v1081, 1.442695
        %v1109 = vpow.pop %v1108
        %v1110 = vmul.f32 %v1082, 1.442695
        %v1111 = vpow.pop %v1110
        %v1112 = vmul.f32 %v1083, 1.442695
        %v1113 = vpow.pop %v1112
        %v1114 = vmul.f32 %v1084, 1.442695
        %v1115 = vpow.pop %v1114
        %v1116 = vmul.f32 %v1085, 1.442695
        %v1117 = vpow.pop %v1116
        %v1118 = vsel %vm629, %v1087, 0.0
        %1119 = vadd.xlane.f32.xlu0 %v1118
        %v1120 = vpop.xlane.xlu0 %1119
        %v1121 = vsel %vm629, %v1089, 0.0
        %1122 = vadd.xlane.f32.xlu0 %v1121
        %v1123 = vpop.xlane.xlu0 %1122
        %v1124 = vsel %vm629, %v1091, 0.0
        %1125 = vadd.xlane.f32.xlu0 %v1124
        %v1126 = vpop.xlane.xlu0 %1125
        %v1127 = vsel %vm629, %v1093, 0.0
        %1128 = vadd.xlane.f32.xlu0 %v1127
        %v1129 = vpop.xlane.xlu0 %1128
        %v1130 = vsel %vm629, %v1095, 0.0
        %1131 = vadd.xlane.f32.xlu0 %v1130
        %v1132 = vpop.xlane.xlu0 %1131
        %v1133 = vsel %vm629, %v1097, 0.0
        %1134 = vadd.xlane.f32.xlu0 %v1133
        %v1135 = vpop.xlane.xlu0 %1134
        %v1136 = vsel %vm629, %v1099, 0.0
        %1137 = vadd.xlane.f32.xlu0 %v1136
        %v1138 = vpop.xlane.xlu0 %1137
        %v1139 = vsel %vm629, %v1101, 0.0
        %1140 = vadd.xlane.f32.xlu0 %v1139
        %v1141 = vpop.xlane.xlu0 %1140
        %v1142 = vsel %vm629, %v1103, 0.0
        %1143 = vadd.xlane.f32.xlu0 %v1142
        %v1144 = vpop.xlane.xlu0 %1143
        %v1145 = vsel %vm629, %v1105, 0.0
        %1146 = vadd.xlane.f32.xlu0 %v1145
        %v1147 = vpop.xlane.xlu0 %1146
        %v1148 = vsel %vm629, %v1107, 0.0
        %1149 = vadd.xlane.f32.xlu0 %v1148
        %v1150 = vpop.xlane.xlu0 %1149
        %v1151 = vsel %vm629, %v1109, 0.0
        %1152 = vadd.xlane.f32.xlu0 %v1151
        %v1153 = vpop.xlane.xlu0 %1152
        %v1154 = vsel %vm629, %v1111, 0.0
        %1155 = vadd.xlane.f32.xlu0 %v1154
        %v1156 = vpop.xlane.xlu0 %1155
        %v1157 = vsel %vm629, %v1113, 0.0
        %1158 = vadd.xlane.f32.xlu0 %v1157
        %v1159 = vpop.xlane.xlu0 %1158
        %v1160 = vsel %vm629, %v1115, 0.0
        %1161 = vadd.xlane.f32.xlu0 %v1160
        %v1162 = vpop.xlane.xlu0 %1161
        %v1163 = vsel %vm629, %v1117, 0.0
        %1164 = vadd.xlane.f32.xlu0 %v1163
        %v1165 = vpop.xlane.xlu0 %1164
        %v1166 = vrcp.pop %v1120
        %v1167 = vrcp.pop %v1123
        %v1168 = vrcp.pop %v1126
        %v1169 = vrcp.pop %v1129
        %v1170 = vrcp.pop %v1132
        %v1171 = vrcp.pop %v1135
        %v1172 = vrcp.pop %v1138
        %v1173 = vrcp.pop %v1141
        %v1174 = vrcp.pop %v1144
        %v1175 = vrcp.pop %v1147
        %v1176 = vrcp.pop %v1150
        %v1177 = vrcp.pop %v1153
        %v1178 = vrcp.pop %v1156
        %v1179 = vrcp.pop %v1159
        %v1180 = vrcp.pop %v1162
        %v1181 = vrcp.pop %v1165
        %v1182 = vmul.f32 %v1087, %v1166
        %v1183 = vmul.f32 %v1089, %v1167
        %v1184 = vmul.f32 %v1091, %v1168
        %v1185 = vmul.f32 %v1093, %v1169
        %v1186 = vmul.f32 %v1095, %v1170
        %v1187 = vmul.f32 %v1097, %v1171
        %v1188 = vmul.f32 %v1099, %v1172
        %v1189 = vmul.f32 %v1101, %v1173
        %v1190 = vmul.f32 %v1103, %v1174
        %v1191 = vmul.f32 %v1105, %v1175
        %v1192 = vmul.f32 %v1107, %v1176
        %v1193 = vmul.f32 %v1109, %v1177
        %v1194 = vmul.f32 %v1111, %v1178
        %v1195 = vmul.f32 %v1113, %v1179
        %v1196 = vmul.f32 %v1115, %v1180
        %v1197 = vmul.f32 %v1117, %v1181
        %v1198 = vpack.c.bf16 %v1183, %v1182
        %v1199 = vpack.c.bf16 %v1185, %v1184
        %v1200 = vpack.c.bf16 %v1187, %v1186
        %v1201 = vpack.c.bf16 %v1189, %v1188
        %v1202 = vpack.c.bf16 %v1191, %v1190
        %v1203 = vpack.c.bf16 %v1193, %v1192
        %v1204 = vpack.c.bf16 %v1195, %v1194
        %v1205 = vpack.c.bf16 %v1197, %v1196
        %v1206 = vpack.c.bf16 %v554, %v551
        %v1207 = vpack.c.bf16 %v562, %v559
        %v1208 = vpack.c.bf16 %v570, %v567
        %v1209 = vpack.c.bf16 %v578, %v575
        %v1210 = vpack.c.bf16 %v586, %v583
        %v1211 = vpack.c.bf16 %v594, %v591
        %v1212 = vpack.c.bf16 %v602, %v599
        %v1213 = vpack.c.bf16 %v610, %v607
        %v1215 = vsel %vm629, %v1198, 0
        %1217 = vmatprep.subr.bf16.mxu0 0
        %1218 = vmatpush1.bf16.msra.mxu0 0
        %1219 = vmatprep.subr.bf16.mxu0 0
        %1220 = vmatpush1.bf16.msra.mxu0 0
        %1221 = vmatprep.subr.bf16.mxu0 0
        %1222 = vmatpush1.bf16.msra.mxu0 0
        %1223 = vmatprep.subr.bf16.mxu0 0
        %1224 = vmatpush1.bf16.msra.mxu0 0
        %1225 = vmatprep.subr.bf16.mxu0 0
        %1226 = vmatpush1.bf16.msra.mxu0 0
        %1227 = vmatprep.subr.bf16.mxu0 0
        %1228 = vmatpush1.bf16.msra.mxu0 0
        %1229 = vmatprep.subr.bf16.mxu0 0
        %1230 = vmatpush1.bf16.msra.mxu0 0
        %1231 = vmatprep.subr.bf16.mxu0 0
        %1232 = vmatpush1.bf16.msra.mxu0 %v1206
        %1233 = vmatprep.subr.bf16.mxu0 0
        %1234 = vmatpush2.bf16.msra.mxu0 0
        %1235 = vmatprep.subr.bf16.mxu0 0
        %1236 = vmatpush2.bf16.msra.mxu0 0
        %1237 = vmatprep.subr.bf16.mxu0 0
        %1238 = vmatpush2.bf16.msra.mxu0 0
        %1239 = vmatprep.subr.bf16.mxu0 0
        %1240 = vmatpush2.bf16.msra.mxu0 0
        %1241 = vmatprep.subr.bf16.mxu0 0
        %1242 = vmatpush2.bf16.msra.mxu0 0
        %1243 = vmatprep.subr.bf16.mxu0 0
        %1244 = vmatpush2.bf16.msra.mxu0 0
        %1245 = vmatprep.subr.bf16.mxu0 0
        %1246 = vmatpush2.bf16.msra.mxu0 0
        %1247 = vmatprep.subr.bf16.mxu0 0
        %1248 = vmatpush2.bf16.msra.mxu0 0
        %1249 = vmatprep.mubr.bf16.mxu0 0
        %1250 = vmatmul.mubr.bf16.gmra.mxu0 %v1215
        %v1251 = vpop.f32.mrf.mxu0
        %v1252 = vadd.f32 0.0, %v1251
        %v1253 = vpop.f32.mrf.mxu0
        %v1254 = vpop.f32.mrf.mxu0
        %v1255 = vadd.f32 0.0, %v1254
        %v1256 = vpop.f32.mrf.mxu0
        %1257 = vdwg.mxu0
        %v1259 = vsel %vm629, %v1199, 0
        %1261 = vmatprep.subr.bf16.mxu0 0
        %1262 = vmatpush1.bf16.msra.mxu0 0
        %1263 = vmatprep.subr.bf16.mxu0 0
        %1264 = vmatpush1.bf16.msra.mxu0 0
        %1265 = vmatprep.subr.bf16.mxu0 0
        %1266 = vmatpush1.bf16.msra.mxu0 0
        %1267 = vmatprep.subr.bf16.mxu0 0
        %1268 = vmatpush1.bf16.msra.mxu0 0
        %1269 = vmatprep.subr.bf16.mxu0 0
        %1270 = vmatpush1.bf16.msra.mxu0 0
        %1271 = vmatprep.subr.bf16.mxu0 0
        %1272 = vmatpush1.bf16.msra.mxu0 0
        %1273 = vmatprep.subr.bf16.mxu0 0
        %1274 = vmatpush1.bf16.msra.mxu0 0
        %1275 = vmatprep.subr.bf16.mxu0 0
        %1276 = vmatpush1.bf16.msra.mxu0 %v1207
        %1277 = vmatprep.subr.bf16.mxu0 0
        %1278 = vmatpush2.bf16.msra.mxu0 0
        %1279 = vmatprep.subr.bf16.mxu0 0
        %1280 = vmatpush2.bf16.msra.mxu0 0
        %1281 = vmatprep.subr.bf16.mxu0 0
        %1282 = vmatpush2.bf16.msra.mxu0 0
        %1283 = vmatprep.subr.bf16.mxu0 0
        %1284 = vmatpush2.bf16.msra.mxu0 0
        %1285 = vmatprep.subr.bf16.mxu0 0
        %1286 = vmatpush2.bf16.msra.mxu0 0
        %1287 = vmatprep.subr.bf16.mxu0 0
        %1288 = vmatpush2.bf16.msra.mxu0 0
        %1289 = vmatprep.subr.bf16.mxu0 0
        %1290 = vmatpush2.bf16.msra.mxu0 0
        %1291 = vmatprep.subr.bf16.mxu0 0
        %1292 = vmatpush2.bf16.msra.mxu0 0
        %1293 = vmatprep.mubr.bf16.mxu0 0
        %1294 = vmatmul.mubr.bf16.gmra.mxu0 %v1259
        %v1295 = vpop.f32.mrf.mxu0
        %v1296 = vadd.f32 0.0, %v1295
        %v1297 = vpop.f32.mrf.mxu0
        %v1298 = vpop.f32.mrf.mxu0
        %v1299 = vadd.f32 0.0, %v1298
        %v1300 = vpop.f32.mrf.mxu0
        %1301 = vdwg.mxu0
        %v1303 = vsel %vm629, %v1200, 0
        %1305 = vmatprep.subr.bf16.mxu0 0
        %1306 = vmatpush1.bf16.msra.mxu0 0
        %1307 = vmatprep.subr.bf16.mxu0 0
        %1308 = vmatpush1.bf16.msra.mxu0 0
        %1309 = vmatprep.subr.bf16.mxu0 0
        %1310 = vmatpush1.bf16.msra.mxu0 0
        %1311 = vmatprep.subr.bf16.mxu0 0
        %1312 = vmatpush1.bf16.msra.mxu0 0
        %1313 = vmatprep.subr.bf16.mxu0 0
        %1314 = vmatpush1.bf16.msra.mxu0 0
        %1315 = vmatprep.subr.bf16.mxu0 0
        %1316 = vmatpush1.bf16.msra.mxu0 0
        %1317 = vmatprep.subr.bf16.mxu0 0
        %1318 = vmatpush1.bf16.msra.mxu0 0
        %1319 = vmatprep.subr.bf16.mxu0 0
        %1320 = vmatpush1.bf16.msra.mxu0 %v1208
        %1321 = vmatprep.subr.bf16.mxu0 0
        %1322 = vmatpush2.bf16.msra.mxu0 0
        %1323 = vmatprep.subr.bf16.mxu0 0
        %1324 = vmatpush2.bf16.msra.mxu0 0
        %1325 = vmatprep.subr.bf16.mxu0 0
        %1326 = vmatpush2.bf16.msra.mxu0 0
        %1327 = vmatprep.subr.bf16.mxu0 0
        %1328 = vmatpush2.bf16.msra.mxu0 0
        %1329 = vmatprep.subr.bf16.mxu0 0
        %1330 = vmatpush2.bf16.msra.mxu0 0
        %1331 = vmatprep.subr.bf16.mxu0 0
        %1332 = vmatpush2.bf16.msra.mxu0 0
        %1333 = vmatprep.subr.bf16.mxu0 0
        %1334 = vmatpush2.bf16.msra.mxu0 0
        %1335 = vmatprep.subr.bf16.mxu0 0
        %1336 = vmatpush2.bf16.msra.mxu0 0
        %1337 = vmatprep.mubr.bf16.mxu0 0
        %1338 = vmatmul.mubr.bf16.gmra.mxu0 %v1303
        %v1339 = vpop.f32.mrf.mxu0
        %v1340 = vadd.f32 0.0, %v1339
        %v1341 = vpop.f32.mrf.mxu0
        %v1342 = vpop.f32.mrf.mxu0
        %v1343 = vadd.f32 0.0, %v1342
        %v1344 = vpop.f32.mrf.mxu0
        %1345 = vdwg.mxu0
        %v1347 = vsel %vm629, %v1201, 0
        %1349 = vmatprep.subr.bf16.mxu0 0
        %1350 = vmatpush1.bf16.msra.mxu0 0
        %1351 = vmatprep.subr.bf16.mxu0 0
        %1352 = vmatpush1.bf16.msra.mxu0 0
        %1353 = vmatprep.subr.bf16.mxu0 0
        %1354 = vmatpush1.bf16.msra.mxu0 0
        %1355 = vmatprep.subr.bf16.mxu0 0
        %1356 = vmatpush1.bf16.msra.mxu0 0
        %1357 = vmatprep.subr.bf16.mxu0 0
        %1358 = vmatpush1.bf16.msra.mxu0 0
        %1359 = vmatprep.subr.bf16.mxu0 0
        %1360 = vmatpush1.bf16.msra.mxu0 0
        %1361 = vmatprep.subr.bf16.mxu0 0
        %1362 = vmatpush1.bf16.msra.mxu0 0
        %1363 = vmatprep.subr.bf16.mxu0 0
        %1364 = vmatpush1.bf16.msra.mxu0 %v1209
        %1365 = vmatprep.subr.bf16.mxu0 0
        %1366 = vmatpush2.bf16.msra.mxu0 0
        %1367 = vmatprep.subr.bf16.mxu0 0
        %1368 = vmatpush2.bf16.msra.mxu0 0
        %1369 = vmatprep.subr.bf16.mxu0 0
        %1370 = vmatpush2.bf16.msra.mxu0 0
        %1371 = vmatprep.subr.bf16.mxu0 0
        %1372 = vmatpush2.bf16.msra.mxu0 0
        %1373 = vmatprep.subr.bf16.mxu0 0
        %1374 = vmatpush2.bf16.msra.mxu0 0
        %1375 = vmatprep.subr.bf16.mxu0 0
        %1376 = vmatpush2.bf16.msra.mxu0 0
        %1377 = vmatprep.subr.bf16.mxu0 0
        %1378 = vmatpush2.bf16.msra.mxu0 0
        %1379 = vmatprep.subr.bf16.mxu0 0
        %1380 = vmatpush2.bf16.msra.mxu0 0
        %1381 = vmatprep.mubr.bf16.mxu0 0
        %1382 = vmatmul.mubr.bf16.gmra.mxu0 %v1347
        %v1383 = vpop.f32.mrf.mxu0
        %v1384 = vadd.f32 0.0, %v1383
        %v1385 = vpop.f32.mrf.mxu0
        %v1386 = vpop.f32.mrf.mxu0
        %v1387 = vadd.f32 0.0, %v1386
        %v1388 = vpop.f32.mrf.mxu0
        %1389 = vdwg.mxu0
        %v1391 = vsel %vm629, %v1202, 0
        %1393 = vmatprep.subr.bf16.mxu0 0
        %1394 = vmatpush1.bf16.msra.mxu0 0
        %1395 = vmatprep.subr.bf16.mxu0 0
        %1396 = vmatpush1.bf16.msra.mxu0 0
        %1397 = vmatprep.subr.bf16.mxu0 0
        %1398 = vmatpush1.bf16.msra.mxu0 0
        %1399 = vmatprep.subr.bf16.mxu0 0
        %1400 = vmatpush1.bf16.msra.mxu0 0
        %1401 = vmatprep.subr.bf16.mxu0 0
        %1402 = vmatpush1.bf16.msra.mxu0 0
        %1403 = vmatprep.subr.bf16.mxu0 0
        %1404 = vmatpush1.bf16.msra.mxu0 0
        %1405 = vmatprep.subr.bf16.mxu0 0
        %1406 = vmatpush1.bf16.msra.mxu0 0
        %1407 = vmatprep.subr.bf16.mxu0 0
        %1408 = vmatpush1.bf16.msra.mxu0 %v1210
        %1409 = vmatprep.subr.bf16.mxu0 0
        %1410 = vmatpush2.bf16.msra.mxu0 0
        %1411 = vmatprep.subr.bf16.mxu0 0
        %1412 = vmatpush2.bf16.msra.mxu0 0
        %1413 = vmatprep.subr.bf16.mxu0 0
        %1414 = vmatpush2.bf16.msra.mxu0 0
        %1415 = vmatprep.subr.bf16.mxu0 0
        %1416 = vmatpush2.bf16.msra.mxu0 0
        %1417 = vmatprep.subr.bf16.mxu0 0
        %1418 = vmatpush2.bf16.msra.mxu0 0
        %1419 = vmatprep.subr.bf16.mxu0 0
        %1420 = vmatpush2.bf16.msra.mxu0 0
        %1421 = vmatprep.subr.bf16.mxu0 0
        %1422 = vmatpush2.bf16.msra.mxu0 0
        %1423 = vmatprep.subr.bf16.mxu0 0
        %1424 = vmatpush2.bf16.msra.mxu0 0
        %1425 = vmatprep.mubr.bf16.mxu0 0
        %1426 = vmatmul.mubr.bf16.gmra.mxu0 %v1391
        %v1427 = vpop.f32.mrf.mxu0
        %v1428 = vadd.f32 0.0, %v1427
        %v1429 = vpop.f32.mrf.mxu0
        %v1430 = vpop.f32.mrf.mxu0
        %v1431 = vadd.f32 0.0, %v1430
        %v1432 = vpop.f32.mrf.mxu0
        %1433 = vdwg.mxu0
        %v1435 = vsel %vm629, %v1203, 0
        %1437 = vmatprep.subr.bf16.mxu0 0
        %1438 = vmatpush1.bf16.msra.mxu0 0
        %1439 = vmatprep.subr.bf16.mxu0 0
        %1440 = vmatpush1.bf16.msra.mxu0 0
        %1441 = vmatprep.subr.bf16.mxu0 0
        %1442 = vmatpush1.bf16.msra.mxu0 0
        %1443 = vmatprep.subr.bf16.mxu0 0
        %1444 = vmatpush1.bf16.msra.mxu0 0
        %1445 = vmatprep.subr.bf16.mxu0 0
        %1446 = vmatpush1.bf16.msra.mxu0 0
        %1447 = vmatprep.subr.bf16.mxu0 0
        %1448 = vmatpush1.bf16.msra.mxu0 0
        %1449 = vmatprep.subr.bf16.mxu0 0
        %1450 = vmatpush1.bf16.msra.mxu0 0
        %1451 = vmatprep.subr.bf16.mxu0 0
        %1452 = vmatpush1.bf16.msra.mxu0 %v1211
        %1453 = vmatprep.subr.bf16.mxu0 0
        %1454 = vmatpush2.bf16.msra.mxu0 0
        %1455 = vmatprep.subr.bf16.mxu0 0
        %1456 = vmatpush2.bf16.msra.mxu0 0
        %1457 = vmatprep.subr.bf16.mxu0 0
        %1458 = vmatpush2.bf16.msra.mxu0 0
        %1459 = vmatprep.subr.bf16.mxu0 0
        %1460 = vmatpush2.bf16.msra.mxu0 0
        %1461 = vmatprep.subr.bf16.mxu0 0
        %1462 = vmatpush2.bf16.msra.mxu0 0
        %1463 = vmatprep.subr.bf16.mxu0 0
        %1464 = vmatpush2.bf16.msra.mxu0 0
        %1465 = vmatprep.subr.bf16.mxu0 0
        %1466 = vmatpush2.bf16.msra.mxu0 0
        %1467 = vmatprep.subr.bf16.mxu0 0
        %1468 = vmatpush2.bf16.msra.mxu0 0
        %1469 = vmatprep.mubr.bf16.mxu0 0
        %1470 = vmatmul.mubr.bf16.gmra.mxu0 %v1435
        %v1471 = vpop.f32.mrf.mxu0
        %v1472 = vadd.f32 0.0, %v1471
        %v1473 = vpop.f32.mrf.mxu0
        %v1474 = vpop.f32.mrf.mxu0
        %v1475 = vadd.f32 0.0, %v1474
        %v1476 = vpop.f32.mrf.mxu0
        %1477 = vdwg.mxu0
        %v1479 = vsel %vm629, %v1204, 0
        %1481 = vmatprep.subr.bf16.mxu0 0
        %1482 = vmatpush1.bf16.msra.mxu0 0
        %1483 = vmatprep.subr.bf16.mxu0 0
        %1484 = vmatpush1.bf16.msra.mxu0 0
        %1485 = vmatprep.subr.bf16.mxu0 0
        %1486 = vmatpush1.bf16.msra.mxu0 0
        %1487 = vmatprep.subr.bf16.mxu0 0
        %1488 = vmatpush1.bf16.msra.mxu0 0
        %1489 = vmatprep.subr.bf16.mxu0 0
        %1490 = vmatpush1.bf16.msra.mxu0 0
        %1491 = vmatprep.subr.bf16.mxu0 0
        %1492 = vmatpush1.bf16.msra.mxu0 0
        %1493 = vmatprep.subr.bf16.mxu0 0
        %1494 = vmatpush1.bf16.msra.mxu0 0
        %1495 = vmatprep.subr.bf16.mxu0 0
        %1496 = vmatpush1.bf16.msra.mxu0 %v1212
        %1497 = vmatprep.subr.bf16.mxu0 0
        %1498 = vmatpush2.bf16.msra.mxu0 0
        %1499 = vmatprep.subr.bf16.mxu0 0
        %1500 = vmatpush2.bf16.msra.mxu0 0
        %1501 = vmatprep.subr.bf16.mxu0 0
        %1502 = vmatpush2.bf16.msra.mxu0 0
        %1503 = vmatprep.subr.bf16.mxu0 0
        %1504 = vmatpush2.bf16.msra.mxu0 0
        %1505 = vmatprep.subr.bf16.mxu0 0
        %1506 = vmatpush2.bf16.msra.mxu0 0
        %1507 = vmatprep.subr.bf16.mxu0 0
        %1508 = vmatpush2.bf16.msra.mxu0 0
        %1509 = vmatprep.subr.bf16.mxu0 0
        %1510 = vmatpush2.bf16.msra.mxu0 0
        %1511 = vmatprep.subr.bf16.mxu0 0
        %1512 = vmatpush2.bf16.msra.mxu0 0
        %1513 = vmatprep.mubr.bf16.mxu0 0
        %1514 = vmatmul.mubr.bf16.gmra.mxu0 %v1479
        %v1515 = vpop.f32.mrf.mxu0
        %v1516 = vadd.f32 0.0, %v1515
        %v1517 = vpop.f32.mrf.mxu0
        %v1518 = vpop.f32.mrf.mxu0
        %v1519 = vadd.f32 0.0, %v1518
        %v1520 = vpop.f32.mrf.mxu0
        %1521 = vdwg.mxu0
        %v1523 = vsel %vm629, %v1205, 0
        %1525 = vmatprep.subr.bf16.mxu0 0
        %1526 = vmatpush1.bf16.msra.mxu0 0
        %1527 = vmatprep.subr.bf16.mxu0 0
        %1528 = vmatpush1.bf16.msra.mxu0 0
        %1529 = vmatprep.subr.bf16.mxu0 0
        %1530 = vmatpush1.bf16.msra.mxu0 0
        %1531 = vmatprep.subr.bf16.mxu0 0
        %1532 = vmatpush1.bf16.msra.mxu0 0
        %1533 = vmatprep.subr.bf16.mxu0 0
        %1534 = vmatpush1.bf16.msra.mxu0 0
        %1535 = vmatprep.subr.bf16.mxu0 0
        %1536 = vmatpush1.bf16.msra.mxu0 0
        %1537 = vmatprep.subr.bf16.mxu0 0
        %1538 = vmatpush1.bf16.msra.mxu0 0
        %1539 = vmatprep.subr.bf16.mxu0 0
        %1540 = vmatpush1.bf16.msra.mxu0 %v1213
        %1541 = vmatprep.subr.bf16.mxu0 0
        %1542 = vmatpush2.bf16.msra.mxu0 0
        %1543 = vmatprep.subr.bf16.mxu0 0
        %1544 = vmatpush2.bf16.msra.mxu0 0
        %1545 = vmatprep.subr.bf16.mxu0 0
        %1546 = vmatpush2.bf16.msra.mxu0 0
        %1547 = vmatprep.subr.bf16.mxu0 0
        %1548 = vmatpush2.bf16.msra.mxu0 0
        %1549 = vmatprep.subr.bf16.mxu0 0
        %1550 = vmatpush2.bf16.msra.mxu0 0
        %1551 = vmatprep.subr.bf16.mxu0 0
        %1552 = vmatpush2.bf16.msra.mxu0 0
        %1553 = vmatprep.subr.bf16.mxu0 0
        %1554 = vmatpush2.bf16.msra.mxu0 0
        %1555 = vmatprep.subr.bf16.mxu0 0
        %1556 = vmatpush2.bf16.msra.mxu0 0
        %1557 = vmatprep.mubr.bf16.mxu0 0
        %1558 = vmatmul.mubr.bf16.gmra.mxu0 %v1523
        %v1559 = vpop.f32.mrf.mxu0
        %v1560 = vadd.f32 0.0, %v1559
        %v1561 = vpop.f32.mrf.mxu0
        %v1562 = vpop.f32.mrf.mxu0
        %v1563 = vadd.f32 0.0, %v1562
        %v1564 = vpop.f32.mrf.mxu0
        %1565 = vdwg.mxu0
        %v1566 = vpack.c.bf16 %v1255, %v1252
        %v1567 = vpack.c.bf16 %v1299, %v1296
        %v1568 = vpack.c.bf16 %v1343, %v1340
        %v1569 = vpack.c.bf16 %v1387, %v1384
        %v1570 = vpack.c.bf16 %v1431, %v1428
        %v1571 = vpack.c.bf16 %v1475, %v1472
        %v1572 = vpack.c.bf16 %v1519, %v1516
        %v1573 = vpack.c.bf16 %v1563, %v1560
        %1575 = vrot.lane.b32.xlu0 %v613, 112
        %v1576 = vpop.permute.xlu0 %1575
        %1578 = vrot.lane.b32.xlu0 %v621, 112
        %v1579 = vpop.permute.xlu0 %1578
        %v1581 = vsel %vm629, %v1576, 0
        %v1584 = vsel %vm629, %v1579, 0
        %1586 = vmatprep.subr.bf16.mxu0 0
        %1587 = vmatpush1.bf16.xpose.msra.mxu0 0
        %1588 = vmatprep.subr.bf16.mxu0 0
        %1589 = vmatpush1.bf16.xpose.msra.mxu0 0
        %1590 = vmatprep.subr.bf16.mxu0 0
        %1591 = vmatpush1.bf16.xpose.msra.mxu0 0
        %1592 = vmatprep.subr.bf16.mxu0 0
        %1593 = vmatpush1.bf16.xpose.msra.mxu0 0
        %1594 = vmatprep.subr.bf16.mxu0 0
        %1595 = vmatpush1.bf16.xpose.msra.mxu0 0
        %1596 = vmatprep.subr.bf16.mxu0 0
        %1597 = vmatpush1.bf16.xpose.msra.mxu0 0
        %1598 = vmatprep.subr.bf16.mxu0 0
        %1599 = vmatpush1.bf16.xpose.msra.mxu0 0
        %1600 = vmatprep.subr.bf16.mxu0 0
        %1601 = vmatpush1.bf16.xpose.msra.mxu0 %v1584
        %1602 = vmatprep.subr.bf16.mxu0 0
        %1603 = vmatpush2.bf16.xpose.msra.mxu0 0
        %1604 = vmatprep.subr.bf16.mxu0 0
        %1605 = vmatpush2.bf16.xpose.msra.mxu0 0
        %1606 = vmatprep.subr.bf16.mxu0 0
        %1607 = vmatpush2.bf16.xpose.msra.mxu0 0
        %1608 = vmatprep.subr.bf16.mxu0 0
        %1609 = vmatpush2.bf16.xpose.msra.mxu0 0
        %1610 = vmatprep.subr.bf16.mxu0 0
        %1611 = vmatpush2.bf16.xpose.msra.mxu0 0
        %1612 = vmatprep.subr.bf16.mxu0 0
        %1613 = vmatpush2.bf16.xpose.msra.mxu0 0
        %1614 = vmatprep.subr.bf16.mxu0 0
        %1615 = vmatpush2.bf16.xpose.msra.mxu0 0
        %1616 = vmatprep.subr.bf16.mxu0 0
        %1617 = vmatpush2.bf16.xpose.msra.mxu0 0
        %1618 = vmatprep.mubr.bf16.mxu0 0
        %1619 = vmatmul.mubr.bf16.gmra.mxu0 %v1581
        %v1620 = vpop.f32.mrf.mxu0
        %v1621 = vadd.f32 0.0, %v1620
        %v1622 = vpop.f32.mrf.mxu0
        %v1623 = vpop.f32.mrf.mxu0
        %v1624 = vadd.f32 0.0, %v1623
        %v1625 = vpop.f32.mrf.mxu0
        %1626 = vdwg.mxu0
        %1628 = vrot.lane.b32.xlu0 %v614, 112
        %v1629 = vpop.permute.xlu0 %1628
        %1631 = vrot.lane.b32.xlu0 %v622, 112
        %v1632 = vpop.permute.xlu0 %1631
        %v1634 = vsel %vm629, %v1629, 0
        %v1637 = vsel %vm629, %v1632, 0
        %1639 = vmatprep.subr.bf16.mxu0 0
        %1640 = vmatpush1.bf16.xpose.msra.mxu0 0
        %1641 = vmatprep.subr.bf16.mxu0 0
        %1642 = vmatpush1.bf16.xpose.msra.mxu0 0
        %1643 = vmatprep.subr.bf16.mxu0 0
        %1644 = vmatpush1.bf16.xpose.msra.mxu0 0
        %1645 = vmatprep.subr.bf16.mxu0 0
        %1646 = vmatpush1.bf16.xpose.msra.mxu0 0
        %1647 = vmatprep.subr.bf16.mxu0 0
        %1648 = vmatpush1.bf16.xpose.msra.mxu0 0
        %1649 = vmatprep.subr.bf16.mxu0 0
        %1650 = vmatpush1.bf16.xpose.msra.mxu0 0
        %1651 = vmatprep.subr.bf16.mxu0 0
        %1652 = vmatpush1.bf16.xpose.msra.mxu0 0
        %1653 = vmatprep.subr.bf16.mxu0 0
        %1654 = vmatpush1.bf16.xpose.msra.mxu0 %v1637
        %1655 = vmatprep.subr.bf16.mxu0 0
        %1656 = vmatpush2.bf16.xpose.msra.mxu0 0
        %1657 = vmatprep.subr.bf16.mxu0 0
        %1658 = vmatpush2.bf16.xpose.msra.mxu0 0
        %1659 = vmatprep.subr.bf16.mxu0 0
        %1660 = vmatpush2.bf16.xpose.msra.mxu0 0
        %1661 = vmatprep.subr.bf16.mxu0 0
        %1662 = vmatpush2.bf16.xpose.msra.mxu0 0
        %1663 = vmatprep.subr.bf16.mxu0 0
        %1664 = vmatpush2.bf16.xpose.msra.mxu0 0
        %1665 = vmatprep.subr.bf16.mxu0 0
        %1666 = vmatpush2.bf16.xpose.msra.mxu0 0
        %1667 = vmatprep.subr.bf16.mxu0 0
        %1668 = vmatpush2.bf16.xpose.msra.mxu0 0
        %1669 = vmatprep.subr.bf16.mxu0 0
        %1670 = vmatpush2.bf16.xpose.msra.mxu0 0
        %1671 = vmatprep.mubr.bf16.mxu0 0
        %1672 = vmatmul.mubr.bf16.gmra.mxu0 %v1634
        %v1673 = vpop.f32.mrf.mxu0
        %v1674 = vadd.f32 0.0, %v1673
        %v1675 = vpop.f32.mrf.mxu0
        %v1676 = vpop.f32.mrf.mxu0
        %v1677 = vadd.f32 0.0, %v1676
        %v1678 = vpop.f32.mrf.mxu0
        %1679 = vdwg.mxu0
        %1681 = vrot.lane.b32.xlu0 %v615, 112
        %v1682 = vpop.permute.xlu0 %1681
        %1684 = vrot.lane.b32.xlu0 %v623, 112
        %v1685 = vpop.permute.xlu0 %1684
        %v1687 = vsel %vm629, %v1682, 0
        %v1690 = vsel %vm629, %v1685, 0
        %1692 = vmatprep.subr.bf16.mxu0 0
        %1693 = vmatpush1.bf16.xpose.msra.mxu0 0
        %1694 = vmatprep.subr.bf16.mxu0 0
        %1695 = vmatpush1.bf16.xpose.msra.mxu0 0
        %1696 = vmatprep.subr.bf16.mxu0 0
        %1697 = vmatpush1.bf16.xpose.msra.mxu0 0
        %1698 = vmatprep.subr.bf16.mxu0 0
        %1699 = vmatpush1.bf16.xpose.msra.mxu0 0
        %1700 = vmatprep.subr.bf16.mxu0 0
        %1701 = vmatpush1.bf16.xpose.msra.mxu0 0
        %1702 = vmatprep.subr.bf16.mxu0 0
        %1703 = vmatpush1.bf16.xpose.msra.mxu0 0
        %1704 = vmatprep.subr.bf16.mxu0 0
        %1705 = vmatpush1.bf16.xpose.msra.mxu0 0
        %1706 = vmatprep.subr.bf16.mxu0 0
        %1707 = vmatpush1.bf16.xpose.msra.mxu0 %v1690
        %1708 = vmatprep.subr.bf16.mxu0 0
        %1709 = vmatpush2.bf16.xpose.msra.mxu0 0
        %1710 = vmatprep.subr.bf16.mxu0 0
        %1711 = vmatpush2.bf16.xpose.msra.mxu0 0
        %1712 = vmatprep.subr.bf16.mxu0 0
        %1713 = vmatpush2.bf16.xpose.msra.mxu0 0
        %1714 = vmatprep.subr.bf16.mxu0 0
        %1715 = vmatpush2.bf16.xpose.msra.mxu0 0
        %1716 = vmatprep.subr.bf16.mxu0 0
        %1717 = vmatpush2.bf16.xpose.msra.mxu0 0
        %1718 = vmatprep.subr.bf16.mxu0 0
        %1719 = vmatpush2.bf16.xpose.msra.mxu0 0
        %1720 = vmatprep.subr.bf16.mxu0 0
        %1721 = vmatpush2.bf16.xpose.msra.mxu0 0
        %1722 = vmatprep.subr.bf16.mxu0 0
        %1723 = vmatpush2.bf16.xpose.msra.mxu0 0
        %1724 = vmatprep.mubr.bf16.mxu0 0
        %1725 = vmatmul.mubr.bf16.gmra.mxu0 %v1687
        %v1726 = vpop.f32.mrf.mxu0
        %v1727 = vadd.f32 0.0, %v1726
        %v1728 = vpop.f32.mrf.mxu0
        %v1729 = vpop.f32.mrf.mxu0
        %v1730 = vadd.f32 0.0, %v1729
        %v1731 = vpop.f32.mrf.mxu0
        %1732 = vdwg.mxu0
        %1734 = vrot.lane.b32.xlu0 %v616, 112
        %v1735 = vpop.permute.xlu0 %1734
        %1737 = vrot.lane.b32.xlu0 %v624, 112
        %v1738 = vpop.permute.xlu0 %1737
        %v1740 = vsel %vm629, %v1735, 0
        %v1743 = vsel %vm629, %v1738, 0
        %1745 = vmatprep.subr.bf16.mxu0 0
        %1746 = vmatpush1.bf16.xpose.msra.mxu0 0
        %1747 = vmatprep.subr.bf16.mxu0 0
        %1748 = vmatpush1.bf16.xpose.msra.mxu0 0
        %1749 = vmatprep.subr.bf16.mxu0 0
        %1750 = vmatpush1.bf16.xpose.msra.mxu0 0
        %1751 = vmatprep.subr.bf16.mxu0 0
        %1752 = vmatpush1.bf16.xpose.msra.mxu0 0
        %1753 = vmatprep.subr.bf16.mxu0 0
        %1754 = vmatpush1.bf16.xpose.msra.mxu0 0
        %1755 = vmatprep.subr.bf16.mxu0 0
        %1756 = vmatpush1.bf16.xpose.msra.mxu0 0
        %1757 = vmatprep.subr.bf16.mxu0 0
        %1758 = vmatpush1.bf16.xpose.msra.mxu0 0
        %1759 = vmatprep.subr.bf16.mxu0 0
        %1760 = vmatpush1.bf16.xpose.msra.mxu0 %v1743
        %1761 = vmatprep.subr.bf16.mxu0 0
        %1762 = vmatpush2.bf16.xpose.msra.mxu0 0
        %1763 = vmatprep.subr.bf16.mxu0 0
        %1764 = vmatpush2.bf16.xpose.msra.mxu0 0
        %1765 = vmatprep.subr.bf16.mxu0 0
        %1766 = vmatpush2.bf16.xpose.msra.mxu0 0
        %1767 = vmatprep.subr.bf16.mxu0 0
        %1768 = vmatpush2.bf16.xpose.msra.mxu0 0
        %1769 = vmatprep.subr.bf16.mxu0 0
        %1770 = vmatpush2.bf16.xpose.msra.mxu0 0
        %1771 = vmatprep.subr.bf16.mxu0 0
        %1772 = vmatpush2.bf16.xpose.msra.mxu0 0
        %1773 = vmatprep.subr.bf16.mxu0 0
        %1774 = vmatpush2.bf16.xpose.msra.mxu0 0
        %1775 = vmatprep.subr.bf16.mxu0 0
        %1776 = vmatpush2.bf16.xpose.msra.mxu0 0
        %1777 = vmatprep.mubr.bf16.mxu0 0
        %1778 = vmatmul.mubr.bf16.gmra.mxu0 %v1740
        %v1779 = vpop.f32.mrf.mxu0
        %v1780 = vadd.f32 0.0, %v1779
        %v1781 = vpop.f32.mrf.mxu0
        %v1782 = vpop.f32.mrf.mxu0
        %v1783 = vadd.f32 0.0, %v1782
        %v1784 = vpop.f32.mrf.mxu0
        %1785 = vdwg.mxu0
        %1787 = vrot.lane.b32.xlu0 %v617, 112
        %v1788 = vpop.permute.xlu0 %1787
        %1790 = vrot.lane.b32.xlu0 %v625, 112
        %v1791 = vpop.permute.xlu0 %1790
        %v1793 = vsel %vm629, %v1788, 0
        %v1796 = vsel %vm629, %v1791, 0
        %1798 = vmatprep.subr.bf16.mxu0 0
        %1799 = vmatpush1.bf16.xpose.msra.mxu0 0
        %1800 = vmatprep.subr.bf16.mxu0 0
        %1801 = vmatpush1.bf16.xpose.msra.mxu0 0
        %1802 = vmatprep.subr.bf16.mxu0 0
        %1803 = vmatpush1.bf16.xpose.msra.mxu0 0
        %1804 = vmatprep.subr.bf16.mxu0 0
        %1805 = vmatpush1.bf16.xpose.msra.mxu0 0
        %1806 = vmatprep.subr.bf16.mxu0 0
        %1807 = vmatpush1.bf16.xpose.msra.mxu0 0
        %1808 = vmatprep.subr.bf16.mxu0 0
        %1809 = vmatpush1.bf16.xpose.msra.mxu0 0
        %1810 = vmatprep.subr.bf16.mxu0 0
        %1811 = vmatpush1.bf16.xpose.msra.mxu0 0
        %1812 = vmatprep.subr.bf16.mxu0 0
        %1813 = vmatpush1.bf16.xpose.msra.mxu0 %v1796
        %1814 = vmatprep.subr.bf16.mxu0 0
        %1815 = vmatpush2.bf16.xpose.msra.mxu0 0
        %1816 = vmatprep.subr.bf16.mxu0 0
        %1817 = vmatpush2.bf16.xpose.msra.mxu0 0
        %1818 = vmatprep.subr.bf16.mxu0 0
        %1819 = vmatpush2.bf16.xpose.msra.mxu0 0
        %1820 = vmatprep.subr.bf16.mxu0 0
        %1821 = vmatpush2.bf16.xpose.msra.mxu0 0
        %1822 = vmatprep.subr.bf16.mxu0 0
        %1823 = vmatpush2.bf16.xpose.msra.mxu0 0
        %1824 = vmatprep.subr.bf16.mxu0 0
        %1825 = vmatpush2.bf16.xpose.msra.mxu0 0
        %1826 = vmatprep.subr.bf16.mxu0 0
        %1827 = vmatpush2.bf16.xpose.msra.mxu0 0
        %1828 = vmatprep.subr.bf16.mxu0 0
        %1829 = vmatpush2.bf16.xpose.msra.mxu0 0
        %1830 = vmatprep.mubr.bf16.mxu0 0
        %1831 = vmatmul.mubr.bf16.gmra.mxu0 %v1793
        %v1832 = vpop.f32.mrf.mxu0
        %v1833 = vadd.f32 0.0, %v1832
        %v1834 = vpop.f32.mrf.mxu0
        %v1835 = vpop.f32.mrf.mxu0
        %v1836 = vadd.f32 0.0, %v1835
        %v1837 = vpop.f32.mrf.mxu0
        %1838 = vdwg.mxu0
        %1840 = vrot.lane.b32.xlu0 %v618, 112
        %v1841 = vpop.permute.xlu0 %1840
        %1843 = vrot.lane.b32.xlu0 %v626, 112
        %v1844 = vpop.permute.xlu0 %1843
        %v1846 = vsel %vm629, %v1841, 0
        %v1849 = vsel %vm629, %v1844, 0
        %1851 = vmatprep.subr.bf16.mxu0 0
        %1852 = vmatpush1.bf16.xpose.msra.mxu0 0
        %1853 = vmatprep.subr.bf16.mxu0 0
        %1854 = vmatpush1.bf16.xpose.msra.mxu0 0
        %1855 = vmatprep.subr.bf16.mxu0 0
        %1856 = vmatpush1.bf16.xpose.msra.mxu0 0
        %1857 = vmatprep.subr.bf16.mxu0 0
        %1858 = vmatpush1.bf16.xpose.msra.mxu0 0
        %1859 = vmatprep.subr.bf16.mxu0 0
        %1860 = vmatpush1.bf16.xpose.msra.mxu0 0
        %1861 = vmatprep.subr.bf16.mxu0 0
        %1862 = vmatpush1.bf16.xpose.msra.mxu0 0
        %1863 = vmatprep.subr.bf16.mxu0 0
        %1864 = vmatpush1.bf16.xpose.msra.mxu0 0
        %1865 = vmatprep.subr.bf16.mxu0 0
        %1866 = vmatpush1.bf16.xpose.msra.mxu0 %v1849
        %1867 = vmatprep.subr.bf16.mxu0 0
        %1868 = vmatpush2.bf16.xpose.msra.mxu0 0
        %1869 = vmatprep.subr.bf16.mxu0 0
        %1870 = vmatpush2.bf16.xpose.msra.mxu0 0
        %1871 = vmatprep.subr.bf16.mxu0 0
        %1872 = vmatpush2.bf16.xpose.msra.mxu0 0
        %1873 = vmatprep.subr.bf16.mxu0 0
        %1874 = vmatpush2.bf16.xpose.msra.mxu0 0
        %1875 = vmatprep.subr.bf16.mxu0 0
        %1876 = vmatpush2.bf16.xpose.msra.mxu0 0
        %1877 = vmatprep.subr.bf16.mxu0 0
        %1878 = vmatpush2.bf16.xpose.msra.mxu0 0
        %1879 = vmatprep.subr.bf16.mxu0 0
        %1880 = vmatpush2.bf16.xpose.msra.mxu0 0
        %1881 = vmatprep.subr.bf16.mxu0 0
        %1882 = vmatpush2.bf16.xpose.msra.mxu0 0
        %1883 = vmatprep.mubr.bf16.mxu0 0
        %1884 = vmatmul.mubr.bf16.gmra.mxu0 %v1846
        %v1885 = vpop.f32.mrf.mxu0
        %v1886 = vadd.f32 0.0, %v1885
        %v1887 = vpop.f32.mrf.mxu0
        %v1888 = vpop.f32.mrf.mxu0
        %v1889 = vadd.f32 0.0, %v1888
        %v1890 = vpop.f32.mrf.mxu0
        %1891 = vdwg.mxu0
        %1893 = vrot.lane.b32.xlu0 %v619, 112
        %v1894 = vpop.permute.xlu0 %1893
        %1896 = vrot.lane.b32.xlu0 %v627, 112
        %v1897 = vpop.permute.xlu0 %1896
        %v1899 = vsel %vm629, %v1894, 0
        %v1902 = vsel %vm629, %v1897, 0
        %1904 = vmatprep.subr.bf16.mxu0 0
        %1905 = vmatpush1.bf16.xpose.msra.mxu0 0
        %1906 = vmatprep.subr.bf16.mxu0 0
        %1907 = vmatpush1.bf16.xpose.msra.mxu0 0
        %1908 = vmatprep.subr.bf16.mxu0 0
        %1909 = vmatpush1.bf16.xpose.msra.mxu0 0
        %1910 = vmatprep.subr.bf16.mxu0 0
        %1911 = vmatpush1.bf16.xpose.msra.mxu0 0
        %1912 = vmatprep.subr.bf16.mxu0 0
        %1913 = vmatpush1.bf16.xpose.msra.mxu0 0
        %1914 = vmatprep.subr.bf16.mxu0 0
        %1915 = vmatpush1.bf16.xpose.msra.mxu0 0
        %1916 = vmatprep.subr.bf16.mxu0 0
        %1917 = vmatpush1.bf16.xpose.msra.mxu0 0
        %1918 = vmatprep.subr.bf16.mxu0 0
        %1919 = vmatpush1.bf16.xpose.msra.mxu0 %v1902
        %1920 = vmatprep.subr.bf16.mxu0 0
        %1921 = vmatpush2.bf16.xpose.msra.mxu0 0
        %1922 = vmatprep.subr.bf16.mxu0 0
        %1923 = vmatpush2.bf16.xpose.msra.mxu0 0
        %1924 = vmatprep.subr.bf16.mxu0 0
        %1925 = vmatpush2.bf16.xpose.msra.mxu0 0
        %1926 = vmatprep.subr.bf16.mxu0 0
        %1927 = vmatpush2.bf16.xpose.msra.mxu0 0
        %1928 = vmatprep.subr.bf16.mxu0 0
        %1929 = vmatpush2.bf16.xpose.msra.mxu0 0
        %1930 = vmatprep.subr.bf16.mxu0 0
        %1931 = vmatpush2.bf16.xpose.msra.mxu0 0
        %1932 = vmatprep.subr.bf16.mxu0 0
        %1933 = vmatpush2.bf16.xpose.msra.mxu0 0
        %1934 = vmatprep.subr.bf16.mxu0 0
        %1935 = vmatpush2.bf16.xpose.msra.mxu0 0
        %1936 = vmatprep.mubr.bf16.mxu0 0
        %1937 = vmatmul.mubr.bf16.gmra.mxu0 %v1899
        %v1938 = vpop.f32.mrf.mxu0
        %v1939 = vadd.f32 0.0, %v1938
        %v1940 = vpop.f32.mrf.mxu0
        %v1941 = vpop.f32.mrf.mxu0
        %v1942 = vadd.f32 0.0, %v1941
        %v1943 = vpop.f32.mrf.mxu0
        %1944 = vdwg.mxu0
        %1946 = vrot.lane.b32.xlu0 %v620, 112
        %v1947 = vpop.permute.xlu0 %1946
        %1949 = vrot.lane.b32.xlu0 %v628, 112
        %v1950 = vpop.permute.xlu0 %1949
        %v1952 = vsel %vm629, %v1947, 0
        %v1955 = vsel %vm629, %v1950, 0
        %1957 = vmatprep.subr.bf16.mxu0 0
        %1958 = vmatpush1.bf16.xpose.msra.mxu0 0
        %1959 = vmatprep.subr.bf16.mxu0 0
        %1960 = vmatpush1.bf16.xpose.msra.mxu0 0
        %1961 = vmatprep.subr.bf16.mxu0 0
        %1962 = vmatpush1.bf16.xpose.msra.mxu0 0
        %1963 = vmatprep.subr.bf16.mxu0 0
        %1964 = vmatpush1.bf16.xpose.msra.mxu0 0
        %1965 = vmatprep.subr.bf16.mxu0 0
        %1966 = vmatpush1.bf16.xpose.msra.mxu0 0
        %1967 = vmatprep.subr.bf16.mxu0 0
        %1968 = vmatpush1.bf16.xpose.msra.mxu0 0
        %1969 = vmatprep.subr.bf16.mxu0 0
        %1970 = vmatpush1.bf16.xpose.msra.mxu0 0
        %1971 = vmatprep.subr.bf16.mxu0 0
        %1972 = vmatpush1.bf16.xpose.msra.mxu0 %v1955
        %1973 = vmatprep.subr.bf16.mxu0 0
        %1974 = vmatpush2.bf16.xpose.msra.mxu0 0
        %1975 = vmatprep.subr.bf16.mxu0 0
        %1976 = vmatpush2.bf16.xpose.msra.mxu0 0
        %1977 = vmatprep.subr.bf16.mxu0 0
        %1978 = vmatpush2.bf16.xpose.msra.mxu0 0
        %1979 = vmatprep.subr.bf16.mxu0 0
        %1980 = vmatpush2.bf16.xpose.msra.mxu0 0
        %1981 = vmatprep.subr.bf16.mxu0 0
        %1982 = vmatpush2.bf16.xpose.msra.mxu0 0
        %1983 = vmatprep.subr.bf16.mxu0 0
        %1984 = vmatpush2.bf16.xpose.msra.mxu0 0
        %1985 = vmatprep.subr.bf16.mxu0 0
        %1986 = vmatpush2.bf16.xpose.msra.mxu0 0
        %1987 = vmatprep.subr.bf16.mxu0 0
        %1988 = vmatpush2.bf16.xpose.msra.mxu0 0
        %1989 = vmatprep.mubr.bf16.mxu0 0
        %1990 = vmatmul.mubr.bf16.gmra.mxu0 %v1952
        %v1991 = vpop.f32.mrf.mxu0
        %v1992 = vadd.f32 0.0, %v1991
        %v1993 = vpop.f32.mrf.mxu0
        %v1994 = vpop.f32.mrf.mxu0
        %v1995 = vadd.f32 0.0, %v1994
        %v1996 = vpop.f32.mrf.mxu0
        %1997 = vdwg.mxu0
        %v1998 = vmul.f32 %v1621, 0.25
        %v1999 = vmul.f32 %v1624, 0.25
        %v2000 = vmul.f32 %v1674, 0.25
        %v2001 = vmul.f32 %v1677, 0.25
        %v2002 = vmul.f32 %v1727, 0.25
        %v2003 = vmul.f32 %v1730, 0.25
        %v2004 = vmul.f32 %v1780, 0.25
        %v2005 = vmul.f32 %v1783, 0.25
        %v2006 = vmul.f32 %v1833, 0.25
        %v2007 = vmul.f32 %v1836, 0.25
        %v2008 = vmul.f32 %v1886, 0.25
        %v2009 = vmul.f32 %v1889, 0.25
        %v2010 = vmul.f32 %v1939, 0.25
        %v2011 = vmul.f32 %v1942, 0.25
        %v2012 = vmul.f32 %v1992, 0.25
        %v2013 = vmul.f32 %v1995, 0.25
        %v2014 = vsel %vm629, %v1998, -inf
        %2015 = vmax.xlane.f32.xlu0 %v2014
        %v2016 = vpop.xlane.xlu0 %2015
        %v2017 = vsel %vm629, %v1999, -inf
        %2018 = vmax.xlane.f32.xlu0 %v2017
        %v2019 = vpop.xlane.xlu0 %2018
        %v2020 = vsel %vm629, %v2000, -inf
        %2021 = vmax.xlane.f32.xlu0 %v2020
        %v2022 = vpop.xlane.xlu0 %2021
        %v2023 = vsel %vm629, %v2001, -inf
        %2024 = vmax.xlane.f32.xlu0 %v2023
        %v2025 = vpop.xlane.xlu0 %2024
        %v2026 = vsel %vm629, %v2002, -inf
        %2027 = vmax.xlane.f32.xlu0 %v2026
        %v2028 = vpop.xlane.xlu0 %2027
        %v2029 = vsel %vm629, %v2003, -inf
        %2030 = vmax.xlane.f32.xlu0 %v2029
        %v2031 = vpop.xlane.xlu0 %2030
        %v2032 = vsel %vm629, %v2004, -inf
        %2033 = vmax.xlane.f32.xlu0 %v2032
        %v2034 = vpop.xlane.xlu0 %2033
        %v2035 = vsel %vm629, %v2005, -inf
        %2036 = vmax.xlane.f32.xlu0 %v2035
        %v2037 = vpop.xlane.xlu0 %2036
        %v2038 = vsel %vm629, %v2006, -inf
        %2039 = vmax.xlane.f32.xlu0 %v2038
        %v2040 = vpop.xlane.xlu0 %2039
        %v2041 = vsel %vm629, %v2007, -inf
        %2042 = vmax.xlane.f32.xlu0 %v2041
        %v2043 = vpop.xlane.xlu0 %2042
        %v2044 = vsel %vm629, %v2008, -inf
        %2045 = vmax.xlane.f32.xlu0 %v2044
        %v2046 = vpop.xlane.xlu0 %2045
        %v2047 = vsel %vm629, %v2009, -inf
        %2048 = vmax.xlane.f32.xlu0 %v2047
        %v2049 = vpop.xlane.xlu0 %2048
        %v2050 = vsel %vm629, %v2010, -inf
        %2051 = vmax.xlane.f32.xlu0 %v2050
        %v2052 = vpop.xlane.xlu0 %2051
        %v2053 = vsel %vm629, %v2011, -inf
        %2054 = vmax.xlane.f32.xlu0 %v2053
        %v2055 = vpop.xlane.xlu0 %2054
        %v2056 = vsel %vm629, %v2012, -inf
        %2057 = vmax.xlane.f32.xlu0 %v2056
        %v2058 = vpop.xlane.xlu0 %2057
        %v2059 = vsel %vm629, %v2013, -inf
        %2060 = vmax.xlane.f32.xlu0 %v2059
        %v2061 = vpop.xlane.xlu0 %2060
        %v2062 = vsub.f32 %v1998, %v2016
        %v2063 = vsub.f32 %v1999, %v2019
        %v2064 = vsub.f32 %v2000, %v2022
        %v2065 = vsub.f32 %v2001, %v2025
        %v2066 = vsub.f32 %v2002, %v2028
        %v2067 = vsub.f32 %v2003, %v2031
        %v2068 = vsub.f32 %v2004, %v2034
        %v2069 = vsub.f32 %v2005, %v2037
        %v2070 = vsub.f32 %v2006, %v2040
        %v2071 = vsub.f32 %v2007, %v2043
        %v2072 = vsub.f32 %v2008, %v2046
        %v2073 = vsub.f32 %v2009, %v2049
        %v2074 = vsub.f32 %v2010, %v2052
        %v2075 = vsub.f32 %v2011, %v2055
        %v2076 = vsub.f32 %v2012, %v2058
        %v2077 = vsub.f32 %v2013, %v2061
        %v2078 = vmul.f32 %v2062, 1.442695
        %v2079 = vpow.pop %v2078
        %v2080 = vmul.f32 %v2063, 1.442695
        %v2081 = vpow.pop %v2080
        %v2082 = vmul.f32 %v2064, 1.442695
        %v2083 = vpow.pop %v2082
        %v2084 = vmul.f32 %v2065, 1.442695
        %v2085 = vpow.pop %v2084
        %v2086 = vmul.f32 %v2066, 1.442695
        %v2087 = vpow.pop %v2086
        %v2088 = vmul.f32 %v2067, 1.442695
        %v2089 = vpow.pop %v2088
        %v2090 = vmul.f32 %v2068, 1.442695
        %v2091 = vpow.pop %v2090
        %v2092 = vmul.f32 %v2069, 1.442695
        %v2093 = vpow.pop %v2092
        %v2094 = vmul.f32 %v2070, 1.442695
        %v2095 = vpow.pop %v2094
        %v2096 = vmul.f32 %v2071, 1.442695
        %v2097 = vpow.pop %v2096
        %v2098 = vmul.f32 %v2072, 1.442695
        %v2099 = vpow.pop %v2098
        %v2100 = vmul.f32 %v2073, 1.442695
        %v2101 = vpow.pop %v2100
        %v2102 = vmul.f32 %v2074, 1.442695
        %v2103 = vpow.pop %v2102
        %v2104 = vmul.f32 %v2075, 1.442695
        %v2105 = vpow.pop %v2104
        %v2106 = vmul.f32 %v2076, 1.442695
        %v2107 = vpow.pop %v2106
        %v2108 = vmul.f32 %v2077, 1.442695
        %v2109 = vpow.pop %v2108
        %v2110 = vsel %vm629, %v2079, 0.0
        %2111 = vadd.xlane.f32.xlu0 %v2110
        %v2112 = vpop.xlane.xlu0 %2111
        %v2113 = vsel %vm629, %v2081, 0.0
        %2114 = vadd.xlane.f32.xlu0 %v2113
        %v2115 = vpop.xlane.xlu0 %2114
        %v2116 = vsel %vm629, %v2083, 0.0
        %2117 = vadd.xlane.f32.xlu0 %v2116
        %v2118 = vpop.xlane.xlu0 %2117
        %v2119 = vsel %vm629, %v2085, 0.0
        %2120 = vadd.xlane.f32.xlu0 %v2119
        %v2121 = vpop.xlane.xlu0 %2120
        %v2122 = vsel %vm629, %v2087, 0.0
        %2123 = vadd.xlane.f32.xlu0 %v2122
        %v2124 = vpop.xlane.xlu0 %2123
        %v2125 = vsel %vm629, %v2089, 0.0
        %2126 = vadd.xlane.f32.xlu0 %v2125
        %v2127 = vpop.xlane.xlu0 %2126
        %v2128 = vsel %vm629, %v2091, 0.0
        %2129 = vadd.xlane.f32.xlu0 %v2128
        %v2130 = vpop.xlane.xlu0 %2129
        %v2131 = vsel %vm629, %v2093, 0.0
        %2132 = vadd.xlane.f32.xlu0 %v2131
        %v2133 = vpop.xlane.xlu0 %2132
        %v2134 = vsel %vm629, %v2095, 0.0
        %2135 = vadd.xlane.f32.xlu0 %v2134
        %v2136 = vpop.xlane.xlu0 %2135
        %v2137 = vsel %vm629, %v2097, 0.0
        %2138 = vadd.xlane.f32.xlu0 %v2137
        %v2139 = vpop.xlane.xlu0 %2138
        %v2140 = vsel %vm629, %v2099, 0.0
        %2141 = vadd.xlane.f32.xlu0 %v2140
        %v2142 = vpop.xlane.xlu0 %2141
        %v2143 = vsel %vm629, %v2101, 0.0
        %2144 = vadd.xlane.f32.xlu0 %v2143
        %v2145 = vpop.xlane.xlu0 %2144
        %v2146 = vsel %vm629, %v2103, 0.0
        %2147 = vadd.xlane.f32.xlu0 %v2146
        %v2148 = vpop.xlane.xlu0 %2147
        %v2149 = vsel %vm629, %v2105, 0.0
        %2150 = vadd.xlane.f32.xlu0 %v2149
        %v2151 = vpop.xlane.xlu0 %2150
        %v2152 = vsel %vm629, %v2107, 0.0
        %2153 = vadd.xlane.f32.xlu0 %v2152
        %v2154 = vpop.xlane.xlu0 %2153
        %v2155 = vsel %vm629, %v2109, 0.0
        %2156 = vadd.xlane.f32.xlu0 %v2155
        %v2157 = vpop.xlane.xlu0 %2156
        %v2158 = vrcp.pop %v2112
        %v2159 = vrcp.pop %v2115
        %v2160 = vrcp.pop %v2118
        %v2161 = vrcp.pop %v2121
        %v2162 = vrcp.pop %v2124
        %v2163 = vrcp.pop %v2127
        %v2164 = vrcp.pop %v2130
        %v2165 = vrcp.pop %v2133
        %v2166 = vrcp.pop %v2136
        %v2167 = vrcp.pop %v2139
        %v2168 = vrcp.pop %v2142
        %v2169 = vrcp.pop %v2145
        %v2170 = vrcp.pop %v2148
        %v2171 = vrcp.pop %v2151
        %v2172 = vrcp.pop %v2154
        %v2173 = vrcp.pop %v2157
        %v2174 = vmul.f32 %v2079, %v2158
        %v2175 = vmul.f32 %v2081, %v2159
        %v2176 = vmul.f32 %v2083, %v2160
        %v2177 = vmul.f32 %v2085, %v2161
        %v2178 = vmul.f32 %v2087, %v2162
        %v2179 = vmul.f32 %v2089, %v2163
        %v2180 = vmul.f32 %v2091, %v2164
        %v2181 = vmul.f32 %v2093, %v2165
        %v2182 = vmul.f32 %v2095, %v2166
        %v2183 = vmul.f32 %v2097, %v2167
        %v2184 = vmul.f32 %v2099, %v2168
        %v2185 = vmul.f32 %v2101, %v2169
        %v2186 = vmul.f32 %v2103, %v2170
        %v2187 = vmul.f32 %v2105, %v2171
        %v2188 = vmul.f32 %v2107, %v2172
        %v2189 = vmul.f32 %v2109, %v2173
        %v2190 = vpack.c.bf16 %v2175, %v2174
        %v2191 = vpack.c.bf16 %v2177, %v2176
        %v2192 = vpack.c.bf16 %v2179, %v2178
        %v2193 = vpack.c.bf16 %v2181, %v2180
        %v2194 = vpack.c.bf16 %v2183, %v2182
        %v2195 = vpack.c.bf16 %v2185, %v2184
        %v2196 = vpack.c.bf16 %v2187, %v2186
        %v2197 = vpack.c.bf16 %v2189, %v2188
        %2199 = vrot.lane.b32.xlu0 %v1206, 112
        %v2200 = vpop.permute.xlu0 %2199
        %v2203 = vsel %vm629, %v2190, 0
        %2205 = vmatprep.subr.bf16.mxu0 0
        %2206 = vmatpush1.bf16.msra.mxu0 0
        %2207 = vmatprep.subr.bf16.mxu0 0
        %2208 = vmatpush1.bf16.msra.mxu0 0
        %2209 = vmatprep.subr.bf16.mxu0 0
        %2210 = vmatpush1.bf16.msra.mxu0 0
        %2211 = vmatprep.subr.bf16.mxu0 0
        %2212 = vmatpush1.bf16.msra.mxu0 0
        %2213 = vmatprep.subr.bf16.mxu0 0
        %2214 = vmatpush1.bf16.msra.mxu0 0
        %2215 = vmatprep.subr.bf16.mxu0 0
        %2216 = vmatpush1.bf16.msra.mxu0 0
        %2217 = vmatprep.subr.bf16.mxu0 0
        %2218 = vmatpush1.bf16.msra.mxu0 0
        %2219 = vmatprep.subr.bf16.mxu0 0
        %2220 = vmatpush1.bf16.msra.mxu0 %v2200
        %2221 = vmatprep.subr.bf16.mxu0 0
        %2222 = vmatpush2.bf16.msra.mxu0 0
        %2223 = vmatprep.subr.bf16.mxu0 0
        %2224 = vmatpush2.bf16.msra.mxu0 0
        %2225 = vmatprep.subr.bf16.mxu0 0
        %2226 = vmatpush2.bf16.msra.mxu0 0
        %2227 = vmatprep.subr.bf16.mxu0 0
        %2228 = vmatpush2.bf16.msra.mxu0 0
        %2229 = vmatprep.subr.bf16.mxu0 0
        %2230 = vmatpush2.bf16.msra.mxu0 0
        %2231 = vmatprep.subr.bf16.mxu0 0
        %2232 = vmatpush2.bf16.msra.mxu0 0
        %2233 = vmatprep.subr.bf16.mxu0 0
        %2234 = vmatpush2.bf16.msra.mxu0 0
        %2235 = vmatprep.subr.bf16.mxu0 0
        %2236 = vmatpush2.bf16.msra.mxu0 0
        %2237 = vmatprep.mubr.bf16.mxu0 0
        %2238 = vmatmul.mubr.bf16.gmra.mxu0 %v2203
        %v2239 = vpop.f32.mrf.mxu0
        %v2240 = vadd.f32 0.0, %v2239
        %v2241 = vpop.f32.mrf.mxu0
        %v2242 = vpop.f32.mrf.mxu0
        %v2243 = vadd.f32 0.0, %v2242
        %v2244 = vpop.f32.mrf.mxu0
        %2245 = vdwg.mxu0
        %2247 = vrot.lane.b32.xlu0 %v1207, 112
        %v2248 = vpop.permute.xlu0 %2247
        %v2251 = vsel %vm629, %v2191, 0
        %2253 = vmatprep.subr.bf16.mxu0 0
        %2254 = vmatpush1.bf16.msra.mxu0 0
        %2255 = vmatprep.subr.bf16.mxu0 0
        %2256 = vmatpush1.bf16.msra.mxu0 0
        %2257 = vmatprep.subr.bf16.mxu0 0
        %2258 = vmatpush1.bf16.msra.mxu0 0
        %2259 = vmatprep.subr.bf16.mxu0 0
        %2260 = vmatpush1.bf16.msra.mxu0 0
        %2261 = vmatprep.subr.bf16.mxu0 0
        %2262 = vmatpush1.bf16.msra.mxu0 0
        %2263 = vmatprep.subr.bf16.mxu0 0
        %2264 = vmatpush1.bf16.msra.mxu0 0
        %2265 = vmatprep.subr.bf16.mxu0 0
        %2266 = vmatpush1.bf16.msra.mxu0 0
        %2267 = vmatprep.subr.bf16.mxu0 0
        %2268 = vmatpush1.bf16.msra.mxu0 %v2248
        %2269 = vmatprep.subr.bf16.mxu0 0
        %2270 = vmatpush2.bf16.msra.mxu0 0
        %2271 = vmatprep.subr.bf16.mxu0 0
        %2272 = vmatpush2.bf16.msra.mxu0 0
        %2273 = vmatprep.subr.bf16.mxu0 0
        %2274 = vmatpush2.bf16.msra.mxu0 0
        %2275 = vmatprep.subr.bf16.mxu0 0
        %2276 = vmatpush2.bf16.msra.mxu0 0
        %2277 = vmatprep.subr.bf16.mxu0 0
        %2278 = vmatpush2.bf16.msra.mxu0 0
        %2279 = vmatprep.subr.bf16.mxu0 0
        %2280 = vmatpush2.bf16.msra.mxu0 0
        %2281 = vmatprep.subr.bf16.mxu0 0
        %2282 = vmatpush2.bf16.msra.mxu0 0
        %2283 = vmatprep.subr.bf16.mxu0 0
        %2284 = vmatpush2.bf16.msra.mxu0 0
        %2285 = vmatprep.mubr.bf16.mxu0 0
        %2286 = vmatmul.mubr.bf16.gmra.mxu0 %v2251
        %v2287 = vpop.f32.mrf.mxu0
        %v2288 = vadd.f32 0.0, %v2287
        %v2289 = vpop.f32.mrf.mxu0
        %v2290 = vpop.f32.mrf.mxu0
        %v2291 = vadd.f32 0.0, %v2290
        %v2292 = vpop.f32.mrf.mxu0
        %2293 = vdwg.mxu0
        %2295 = vrot.lane.b32.xlu0 %v1208, 112
        %v2296 = vpop.permute.xlu0 %2295
        %v2299 = vsel %vm629, %v2192, 0
        %2301 = vmatprep.subr.bf16.mxu0 0
        %2302 = vmatpush1.bf16.msra.mxu0 0
        %2303 = vmatprep.subr.bf16.mxu0 0
        %2304 = vmatpush1.bf16.msra.mxu0 0
        %2305 = vmatprep.subr.bf16.mxu0 0
        %2306 = vmatpush1.bf16.msra.mxu0 0
        %2307 = vmatprep.subr.bf16.mxu0 0
        %2308 = vmatpush1.bf16.msra.mxu0 0
        %2309 = vmatprep.subr.bf16.mxu0 0
        %2310 = vmatpush1.bf16.msra.mxu0 0
        %2311 = vmatprep.subr.bf16.mxu0 0
        %2312 = vmatpush1.bf16.msra.mxu0 0
        %2313 = vmatprep.subr.bf16.mxu0 0
        %2314 = vmatpush1.bf16.msra.mxu0 0
        %2315 = vmatprep.subr.bf16.mxu0 0
        %2316 = vmatpush1.bf16.msra.mxu0 %v2296
        %2317 = vmatprep.subr.bf16.mxu0 0
        %2318 = vmatpush2.bf16.msra.mxu0 0
        %2319 = vmatprep.subr.bf16.mxu0 0
        %2320 = vmatpush2.bf16.msra.mxu0 0
        %2321 = vmatprep.subr.bf16.mxu0 0
        %2322 = vmatpush2.bf16.msra.mxu0 0
        %2323 = vmatprep.subr.bf16.mxu0 0
        %2324 = vmatpush2.bf16.msra.mxu0 0
        %2325 = vmatprep.subr.bf16.mxu0 0
        %2326 = vmatpush2.bf16.msra.mxu0 0
        %2327 = vmatprep.subr.bf16.mxu0 0
        %2328 = vmatpush2.bf16.msra.mxu0 0
        %2329 = vmatprep.subr.bf16.mxu0 0
        %2330 = vmatpush2.bf16.msra.mxu0 0
        %2331 = vmatprep.subr.bf16.mxu0 0
        %2332 = vmatpush2.bf16.msra.mxu0 0
        %2333 = vmatprep.mubr.bf16.mxu0 0
        %2334 = vmatmul.mubr.bf16.gmra.mxu0 %v2299
        %v2335 = vpop.f32.mrf.mxu0
        %v2336 = vadd.f32 0.0, %v2335
        %v2337 = vpop.f32.mrf.mxu0
        %v2338 = vpop.f32.mrf.mxu0
        %v2339 = vadd.f32 0.0, %v2338
        %v2340 = vpop.f32.mrf.mxu0
        %2341 = vdwg.mxu0
        %2343 = vrot.lane.b32.xlu0 %v1209, 112
        %v2344 = vpop.permute.xlu0 %2343
        %v2347 = vsel %vm629, %v2193, 0
        %2349 = vmatprep.subr.bf16.mxu0 0
        %2350 = vmatpush1.bf16.msra.mxu0 0
        %2351 = vmatprep.subr.bf16.mxu0 0
        %2352 = vmatpush1.bf16.msra.mxu0 0
        %2353 = vmatprep.subr.bf16.mxu0 0
        %2354 = vmatpush1.bf16.msra.mxu0 0
        %2355 = vmatprep.subr.bf16.mxu0 0
        %2356 = vmatpush1.bf16.msra.mxu0 0
        %2357 = vmatprep.subr.bf16.mxu0 0
        %2358 = vmatpush1.bf16.msra.mxu0 0
        %2359 = vmatprep.subr.bf16.mxu0 0
        %2360 = vmatpush1.bf16.msra.mxu0 0
        %2361 = vmatprep.subr.bf16.mxu0 0
        %2362 = vmatpush1.bf16.msra.mxu0 0
        %2363 = vmatprep.subr.bf16.mxu0 0
        %2364 = vmatpush1.bf16.msra.mxu0 %v2344
        %2365 = vmatprep.subr.bf16.mxu0 0
        %2366 = vmatpush2.bf16.msra.mxu0 0
        %2367 = vmatprep.subr.bf16.mxu0 0
        %2368 = vmatpush2.bf16.msra.mxu0 0
        %2369 = vmatprep.subr.bf16.mxu0 0
        %2370 = vmatpush2.bf16.msra.mxu0 0
        %2371 = vmatprep.subr.bf16.mxu0 0
        %2372 = vmatpush2.bf16.msra.mxu0 0
        %2373 = vmatprep.subr.bf16.mxu0 0
        %2374 = vmatpush2.bf16.msra.mxu0 0
        %2375 = vmatprep.subr.bf16.mxu0 0
        %2376 = vmatpush2.bf16.msra.mxu0 0
        %2377 = vmatprep.subr.bf16.mxu0 0
        %2378 = vmatpush2.bf16.msra.mxu0 0
        %2379 = vmatprep.subr.bf16.mxu0 0
        %2380 = vmatpush2.bf16.msra.mxu0 0
        %2381 = vmatprep.mubr.bf16.mxu0 0
        %2382 = vmatmul.mubr.bf16.gmra.mxu0 %v2347
        %v2383 = vpop.f32.mrf.mxu0
        %v2384 = vadd.f32 0.0, %v2383
        %v2385 = vpop.f32.mrf.mxu0
        %v2386 = vpop.f32.mrf.mxu0
        %v2387 = vadd.f32 0.0, %v2386
        %v2388 = vpop.f32.mrf.mxu0
        %2389 = vdwg.mxu0
        %2391 = vrot.lane.b32.xlu0 %v1210, 112
        %v2392 = vpop.permute.xlu0 %2391
        %v2395 = vsel %vm629, %v2194, 0
        %2397 = vmatprep.subr.bf16.mxu0 0
        %2398 = vmatpush1.bf16.msra.mxu0 0
        %2399 = vmatprep.subr.bf16.mxu0 0
        %2400 = vmatpush1.bf16.msra.mxu0 0
        %2401 = vmatprep.subr.bf16.mxu0 0
        %2402 = vmatpush1.bf16.msra.mxu0 0
        %2403 = vmatprep.subr.bf16.mxu0 0
        %2404 = vmatpush1.bf16.msra.mxu0 0
        %2405 = vmatprep.subr.bf16.mxu0 0
        %2406 = vmatpush1.bf16.msra.mxu0 0
        %2407 = vmatprep.subr.bf16.mxu0 0
        %2408 = vmatpush1.bf16.msra.mxu0 0
        %2409 = vmatprep.subr.bf16.mxu0 0
        %2410 = vmatpush1.bf16.msra.mxu0 0
        %2411 = vmatprep.subr.bf16.mxu0 0
        %2412 = vmatpush1.bf16.msra.mxu0 %v2392
        %2413 = vmatprep.subr.bf16.mxu0 0
        %2414 = vmatpush2.bf16.msra.mxu0 0
        %2415 = vmatprep.subr.bf16.mxu0 0
        %2416 = vmatpush2.bf16.msra.mxu0 0
        %2417 = vmatprep.subr.bf16.mxu0 0
        %2418 = vmatpush2.bf16.msra.mxu0 0
        %2419 = vmatprep.subr.bf16.mxu0 0
        %2420 = vmatpush2.bf16.msra.mxu0 0
        %2421 = vmatprep.subr.bf16.mxu0 0
        %2422 = vmatpush2.bf16.msra.mxu0 0
        %2423 = vmatprep.subr.bf16.mxu0 0
        %2424 = vmatpush2.bf16.msra.mxu0 0
        %2425 = vmatprep.subr.bf16.mxu0 0
        %2426 = vmatpush2.bf16.msra.mxu0 0
        %2427 = vmatprep.subr.bf16.mxu0 0
        %2428 = vmatpush2.bf16.msra.mxu0 0
        %2429 = vmatprep.mubr.bf16.mxu0 0
        %2430 = vmatmul.mubr.bf16.gmra.mxu0 %v2395
        %v2431 = vpop.f32.mrf.mxu0
        %v2432 = vadd.f32 0.0, %v2431
        %v2433 = vpop.f32.mrf.mxu0
        %v2434 = vpop.f32.mrf.mxu0
        %v2435 = vadd.f32 0.0, %v2434
        %v2436 = vpop.f32.mrf.mxu0
        %2437 = vdwg.mxu0
        %2439 = vrot.lane.b32.xlu0 %v1211, 112
        %v2440 = vpop.permute.xlu0 %2439
        %v2443 = vsel %vm629, %v2195, 0
        %2445 = vmatprep.subr.bf16.mxu0 0
        %2446 = vmatpush1.bf16.msra.mxu0 0
        %2447 = vmatprep.subr.bf16.mxu0 0
        %2448 = vmatpush1.bf16.msra.mxu0 0
        %2449 = vmatprep.subr.bf16.mxu0 0
        %2450 = vmatpush1.bf16.msra.mxu0 0
        %2451 = vmatprep.subr.bf16.mxu0 0
        %2452 = vmatpush1.bf16.msra.mxu0 0
        %2453 = vmatprep.subr.bf16.mxu0 0
        %2454 = vmatpush1.bf16.msra.mxu0 0
        %2455 = vmatprep.subr.bf16.mxu0 0
        %2456 = vmatpush1.bf16.msra.mxu0 0
        %2457 = vmatprep.subr.bf16.mxu0 0
        %2458 = vmatpush1.bf16.msra.mxu0 0
        %2459 = vmatprep.subr.bf16.mxu0 0
        %2460 = vmatpush1.bf16.msra.mxu0 %v2440
        %2461 = vmatprep.subr.bf16.mxu0 0
        %2462 = vmatpush2.bf16.msra.mxu0 0
        %2463 = vmatprep.subr.bf16.mxu0 0
        %2464 = vmatpush2.bf16.msra.mxu0 0
        %2465 = vmatprep.subr.bf16.mxu0 0
        %2466 = vmatpush2.bf16.msra.mxu0 0
        %2467 = vmatprep.subr.bf16.mxu0 0
        %2468 = vmatpush2.bf16.msra.mxu0 0
        %2469 = vmatprep.subr.bf16.mxu0 0
        %2470 = vmatpush2.bf16.msra.mxu0 0
        %2471 = vmatprep.subr.bf16.mxu0 0
        %2472 = vmatpush2.bf16.msra.mxu0 0
        %2473 = vmatprep.subr.bf16.mxu0 0
        %2474 = vmatpush2.bf16.msra.mxu0 0
        %2475 = vmatprep.subr.bf16.mxu0 0
        %2476 = vmatpush2.bf16.msra.mxu0 0
        %2477 = vmatprep.mubr.bf16.mxu0 0
        %2478 = vmatmul.mubr.bf16.gmra.mxu0 %v2443
        %v2479 = vpop.f32.mrf.mxu0
        %v2480 = vadd.f32 0.0, %v2479
        %v2481 = vpop.f32.mrf.mxu0
        %v2482 = vpop.f32.mrf.mxu0
        %v2483 = vadd.f32 0.0, %v2482
        %v2484 = vpop.f32.mrf.mxu0
        %2485 = vdwg.mxu0
        %2487 = vrot.lane.b32.xlu0 %v1212, 112
        %v2488 = vpop.permute.xlu0 %2487
        %v2491 = vsel %vm629, %v2196, 0
        %2493 = vmatprep.subr.bf16.mxu0 0
        %2494 = vmatpush1.bf16.msra.mxu0 0
        %2495 = vmatprep.subr.bf16.mxu0 0
        %2496 = vmatpush1.bf16.msra.mxu0 0
        %2497 = vmatprep.subr.bf16.mxu0 0
        %2498 = vmatpush1.bf16.msra.mxu0 0
        %2499 = vmatprep.subr.bf16.mxu0 0
        %2500 = vmatpush1.bf16.msra.mxu0 0
        %2501 = vmatprep.subr.bf16.mxu0 0
        %2502 = vmatpush1.bf16.msra.mxu0 0
        %2503 = vmatprep.subr.bf16.mxu0 0
        %2504 = vmatpush1.bf16.msra.mxu0 0
        %2505 = vmatprep.subr.bf16.mxu0 0
        %2506 = vmatpush1.bf16.msra.mxu0 0
        %2507 = vmatprep.subr.bf16.mxu0 0
        %2508 = vmatpush1.bf16.msra.mxu0 %v2488
        %2509 = vmatprep.subr.bf16.mxu0 0
        %2510 = vmatpush2.bf16.msra.mxu0 0
        %2511 = vmatprep.subr.bf16.mxu0 0
        %2512 = vmatpush2.bf16.msra.mxu0 0
        %2513 = vmatprep.subr.bf16.mxu0 0
        %2514 = vmatpush2.bf16.msra.mxu0 0
        %2515 = vmatprep.subr.bf16.mxu0 0
        %2516 = vmatpush2.bf16.msra.mxu0 0
        %2517 = vmatprep.subr.bf16.mxu0 0
        %2518 = vmatpush2.bf16.msra.mxu0 0
        %2519 = vmatprep.subr.bf16.mxu0 0
        %2520 = vmatpush2.bf16.msra.mxu0 0
        %2521 = vmatprep.subr.bf16.mxu0 0
        %2522 = vmatpush2.bf16.msra.mxu0 0
        %2523 = vmatprep.subr.bf16.mxu0 0
        %2524 = vmatpush2.bf16.msra.mxu0 0
        %2525 = vmatprep.mubr.bf16.mxu0 0
        %2526 = vmatmul.mubr.bf16.gmra.mxu0 %v2491
        %v2527 = vpop.f32.mrf.mxu0
        %v2528 = vadd.f32 0.0, %v2527
        %v2529 = vpop.f32.mrf.mxu0
        %v2530 = vpop.f32.mrf.mxu0
        %v2531 = vadd.f32 0.0, %v2530
        %v2532 = vpop.f32.mrf.mxu0
        %2533 = vdwg.mxu0
        %2535 = vrot.lane.b32.xlu0 %v1213, 112
        %v2536 = vpop.permute.xlu0 %2535
        %v2539 = vsel %vm629, %v2197, 0
        %2541 = vmatprep.subr.bf16.mxu0 0
        %2542 = vmatpush1.bf16.msra.mxu0 0
        %2543 = vmatprep.subr.bf16.mxu0 0
        %2544 = vmatpush1.bf16.msra.mxu0 0
        %2545 = vmatprep.subr.bf16.mxu0 0
        %2546 = vmatpush1.bf16.msra.mxu0 0
        %2547 = vmatprep.subr.bf16.mxu0 0
        %2548 = vmatpush1.bf16.msra.mxu0 0
        %2549 = vmatprep.subr.bf16.mxu0 0
        %2550 = vmatpush1.bf16.msra.mxu0 0
        %2551 = vmatprep.subr.bf16.mxu0 0
        %2552 = vmatpush1.bf16.msra.mxu0 0
        %2553 = vmatprep.subr.bf16.mxu0 0
        %2554 = vmatpush1.bf16.msra.mxu0 0
        %2555 = vmatprep.subr.bf16.mxu0 0
        %2556 = vmatpush1.bf16.msra.mxu0 %v2536
        %2557 = vmatprep.subr.bf16.mxu0 0
        %2558 = vmatpush2.bf16.msra.mxu0 0
        %2559 = vmatprep.subr.bf16.mxu0 0
        %2560 = vmatpush2.bf16.msra.mxu0 0
        %2561 = vmatprep.subr.bf16.mxu0 0
        %2562 = vmatpush2.bf16.msra.mxu0 0
        %2563 = vmatprep.subr.bf16.mxu0 0
        %2564 = vmatpush2.bf16.msra.mxu0 0
        %2565 = vmatprep.subr.bf16.mxu0 0
        %2566 = vmatpush2.bf16.msra.mxu0 0
        %2567 = vmatprep.subr.bf16.mxu0 0
        %2568 = vmatpush2.bf16.msra.mxu0 0
        %2569 = vmatprep.subr.bf16.mxu0 0
        %2570 = vmatpush2.bf16.msra.mxu0 0
        %2571 = vmatprep.subr.bf16.mxu0 0
        %2572 = vmatpush2.bf16.msra.mxu0 0
        %2573 = vmatprep.mubr.bf16.mxu0 0
        %2574 = vmatmul.mubr.bf16.gmra.mxu0 %v2539
        %v2575 = vpop.f32.mrf.mxu0
        %v2576 = vadd.f32 0.0, %v2575
        %v2577 = vpop.f32.mrf.mxu0
        %v2578 = vpop.f32.mrf.mxu0
        %v2579 = vadd.f32 0.0, %v2578
        %v2580 = vpop.f32.mrf.mxu0
        %2581 = vdwg.mxu0
        %v2582 = vpack.c.bf16 %v2243, %v2240
        %v2583 = vpack.c.bf16 %v2291, %v2288
        %v2584 = vpack.c.bf16 %v2339, %v2336
        %v2585 = vpack.c.bf16 %v2387, %v2384
        %v2586 = vpack.c.bf16 %v2435, %v2432
        %v2587 = vpack.c.bf16 %v2483, %v2480
        %v2588 = vpack.c.bf16 %v2531, %v2528
        %v2589 = vpack.c.bf16 %v2579, %v2576
        %v2592 = vunpack.c.l.b16 %v261
        %v2593 = vunpack.c.l.b16 %v262
        %v2594 = vpack.c.b16 %v2593, %v2592
        %v2597 = vsel %vm629, %v2582, 0
        %v2600 = vsel %vm629, %v2583, 0
        %v2603 = vsel %vm629, %v2584, 0
        %v2606 = vsel %vm629, %v2585, 0
        %v2609 = vsel %vm629, %v2586, 0
        %v2612 = vsel %vm629, %v2587, 0
        %v2615 = vsel %vm629, %v2588, 0
        %v2618 = vsel %vm629, %v2589, 0
        %2620 = vmatprep.subr.bf16.mxu0 0
        %2621 = vmatpush1.bf16.msra.mxu0 0
        %2622 = vmatprep.subr.bf16.mxu0 0
        %2623 = vmatpush1.bf16.msra.mxu0 0
        %2624 = vmatprep.subr.bf16.mxu0 0
        %2625 = vmatpush1.bf16.msra.mxu0 0
        %2626 = vmatprep.subr.bf16.mxu0 0
        %2627 = vmatpush1.bf16.msra.mxu0 0
        %2628 = vmatprep.subr.bf16.mxu0 0
        %2629 = vmatpush1.bf16.msra.mxu0 0
        %2630 = vmatprep.subr.bf16.mxu0 0
        %2631 = vmatpush1.bf16.msra.mxu0 0
        %2632 = vmatprep.subr.bf16.mxu0 0
        %2633 = vmatpush1.bf16.msra.mxu0 0
        %2634 = vmatprep.subr.bf16.mxu0 0
        %2635 = vmatpush1.bf16.msra.mxu0 %v2594
        %2636 = vmatprep.subr.bf16.mxu0 0
        %2637 = vmatpush2.bf16.msra.mxu0 0
        %2638 = vmatprep.subr.bf16.mxu0 0
        %2639 = vmatpush2.bf16.msra.mxu0 0
        %2640 = vmatprep.subr.bf16.mxu0 0
        %2641 = vmatpush2.bf16.msra.mxu0 0
        %2642 = vmatprep.subr.bf16.mxu0 0
        %2643 = vmatpush2.bf16.msra.mxu0 0
        %2644 = vmatprep.subr.bf16.mxu0 0
        %2645 = vmatpush2.bf16.msra.mxu0 0
        %2646 = vmatprep.subr.bf16.mxu0 0
        %2647 = vmatpush2.bf16.msra.mxu0 0
        %2648 = vmatprep.subr.bf16.mxu0 0
        %2649 = vmatpush2.bf16.msra.mxu0 0
        %2650 = vmatprep.subr.bf16.mxu0 0
        %2651 = vmatpush2.bf16.msra.mxu0 0
        %2652 = vmatprep.mubr.bf16.mxu0 0
        %2653 = vmatmul.mubr.bf16.gmra.mxu0 %v2597
        %v2654 = vpop.f32.mrf.mxu0
        %v2655 = vadd.f32 0.0, %v2654
        %v2656 = vpop.f32.mrf.mxu0
        %v2657 = vpop.f32.mrf.mxu0
        %v2658 = vadd.f32 0.0, %v2657
        %v2659 = vpop.f32.mrf.mxu0
        %2660 = vmatprep.mubr.bf16.mxu0 0
        %2661 = vmatmul.mubr.bf16.gmra.mxu0 %v2600
        %v2662 = vpop.f32.mrf.mxu0
        %v2663 = vadd.f32 0.0, %v2662
        %v2664 = vpop.f32.mrf.mxu0
        %v2665 = vpop.f32.mrf.mxu0
        %v2666 = vadd.f32 0.0, %v2665
        %v2667 = vpop.f32.mrf.mxu0
        %2668 = vmatprep.mubr.bf16.mxu0 0
        %2669 = vmatmul.mubr.bf16.gmra.mxu0 %v2603
        %v2670 = vpop.f32.mrf.mxu0
        %v2671 = vadd.f32 0.0, %v2670
        %v2672 = vpop.f32.mrf.mxu0
        %v2673 = vpop.f32.mrf.mxu0
        %v2674 = vadd.f32 0.0, %v2673
        %v2675 = vpop.f32.mrf.mxu0
        %2676 = vmatprep.mubr.bf16.mxu0 0
        %2677 = vmatmul.mubr.bf16.gmra.mxu0 %v2606
        %v2678 = vpop.f32.mrf.mxu0
        %v2679 = vadd.f32 0.0, %v2678
        %v2680 = vpop.f32.mrf.mxu0
        %v2681 = vpop.f32.mrf.mxu0
        %v2682 = vadd.f32 0.0, %v2681
        %v2683 = vpop.f32.mrf.mxu0
        %2684 = vmatprep.mubr.bf16.mxu0 0
        %2685 = vmatmul.mubr.bf16.gmra.mxu0 %v2609
        %v2686 = vpop.f32.mrf.mxu0
        %v2687 = vadd.f32 0.0, %v2686
        %v2688 = vpop.f32.mrf.mxu0
        %v2689 = vpop.f32.mrf.mxu0
        %v2690 = vadd.f32 0.0, %v2689
        %v2691 = vpop.f32.mrf.mxu0
        %2692 = vmatprep.mubr.bf16.mxu0 0
        %2693 = vmatmul.mubr.bf16.gmra.mxu0 %v2612
        %v2694 = vpop.f32.mrf.mxu0
        %v2695 = vadd.f32 0.0, %v2694
        %v2696 = vpop.f32.mrf.mxu0
        %v2697 = vpop.f32.mrf.mxu0
        %v2698 = vadd.f32 0.0, %v2697
        %v2699 = vpop.f32.mrf.mxu0
        %2700 = vmatprep.mubr.bf16.mxu0 0
        %2701 = vmatmul.mubr.bf16.gmra.mxu0 %v2615
        %v2702 = vpop.f32.mrf.mxu0
        %v2703 = vadd.f32 0.0, %v2702
        %v2704 = vpop.f32.mrf.mxu0
        %v2705 = vpop.f32.mrf.mxu0
        %v2706 = vadd.f32 0.0, %v2705
        %v2707 = vpop.f32.mrf.mxu0
        %2708 = vmatprep.mubr.bf16.mxu0 0
        %2709 = vmatmul.mubr.bf16.gmra.mxu0 %v2618
        %v2710 = vpop.f32.mrf.mxu0
        %v2711 = vadd.f32 0.0, %v2710
        %v2712 = vpop.f32.mrf.mxu0
        %v2713 = vpop.f32.mrf.mxu0
        %v2714 = vadd.f32 0.0, %v2713
        %v2715 = vpop.f32.mrf.mxu0
        %2716 = vdwg.mxu0
        %v2719 = vunpack.c.l.b16 %v259
        %v2720 = vunpack.c.l.b16 %v260
        %v2721 = vpack.c.b16 %v2720, %v2719
        %v2724 = vsel %vm629, %v1566, 0
        %v2727 = vsel %vm629, %v1567, 0
        %v2730 = vsel %vm629, %v1568, 0
        %v2733 = vsel %vm629, %v1569, 0
        %v2736 = vsel %vm629, %v1570, 0
        %v2739 = vsel %vm629, %v1571, 0
        %v2742 = vsel %vm629, %v1572, 0
        %v2745 = vsel %vm629, %v1573, 0
        %2747 = vmatprep.subr.bf16.mxu0 0
        %2748 = vmatpush1.bf16.msra.mxu0 0
        %2749 = vmatprep.subr.bf16.mxu0 0
        %2750 = vmatpush1.bf16.msra.mxu0 0
        %2751 = vmatprep.subr.bf16.mxu0 0
        %2752 = vmatpush1.bf16.msra.mxu0 0
        %2753 = vmatprep.subr.bf16.mxu0 0
        %2754 = vmatpush1.bf16.msra.mxu0 0
        %2755 = vmatprep.subr.bf16.mxu0 0
        %2756 = vmatpush1.bf16.msra.mxu0 0
        %2757 = vmatprep.subr.bf16.mxu0 0
        %2758 = vmatpush1.bf16.msra.mxu0 0
        %2759 = vmatprep.subr.bf16.mxu0 0
        %2760 = vmatpush1.bf16.msra.mxu0 0
        %2761 = vmatprep.subr.bf16.mxu0 0
        %2762 = vmatpush1.bf16.msra.mxu0 %v2721
        %2763 = vmatprep.subr.bf16.mxu0 0
        %2764 = vmatpush2.bf16.msra.mxu0 0
        %2765 = vmatprep.subr.bf16.mxu0 0
        %2766 = vmatpush2.bf16.msra.mxu0 0
        %2767 = vmatprep.subr.bf16.mxu0 0
        %2768 = vmatpush2.bf16.msra.mxu0 0
        %2769 = vmatprep.subr.bf16.mxu0 0
        %2770 = vmatpush2.bf16.msra.mxu0 0
        %2771 = vmatprep.subr.bf16.mxu0 0
        %2772 = vmatpush2.bf16.msra.mxu0 0
        %2773 = vmatprep.subr.bf16.mxu0 0
        %2774 = vmatpush2.bf16.msra.mxu0 0
        %2775 = vmatprep.subr.bf16.mxu0 0
        %2776 = vmatpush2.bf16.msra.mxu0 0
        %2777 = vmatprep.subr.bf16.mxu0 0
        %2778 = vmatpush2.bf16.msra.mxu0 0
        %2779 = vmatprep.mubr.bf16.mxu0 0
        %2780 = vmatmul.mubr.bf16.gmra.mxu0 %v2724
        %v2781 = vpop.f32.mrf.mxu0
        %v2782 = vadd.f32 %v2655, %v2781
        %v2783 = vpop.f32.mrf.mxu0
        %v2784 = vpop.f32.mrf.mxu0
        %v2785 = vadd.f32 %v2658, %v2784
        %v2786 = vpop.f32.mrf.mxu0
        %2787 = vmatprep.mubr.bf16.mxu0 0
        %2788 = vmatmul.mubr.bf16.gmra.mxu0 %v2727
        %v2789 = vpop.f32.mrf.mxu0
        %v2790 = vadd.f32 %v2663, %v2789
        %v2791 = vpop.f32.mrf.mxu0
        %v2792 = vpop.f32.mrf.mxu0
        %v2793 = vadd.f32 %v2666, %v2792
        %v2794 = vpop.f32.mrf.mxu0
        %2795 = vmatprep.mubr.bf16.mxu0 0
        %2796 = vmatmul.mubr.bf16.gmra.mxu0 %v2730
        %v2797 = vpop.f32.mrf.mxu0
        %v2798 = vadd.f32 %v2671, %v2797
        %v2799 = vpop.f32.mrf.mxu0
        %v2800 = vpop.f32.mrf.mxu0
        %v2801 = vadd.f32 %v2674, %v2800
        %v2802 = vpop.f32.mrf.mxu0
        %2803 = vmatprep.mubr.bf16.mxu0 0
        %2804 = vmatmul.mubr.bf16.gmra.mxu0 %v2733
        %v2805 = vpop.f32.mrf.mxu0
        %v2806 = vadd.f32 %v2679, %v2805
        %v2807 = vpop.f32.mrf.mxu0
        %v2808 = vpop.f32.mrf.mxu0
        %v2809 = vadd.f32 %v2682, %v2808
        %v2810 = vpop.f32.mrf.mxu0
        %2811 = vmatprep.mubr.bf16.mxu0 0
        %2812 = vmatmul.mubr.bf16.gmra.mxu0 %v2736
        %v2813 = vpop.f32.mrf.mxu0
        %v2814 = vadd.f32 %v2687, %v2813
        %v2815 = vpop.f32.mrf.mxu0
        %v2816 = vpop.f32.mrf.mxu0
        %v2817 = vadd.f32 %v2690, %v2816
        %v2818 = vpop.f32.mrf.mxu0
        %2819 = vmatprep.mubr.bf16.mxu0 0
        %2820 = vmatmul.mubr.bf16.gmra.mxu0 %v2739
        %v2821 = vpop.f32.mrf.mxu0
        %v2822 = vadd.f32 %v2695, %v2821
        %v2823 = vpop.f32.mrf.mxu0
        %v2824 = vpop.f32.mrf.mxu0
        %v2825 = vadd.f32 %v2698, %v2824
        %v2826 = vpop.f32.mrf.mxu0
        %2827 = vmatprep.mubr.bf16.mxu0 0
        %2828 = vmatmul.mubr.bf16.gmra.mxu0 %v2742
        %v2829 = vpop.f32.mrf.mxu0
        %v2830 = vadd.f32 %v2703, %v2829
        %v2831 = vpop.f32.mrf.mxu0
        %v2832 = vpop.f32.mrf.mxu0
        %v2833 = vadd.f32 %v2706, %v2832
        %v2834 = vpop.f32.mrf.mxu0
        %2835 = vmatprep.mubr.bf16.mxu0 0
        %2836 = vmatmul.mubr.bf16.gmra.mxu0 %v2745
        %v2837 = vpop.f32.mrf.mxu0
        %v2838 = vadd.f32 %v2711, %v2837
        %v2839 = vpop.f32.mrf.mxu0
        %v2840 = vpop.f32.mrf.mxu0
        %v2841 = vadd.f32 %v2714, %v2840
        %v2842 = vpop.f32.mrf.mxu0
        %2843 = vdwg.mxu0
        %2844 = vrot.lane.b32.xlu0 %v613, 96
        %v2845 = vpop.permute.xlu0 %2844
        %2846 = vrot.lane.b32.xlu0 %v621, 96
        %v2847 = vpop.permute.xlu0 %2846
        %v2849 = vsel %vm629, %v2845, 0
        %v2852 = vsel %vm629, %v2847, 0
        %2854 = vmatprep.subr.bf16.mxu0 0
        %2855 = vmatpush1.bf16.xpose.msra.mxu0 0
        %2856 = vmatprep.subr.bf16.mxu0 0
        %2857 = vmatpush1.bf16.xpose.msra.mxu0 0
        %2858 = vmatprep.subr.bf16.mxu0 0
        %2859 = vmatpush1.bf16.xpose.msra.mxu0 0
        %2860 = vmatprep.subr.bf16.mxu0 0
        %2861 = vmatpush1.bf16.xpose.msra.mxu0 0
        %2862 = vmatprep.subr.bf16.mxu0 0
        %2863 = vmatpush1.bf16.xpose.msra.mxu0 0
        %2864 = vmatprep.subr.bf16.mxu0 0
        %2865 = vmatpush1.bf16.xpose.msra.mxu0 0
        %2866 = vmatprep.subr.bf16.mxu0 0
        %2867 = vmatpush1.bf16.xpose.msra.mxu0 0
        %2868 = vmatprep.subr.bf16.mxu0 0
        %2869 = vmatpush1.bf16.xpose.msra.mxu0 %v2852
        %2870 = vmatprep.subr.bf16.mxu0 0
        %2871 = vmatpush2.bf16.xpose.msra.mxu0 0
        %2872 = vmatprep.subr.bf16.mxu0 0
        %2873 = vmatpush2.bf16.xpose.msra.mxu0 0
        %2874 = vmatprep.subr.bf16.mxu0 0
        %2875 = vmatpush2.bf16.xpose.msra.mxu0 0
        %2876 = vmatprep.subr.bf16.mxu0 0
        %2877 = vmatpush2.bf16.xpose.msra.mxu0 0
        %2878 = vmatprep.subr.bf16.mxu0 0
        %2879 = vmatpush2.bf16.xpose.msra.mxu0 0
        %2880 = vmatprep.subr.bf16.mxu0 0
        %2881 = vmatpush2.bf16.xpose.msra.mxu0 0
        %2882 = vmatprep.subr.bf16.mxu0 0
        %2883 = vmatpush2.bf16.xpose.msra.mxu0 0
        %2884 = vmatprep.subr.bf16.mxu0 0
        %2885 = vmatpush2.bf16.xpose.msra.mxu0 0
        %2886 = vmatprep.mubr.bf16.mxu0 0
        %2887 = vmatmul.mubr.bf16.gmra.mxu0 %v2849
        %v2888 = vpop.f32.mrf.mxu0
        %v2889 = vadd.f32 0.0, %v2888
        %v2890 = vpop.f32.mrf.mxu0
        %v2891 = vpop.f32.mrf.mxu0
        %v2892 = vadd.f32 0.0, %v2891
        %v2893 = vpop.f32.mrf.mxu0
        %2894 = vdwg.mxu0
        %2895 = vrot.lane.b32.xlu0 %v614, 96
        %v2896 = vpop.permute.xlu0 %2895
        %2897 = vrot.lane.b32.xlu0 %v622, 96
        %v2898 = vpop.permute.xlu0 %2897
        %v2900 = vsel %vm629, %v2896, 0
        %v2903 = vsel %vm629, %v2898, 0
        %2905 = vmatprep.subr.bf16.mxu0 0
        %2906 = vmatpush1.bf16.xpose.msra.mxu0 0
        %2907 = vmatprep.subr.bf16.mxu0 0
        %2908 = vmatpush1.bf16.xpose.msra.mxu0 0
        %2909 = vmatprep.subr.bf16.mxu0 0
        %2910 = vmatpush1.bf16.xpose.msra.mxu0 0
        %2911 = vmatprep.subr.bf16.mxu0 0
        %2912 = vmatpush1.bf16.xpose.msra.mxu0 0
        %2913 = vmatprep.subr.bf16.mxu0 0
        %2914 = vmatpush1.bf16.xpose.msra.mxu0 0
        %2915 = vmatprep.subr.bf16.mxu0 0
        %2916 = vmatpush1.bf16.xpose.msra.mxu0 0
        %2917 = vmatprep.subr.bf16.mxu0 0
        %2918 = vmatpush1.bf16.xpose.msra.mxu0 0
        %2919 = vmatprep.subr.bf16.mxu0 0
        %2920 = vmatpush1.bf16.xpose.msra.mxu0 %v2903
        %2921 = vmatprep.subr.bf16.mxu0 0
        %2922 = vmatpush2.bf16.xpose.msra.mxu0 0
        %2923 = vmatprep.subr.bf16.mxu0 0
        %2924 = vmatpush2.bf16.xpose.msra.mxu0 0
        %2925 = vmatprep.subr.bf16.mxu0 0
        %2926 = vmatpush2.bf16.xpose.msra.mxu0 0
        %2927 = vmatprep.subr.bf16.mxu0 0
        %2928 = vmatpush2.bf16.xpose.msra.mxu0 0
        %2929 = vmatprep.subr.bf16.mxu0 0
        %2930 = vmatpush2.bf16.xpose.msra.mxu0 0
        %2931 = vmatprep.subr.bf16.mxu0 0
        %2932 = vmatpush2.bf16.xpose.msra.mxu0 0
        %2933 = vmatprep.subr.bf16.mxu0 0
        %2934 = vmatpush2.bf16.xpose.msra.mxu0 0
        %2935 = vmatprep.subr.bf16.mxu0 0
        %2936 = vmatpush2.bf16.xpose.msra.mxu0 0
        %2937 = vmatprep.mubr.bf16.mxu0 0
        %2938 = vmatmul.mubr.bf16.gmra.mxu0 %v2900
        %v2939 = vpop.f32.mrf.mxu0
        %v2940 = vadd.f32 0.0, %v2939
        %v2941 = vpop.f32.mrf.mxu0
        %v2942 = vpop.f32.mrf.mxu0
        %v2943 = vadd.f32 0.0, %v2942
        %v2944 = vpop.f32.mrf.mxu0
        %2945 = vdwg.mxu0
        %2946 = vrot.lane.b32.xlu0 %v615, 96
        %v2947 = vpop.permute.xlu0 %2946
        %2948 = vrot.lane.b32.xlu0 %v623, 96
        %v2949 = vpop.permute.xlu0 %2948
        %v2951 = vsel %vm629, %v2947, 0
        %v2954 = vsel %vm629, %v2949, 0
        %2956 = vmatprep.subr.bf16.mxu0 0
        %2957 = vmatpush1.bf16.xpose.msra.mxu0 0
        %2958 = vmatprep.subr.bf16.mxu0 0
        %2959 = vmatpush1.bf16.xpose.msra.mxu0 0
        %2960 = vmatprep.subr.bf16.mxu0 0
        %2961 = vmatpush1.bf16.xpose.msra.mxu0 0
        %2962 = vmatprep.subr.bf16.mxu0 0
        %2963 = vmatpush1.bf16.xpose.msra.mxu0 0
        %2964 = vmatprep.subr.bf16.mxu0 0
        %2965 = vmatpush1.bf16.xpose.msra.mxu0 0
        %2966 = vmatprep.subr.bf16.mxu0 0
        %2967 = vmatpush1.bf16.xpose.msra.mxu0 0
        %2968 = vmatprep.subr.bf16.mxu0 0
        %2969 = vmatpush1.bf16.xpose.msra.mxu0 0
        %2970 = vmatprep.subr.bf16.mxu0 0
        %2971 = vmatpush1.bf16.xpose.msra.mxu0 %v2954
        %2972 = vmatprep.subr.bf16.mxu0 0
        %2973 = vmatpush2.bf16.xpose.msra.mxu0 0
        %2974 = vmatprep.subr.bf16.mxu0 0
        %2975 = vmatpush2.bf16.xpose.msra.mxu0 0
        %2976 = vmatprep.subr.bf16.mxu0 0
        %2977 = vmatpush2.bf16.xpose.msra.mxu0 0
        %2978 = vmatprep.subr.bf16.mxu0 0
        %2979 = vmatpush2.bf16.xpose.msra.mxu0 0
        %2980 = vmatprep.subr.bf16.mxu0 0
        %2981 = vmatpush2.bf16.xpose.msra.mxu0 0
        %2982 = vmatprep.subr.bf16.mxu0 0
        %2983 = vmatpush2.bf16.xpose.msra.mxu0 0
        %2984 = vmatprep.subr.bf16.mxu0 0
        %2985 = vmatpush2.bf16.xpose.msra.mxu0 0
        %2986 = vmatprep.subr.bf16.mxu0 0
        %2987 = vmatpush2.bf16.xpose.msra.mxu0 0
        %2988 = vmatprep.mubr.bf16.mxu0 0
        %2989 = vmatmul.mubr.bf16.gmra.mxu0 %v2951
        %v2990 = vpop.f32.mrf.mxu0
        %v2991 = vadd.f32 0.0, %v2990
        %v2992 = vpop.f32.mrf.mxu0
        %v2993 = vpop.f32.mrf.mxu0
        %v2994 = vadd.f32 0.0, %v2993
        %v2995 = vpop.f32.mrf.mxu0
        %2996 = vdwg.mxu0
        %2997 = vrot.lane.b32.xlu0 %v616, 96
        %v2998 = vpop.permute.xlu0 %2997
        %2999 = vrot.lane.b32.xlu0 %v624, 96
        %v3000 = vpop.permute.xlu0 %2999
        %v3002 = vsel %vm629, %v2998, 0
        %v3005 = vsel %vm629, %v3000, 0
        %3007 = vmatprep.subr.bf16.mxu0 0
        %3008 = vmatpush1.bf16.xpose.msra.mxu0 0
        %3009 = vmatprep.subr.bf16.mxu0 0
        %3010 = vmatpush1.bf16.xpose.msra.mxu0 0
        %3011 = vmatprep.subr.bf16.mxu0 0
        %3012 = vmatpush1.bf16.xpose.msra.mxu0 0
        %3013 = vmatprep.subr.bf16.mxu0 0
        %3014 = vmatpush1.bf16.xpose.msra.mxu0 0
        %3015 = vmatprep.subr.bf16.mxu0 0
        %3016 = vmatpush1.bf16.xpose.msra.mxu0 0
        %3017 = vmatprep.subr.bf16.mxu0 0
        %3018 = vmatpush1.bf16.xpose.msra.mxu0 0
        %3019 = vmatprep.subr.bf16.mxu0 0
        %3020 = vmatpush1.bf16.xpose.msra.mxu0 0
        %3021 = vmatprep.subr.bf16.mxu0 0
        %3022 = vmatpush1.bf16.xpose.msra.mxu0 %v3005
        %3023 = vmatprep.subr.bf16.mxu0 0
        %3024 = vmatpush2.bf16.xpose.msra.mxu0 0
        %3025 = vmatprep.subr.bf16.mxu0 0
        %3026 = vmatpush2.bf16.xpose.msra.mxu0 0
        %3027 = vmatprep.subr.bf16.mxu0 0
        %3028 = vmatpush2.bf16.xpose.msra.mxu0 0
        %3029 = vmatprep.subr.bf16.mxu0 0
        %3030 = vmatpush2.bf16.xpose.msra.mxu0 0
        %3031 = vmatprep.subr.bf16.mxu0 0
        %3032 = vmatpush2.bf16.xpose.msra.mxu0 0
        %3033 = vmatprep.subr.bf16.mxu0 0
        %3034 = vmatpush2.bf16.xpose.msra.mxu0 0
        %3035 = vmatprep.subr.bf16.mxu0 0
        %3036 = vmatpush2.bf16.xpose.msra.mxu0 0
        %3037 = vmatprep.subr.bf16.mxu0 0
        %3038 = vmatpush2.bf16.xpose.msra.mxu0 0
        %3039 = vmatprep.mubr.bf16.mxu0 0
        %3040 = vmatmul.mubr.bf16.gmra.mxu0 %v3002
        %v3041 = vpop.f32.mrf.mxu0
        %v3042 = vadd.f32 0.0, %v3041
        %v3043 = vpop.f32.mrf.mxu0
        %v3044 = vpop.f32.mrf.mxu0
        %v3045 = vadd.f32 0.0, %v3044
        %v3046 = vpop.f32.mrf.mxu0
        %3047 = vdwg.mxu0
        %3048 = vrot.lane.b32.xlu0 %v617, 96
        %v3049 = vpop.permute.xlu0 %3048
        %3050 = vrot.lane.b32.xlu0 %v625, 96
        %v3051 = vpop.permute.xlu0 %3050
        %v3053 = vsel %vm629, %v3049, 0
        %v3056 = vsel %vm629, %v3051, 0
        %3058 = vmatprep.subr.bf16.mxu0 0
        %3059 = vmatpush1.bf16.xpose.msra.mxu0 0
        %3060 = vmatprep.subr.bf16.mxu0 0
        %3061 = vmatpush1.bf16.xpose.msra.mxu0 0
        %3062 = vmatprep.subr.bf16.mxu0 0
        %3063 = vmatpush1.bf16.xpose.msra.mxu0 0
        %3064 = vmatprep.subr.bf16.mxu0 0
        %3065 = vmatpush1.bf16.xpose.msra.mxu0 0
        %3066 = vmatprep.subr.bf16.mxu0 0
        %3067 = vmatpush1.bf16.xpose.msra.mxu0 0
        %3068 = vmatprep.subr.bf16.mxu0 0
        %3069 = vmatpush1.bf16.xpose.msra.mxu0 0
        %3070 = vmatprep.subr.bf16.mxu0 0
        %3071 = vmatpush1.bf16.xpose.msra.mxu0 0
        %3072 = vmatprep.subr.bf16.mxu0 0
        %3073 = vmatpush1.bf16.xpose.msra.mxu0 %v3056
        %3074 = vmatprep.subr.bf16.mxu0 0
        %3075 = vmatpush2.bf16.xpose.msra.mxu0 0
        %3076 = vmatprep.subr.bf16.mxu0 0
        %3077 = vmatpush2.bf16.xpose.msra.mxu0 0
        %3078 = vmatprep.subr.bf16.mxu0 0
        %3079 = vmatpush2.bf16.xpose.msra.mxu0 0
        %3080 = vmatprep.subr.bf16.mxu0 0
        %3081 = vmatpush2.bf16.xpose.msra.mxu0 0
        %3082 = vmatprep.subr.bf16.mxu0 0
        %3083 = vmatpush2.bf16.xpose.msra.mxu0 0
        %3084 = vmatprep.subr.bf16.mxu0 0
        %3085 = vmatpush2.bf16.xpose.msra.mxu0 0
        %3086 = vmatprep.subr.bf16.mxu0 0
        %3087 = vmatpush2.bf16.xpose.msra.mxu0 0
        %3088 = vmatprep.subr.bf16.mxu0 0
        %3089 = vmatpush2.bf16.xpose.msra.mxu0 0
        %3090 = vmatprep.mubr.bf16.mxu0 0
        %3091 = vmatmul.mubr.bf16.gmra.mxu0 %v3053
        %v3092 = vpop.f32.mrf.mxu0
        %v3093 = vadd.f32 0.0, %v3092
        %v3094 = vpop.f32.mrf.mxu0
        %v3095 = vpop.f32.mrf.mxu0
        %v3096 = vadd.f32 0.0, %v3095
        %v3097 = vpop.f32.mrf.mxu0
        %3098 = vdwg.mxu0
        %3099 = vrot.lane.b32.xlu0 %v618, 96
        %v3100 = vpop.permute.xlu0 %3099
        %3101 = vrot.lane.b32.xlu0 %v626, 96
        %v3102 = vpop.permute.xlu0 %3101
        %v3104 = vsel %vm629, %v3100, 0
        %v3107 = vsel %vm629, %v3102, 0
        %3109 = vmatprep.subr.bf16.mxu0 0
        %3110 = vmatpush1.bf16.xpose.msra.mxu0 0
        %3111 = vmatprep.subr.bf16.mxu0 0
        %3112 = vmatpush1.bf16.xpose.msra.mxu0 0
        %3113 = vmatprep.subr.bf16.mxu0 0
        %3114 = vmatpush1.bf16.xpose.msra.mxu0 0
        %3115 = vmatprep.subr.bf16.mxu0 0
        %3116 = vmatpush1.bf16.xpose.msra.mxu0 0
        %3117 = vmatprep.subr.bf16.mxu0 0
        %3118 = vmatpush1.bf16.xpose.msra.mxu0 0
        %3119 = vmatprep.subr.bf16.mxu0 0
        %3120 = vmatpush1.bf16.xpose.msra.mxu0 0
        %3121 = vmatprep.subr.bf16.mxu0 0
        %3122 = vmatpush1.bf16.xpose.msra.mxu0 0
        %3123 = vmatprep.subr.bf16.mxu0 0
        %3124 = vmatpush1.bf16.xpose.msra.mxu0 %v3107
        %3125 = vmatprep.subr.bf16.mxu0 0
        %3126 = vmatpush2.bf16.xpose.msra.mxu0 0
        %3127 = vmatprep.subr.bf16.mxu0 0
        %3128 = vmatpush2.bf16.xpose.msra.mxu0 0
        %3129 = vmatprep.subr.bf16.mxu0 0
        %3130 = vmatpush2.bf16.xpose.msra.mxu0 0
        %3131 = vmatprep.subr.bf16.mxu0 0
        %3132 = vmatpush2.bf16.xpose.msra.mxu0 0
        %3133 = vmatprep.subr.bf16.mxu0 0
        %3134 = vmatpush2.bf16.xpose.msra.mxu0 0
        %3135 = vmatprep.subr.bf16.mxu0 0
        %3136 = vmatpush2.bf16.xpose.msra.mxu0 0
        %3137 = vmatprep.subr.bf16.mxu0 0
        %3138 = vmatpush2.bf16.xpose.msra.mxu0 0
        %3139 = vmatprep.subr.bf16.mxu0 0
        %3140 = vmatpush2.bf16.xpose.msra.mxu0 0
        %3141 = vmatprep.mubr.bf16.mxu0 0
        %3142 = vmatmul.mubr.bf16.gmra.mxu0 %v3104
        %v3143 = vpop.f32.mrf.mxu0
        %v3144 = vadd.f32 0.0, %v3143
        %v3145 = vpop.f32.mrf.mxu0
        %v3146 = vpop.f32.mrf.mxu0
        %v3147 = vadd.f32 0.0, %v3146
        %v3148 = vpop.f32.mrf.mxu0
        %3149 = vdwg.mxu0
        %3150 = vrot.lane.b32.xlu0 %v619, 96
        %v3151 = vpop.permute.xlu0 %3150
        %3152 = vrot.lane.b32.xlu0 %v627, 96
        %v3153 = vpop.permute.xlu0 %3152
        %v3155 = vsel %vm629, %v3151, 0
        %v3158 = vsel %vm629, %v3153, 0
        %3160 = vmatprep.subr.bf16.mxu0 0
        %3161 = vmatpush1.bf16.xpose.msra.mxu0 0
        %3162 = vmatprep.subr.bf16.mxu0 0
        %3163 = vmatpush1.bf16.xpose.msra.mxu0 0
        %3164 = vmatprep.subr.bf16.mxu0 0
        %3165 = vmatpush1.bf16.xpose.msra.mxu0 0
        %3166 = vmatprep.subr.bf16.mxu0 0
        %3167 = vmatpush1.bf16.xpose.msra.mxu0 0
        %3168 = vmatprep.subr.bf16.mxu0 0
        %3169 = vmatpush1.bf16.xpose.msra.mxu0 0
        %3170 = vmatprep.subr.bf16.mxu0 0
        %3171 = vmatpush1.bf16.xpose.msra.mxu0 0
        %3172 = vmatprep.subr.bf16.mxu0 0
        %3173 = vmatpush1.bf16.xpose.msra.mxu0 0
        %3174 = vmatprep.subr.bf16.mxu0 0
        %3175 = vmatpush1.bf16.xpose.msra.mxu0 %v3158
        %3176 = vmatprep.subr.bf16.mxu0 0
        %3177 = vmatpush2.bf16.xpose.msra.mxu0 0
        %3178 = vmatprep.subr.bf16.mxu0 0
        %3179 = vmatpush2.bf16.xpose.msra.mxu0 0
        %3180 = vmatprep.subr.bf16.mxu0 0
        %3181 = vmatpush2.bf16.xpose.msra.mxu0 0
        %3182 = vmatprep.subr.bf16.mxu0 0
        %3183 = vmatpush2.bf16.xpose.msra.mxu0 0
        %3184 = vmatprep.subr.bf16.mxu0 0
        %3185 = vmatpush2.bf16.xpose.msra.mxu0 0
        %3186 = vmatprep.subr.bf16.mxu0 0
        %3187 = vmatpush2.bf16.xpose.msra.mxu0 0
        %3188 = vmatprep.subr.bf16.mxu0 0
        %3189 = vmatpush2.bf16.xpose.msra.mxu0 0
        %3190 = vmatprep.subr.bf16.mxu0 0
        %3191 = vmatpush2.bf16.xpose.msra.mxu0 0
        %3192 = vmatprep.mubr.bf16.mxu0 0
        %3193 = vmatmul.mubr.bf16.gmra.mxu0 %v3155
        %v3194 = vpop.f32.mrf.mxu0
        %v3195 = vadd.f32 0.0, %v3194
        %v3196 = vpop.f32.mrf.mxu0
        %v3197 = vpop.f32.mrf.mxu0
        %v3198 = vadd.f32 0.0, %v3197
        %v3199 = vpop.f32.mrf.mxu0
        %3200 = vdwg.mxu0
        %3201 = vrot.lane.b32.xlu0 %v620, 96
        %v3202 = vpop.permute.xlu0 %3201
        %3203 = vrot.lane.b32.xlu0 %v628, 96
        %v3204 = vpop.permute.xlu0 %3203
        %v3206 = vsel %vm629, %v3202, 0
        %v3209 = vsel %vm629, %v3204, 0
        %3211 = vmatprep.subr.bf16.mxu0 0
        %3212 = vmatpush1.bf16.xpose.msra.mxu0 0
        %3213 = vmatprep.subr.bf16.mxu0 0
        %3214 = vmatpush1.bf16.xpose.msra.mxu0 0
        %3215 = vmatprep.subr.bf16.mxu0 0
        %3216 = vmatpush1.bf16.xpose.msra.mxu0 0
        %3217 = vmatprep.subr.bf16.mxu0 0
        %3218 = vmatpush1.bf16.xpose.msra.mxu0 0
        %3219 = vmatprep.subr.bf16.mxu0 0
        %3220 = vmatpush1.bf16.xpose.msra.mxu0 0
        %3221 = vmatprep.subr.bf16.mxu0 0
        %3222 = vmatpush1.bf16.xpose.msra.mxu0 0
        %3223 = vmatprep.subr.bf16.mxu0 0
        %3224 = vmatpush1.bf16.xpose.msra.mxu0 0
        %3225 = vmatprep.subr.bf16.mxu0 0
        %3226 = vmatpush1.bf16.xpose.msra.mxu0 %v3209
        %3227 = vmatprep.subr.bf16.mxu0 0
        %3228 = vmatpush2.bf16.xpose.msra.mxu0 0
        %3229 = vmatprep.subr.bf16.mxu0 0
        %3230 = vmatpush2.bf16.xpose.msra.mxu0 0
        %3231 = vmatprep.subr.bf16.mxu0 0
        %3232 = vmatpush2.bf16.xpose.msra.mxu0 0
        %3233 = vmatprep.subr.bf16.mxu0 0
        %3234 = vmatpush2.bf16.xpose.msra.mxu0 0
        %3235 = vmatprep.subr.bf16.mxu0 0
        %3236 = vmatpush2.bf16.xpose.msra.mxu0 0
        %3237 = vmatprep.subr.bf16.mxu0 0
        %3238 = vmatpush2.bf16.xpose.msra.mxu0 0
        %3239 = vmatprep.subr.bf16.mxu0 0
        %3240 = vmatpush2.bf16.xpose.msra.mxu0 0
        %3241 = vmatprep.subr.bf16.mxu0 0
        %3242 = vmatpush2.bf16.xpose.msra.mxu0 0
        %3243 = vmatprep.mubr.bf16.mxu0 0
        %3244 = vmatmul.mubr.bf16.gmra.mxu0 %v3206
        %v3245 = vpop.f32.mrf.mxu0
        %v3246 = vadd.f32 0.0, %v3245
        %v3247 = vpop.f32.mrf.mxu0
        %v3248 = vpop.f32.mrf.mxu0
        %v3249 = vadd.f32 0.0, %v3248
        %v3250 = vpop.f32.mrf.mxu0
        %3251 = vdwg.mxu0
        %v3252 = vmul.f32 %v2889, 0.25
        %v3253 = vmul.f32 %v2892, 0.25
        %v3254 = vmul.f32 %v2940, 0.25
        %v3255 = vmul.f32 %v2943, 0.25
        %v3256 = vmul.f32 %v2991, 0.25
        %v3257 = vmul.f32 %v2994, 0.25
        %v3258 = vmul.f32 %v3042, 0.25
        %v3259 = vmul.f32 %v3045, 0.25
        %v3260 = vmul.f32 %v3093, 0.25
        %v3261 = vmul.f32 %v3096, 0.25
        %v3262 = vmul.f32 %v3144, 0.25
        %v3263 = vmul.f32 %v3147, 0.25
        %v3264 = vmul.f32 %v3195, 0.25
        %v3265 = vmul.f32 %v3198, 0.25
        %v3266 = vmul.f32 %v3246, 0.25
        %v3267 = vmul.f32 %v3249, 0.25
        %v3268 = vsel %vm629, %v3252, -inf
        %3269 = vmax.xlane.f32.xlu0 %v3268
        %v3270 = vpop.xlane.xlu0 %3269
        %v3271 = vsel %vm629, %v3253, -inf
        %3272 = vmax.xlane.f32.xlu0 %v3271
        %v3273 = vpop.xlane.xlu0 %3272
        %v3274 = vsel %vm629, %v3254, -inf
        %3275 = vmax.xlane.f32.xlu0 %v3274
        %v3276 = vpop.xlane.xlu0 %3275
        %v3277 = vsel %vm629, %v3255, -inf
        %3278 = vmax.xlane.f32.xlu0 %v3277
        %v3279 = vpop.xlane.xlu0 %3278
        %v3280 = vsel %vm629, %v3256, -inf
        %3281 = vmax.xlane.f32.xlu0 %v3280
        %v3282 = vpop.xlane.xlu0 %3281
        %v3283 = vsel %vm629, %v3257, -inf
        %3284 = vmax.xlane.f32.xlu0 %v3283
        %v3285 = vpop.xlane.xlu0 %3284
        %v3286 = vsel %vm629, %v3258, -inf
        %3287 = vmax.xlane.f32.xlu0 %v3286
        %v3288 = vpop.xlane.xlu0 %3287
        %v3289 = vsel %vm629, %v3259, -inf
        %3290 = vmax.xlane.f32.xlu0 %v3289
        %v3291 = vpop.xlane.xlu0 %3290
        %v3292 = vsel %vm629, %v3260, -inf
        %3293 = vmax.xlane.f32.xlu0 %v3292
        %v3294 = vpop.xlane.xlu0 %3293
        %v3295 = vsel %vm629, %v3261, -inf
        %3296 = vmax.xlane.f32.xlu0 %v3295
        %v3297 = vpop.xlane.xlu0 %3296
        %v3298 = vsel %vm629, %v3262, -inf
        %3299 = vmax.xlane.f32.xlu0 %v3298
        %v3300 = vpop.xlane.xlu0 %3299
        %v3301 = vsel %vm629, %v3263, -inf
        %3302 = vmax.xlane.f32.xlu0 %v3301
        %v3303 = vpop.xlane.xlu0 %3302
        %v3304 = vsel %vm629, %v3264, -inf
        %3305 = vmax.xlane.f32.xlu0 %v3304
        %v3306 = vpop.xlane.xlu0 %3305
        %v3307 = vsel %vm629, %v3265, -inf
        %3308 = vmax.xlane.f32.xlu0 %v3307
        %v3309 = vpop.xlane.xlu0 %3308
        %v3310 = vsel %vm629, %v3266, -inf
        %3311 = vmax.xlane.f32.xlu0 %v3310
        %v3312 = vpop.xlane.xlu0 %3311
        %v3313 = vsel %vm629, %v3267, -inf
        %3314 = vmax.xlane.f32.xlu0 %v3313
        %v3315 = vpop.xlane.xlu0 %3314
        %v3316 = vsub.f32 %v3252, %v3270
        %v3317 = vsub.f32 %v3253, %v3273
        %v3318 = vsub.f32 %v3254, %v3276
        %v3319 = vsub.f32 %v3255, %v3279
        %v3320 = vsub.f32 %v3256, %v3282
        %v3321 = vsub.f32 %v3257, %v3285
        %v3322 = vsub.f32 %v3258, %v3288
        %v3323 = vsub.f32 %v3259, %v3291
        %v3324 = vsub.f32 %v3260, %v3294
        %v3325 = vsub.f32 %v3261, %v3297
        %v3326 = vsub.f32 %v3262, %v3300
        %v3327 = vsub.f32 %v3263, %v3303
        %v3328 = vsub.f32 %v3264, %v3306
        %v3329 = vsub.f32 %v3265, %v3309
        %v3330 = vsub.f32 %v3266, %v3312
        %v3331 = vsub.f32 %v3267, %v3315
        %v3332 = vmul.f32 %v3316, 1.442695
        %v3333 = vpow.pop %v3332
        %v3334 = vmul.f32 %v3317, 1.442695
        %v3335 = vpow.pop %v3334
        %v3336 = vmul.f32 %v3318, 1.442695
        %v3337 = vpow.pop %v3336
        %v3338 = vmul.f32 %v3319, 1.442695
        %v3339 = vpow.pop %v3338
        %v3340 = vmul.f32 %v3320, 1.442695
        %v3341 = vpow.pop %v3340
        %v3342 = vmul.f32 %v3321, 1.442695
        %v3343 = vpow.pop %v3342
        %v3344 = vmul.f32 %v3322, 1.442695
        %v3345 = vpow.pop %v3344
        %v3346 = vmul.f32 %v3323, 1.442695
        %v3347 = vpow.pop %v3346
        %v3348 = vmul.f32 %v3324, 1.442695
        %v3349 = vpow.pop %v3348
        %v3350 = vmul.f32 %v3325, 1.442695
        %v3351 = vpow.pop %v3350
        %v3352 = vmul.f32 %v3326, 1.442695
        %v3353 = vpow.pop %v3352
        %v3354 = vmul.f32 %v3327, 1.442695
        %v3355 = vpow.pop %v3354
        %v3356 = vmul.f32 %v3328, 1.442695
        %v3357 = vpow.pop %v3356
        %v3358 = vmul.f32 %v3329, 1.442695
        %v3359 = vpow.pop %v3358
        %v3360 = vmul.f32 %v3330, 1.442695
        %v3361 = vpow.pop %v3360
        %v3362 = vmul.f32 %v3331, 1.442695
        %v3363 = vpow.pop %v3362
        %v3364 = vsel %vm629, %v3333, 0.0
        %3365 = vadd.xlane.f32.xlu0 %v3364
        %v3366 = vpop.xlane.xlu0 %3365
        %v3367 = vsel %vm629, %v3335, 0.0
        %3368 = vadd.xlane.f32.xlu0 %v3367
        %v3369 = vpop.xlane.xlu0 %3368
        %v3370 = vsel %vm629, %v3337, 0.0
        %3371 = vadd.xlane.f32.xlu0 %v3370
        %v3372 = vpop.xlane.xlu0 %3371
        %v3373 = vsel %vm629, %v3339, 0.0
        %3374 = vadd.xlane.f32.xlu0 %v3373
        %v3375 = vpop.xlane.xlu0 %3374
        %v3376 = vsel %vm629, %v3341, 0.0
        %3377 = vadd.xlane.f32.xlu0 %v3376
        %v3378 = vpop.xlane.xlu0 %3377
        %v3379 = vsel %vm629, %v3343, 0.0
        %3380 = vadd.xlane.f32.xlu0 %v3379
        %v3381 = vpop.xlane.xlu0 %3380
        %v3382 = vsel %vm629, %v3345, 0.0
        %3383 = vadd.xlane.f32.xlu0 %v3382
        %v3384 = vpop.xlane.xlu0 %3383
        %v3385 = vsel %vm629, %v3347, 0.0
        %3386 = vadd.xlane.f32.xlu0 %v3385
        %v3387 = vpop.xlane.xlu0 %3386
        %v3388 = vsel %vm629, %v3349, 0.0
        %3389 = vadd.xlane.f32.xlu0 %v3388
        %v3390 = vpop.xlane.xlu0 %3389
        %v3391 = vsel %vm629, %v3351, 0.0
        %3392 = vadd.xlane.f32.xlu0 %v3391
        %v3393 = vpop.xlane.xlu0 %3392
        %v3394 = vsel %vm629, %v3353, 0.0
        %3395 = vadd.xlane.f32.xlu0 %v3394
        %v3396 = vpop.xlane.xlu0 %3395
        %v3397 = vsel %vm629, %v3355, 0.0
        %3398 = vadd.xlane.f32.xlu0 %v3397
        %v3399 = vpop.xlane.xlu0 %3398
        %v3400 = vsel %vm629, %v3357, 0.0
        %3401 = vadd.xlane.f32.xlu0 %v3400
        %v3402 = vpop.xlane.xlu0 %3401
        %v3403 = vsel %vm629, %v3359, 0.0
        %3404 = vadd.xlane.f32.xlu0 %v3403
        %v3405 = vpop.xlane.xlu0 %3404
        %v3406 = vsel %vm629, %v3361, 0.0
        %3407 = vadd.xlane.f32.xlu0 %v3406
        %v3408 = vpop.xlane.xlu0 %3407
        %v3409 = vsel %vm629, %v3363, 0.0
        %3410 = vadd.xlane.f32.xlu0 %v3409
        %v3411 = vpop.xlane.xlu0 %3410
        %v3412 = vrcp.pop %v3366
        %v3413 = vrcp.pop %v3369
        %v3414 = vrcp.pop %v3372
        %v3415 = vrcp.pop %v3375
        %v3416 = vrcp.pop %v3378
        %v3417 = vrcp.pop %v3381
        %v3418 = vrcp.pop %v3384
        %v3419 = vrcp.pop %v3387
        %v3420 = vrcp.pop %v3390
        %v3421 = vrcp.pop %v3393
        %v3422 = vrcp.pop %v3396
        %v3423 = vrcp.pop %v3399
        %v3424 = vrcp.pop %v3402
        %v3425 = vrcp.pop %v3405
        %v3426 = vrcp.pop %v3408
        %v3427 = vrcp.pop %v3411
        %v3428 = vmul.f32 %v3333, %v3412
        %v3429 = vmul.f32 %v3335, %v3413
        %v3430 = vmul.f32 %v3337, %v3414
        %v3431 = vmul.f32 %v3339, %v3415
        %v3432 = vmul.f32 %v3341, %v3416
        %v3433 = vmul.f32 %v3343, %v3417
        %v3434 = vmul.f32 %v3345, %v3418
        %v3435 = vmul.f32 %v3347, %v3419
        %v3436 = vmul.f32 %v3349, %v3420
        %v3437 = vmul.f32 %v3351, %v3421
        %v3438 = vmul.f32 %v3353, %v3422
        %v3439 = vmul.f32 %v3355, %v3423
        %v3440 = vmul.f32 %v3357, %v3424
        %v3441 = vmul.f32 %v3359, %v3425
        %v3442 = vmul.f32 %v3361, %v3426
        %v3443 = vmul.f32 %v3363, %v3427
        %v3444 = vpack.c.bf16 %v3429, %v3428
        %v3445 = vpack.c.bf16 %v3431, %v3430
        %v3446 = vpack.c.bf16 %v3433, %v3432
        %v3447 = vpack.c.bf16 %v3435, %v3434
        %v3448 = vpack.c.bf16 %v3437, %v3436
        %v3449 = vpack.c.bf16 %v3439, %v3438
        %v3450 = vpack.c.bf16 %v3441, %v3440
        %v3451 = vpack.c.bf16 %v3443, %v3442
        %3452 = vrot.lane.b32.xlu0 %v1206, 96
        %v3453 = vpop.permute.xlu0 %3452
        %v3456 = vsel %vm629, %v3444, 0
        %3458 = vmatprep.subr.bf16.mxu0 0
        %3459 = vmatpush1.bf16.msra.mxu0 0
        %3460 = vmatprep.subr.bf16.mxu0 0
        %3461 = vmatpush1.bf16.msra.mxu0 0
        %3462 = vmatprep.subr.bf16.mxu0 0
        %3463 = vmatpush1.bf16.msra.mxu0 0
        %3464 = vmatprep.subr.bf16.mxu0 0
        %3465 = vmatpush1.bf16.msra.mxu0 0
        %3466 = vmatprep.subr.bf16.mxu0 0
        %3467 = vmatpush1.bf16.msra.mxu0 0
        %3468 = vmatprep.subr.bf16.mxu0 0
        %3469 = vmatpush1.bf16.msra.mxu0 0
        %3470 = vmatprep.subr.bf16.mxu0 0
        %3471 = vmatpush1.bf16.msra.mxu0 0
        %3472 = vmatprep.subr.bf16.mxu0 0
        %3473 = vmatpush1.bf16.msra.mxu0 %v3453
        %3474 = vmatprep.subr.bf16.mxu0 0
        %3475 = vmatpush2.bf16.msra.mxu0 0
        %3476 = vmatprep.subr.bf16.mxu0 0
        %3477 = vmatpush2.bf16.msra.mxu0 0
        %3478 = vmatprep.subr.bf16.mxu0 0
        %3479 = vmatpush2.bf16.msra.mxu0 0
        %3480 = vmatprep.subr.bf16.mxu0 0
        %3481 = vmatpush2.bf16.msra.mxu0 0
        %3482 = vmatprep.subr.bf16.mxu0 0
        %3483 = vmatpush2.bf16.msra.mxu0 0
        %3484 = vmatprep.subr.bf16.mxu0 0
        %3485 = vmatpush2.bf16.msra.mxu0 0
        %3486 = vmatprep.subr.bf16.mxu0 0
        %3487 = vmatpush2.bf16.msra.mxu0 0
        %3488 = vmatprep.subr.bf16.mxu0 0
        %3489 = vmatpush2.bf16.msra.mxu0 0
        %3490 = vmatprep.mubr.bf16.mxu0 0
        %3491 = vmatmul.mubr.bf16.gmra.mxu0 %v3456
        %v3492 = vpop.f32.mrf.mxu0
        %v3493 = vadd.f32 0.0, %v3492
        %v3494 = vpop.f32.mrf.mxu0
        %v3495 = vpop.f32.mrf.mxu0
        %v3496 = vadd.f32 0.0, %v3495
        %v3497 = vpop.f32.mrf.mxu0
        %3498 = vdwg.mxu0
        %3499 = vrot.lane.b32.xlu0 %v1207, 96
        %v3500 = vpop.permute.xlu0 %3499
        %v3503 = vsel %vm629, %v3445, 0
        %3505 = vmatprep.subr.bf16.mxu0 0
        %3506 = vmatpush1.bf16.msra.mxu0 0
        %3507 = vmatprep.subr.bf16.mxu0 0
        %3508 = vmatpush1.bf16.msra.mxu0 0
        %3509 = vmatprep.subr.bf16.mxu0 0
        %3510 = vmatpush1.bf16.msra.mxu0 0
        %3511 = vmatprep.subr.bf16.mxu0 0
        %3512 = vmatpush1.bf16.msra.mxu0 0
        %3513 = vmatprep.subr.bf16.mxu0 0
        %3514 = vmatpush1.bf16.msra.mxu0 0
        %3515 = vmatprep.subr.bf16.mxu0 0
        %3516 = vmatpush1.bf16.msra.mxu0 0
        %3517 = vmatprep.subr.bf16.mxu0 0
        %3518 = vmatpush1.bf16.msra.mxu0 0
        %3519 = vmatprep.subr.bf16.mxu0 0
        %3520 = vmatpush1.bf16.msra.mxu0 %v3500
        %3521 = vmatprep.subr.bf16.mxu0 0
        %3522 = vmatpush2.bf16.msra.mxu0 0
        %3523 = vmatprep.subr.bf16.mxu0 0
        %3524 = vmatpush2.bf16.msra.mxu0 0
        %3525 = vmatprep.subr.bf16.mxu0 0
        %3526 = vmatpush2.bf16.msra.mxu0 0
        %3527 = vmatprep.subr.bf16.mxu0 0
        %3528 = vmatpush2.bf16.msra.mxu0 0
        %3529 = vmatprep.subr.bf16.mxu0 0
        %3530 = vmatpush2.bf16.msra.mxu0 0
        %3531 = vmatprep.subr.bf16.mxu0 0
        %3532 = vmatpush2.bf16.msra.mxu0 0
        %3533 = vmatprep.subr.bf16.mxu0 0
        %3534 = vmatpush2.bf16.msra.mxu0 0
        %3535 = vmatprep.subr.bf16.mxu0 0
        %3536 = vmatpush2.bf16.msra.mxu0 0
        %3537 = vmatprep.mubr.bf16.mxu0 0
        %3538 = vmatmul.mubr.bf16.gmra.mxu0 %v3503
        %v3539 = vpop.f32.mrf.mxu0
        %v3540 = vadd.f32 0.0, %v3539
        %v3541 = vpop.f32.mrf.mxu0
        %v3542 = vpop.f32.mrf.mxu0
        %v3543 = vadd.f32 0.0, %v3542
        %v3544 = vpop.f32.mrf.mxu0
        %3545 = vdwg.mxu0
        %3546 = vrot.lane.b32.xlu0 %v1208, 96
        %v3547 = vpop.permute.xlu0 %3546
        %v3550 = vsel %vm629, %v3446, 0
        %3552 = vmatprep.subr.bf16.mxu0 0
        %3553 = vmatpush1.bf16.msra.mxu0 0
        %3554 = vmatprep.subr.bf16.mxu0 0
        %3555 = vmatpush1.bf16.msra.mxu0 0
        %3556 = vmatprep.subr.bf16.mxu0 0
        %3557 = vmatpush1.bf16.msra.mxu0 0
        %3558 = vmatprep.subr.bf16.mxu0 0
        %3559 = vmatpush1.bf16.msra.mxu0 0
        %3560 = vmatprep.subr.bf16.mxu0 0
        %3561 = vmatpush1.bf16.msra.mxu0 0
        %3562 = vmatprep.subr.bf16.mxu0 0
        %3563 = vmatpush1.bf16.msra.mxu0 0
        %3564 = vmatprep.subr.bf16.mxu0 0
        %3565 = vmatpush1.bf16.msra.mxu0 0
        %3566 = vmatprep.subr.bf16.mxu0 0
        %3567 = vmatpush1.bf16.msra.mxu0 %v3547
        %3568 = vmatprep.subr.bf16.mxu0 0
        %3569 = vmatpush2.bf16.msra.mxu0 0
        %3570 = vmatprep.subr.bf16.mxu0 0
        %3571 = vmatpush2.bf16.msra.mxu0 0
        %3572 = vmatprep.subr.bf16.mxu0 0
        %3573 = vmatpush2.bf16.msra.mxu0 0
        %3574 = vmatprep.subr.bf16.mxu0 0
        %3575 = vmatpush2.bf16.msra.mxu0 0
        %3576 = vmatprep.subr.bf16.mxu0 0
        %3577 = vmatpush2.bf16.msra.mxu0 0
        %3578 = vmatprep.subr.bf16.mxu0 0
        %3579 = vmatpush2.bf16.msra.mxu0 0
        %3580 = vmatprep.subr.bf16.mxu0 0
        %3581 = vmatpush2.bf16.msra.mxu0 0
        %3582 = vmatprep.subr.bf16.mxu0 0
        %3583 = vmatpush2.bf16.msra.mxu0 0
        %3584 = vmatprep.mubr.bf16.mxu0 0
        %3585 = vmatmul.mubr.bf16.gmra.mxu0 %v3550
        %v3586 = vpop.f32.mrf.mxu0
        %v3587 = vadd.f32 0.0, %v3586
        %v3588 = vpop.f32.mrf.mxu0
        %v3589 = vpop.f32.mrf.mxu0
        %v3590 = vadd.f32 0.0, %v3589
        %v3591 = vpop.f32.mrf.mxu0
        %3592 = vdwg.mxu0
        %3593 = vrot.lane.b32.xlu0 %v1209, 96
        %v3594 = vpop.permute.xlu0 %3593
        %v3597 = vsel %vm629, %v3447, 0
        %3599 = vmatprep.subr.bf16.mxu0 0
        %3600 = vmatpush1.bf16.msra.mxu0 0
        %3601 = vmatprep.subr.bf16.mxu0 0
        %3602 = vmatpush1.bf16.msra.mxu0 0
        %3603 = vmatprep.subr.bf16.mxu0 0
        %3604 = vmatpush1.bf16.msra.mxu0 0
        %3605 = vmatprep.subr.bf16.mxu0 0
        %3606 = vmatpush1.bf16.msra.mxu0 0
        %3607 = vmatprep.subr.bf16.mxu0 0
        %3608 = vmatpush1.bf16.msra.mxu0 0
        %3609 = vmatprep.subr.bf16.mxu0 0
        %3610 = vmatpush1.bf16.msra.mxu0 0
        %3611 = vmatprep.subr.bf16.mxu0 0
        %3612 = vmatpush1.bf16.msra.mxu0 0
        %3613 = vmatprep.subr.bf16.mxu0 0
        %3614 = vmatpush1.bf16.msra.mxu0 %v3594
        %3615 = vmatprep.subr.bf16.mxu0 0
        %3616 = vmatpush2.bf16.msra.mxu0 0
        %3617 = vmatprep.subr.bf16.mxu0 0
        %3618 = vmatpush2.bf16.msra.mxu0 0
        %3619 = vmatprep.subr.bf16.mxu0 0
        %3620 = vmatpush2.bf16.msra.mxu0 0
        %3621 = vmatprep.subr.bf16.mxu0 0
        %3622 = vmatpush2.bf16.msra.mxu0 0
        %3623 = vmatprep.subr.bf16.mxu0 0
        %3624 = vmatpush2.bf16.msra.mxu0 0
        %3625 = vmatprep.subr.bf16.mxu0 0
        %3626 = vmatpush2.bf16.msra.mxu0 0
        %3627 = vmatprep.subr.bf16.mxu0 0
        %3628 = vmatpush2.bf16.msra.mxu0 0
        %3629 = vmatprep.subr.bf16.mxu0 0
        %3630 = vmatpush2.bf16.msra.mxu0 0
        %3631 = vmatprep.mubr.bf16.mxu0 0
        %3632 = vmatmul.mubr.bf16.gmra.mxu0 %v3597
        %v3633 = vpop.f32.mrf.mxu0
        %v3634 = vadd.f32 0.0, %v3633
        %v3635 = vpop.f32.mrf.mxu0
        %v3636 = vpop.f32.mrf.mxu0
        %v3637 = vadd.f32 0.0, %v3636
        %v3638 = vpop.f32.mrf.mxu0
        %3639 = vdwg.mxu0
        %3640 = vrot.lane.b32.xlu0 %v1210, 96
        %v3641 = vpop.permute.xlu0 %3640
        %v3644 = vsel %vm629, %v3448, 0
        %3646 = vmatprep.subr.bf16.mxu0 0
        %3647 = vmatpush1.bf16.msra.mxu0 0
        %3648 = vmatprep.subr.bf16.mxu0 0
        %3649 = vmatpush1.bf16.msra.mxu0 0
        %3650 = vmatprep.subr.bf16.mxu0 0
        %3651 = vmatpush1.bf16.msra.mxu0 0
        %3652 = vmatprep.subr.bf16.mxu0 0
        %3653 = vmatpush1.bf16.msra.mxu0 0
        %3654 = vmatprep.subr.bf16.mxu0 0
        %3655 = vmatpush1.bf16.msra.mxu0 0
        %3656 = vmatprep.subr.bf16.mxu0 0
        %3657 = vmatpush1.bf16.msra.mxu0 0
        %3658 = vmatprep.subr.bf16.mxu0 0
        %3659 = vmatpush1.bf16.msra.mxu0 0
        %3660 = vmatprep.subr.bf16.mxu0 0
        %3661 = vmatpush1.bf16.msra.mxu0 %v3641
        %3662 = vmatprep.subr.bf16.mxu0 0
        %3663 = vmatpush2.bf16.msra.mxu0 0
        %3664 = vmatprep.subr.bf16.mxu0 0
        %3665 = vmatpush2.bf16.msra.mxu0 0
        %3666 = vmatprep.subr.bf16.mxu0 0
        %3667 = vmatpush2.bf16.msra.mxu0 0
        %3668 = vmatprep.subr.bf16.mxu0 0
        %3669 = vmatpush2.bf16.msra.mxu0 0
        %3670 = vmatprep.subr.bf16.mxu0 0
        %3671 = vmatpush2.bf16.msra.mxu0 0
        %3672 = vmatprep.subr.bf16.mxu0 0
        %3673 = vmatpush2.bf16.msra.mxu0 0
        %3674 = vmatprep.subr.bf16.mxu0 0
        %3675 = vmatpush2.bf16.msra.mxu0 0
        %3676 = vmatprep.subr.bf16.mxu0 0
        %3677 = vmatpush2.bf16.msra.mxu0 0
        %3678 = vmatprep.mubr.bf16.mxu0 0
        %3679 = vmatmul.mubr.bf16.gmra.mxu0 %v3644
        %v3680 = vpop.f32.mrf.mxu0
        %v3681 = vadd.f32 0.0, %v3680
        %v3682 = vpop.f32.mrf.mxu0
        %v3683 = vpop.f32.mrf.mxu0
        %v3684 = vadd.f32 0.0, %v3683
        %v3685 = vpop.f32.mrf.mxu0
        %3686 = vdwg.mxu0
        %3687 = vrot.lane.b32.xlu0 %v1211, 96
        %v3688 = vpop.permute.xlu0 %3687
        %v3691 = vsel %vm629, %v3449, 0
        %3693 = vmatprep.subr.bf16.mxu0 0
        %3694 = vmatpush1.bf16.msra.mxu0 0
        %3695 = vmatprep.subr.bf16.mxu0 0
        %3696 = vmatpush1.bf16.msra.mxu0 0
        %3697 = vmatprep.subr.bf16.mxu0 0
        %3698 = vmatpush1.bf16.msra.mxu0 0
        %3699 = vmatprep.subr.bf16.mxu0 0
        %3700 = vmatpush1.bf16.msra.mxu0 0
        %3701 = vmatprep.subr.bf16.mxu0 0
        %3702 = vmatpush1.bf16.msra.mxu0 0
        %3703 = vmatprep.subr.bf16.mxu0 0
        %3704 = vmatpush1.bf16.msra.mxu0 0
        %3705 = vmatprep.subr.bf16.mxu0 0
        %3706 = vmatpush1.bf16.msra.mxu0 0
        %3707 = vmatprep.subr.bf16.mxu0 0
        %3708 = vmatpush1.bf16.msra.mxu0 %v3688
        %3709 = vmatprep.subr.bf16.mxu0 0
        %3710 = vmatpush2.bf16.msra.mxu0 0
        %3711 = vmatprep.subr.bf16.mxu0 0
        %3712 = vmatpush2.bf16.msra.mxu0 0
        %3713 = vmatprep.subr.bf16.mxu0 0
        %3714 = vmatpush2.bf16.msra.mxu0 0
        %3715 = vmatprep.subr.bf16.mxu0 0
        %3716 = vmatpush2.bf16.msra.mxu0 0
        %3717 = vmatprep.subr.bf16.mxu0 0
        %3718 = vmatpush2.bf16.msra.mxu0 0
        %3719 = vmatprep.subr.bf16.mxu0 0
        %3720 = vmatpush2.bf16.msra.mxu0 0
        %3721 = vmatprep.subr.bf16.mxu0 0
        %3722 = vmatpush2.bf16.msra.mxu0 0
        %3723 = vmatprep.subr.bf16.mxu0 0
        %3724 = vmatpush2.bf16.msra.mxu0 0
        %3725 = vmatprep.mubr.bf16.mxu0 0
        %3726 = vmatmul.mubr.bf16.gmra.mxu0 %v3691
        %v3727 = vpop.f32.mrf.mxu0
        %v3728 = vadd.f32 0.0, %v3727
        %v3729 = vpop.f32.mrf.mxu0
        %v3730 = vpop.f32.mrf.mxu0
        %v3731 = vadd.f32 0.0, %v3730
        %v3732 = vpop.f32.mrf.mxu0
        %3733 = vdwg.mxu0
        %3734 = vrot.lane.b32.xlu0 %v1212, 96
        %v3735 = vpop.permute.xlu0 %3734
        %v3738 = vsel %vm629, %v3450, 0
        %3740 = vmatprep.subr.bf16.mxu0 0
        %3741 = vmatpush1.bf16.msra.mxu0 0
        %3742 = vmatprep.subr.bf16.mxu0 0
        %3743 = vmatpush1.bf16.msra.mxu0 0
        %3744 = vmatprep.subr.bf16.mxu0 0
        %3745 = vmatpush1.bf16.msra.mxu0 0
        %3746 = vmatprep.subr.bf16.mxu0 0
        %3747 = vmatpush1.bf16.msra.mxu0 0
        %3748 = vmatprep.subr.bf16.mxu0 0
        %3749 = vmatpush1.bf16.msra.mxu0 0
        %3750 = vmatprep.subr.bf16.mxu0 0
        %3751 = vmatpush1.bf16.msra.mxu0 0
        %3752 = vmatprep.subr.bf16.mxu0 0
        %3753 = vmatpush1.bf16.msra.mxu0 0
        %3754 = vmatprep.subr.bf16.mxu0 0
        %3755 = vmatpush1.bf16.msra.mxu0 %v3735
        %3756 = vmatprep.subr.bf16.mxu0 0
        %3757 = vmatpush2.bf16.msra.mxu0 0
        %3758 = vmatprep.subr.bf16.mxu0 0
        %3759 = vmatpush2.bf16.msra.mxu0 0
        %3760 = vmatprep.subr.bf16.mxu0 0
        %3761 = vmatpush2.bf16.msra.mxu0 0
        %3762 = vmatprep.subr.bf16.mxu0 0
        %3763 = vmatpush2.bf16.msra.mxu0 0
        %3764 = vmatprep.subr.bf16.mxu0 0
        %3765 = vmatpush2.bf16.msra.mxu0 0
        %3766 = vmatprep.subr.bf16.mxu0 0
        %3767 = vmatpush2.bf16.msra.mxu0 0
        %3768 = vmatprep.subr.bf16.mxu0 0
        %3769 = vmatpush2.bf16.msra.mxu0 0
        %3770 = vmatprep.subr.bf16.mxu0 0
        %3771 = vmatpush2.bf16.msra.mxu0 0
        %3772 = vmatprep.mubr.bf16.mxu0 0
        %3773 = vmatmul.mubr.bf16.gmra.mxu0 %v3738
        %v3774 = vpop.f32.mrf.mxu0
        %v3775 = vadd.f32 0.0, %v3774
        %v3776 = vpop.f32.mrf.mxu0
        %v3777 = vpop.f32.mrf.mxu0
        %v3778 = vadd.f32 0.0, %v3777
        %v3779 = vpop.f32.mrf.mxu0
        %3780 = vdwg.mxu0
        %3781 = vrot.lane.b32.xlu0 %v1213, 96
        %v3782 = vpop.permute.xlu0 %3781
        %v3785 = vsel %vm629, %v3451, 0
        %3787 = vmatprep.subr.bf16.mxu0 0
        %3788 = vmatpush1.bf16.msra.mxu0 0
        %3789 = vmatprep.subr.bf16.mxu0 0
        %3790 = vmatpush1.bf16.msra.mxu0 0
        %3791 = vmatprep.subr.bf16.mxu0 0
        %3792 = vmatpush1.bf16.msra.mxu0 0
        %3793 = vmatprep.subr.bf16.mxu0 0
        %3794 = vmatpush1.bf16.msra.mxu0 0
        %3795 = vmatprep.subr.bf16.mxu0 0
        %3796 = vmatpush1.bf16.msra.mxu0 0
        %3797 = vmatprep.subr.bf16.mxu0 0
        %3798 = vmatpush1.bf16.msra.mxu0 0
        %3799 = vmatprep.subr.bf16.mxu0 0
        %3800 = vmatpush1.bf16.msra.mxu0 0
        %3801 = vmatprep.subr.bf16.mxu0 0
        %3802 = vmatpush1.bf16.msra.mxu0 %v3782
        %3803 = vmatprep.subr.bf16.mxu0 0
        %3804 = vmatpush2.bf16.msra.mxu0 0
        %3805 = vmatprep.subr.bf16.mxu0 0
        %3806 = vmatpush2.bf16.msra.mxu0 0
        %3807 = vmatprep.subr.bf16.mxu0 0
        %3808 = vmatpush2.bf16.msra.mxu0 0
        %3809 = vmatprep.subr.bf16.mxu0 0
        %3810 = vmatpush2.bf16.msra.mxu0 0
        %3811 = vmatprep.subr.bf16.mxu0 0
        %3812 = vmatpush2.bf16.msra.mxu0 0
        %3813 = vmatprep.subr.bf16.mxu0 0
        %3814 = vmatpush2.bf16.msra.mxu0 0
        %3815 = vmatprep.subr.bf16.mxu0 0
        %3816 = vmatpush2.bf16.msra.mxu0 0
        %3817 = vmatprep.subr.bf16.mxu0 0
        %3818 = vmatpush2.bf16.msra.mxu0 0
        %3819 = vmatprep.mubr.bf16.mxu0 0
        %3820 = vmatmul.mubr.bf16.gmra.mxu0 %v3785
        %v3821 = vpop.f32.mrf.mxu0
        %v3822 = vadd.f32 0.0, %v3821
        %v3823 = vpop.f32.mrf.mxu0
        %v3824 = vpop.f32.mrf.mxu0
        %v3825 = vadd.f32 0.0, %v3824
        %v3826 = vpop.f32.mrf.mxu0
        %3827 = vdwg.mxu0
        %v3828 = vpack.c.bf16 %v3496, %v3493
        %v3829 = vpack.c.bf16 %v3543, %v3540
        %v3830 = vpack.c.bf16 %v3590, %v3587
        %v3831 = vpack.c.bf16 %v3637, %v3634
        %v3832 = vpack.c.bf16 %v3684, %v3681
        %v3833 = vpack.c.bf16 %v3731, %v3728
        %v3834 = vpack.c.bf16 %v3778, %v3775
        %v3835 = vpack.c.bf16 %v3825, %v3822
        %v3838 = vunpack.c.l.b16 %v263
        %v3839 = vunpack.c.l.b16 %v264
        %v3840 = vpack.c.b16 %v3839, %v3838
        %v3843 = vsel %vm629, %v3828, 0
        %v3846 = vsel %vm629, %v3829, 0
        %v3849 = vsel %vm629, %v3830, 0
        %v3852 = vsel %vm629, %v3831, 0
        %v3855 = vsel %vm629, %v3832, 0
        %v3858 = vsel %vm629, %v3833, 0
        %v3861 = vsel %vm629, %v3834, 0
        %v3864 = vsel %vm629, %v3835, 0
        %3866 = vmatprep.subr.bf16.mxu0 0
        %3867 = vmatpush1.bf16.msra.mxu0 0
        %3868 = vmatprep.subr.bf16.mxu0 0
        %3869 = vmatpush1.bf16.msra.mxu0 0
        %3870 = vmatprep.subr.bf16.mxu0 0
        %3871 = vmatpush1.bf16.msra.mxu0 0
        %3872 = vmatprep.subr.bf16.mxu0 0
        %3873 = vmatpush1.bf16.msra.mxu0 0
        %3874 = vmatprep.subr.bf16.mxu0 0
        %3875 = vmatpush1.bf16.msra.mxu0 0
        %3876 = vmatprep.subr.bf16.mxu0 0
        %3877 = vmatpush1.bf16.msra.mxu0 0
        %3878 = vmatprep.subr.bf16.mxu0 0
        %3879 = vmatpush1.bf16.msra.mxu0 0
        %3880 = vmatprep.subr.bf16.mxu0 0
        %3881 = vmatpush1.bf16.msra.mxu0 %v3840
        %3882 = vmatprep.subr.bf16.mxu0 0
        %3883 = vmatpush2.bf16.msra.mxu0 0
        %3884 = vmatprep.subr.bf16.mxu0 0
        %3885 = vmatpush2.bf16.msra.mxu0 0
        %3886 = vmatprep.subr.bf16.mxu0 0
        %3887 = vmatpush2.bf16.msra.mxu0 0
        %3888 = vmatprep.subr.bf16.mxu0 0
        %3889 = vmatpush2.bf16.msra.mxu0 0
        %3890 = vmatprep.subr.bf16.mxu0 0
        %3891 = vmatpush2.bf16.msra.mxu0 0
        %3892 = vmatprep.subr.bf16.mxu0 0
        %3893 = vmatpush2.bf16.msra.mxu0 0
        %3894 = vmatprep.subr.bf16.mxu0 0
        %3895 = vmatpush2.bf16.msra.mxu0 0
        %3896 = vmatprep.subr.bf16.mxu0 0
        %3897 = vmatpush2.bf16.msra.mxu0 0
        %3898 = vmatprep.mubr.bf16.mxu0 0
        %3899 = vmatmul.mubr.bf16.gmra.mxu0 %v3843
        %v3900 = vpop.f32.mrf.mxu0
        %v3901 = vadd.f32 0.0, %v3900
        %v3902 = vpop.f32.mrf.mxu0
        %v3903 = vpop.f32.mrf.mxu0
        %v3904 = vadd.f32 0.0, %v3903
        %v3905 = vpop.f32.mrf.mxu0
        %3906 = vmatprep.mubr.bf16.mxu0 0
        %3907 = vmatmul.mubr.bf16.gmra.mxu0 %v3846
        %v3908 = vpop.f32.mrf.mxu0
        %v3909 = vadd.f32 0.0, %v3908
        %v3910 = vpop.f32.mrf.mxu0
        %v3911 = vpop.f32.mrf.mxu0
        %v3912 = vadd.f32 0.0, %v3911
        %v3913 = vpop.f32.mrf.mxu0
        %3914 = vmatprep.mubr.bf16.mxu0 0
        %3915 = vmatmul.mubr.bf16.gmra.mxu0 %v3849
        %v3916 = vpop.f32.mrf.mxu0
        %v3917 = vadd.f32 0.0, %v3916
        %v3918 = vpop.f32.mrf.mxu0
        %v3919 = vpop.f32.mrf.mxu0
        %v3920 = vadd.f32 0.0, %v3919
        %v3921 = vpop.f32.mrf.mxu0
        %3922 = vmatprep.mubr.bf16.mxu0 0
        %3923 = vmatmul.mubr.bf16.gmra.mxu0 %v3852
        %v3924 = vpop.f32.mrf.mxu0
        %v3925 = vadd.f32 0.0, %v3924
        %v3926 = vpop.f32.mrf.mxu0
        %v3927 = vpop.f32.mrf.mxu0
        %v3928 = vadd.f32 0.0, %v3927
        %v3929 = vpop.f32.mrf.mxu0
        %3930 = vmatprep.mubr.bf16.mxu0 0
        %3931 = vmatmul.mubr.bf16.gmra.mxu0 %v3855
        %v3932 = vpop.f32.mrf.mxu0
        %v3933 = vadd.f32 0.0, %v3932
        %v3934 = vpop.f32.mrf.mxu0
        %v3935 = vpop.f32.mrf.mxu0
        %v3936 = vadd.f32 0.0, %v3935
        %v3937 = vpop.f32.mrf.mxu0
        %3938 = vmatprep.mubr.bf16.mxu0 0
        %3939 = vmatmul.mubr.bf16.gmra.mxu0 %v3858
        %v3940 = vpop.f32.mrf.mxu0
        %v3941 = vadd.f32 0.0, %v3940
        %v3942 = vpop.f32.mrf.mxu0
        %v3943 = vpop.f32.mrf.mxu0
        %v3944 = vadd.f32 0.0, %v3943
        %v3945 = vpop.f32.mrf.mxu0
        %3946 = vmatprep.mubr.bf16.mxu0 0
        %3947 = vmatmul.mubr.bf16.gmra.mxu0 %v3861
        %v3948 = vpop.f32.mrf.mxu0
        %v3949 = vadd.f32 0.0, %v3948
        %v3950 = vpop.f32.mrf.mxu0
        %v3951 = vpop.f32.mrf.mxu0
        %v3952 = vadd.f32 0.0, %v3951
        %v3953 = vpop.f32.mrf.mxu0
        %3954 = vmatprep.mubr.bf16.mxu0 0
        %3955 = vmatmul.mubr.bf16.gmra.mxu0 %v3864
        %v3956 = vpop.f32.mrf.mxu0
        %v3957 = vadd.f32 0.0, %v3956
        %v3958 = vpop.f32.mrf.mxu0
        %v3959 = vpop.f32.mrf.mxu0
        %v3960 = vadd.f32 0.0, %v3959
        %v3961 = vpop.f32.mrf.mxu0
        %3962 = vdwg.mxu0
        %v3963 = vadd.f32 %v2782, %v3901
        %v3964 = vadd.f32 %v2785, %v3904
        %v3965 = vadd.f32 %v2790, %v3909
        %v3966 = vadd.f32 %v2793, %v3912
        %v3967 = vadd.f32 %v2798, %v3917
        %v3968 = vadd.f32 %v2801, %v3920
        %v3969 = vadd.f32 %v2806, %v3925
        %v3970 = vadd.f32 %v2809, %v3928
        %v3971 = vadd.f32 %v2814, %v3933
        %v3972 = vadd.f32 %v2817, %v3936
        %v3973 = vadd.f32 %v2822, %v3941
        %v3974 = vadd.f32 %v2825, %v3944
        %v3975 = vadd.f32 %v2830, %v3949
        %v3976 = vadd.f32 %v2833, %v3952
        %v3977 = vadd.f32 %v2838, %v3957
        %v3978 = vadd.f32 %v2841, %v3960
        %3979 = vrot.lane.b32.xlu0 %v613, 80
        %v3980 = vpop.permute.xlu0 %3979
        %3981 = vrot.lane.b32.xlu0 %v621, 80
        %v3982 = vpop.permute.xlu0 %3981
        %v3984 = vsel %vm629, %v3980, 0
        %v3987 = vsel %vm629, %v3982, 0
        %3989 = vmatprep.subr.bf16.mxu0 0
        %3990 = vmatpush1.bf16.xpose.msra.mxu0 0
        %3991 = vmatprep.subr.bf16.mxu0 0
        %3992 = vmatpush1.bf16.xpose.msra.mxu0 0
        %3993 = vmatprep.subr.bf16.mxu0 0
        %3994 = vmatpush1.bf16.xpose.msra.mxu0 0
        %3995 = vmatprep.subr.bf16.mxu0 0
        %3996 = vmatpush1.bf16.xpose.msra.mxu0 0
        %3997 = vmatprep.subr.bf16.mxu0 0
        %3998 = vmatpush1.bf16.xpose.msra.mxu0 0
        %3999 = vmatprep.subr.bf16.mxu0 0
        %4000 = vmatpush1.bf16.xpose.msra.mxu0 0
        %4001 = vmatprep.subr.bf16.mxu0 0
        %4002 = vmatpush1.bf16.xpose.msra.mxu0 0
        %4003 = vmatprep.subr.bf16.mxu0 0
        %4004 = vmatpush1.bf16.xpose.msra.mxu0 %v3987
        %4005 = vmatprep.subr.bf16.mxu0 0
        %4006 = vmatpush2.bf16.xpose.msra.mxu0 0
        %4007 = vmatprep.subr.bf16.mxu0 0
        %4008 = vmatpush2.bf16.xpose.msra.mxu0 0
        %4009 = vmatprep.subr.bf16.mxu0 0
        %4010 = vmatpush2.bf16.xpose.msra.mxu0 0
        %4011 = vmatprep.subr.bf16.mxu0 0
        %4012 = vmatpush2.bf16.xpose.msra.mxu0 0
        %4013 = vmatprep.subr.bf16.mxu0 0
        %4014 = vmatpush2.bf16.xpose.msra.mxu0 0
        %4015 = vmatprep.subr.bf16.mxu0 0
        %4016 = vmatpush2.bf16.xpose.msra.mxu0 0
        %4017 = vmatprep.subr.bf16.mxu0 0
        %4018 = vmatpush2.bf16.xpose.msra.mxu0 0
        %4019 = vmatprep.subr.bf16.mxu0 0
        %4020 = vmatpush2.bf16.xpose.msra.mxu0 0
        %4021 = vmatprep.mubr.bf16.mxu0 0
        %4022 = vmatmul.mubr.bf16.gmra.mxu0 %v3984
        %v4023 = vpop.f32.mrf.mxu0
        %v4024 = vadd.f32 0.0, %v4023
        %v4025 = vpop.f32.mrf.mxu0
        %v4026 = vpop.f32.mrf.mxu0
        %v4027 = vadd.f32 0.0, %v4026
        %v4028 = vpop.f32.mrf.mxu0
        %4029 = vdwg.mxu0
        %4030 = vrot.lane.b32.xlu0 %v614, 80
        %v4031 = vpop.permute.xlu0 %4030
        %4032 = vrot.lane.b32.xlu0 %v622, 80
        %v4033 = vpop.permute.xlu0 %4032
        %v4035 = vsel %vm629, %v4031, 0
        %v4038 = vsel %vm629, %v4033, 0
        %4040 = vmatprep.subr.bf16.mxu0 0
        %4041 = vmatpush1.bf16.xpose.msra.mxu0 0
        %4042 = vmatprep.subr.bf16.mxu0 0
        %4043 = vmatpush1.bf16.xpose.msra.mxu0 0
        %4044 = vmatprep.subr.bf16.mxu0 0
        %4045 = vmatpush1.bf16.xpose.msra.mxu0 0
        %4046 = vmatprep.subr.bf16.mxu0 0
        %4047 = vmatpush1.bf16.xpose.msra.mxu0 0
        %4048 = vmatprep.subr.bf16.mxu0 0
        %4049 = vmatpush1.bf16.xpose.msra.mxu0 0
        %4050 = vmatprep.subr.bf16.mxu0 0
        %4051 = vmatpush1.bf16.xpose.msra.mxu0 0
        %4052 = vmatprep.subr.bf16.mxu0 0
        %4053 = vmatpush1.bf16.xpose.msra.mxu0 0
        %4054 = vmatprep.subr.bf16.mxu0 0
        %4055 = vmatpush1.bf16.xpose.msra.mxu0 %v4038
        %4056 = vmatprep.subr.bf16.mxu0 0
        %4057 = vmatpush2.bf16.xpose.msra.mxu0 0
        %4058 = vmatprep.subr.bf16.mxu0 0
        %4059 = vmatpush2.bf16.xpose.msra.mxu0 0
        %4060 = vmatprep.subr.bf16.mxu0 0
        %4061 = vmatpush2.bf16.xpose.msra.mxu0 0
        %4062 = vmatprep.subr.bf16.mxu0 0
        %4063 = vmatpush2.bf16.xpose.msra.mxu0 0
        %4064 = vmatprep.subr.bf16.mxu0 0
        %4065 = vmatpush2.bf16.xpose.msra.mxu0 0
        %4066 = vmatprep.subr.bf16.mxu0 0
        %4067 = vmatpush2.bf16.xpose.msra.mxu0 0
        %4068 = vmatprep.subr.bf16.mxu0 0
        %4069 = vmatpush2.bf16.xpose.msra.mxu0 0
        %4070 = vmatprep.subr.bf16.mxu0 0
        %4071 = vmatpush2.bf16.xpose.msra.mxu0 0
        %4072 = vmatprep.mubr.bf16.mxu0 0
        %4073 = vmatmul.mubr.bf16.gmra.mxu0 %v4035
        %v4074 = vpop.f32.mrf.mxu0
        %v4075 = vadd.f32 0.0, %v4074
        %v4076 = vpop.f32.mrf.mxu0
        %v4077 = vpop.f32.mrf.mxu0
        %v4078 = vadd.f32 0.0, %v4077
        %v4079 = vpop.f32.mrf.mxu0
        %4080 = vdwg.mxu0
        %4081 = vrot.lane.b32.xlu0 %v615, 80
        %v4082 = vpop.permute.xlu0 %4081
        %4083 = vrot.lane.b32.xlu0 %v623, 80
        %v4084 = vpop.permute.xlu0 %4083
        %v4086 = vsel %vm629, %v4082, 0
        %v4089 = vsel %vm629, %v4084, 0
        %4091 = vmatprep.subr.bf16.mxu0 0
        %4092 = vmatpush1.bf16.xpose.msra.mxu0 0
        %4093 = vmatprep.subr.bf16.mxu0 0
        %4094 = vmatpush1.bf16.xpose.msra.mxu0 0
        %4095 = vmatprep.subr.bf16.mxu0 0
        %4096 = vmatpush1.bf16.xpose.msra.mxu0 0
        %4097 = vmatprep.subr.bf16.mxu0 0
        %4098 = vmatpush1.bf16.xpose.msra.mxu0 0
        %4099 = vmatprep.subr.bf16.mxu0 0
        %4100 = vmatpush1.bf16.xpose.msra.mxu0 0
        %4101 = vmatprep.subr.bf16.mxu0 0
        %4102 = vmatpush1.bf16.xpose.msra.mxu0 0
        %4103 = vmatprep.subr.bf16.mxu0 0
        %4104 = vmatpush1.bf16.xpose.msra.mxu0 0
        %4105 = vmatprep.subr.bf16.mxu0 0
        %4106 = vmatpush1.bf16.xpose.msra.mxu0 %v4089
        %4107 = vmatprep.subr.bf16.mxu0 0
        %4108 = vmatpush2.bf16.xpose.msra.mxu0 0
        %4109 = vmatprep.subr.bf16.mxu0 0
        %4110 = vmatpush2.bf16.xpose.msra.mxu0 0
        %4111 = vmatprep.subr.bf16.mxu0 0
        %4112 = vmatpush2.bf16.xpose.msra.mxu0 0
        %4113 = vmatprep.subr.bf16.mxu0 0
        %4114 = vmatpush2.bf16.xpose.msra.mxu0 0
        %4115 = vmatprep.subr.bf16.mxu0 0
        %4116 = vmatpush2.bf16.xpose.msra.mxu0 0
        %4117 = vmatprep.subr.bf16.mxu0 0
        %4118 = vmatpush2.bf16.xpose.msra.mxu0 0
        %4119 = vmatprep.subr.bf16.mxu0 0
        %4120 = vmatpush2.bf16.xpose.msra.mxu0 0
        %4121 = vmatprep.subr.bf16.mxu0 0
        %4122 = vmatpush2.bf16.xpose.msra.mxu0 0
        %4123 = vmatprep.mubr.bf16.mxu0 0
        %4124 = vmatmul.mubr.bf16.gmra.mxu0 %v4086
        %v4125 = vpop.f32.mrf.mxu0
        %v4126 = vadd.f32 0.0, %v4125
        %v4127 = vpop.f32.mrf.mxu0
        %v4128 = vpop.f32.mrf.mxu0
        %v4129 = vadd.f32 0.0, %v4128
        %v4130 = vpop.f32.mrf.mxu0
        %4131 = vdwg.mxu0
        %4132 = vrot.lane.b32.xlu0 %v616, 80
        %v4133 = vpop.permute.xlu0 %4132
        %4134 = vrot.lane.b32.xlu0 %v624, 80
        %v4135 = vpop.permute.xlu0 %4134
        %v4137 = vsel %vm629, %v4133, 0
        %v4140 = vsel %vm629, %v4135, 0
        %4142 = vmatprep.subr.bf16.mxu0 0
        %4143 = vmatpush1.bf16.xpose.msra.mxu0 0
        %4144 = vmatprep.subr.bf16.mxu0 0
        %4145 = vmatpush1.bf16.xpose.msra.mxu0 0
        %4146 = vmatprep.subr.bf16.mxu0 0
        %4147 = vmatpush1.bf16.xpose.msra.mxu0 0
        %4148 = vmatprep.subr.bf16.mxu0 0
        %4149 = vmatpush1.bf16.xpose.msra.mxu0 0
        %4150 = vmatprep.subr.bf16.mxu0 0
        %4151 = vmatpush1.bf16.xpose.msra.mxu0 0
        %4152 = vmatprep.subr.bf16.mxu0 0
        %4153 = vmatpush1.bf16.xpose.msra.mxu0 0
        %4154 = vmatprep.subr.bf16.mxu0 0
        %4155 = vmatpush1.bf16.xpose.msra.mxu0 0
        %4156 = vmatprep.subr.bf16.mxu0 0
        %4157 = vmatpush1.bf16.xpose.msra.mxu0 %v4140
        %4158 = vmatprep.subr.bf16.mxu0 0
        %4159 = vmatpush2.bf16.xpose.msra.mxu0 0
        %4160 = vmatprep.subr.bf16.mxu0 0
        %4161 = vmatpush2.bf16.xpose.msra.mxu0 0
        %4162 = vmatprep.subr.bf16.mxu0 0
        %4163 = vmatpush2.bf16.xpose.msra.mxu0 0
        %4164 = vmatprep.subr.bf16.mxu0 0
        %4165 = vmatpush2.bf16.xpose.msra.mxu0 0
        %4166 = vmatprep.subr.bf16.mxu0 0
        %4167 = vmatpush2.bf16.xpose.msra.mxu0 0
        %4168 = vmatprep.subr.bf16.mxu0 0
        %4169 = vmatpush2.bf16.xpose.msra.mxu0 0
        %4170 = vmatprep.subr.bf16.mxu0 0
        %4171 = vmatpush2.bf16.xpose.msra.mxu0 0
        %4172 = vmatprep.subr.bf16.mxu0 0
        %4173 = vmatpush2.bf16.xpose.msra.mxu0 0
        %4174 = vmatprep.mubr.bf16.mxu0 0
        %4175 = vmatmul.mubr.bf16.gmra.mxu0 %v4137
        %v4176 = vpop.f32.mrf.mxu0
        %v4177 = vadd.f32 0.0, %v4176
        %v4178 = vpop.f32.mrf.mxu0
        %v4179 = vpop.f32.mrf.mxu0
        %v4180 = vadd.f32 0.0, %v4179
        %v4181 = vpop.f32.mrf.mxu0
        %4182 = vdwg.mxu0
        %4183 = vrot.lane.b32.xlu0 %v617, 80
        %v4184 = vpop.permute.xlu0 %4183
        %4185 = vrot.lane.b32.xlu0 %v625, 80
        %v4186 = vpop.permute.xlu0 %4185
        %v4188 = vsel %vm629, %v4184, 0
        %v4191 = vsel %vm629, %v4186, 0
        %4193 = vmatprep.subr.bf16.mxu0 0
        %4194 = vmatpush1.bf16.xpose.msra.mxu0 0
        %4195 = vmatprep.subr.bf16.mxu0 0
        %4196 = vmatpush1.bf16.xpose.msra.mxu0 0
        %4197 = vmatprep.subr.bf16.mxu0 0
        %4198 = vmatpush1.bf16.xpose.msra.mxu0 0
        %4199 = vmatprep.subr.bf16.mxu0 0
        %4200 = vmatpush1.bf16.xpose.msra.mxu0 0
        %4201 = vmatprep.subr.bf16.mxu0 0
        %4202 = vmatpush1.bf16.xpose.msra.mxu0 0
        %4203 = vmatprep.subr.bf16.mxu0 0
        %4204 = vmatpush1.bf16.xpose.msra.mxu0 0
        %4205 = vmatprep.subr.bf16.mxu0 0
        %4206 = vmatpush1.bf16.xpose.msra.mxu0 0
        %4207 = vmatprep.subr.bf16.mxu0 0
        %4208 = vmatpush1.bf16.xpose.msra.mxu0 %v4191
        %4209 = vmatprep.subr.bf16.mxu0 0
        %4210 = vmatpush2.bf16.xpose.msra.mxu0 0
        %4211 = vmatprep.subr.bf16.mxu0 0
        %4212 = vmatpush2.bf16.xpose.msra.mxu0 0
        %4213 = vmatprep.subr.bf16.mxu0 0
        %4214 = vmatpush2.bf16.xpose.msra.mxu0 0
        %4215 = vmatprep.subr.bf16.mxu0 0
        %4216 = vmatpush2.bf16.xpose.msra.mxu0 0
        %4217 = vmatprep.subr.bf16.mxu0 0
        %4218 = vmatpush2.bf16.xpose.msra.mxu0 0
        %4219 = vmatprep.subr.bf16.mxu0 0
        %4220 = vmatpush2.bf16.xpose.msra.mxu0 0
        %4221 = vmatprep.subr.bf16.mxu0 0
        %4222 = vmatpush2.bf16.xpose.msra.mxu0 0
        %4223 = vmatprep.subr.bf16.mxu0 0
        %4224 = vmatpush2.bf16.xpose.msra.mxu0 0
        %4225 = vmatprep.mubr.bf16.mxu0 0
        %4226 = vmatmul.mubr.bf16.gmra.mxu0 %v4188
        %v4227 = vpop.f32.mrf.mxu0
        %v4228 = vadd.f32 0.0, %v4227
        %v4229 = vpop.f32.mrf.mxu0
        %v4230 = vpop.f32.mrf.mxu0
        %v4231 = vadd.f32 0.0, %v4230
        %v4232 = vpop.f32.mrf.mxu0
        %4233 = vdwg.mxu0
        %4234 = vrot.lane.b32.xlu0 %v618, 80
        %v4235 = vpop.permute.xlu0 %4234
        %4236 = vrot.lane.b32.xlu0 %v626, 80
        %v4237 = vpop.permute.xlu0 %4236
        %v4239 = vsel %vm629, %v4235, 0
        %v4242 = vsel %vm629, %v4237, 0
        %4244 = vmatprep.subr.bf16.mxu0 0
        %4245 = vmatpush1.bf16.xpose.msra.mxu0 0
        %4246 = vmatprep.subr.bf16.mxu0 0
        %4247 = vmatpush1.bf16.xpose.msra.mxu0 0
        %4248 = vmatprep.subr.bf16.mxu0 0
        %4249 = vmatpush1.bf16.xpose.msra.mxu0 0
        %4250 = vmatprep.subr.bf16.mxu0 0
        %4251 = vmatpush1.bf16.xpose.msra.mxu0 0
        %4252 = vmatprep.subr.bf16.mxu0 0
        %4253 = vmatpush1.bf16.xpose.msra.mxu0 0
        %4254 = vmatprep.subr.bf16.mxu0 0
        %4255 = vmatpush1.bf16.xpose.msra.mxu0 0
        %4256 = vmatprep.subr.bf16.mxu0 0
        %4257 = vmatpush1.bf16.xpose.msra.mxu0 0
        %4258 = vmatprep.subr.bf16.mxu0 0
        %4259 = vmatpush1.bf16.xpose.msra.mxu0 %v4242
        %4260 = vmatprep.subr.bf16.mxu0 0
        %4261 = vmatpush2.bf16.xpose.msra.mxu0 0
        %4262 = vmatprep.subr.bf16.mxu0 0
        %4263 = vmatpush2.bf16.xpose.msra.mxu0 0
        %4264 = vmatprep.subr.bf16.mxu0 0
        %4265 = vmatpush2.bf16.xpose.msra.mxu0 0
        %4266 = vmatprep.subr.bf16.mxu0 0
        %4267 = vmatpush2.bf16.xpose.msra.mxu0 0
        %4268 = vmatprep.subr.bf16.mxu0 0
        %4269 = vmatpush2.bf16.xpose.msra.mxu0 0
        %4270 = vmatprep.subr.bf16.mxu0 0
        %4271 = vmatpush2.bf16.xpose.msra.mxu0 0
        %4272 = vmatprep.subr.bf16.mxu0 0
        %4273 = vmatpush2.bf16.xpose.msra.mxu0 0
        %4274 = vmatprep.subr.bf16.mxu0 0
        %4275 = vmatpush2.bf16.xpose.msra.mxu0 0
        %4276 = vmatprep.mubr.bf16.mxu0 0
        %4277 = vmatmul.mubr.bf16.gmra.mxu0 %v4239
        %v4278 = vpop.f32.mrf.mxu0
        %v4279 = vadd.f32 0.0, %v4278
        %v4280 = vpop.f32.mrf.mxu0
        %v4281 = vpop.f32.mrf.mxu0
        %v4282 = vadd.f32 0.0, %v4281
        %v4283 = vpop.f32.mrf.mxu0
        %4284 = vdwg.mxu0
        %4285 = vrot.lane.b32.xlu0 %v619, 80
        %v4286 = vpop.permute.xlu0 %4285
        %4287 = vrot.lane.b32.xlu0 %v627, 80
        %v4288 = vpop.permute.xlu0 %4287
        %v4290 = vsel %vm629, %v4286, 0
        %v4293 = vsel %vm629, %v4288, 0
        %4295 = vmatprep.subr.bf16.mxu0 0
        %4296 = vmatpush1.bf16.xpose.msra.mxu0 0
        %4297 = vmatprep.subr.bf16.mxu0 0
        %4298 = vmatpush1.bf16.xpose.msra.mxu0 0
        %4299 = vmatprep.subr.bf16.mxu0 0
        %4300 = vmatpush1.bf16.xpose.msra.mxu0 0
        %4301 = vmatprep.subr.bf16.mxu0 0
        %4302 = vmatpush1.bf16.xpose.msra.mxu0 0
        %4303 = vmatprep.subr.bf16.mxu0 0
        %4304 = vmatpush1.bf16.xpose.msra.mxu0 0
        %4305 = vmatprep.subr.bf16.mxu0 0
        %4306 = vmatpush1.bf16.xpose.msra.mxu0 0
        %4307 = vmatprep.subr.bf16.mxu0 0
        %4308 = vmatpush1.bf16.xpose.msra.mxu0 0
        %4309 = vmatprep.subr.bf16.mxu0 0
        %4310 = vmatpush1.bf16.xpose.msra.mxu0 %v4293
        %4311 = vmatprep.subr.bf16.mxu0 0
        %4312 = vmatpush2.bf16.xpose.msra.mxu0 0
        %4313 = vmatprep.subr.bf16.mxu0 0
        %4314 = vmatpush2.bf16.xpose.msra.mxu0 0
        %4315 = vmatprep.subr.bf16.mxu0 0
        %4316 = vmatpush2.bf16.xpose.msra.mxu0 0
        %4317 = vmatprep.subr.bf16.mxu0 0
        %4318 = vmatpush2.bf16.xpose.msra.mxu0 0
        %4319 = vmatprep.subr.bf16.mxu0 0
        %4320 = vmatpush2.bf16.xpose.msra.mxu0 0
        %4321 = vmatprep.subr.bf16.mxu0 0
        %4322 = vmatpush2.bf16.xpose.msra.mxu0 0
        %4323 = vmatprep.subr.bf16.mxu0 0
        %4324 = vmatpush2.bf16.xpose.msra.mxu0 0
        %4325 = vmatprep.subr.bf16.mxu0 0
        %4326 = vmatpush2.bf16.xpose.msra.mxu0 0
        %4327 = vmatprep.mubr.bf16.mxu0 0
        %4328 = vmatmul.mubr.bf16.gmra.mxu0 %v4290
        %v4329 = vpop.f32.mrf.mxu0
        %v4330 = vadd.f32 0.0, %v4329
        %v4331 = vpop.f32.mrf.mxu0
        %v4332 = vpop.f32.mrf.mxu0
        %v4333 = vadd.f32 0.0, %v4332
        %v4334 = vpop.f32.mrf.mxu0
        %4335 = vdwg.mxu0
        %4336 = vrot.lane.b32.xlu0 %v620, 80
        %v4337 = vpop.permute.xlu0 %4336
        %4338 = vrot.lane.b32.xlu0 %v628, 80
        %v4339 = vpop.permute.xlu0 %4338
        %v4341 = vsel %vm629, %v4337, 0
        %v4344 = vsel %vm629, %v4339, 0
        %4346 = vmatprep.subr.bf16.mxu0 0
        %4347 = vmatpush1.bf16.xpose.msra.mxu0 0
        %4348 = vmatprep.subr.bf16.mxu0 0
        %4349 = vmatpush1.bf16.xpose.msra.mxu0 0
        %4350 = vmatprep.subr.bf16.mxu0 0
        %4351 = vmatpush1.bf16.xpose.msra.mxu0 0
        %4352 = vmatprep.subr.bf16.mxu0 0
        %4353 = vmatpush1.bf16.xpose.msra.mxu0 0
        %4354 = vmatprep.subr.bf16.mxu0 0
        %4355 = vmatpush1.bf16.xpose.msra.mxu0 0
        %4356 = vmatprep.subr.bf16.mxu0 0
        %4357 = vmatpush1.bf16.xpose.msra.mxu0 0
        %4358 = vmatprep.subr.bf16.mxu0 0
        %4359 = vmatpush1.bf16.xpose.msra.mxu0 0
        %4360 = vmatprep.subr.bf16.mxu0 0
        %4361 = vmatpush1.bf16.xpose.msra.mxu0 %v4344
        %4362 = vmatprep.subr.bf16.mxu0 0
        %4363 = vmatpush2.bf16.xpose.msra.mxu0 0
        %4364 = vmatprep.subr.bf16.mxu0 0
        %4365 = vmatpush2.bf16.xpose.msra.mxu0 0
        %4366 = vmatprep.subr.bf16.mxu0 0
        %4367 = vmatpush2.bf16.xpose.msra.mxu0 0
        %4368 = vmatprep.subr.bf16.mxu0 0
        %4369 = vmatpush2.bf16.xpose.msra.mxu0 0
        %4370 = vmatprep.subr.bf16.mxu0 0
        %4371 = vmatpush2.bf16.xpose.msra.mxu0 0
        %4372 = vmatprep.subr.bf16.mxu0 0
        %4373 = vmatpush2.bf16.xpose.msra.mxu0 0
        %4374 = vmatprep.subr.bf16.mxu0 0
        %4375 = vmatpush2.bf16.xpose.msra.mxu0 0
        %4376 = vmatprep.subr.bf16.mxu0 0
        %4377 = vmatpush2.bf16.xpose.msra.mxu0 0
        %4378 = vmatprep.mubr.bf16.mxu0 0
        %4379 = vmatmul.mubr.bf16.gmra.mxu0 %v4341
        %v4380 = vpop.f32.mrf.mxu0
        %v4381 = vadd.f32 0.0, %v4380
        %v4382 = vpop.f32.mrf.mxu0
        %v4383 = vpop.f32.mrf.mxu0
        %v4384 = vadd.f32 0.0, %v4383
        %v4385 = vpop.f32.mrf.mxu0
        %4386 = vdwg.mxu0
        %v4387 = vmul.f32 %v4024, 0.25
        %v4388 = vmul.f32 %v4027, 0.25
        %v4389 = vmul.f32 %v4075, 0.25
        %v4390 = vmul.f32 %v4078, 0.25
        %v4391 = vmul.f32 %v4126, 0.25
        %v4392 = vmul.f32 %v4129, 0.25
        %v4393 = vmul.f32 %v4177, 0.25
        %v4394 = vmul.f32 %v4180, 0.25
        %v4395 = vmul.f32 %v4228, 0.25
        %v4396 = vmul.f32 %v4231, 0.25
        %v4397 = vmul.f32 %v4279, 0.25
        %v4398 = vmul.f32 %v4282, 0.25
        %v4399 = vmul.f32 %v4330, 0.25
        %v4400 = vmul.f32 %v4333, 0.25
        %v4401 = vmul.f32 %v4381, 0.25
        %v4402 = vmul.f32 %v4384, 0.25
        %v4403 = vsel %vm629, %v4387, -inf
        %4404 = vmax.xlane.f32.xlu0 %v4403
        %v4405 = vpop.xlane.xlu0 %4404
        %v4406 = vsel %vm629, %v4388, -inf
        %4407 = vmax.xlane.f32.xlu0 %v4406
        %v4408 = vpop.xlane.xlu0 %4407
        %v4409 = vsel %vm629, %v4389, -inf
        %4410 = vmax.xlane.f32.xlu0 %v4409
        %v4411 = vpop.xlane.xlu0 %4410
        %v4412 = vsel %vm629, %v4390, -inf
        %4413 = vmax.xlane.f32.xlu0 %v4412
        %v4414 = vpop.xlane.xlu0 %4413
        %v4415 = vsel %vm629, %v4391, -inf
        %4416 = vmax.xlane.f32.xlu0 %v4415
        %v4417 = vpop.xlane.xlu0 %4416
        %v4418 = vsel %vm629, %v4392, -inf
        %4419 = vmax.xlane.f32.xlu0 %v4418
        %v4420 = vpop.xlane.xlu0 %4419
        %v4421 = vsel %vm629, %v4393, -inf
        %4422 = vmax.xlane.f32.xlu0 %v4421
        %v4423 = vpop.xlane.xlu0 %4422
        %v4424 = vsel %vm629, %v4394, -inf
        %4425 = vmax.xlane.f32.xlu0 %v4424
        %v4426 = vpop.xlane.xlu0 %4425
        %v4427 = vsel %vm629, %v4395, -inf
        %4428 = vmax.xlane.f32.xlu0 %v4427
        %v4429 = vpop.xlane.xlu0 %4428
        %v4430 = vsel %vm629, %v4396, -inf
        %4431 = vmax.xlane.f32.xlu0 %v4430
        %v4432 = vpop.xlane.xlu0 %4431
        %v4433 = vsel %vm629, %v4397, -inf
        %4434 = vmax.xlane.f32.xlu0 %v4433
        %v4435 = vpop.xlane.xlu0 %4434
        %v4436 = vsel %vm629, %v4398, -inf
        %4437 = vmax.xlane.f32.xlu0 %v4436
        %v4438 = vpop.xlane.xlu0 %4437
        %v4439 = vsel %vm629, %v4399, -inf
        %4440 = vmax.xlane.f32.xlu0 %v4439
        %v4441 = vpop.xlane.xlu0 %4440
        %v4442 = vsel %vm629, %v4400, -inf
        %4443 = vmax.xlane.f32.xlu0 %v4442
        %v4444 = vpop.xlane.xlu0 %4443
        %v4445 = vsel %vm629, %v4401, -inf
        %4446 = vmax.xlane.f32.xlu0 %v4445
        %v4447 = vpop.xlane.xlu0 %4446
        %v4448 = vsel %vm629, %v4402, -inf
        %4449 = vmax.xlane.f32.xlu0 %v4448
        %v4450 = vpop.xlane.xlu0 %4449
        %v4451 = vsub.f32 %v4387, %v4405
        %v4452 = vsub.f32 %v4388, %v4408
        %v4453 = vsub.f32 %v4389, %v4411
        %v4454 = vsub.f32 %v4390, %v4414
        %v4455 = vsub.f32 %v4391, %v4417
        %v4456 = vsub.f32 %v4392, %v4420
        %v4457 = vsub.f32 %v4393, %v4423
        %v4458 = vsub.f32 %v4394, %v4426
        %v4459 = vsub.f32 %v4395, %v4429
        %v4460 = vsub.f32 %v4396, %v4432
        %v4461 = vsub.f32 %v4397, %v4435
        %v4462 = vsub.f32 %v4398, %v4438
        %v4463 = vsub.f32 %v4399, %v4441
        %v4464 = vsub.f32 %v4400, %v4444
        %v4465 = vsub.f32 %v4401, %v4447
        %v4466 = vsub.f32 %v4402, %v4450
        %v4467 = vmul.f32 %v4451, 1.442695
        %v4468 = vpow.pop %v4467
        %v4469 = vmul.f32 %v4452, 1.442695
        %v4470 = vpow.pop %v4469
        %v4471 = vmul.f32 %v4453, 1.442695
        %v4472 = vpow.pop %v4471
        %v4473 = vmul.f32 %v4454, 1.442695
        %v4474 = vpow.pop %v4473
        %v4475 = vmul.f32 %v4455, 1.442695
        %v4476 = vpow.pop %v4475
        %v4477 = vmul.f32 %v4456, 1.442695
        %v4478 = vpow.pop %v4477
        %v4479 = vmul.f32 %v4457, 1.442695
        %v4480 = vpow.pop %v4479
        %v4481 = vmul.f32 %v4458, 1.442695
        %v4482 = vpow.pop %v4481
        %v4483 = vmul.f32 %v4459, 1.442695
        %v4484 = vpow.pop %v4483
        %v4485 = vmul.f32 %v4460, 1.442695
        %v4486 = vpow.pop %v4485
        %v4487 = vmul.f32 %v4461, 1.442695
        %v4488 = vpow.pop %v4487
        %v4489 = vmul.f32 %v4462, 1.442695
        %v4490 = vpow.pop %v4489
        %v4491 = vmul.f32 %v4463, 1.442695
        %v4492 = vpow.pop %v4491
        %v4493 = vmul.f32 %v4464, 1.442695
        %v4494 = vpow.pop %v4493
        %v4495 = vmul.f32 %v4465, 1.442695
        %v4496 = vpow.pop %v4495
        %v4497 = vmul.f32 %v4466, 1.442695
        %v4498 = vpow.pop %v4497
        %v4499 = vsel %vm629, %v4468, 0.0
        %4500 = vadd.xlane.f32.xlu0 %v4499
        %v4501 = vpop.xlane.xlu0 %4500
        %v4502 = vsel %vm629, %v4470, 0.0
        %4503 = vadd.xlane.f32.xlu0 %v4502
        %v4504 = vpop.xlane.xlu0 %4503
        %v4505 = vsel %vm629, %v4472, 0.0
        %4506 = vadd.xlane.f32.xlu0 %v4505
        %v4507 = vpop.xlane.xlu0 %4506
        %v4508 = vsel %vm629, %v4474, 0.0
        %4509 = vadd.xlane.f32.xlu0 %v4508
        %v4510 = vpop.xlane.xlu0 %4509
        %v4511 = vsel %vm629, %v4476, 0.0
        %4512 = vadd.xlane.f32.xlu0 %v4511
        %v4513 = vpop.xlane.xlu0 %4512
        %v4514 = vsel %vm629, %v4478, 0.0
        %4515 = vadd.xlane.f32.xlu0 %v4514
        %v4516 = vpop.xlane.xlu0 %4515
        %v4517 = vsel %vm629, %v4480, 0.0
        %4518 = vadd.xlane.f32.xlu0 %v4517
        %v4519 = vpop.xlane.xlu0 %4518
        %v4520 = vsel %vm629, %v4482, 0.0
        %4521 = vadd.xlane.f32.xlu0 %v4520
        %v4522 = vpop.xlane.xlu0 %4521
        %v4523 = vsel %vm629, %v4484, 0.0
        %4524 = vadd.xlane.f32.xlu0 %v4523
        %v4525 = vpop.xlane.xlu0 %4524
        %v4526 = vsel %vm629, %v4486, 0.0
        %4527 = vadd.xlane.f32.xlu0 %v4526
        %v4528 = vpop.xlane.xlu0 %4527
        %v4529 = vsel %vm629, %v4488, 0.0
        %4530 = vadd.xlane.f32.xlu0 %v4529
        %v4531 = vpop.xlane.xlu0 %4530
        %v4532 = vsel %vm629, %v4490, 0.0
        %4533 = vadd.xlane.f32.xlu0 %v4532
        %v4534 = vpop.xlane.xlu0 %4533
        %v4535 = vsel %vm629, %v4492, 0.0
        %4536 = vadd.xlane.f32.xlu0 %v4535
        %v4537 = vpop.xlane.xlu0 %4536
        %v4538 = vsel %vm629, %v4494, 0.0
        %4539 = vadd.xlane.f32.xlu0 %v4538
        %v4540 = vpop.xlane.xlu0 %4539
        %v4541 = vsel %vm629, %v4496, 0.0
        %4542 = vadd.xlane.f32.xlu0 %v4541
        %v4543 = vpop.xlane.xlu0 %4542
        %v4544 = vsel %vm629, %v4498, 0.0
        %4545 = vadd.xlane.f32.xlu0 %v4544
        %v4546 = vpop.xlane.xlu0 %4545
        %v4547 = vrcp.pop %v4501
        %v4548 = vrcp.pop %v4504
        %v4549 = vrcp.pop %v4507
        %v4550 = vrcp.pop %v4510
        %v4551 = vrcp.pop %v4513
        %v4552 = vrcp.pop %v4516
        %v4553 = vrcp.pop %v4519
        %v4554 = vrcp.pop %v4522
        %v4555 = vrcp.pop %v4525
        %v4556 = vrcp.pop %v4528
        %v4557 = vrcp.pop %v4531
        %v4558 = vrcp.pop %v4534
        %v4559 = vrcp.pop %v4537
        %v4560 = vrcp.pop %v4540
        %v4561 = vrcp.pop %v4543
        %v4562 = vrcp.pop %v4546
        %v4563 = vmul.f32 %v4468, %v4547
        %v4564 = vmul.f32 %v4470, %v4548
        %v4565 = vmul.f32 %v4472, %v4549
        %v4566 = vmul.f32 %v4474, %v4550
        %v4567 = vmul.f32 %v4476, %v4551
        %v4568 = vmul.f32 %v4478, %v4552
        %v4569 = vmul.f32 %v4480, %v4553
        %v4570 = vmul.f32 %v4482, %v4554
        %v4571 = vmul.f32 %v4484, %v4555
        %v4572 = vmul.f32 %v4486, %v4556
        %v4573 = vmul.f32 %v4488, %v4557
        %v4574 = vmul.f32 %v4490, %v4558
        %v4575 = vmul.f32 %v4492, %v4559
        %v4576 = vmul.f32 %v4494, %v4560
        %v4577 = vmul.f32 %v4496, %v4561
        %v4578 = vmul.f32 %v4498, %v4562
        %v4579 = vpack.c.bf16 %v4564, %v4563
        %v4580 = vpack.c.bf16 %v4566, %v4565
        %v4581 = vpack.c.bf16 %v4568, %v4567
        %v4582 = vpack.c.bf16 %v4570, %v4569
        %v4583 = vpack.c.bf16 %v4572, %v4571
        %v4584 = vpack.c.bf16 %v4574, %v4573
        %v4585 = vpack.c.bf16 %v4576, %v4575
        %v4586 = vpack.c.bf16 %v4578, %v4577
        %4587 = vrot.lane.b32.xlu0 %v1206, 80
        %v4588 = vpop.permute.xlu0 %4587
        %v4591 = vsel %vm629, %v4579, 0
        %4593 = vmatprep.subr.bf16.mxu0 0
        %4594 = vmatpush1.bf16.msra.mxu0 0
        %4595 = vmatprep.subr.bf16.mxu0 0
        %4596 = vmatpush1.bf16.msra.mxu0 0
        %4597 = vmatprep.subr.bf16.mxu0 0
        %4598 = vmatpush1.bf16.msra.mxu0 0
        %4599 = vmatprep.subr.bf16.mxu0 0
        %4600 = vmatpush1.bf16.msra.mxu0 0
        %4601 = vmatprep.subr.bf16.mxu0 0
        %4602 = vmatpush1.bf16.msra.mxu0 0
        %4603 = vmatprep.subr.bf16.mxu0 0
        %4604 = vmatpush1.bf16.msra.mxu0 0
        %4605 = vmatprep.subr.bf16.mxu0 0
        %4606 = vmatpush1.bf16.msra.mxu0 0
        %4607 = vmatprep.subr.bf16.mxu0 0
        %4608 = vmatpush1.bf16.msra.mxu0 %v4588
        %4609 = vmatprep.subr.bf16.mxu0 0
        %4610 = vmatpush2.bf16.msra.mxu0 0
        %4611 = vmatprep.subr.bf16.mxu0 0
        %4612 = vmatpush2.bf16.msra.mxu0 0
        %4613 = vmatprep.subr.bf16.mxu0 0
        %4614 = vmatpush2.bf16.msra.mxu0 0
        %4615 = vmatprep.subr.bf16.mxu0 0
        %4616 = vmatpush2.bf16.msra.mxu0 0
        %4617 = vmatprep.subr.bf16.mxu0 0
        %4618 = vmatpush2.bf16.msra.mxu0 0
        %4619 = vmatprep.subr.bf16.mxu0 0
        %4620 = vmatpush2.bf16.msra.mxu0 0
        %4621 = vmatprep.subr.bf16.mxu0 0
        %4622 = vmatpush2.bf16.msra.mxu0 0
        %4623 = vmatprep.subr.bf16.mxu0 0
        %4624 = vmatpush2.bf16.msra.mxu0 0
        %4625 = vmatprep.mubr.bf16.mxu0 0
        %4626 = vmatmul.mubr.bf16.gmra.mxu0 %v4591
        %v4627 = vpop.f32.mrf.mxu0
        %v4628 = vadd.f32 0.0, %v4627
        %v4629 = vpop.f32.mrf.mxu0
        %v4630 = vpop.f32.mrf.mxu0
        %v4631 = vadd.f32 0.0, %v4630
        %v4632 = vpop.f32.mrf.mxu0
        %4633 = vdwg.mxu0
        %4634 = vrot.lane.b32.xlu0 %v1207, 80
        %v4635 = vpop.permute.xlu0 %4634
        %v4638 = vsel %vm629, %v4580, 0
        %4640 = vmatprep.subr.bf16.mxu0 0
        %4641 = vmatpush1.bf16.msra.mxu0 0
        %4642 = vmatprep.subr.bf16.mxu0 0
        %4643 = vmatpush1.bf16.msra.mxu0 0
        %4644 = vmatprep.subr.bf16.mxu0 0
        %4645 = vmatpush1.bf16.msra.mxu0 0
        %4646 = vmatprep.subr.bf16.mxu0 0
        %4647 = vmatpush1.bf16.msra.mxu0 0
        %4648 = vmatprep.subr.bf16.mxu0 0
        %4649 = vmatpush1.bf16.msra.mxu0 0
        %4650 = vmatprep.subr.bf16.mxu0 0
        %4651 = vmatpush1.bf16.msra.mxu0 0
        %4652 = vmatprep.subr.bf16.mxu0 0
        %4653 = vmatpush1.bf16.msra.mxu0 0
        %4654 = vmatprep.subr.bf16.mxu0 0
        %4655 = vmatpush1.bf16.msra.mxu0 %v4635
        %4656 = vmatprep.subr.bf16.mxu0 0
        %4657 = vmatpush2.bf16.msra.mxu0 0
        %4658 = vmatprep.subr.bf16.mxu0 0
        %4659 = vmatpush2.bf16.msra.mxu0 0
        %4660 = vmatprep.subr.bf16.mxu0 0
        %4661 = vmatpush2.bf16.msra.mxu0 0
        %4662 = vmatprep.subr.bf16.mxu0 0
        %4663 = vmatpush2.bf16.msra.mxu0 0
        %4664 = vmatprep.subr.bf16.mxu0 0
        %4665 = vmatpush2.bf16.msra.mxu0 0
        %4666 = vmatprep.subr.bf16.mxu0 0
        %4667 = vmatpush2.bf16.msra.mxu0 0
        %4668 = vmatprep.subr.bf16.mxu0 0
        %4669 = vmatpush2.bf16.msra.mxu0 0
        %4670 = vmatprep.subr.bf16.mxu0 0
        %4671 = vmatpush2.bf16.msra.mxu0 0
        %4672 = vmatprep.mubr.bf16.mxu0 0
        %4673 = vmatmul.mubr.bf16.gmra.mxu0 %v4638
        %v4674 = vpop.f32.mrf.mxu0
        %v4675 = vadd.f32 0.0, %v4674
        %v4676 = vpop.f32.mrf.mxu0
        %v4677 = vpop.f32.mrf.mxu0
        %v4678 = vadd.f32 0.0, %v4677
        %v4679 = vpop.f32.mrf.mxu0
        %4680 = vdwg.mxu0
        %4681 = vrot.lane.b32.xlu0 %v1208, 80
        %v4682 = vpop.permute.xlu0 %4681
        %v4685 = vsel %vm629, %v4581, 0
        %4687 = vmatprep.subr.bf16.mxu0 0
        %4688 = vmatpush1.bf16.msra.mxu0 0
        %4689 = vmatprep.subr.bf16.mxu0 0
        %4690 = vmatpush1.bf16.msra.mxu0 0
        %4691 = vmatprep.subr.bf16.mxu0 0
        %4692 = vmatpush1.bf16.msra.mxu0 0
        %4693 = vmatprep.subr.bf16.mxu0 0
        %4694 = vmatpush1.bf16.msra.mxu0 0
        %4695 = vmatprep.subr.bf16.mxu0 0
        %4696 = vmatpush1.bf16.msra.mxu0 0
        %4697 = vmatprep.subr.bf16.mxu0 0
        %4698 = vmatpush1.bf16.msra.mxu0 0
        %4699 = vmatprep.subr.bf16.mxu0 0
        %4700 = vmatpush1.bf16.msra.mxu0 0
        %4701 = vmatprep.subr.bf16.mxu0 0
        %4702 = vmatpush1.bf16.msra.mxu0 %v4682
        %4703 = vmatprep.subr.bf16.mxu0 0
        %4704 = vmatpush2.bf16.msra.mxu0 0
        %4705 = vmatprep.subr.bf16.mxu0 0
        %4706 = vmatpush2.bf16.msra.mxu0 0
        %4707 = vmatprep.subr.bf16.mxu0 0
        %4708 = vmatpush2.bf16.msra.mxu0 0
        %4709 = vmatprep.subr.bf16.mxu0 0
        %4710 = vmatpush2.bf16.msra.mxu0 0
        %4711 = vmatprep.subr.bf16.mxu0 0
        %4712 = vmatpush2.bf16.msra.mxu0 0
        %4713 = vmatprep.subr.bf16.mxu0 0
        %4714 = vmatpush2.bf16.msra.mxu0 0
        %4715 = vmatprep.subr.bf16.mxu0 0
        %4716 = vmatpush2.bf16.msra.mxu0 0
        %4717 = vmatprep.subr.bf16.mxu0 0
        %4718 = vmatpush2.bf16.msra.mxu0 0
        %4719 = vmatprep.mubr.bf16.mxu0 0
        %4720 = vmatmul.mubr.bf16.gmra.mxu0 %v4685
        %v4721 = vpop.f32.mrf.mxu0
        %v4722 = vadd.f32 0.0, %v4721
        %v4723 = vpop.f32.mrf.mxu0
        %v4724 = vpop.f32.mrf.mxu0
        %v4725 = vadd.f32 0.0, %v4724
        %v4726 = vpop.f32.mrf.mxu0
        %4727 = vdwg.mxu0
        %4728 = vrot.lane.b32.xlu0 %v1209, 80
        %v4729 = vpop.permute.xlu0 %4728
        %v4732 = vsel %vm629, %v4582, 0
        %4734 = vmatprep.subr.bf16.mxu0 0
        %4735 = vmatpush1.bf16.msra.mxu0 0
        %4736 = vmatprep.subr.bf16.mxu0 0
        %4737 = vmatpush1.bf16.msra.mxu0 0
        %4738 = vmatprep.subr.bf16.mxu0 0
        %4739 = vmatpush1.bf16.msra.mxu0 0
        %4740 = vmatprep.subr.bf16.mxu0 0
        %4741 = vmatpush1.bf16.msra.mxu0 0
        %4742 = vmatprep.subr.bf16.mxu0 0
        %4743 = vmatpush1.bf16.msra.mxu0 0
        %4744 = vmatprep.subr.bf16.mxu0 0
        %4745 = vmatpush1.bf16.msra.mxu0 0
        %4746 = vmatprep.subr.bf16.mxu0 0
        %4747 = vmatpush1.bf16.msra.mxu0 0
        %4748 = vmatprep.subr.bf16.mxu0 0
        %4749 = vmatpush1.bf16.msra.mxu0 %v4729
        %4750 = vmatprep.subr.bf16.mxu0 0
        %4751 = vmatpush2.bf16.msra.mxu0 0
        %4752 = vmatprep.subr.bf16.mxu0 0
        %4753 = vmatpush2.bf16.msra.mxu0 0
        %4754 = vmatprep.subr.bf16.mxu0 0
        %4755 = vmatpush2.bf16.msra.mxu0 0
        %4756 = vmatprep.subr.bf16.mxu0 0
        %4757 = vmatpush2.bf16.msra.mxu0 0
        %4758 = vmatprep.subr.bf16.mxu0 0
        %4759 = vmatpush2.bf16.msra.mxu0 0
        %4760 = vmatprep.subr.bf16.mxu0 0
        %4761 = vmatpush2.bf16.msra.mxu0 0
        %4762 = vmatprep.subr.bf16.mxu0 0
        %4763 = vmatpush2.bf16.msra.mxu0 0
        %4764 = vmatprep.subr.bf16.mxu0 0
        %4765 = vmatpush2.bf16.msra.mxu0 0
        %4766 = vmatprep.mubr.bf16.mxu0 0
        %4767 = vmatmul.mubr.bf16.gmra.mxu0 %v4732
        %v4768 = vpop.f32.mrf.mxu0
        %v4769 = vadd.f32 0.0, %v4768
        %v4770 = vpop.f32.mrf.mxu0
        %v4771 = vpop.f32.mrf.mxu0
        %v4772 = vadd.f32 0.0, %v4771
        %v4773 = vpop.f32.mrf.mxu0
        %4774 = vdwg.mxu0
        %4775 = vrot.lane.b32.xlu0 %v1210, 80
        %v4776 = vpop.permute.xlu0 %4775
        %v4779 = vsel %vm629, %v4583, 0
        %4781 = vmatprep.subr.bf16.mxu0 0
        %4782 = vmatpush1.bf16.msra.mxu0 0
        %4783 = vmatprep.subr.bf16.mxu0 0
        %4784 = vmatpush1.bf16.msra.mxu0 0
        %4785 = vmatprep.subr.bf16.mxu0 0
        %4786 = vmatpush1.bf16.msra.mxu0 0
        %4787 = vmatprep.subr.bf16.mxu0 0
        %4788 = vmatpush1.bf16.msra.mxu0 0
        %4789 = vmatprep.subr.bf16.mxu0 0
        %4790 = vmatpush1.bf16.msra.mxu0 0
        %4791 = vmatprep.subr.bf16.mxu0 0
        %4792 = vmatpush1.bf16.msra.mxu0 0
        %4793 = vmatprep.subr.bf16.mxu0 0
        %4794 = vmatpush1.bf16.msra.mxu0 0
        %4795 = vmatprep.subr.bf16.mxu0 0
        %4796 = vmatpush1.bf16.msra.mxu0 %v4776
        %4797 = vmatprep.subr.bf16.mxu0 0
        %4798 = vmatpush2.bf16.msra.mxu0 0
        %4799 = vmatprep.subr.bf16.mxu0 0
        %4800 = vmatpush2.bf16.msra.mxu0 0
        %4801 = vmatprep.subr.bf16.mxu0 0
        %4802 = vmatpush2.bf16.msra.mxu0 0
        %4803 = vmatprep.subr.bf16.mxu0 0
        %4804 = vmatpush2.bf16.msra.mxu0 0
        %4805 = vmatprep.subr.bf16.mxu0 0
        %4806 = vmatpush2.bf16.msra.mxu0 0
        %4807 = vmatprep.subr.bf16.mxu0 0
        %4808 = vmatpush2.bf16.msra.mxu0 0
        %4809 = vmatprep.subr.bf16.mxu0 0
        %4810 = vmatpush2.bf16.msra.mxu0 0
        %4811 = vmatprep.subr.bf16.mxu0 0
        %4812 = vmatpush2.bf16.msra.mxu0 0
        %4813 = vmatprep.mubr.bf16.mxu0 0
        %4814 = vmatmul.mubr.bf16.gmra.mxu0 %v4779
        %v4815 = vpop.f32.mrf.mxu0
        %v4816 = vadd.f32 0.0, %v4815
        %v4817 = vpop.f32.mrf.mxu0
        %v4818 = vpop.f32.mrf.mxu0
        %v4819 = vadd.f32 0.0, %v4818
        %v4820 = vpop.f32.mrf.mxu0
        %4821 = vdwg.mxu0
        %4822 = vrot.lane.b32.xlu0 %v1211, 80
        %v4823 = vpop.permute.xlu0 %4822
        %v4826 = vsel %vm629, %v4584, 0
        %4828 = vmatprep.subr.bf16.mxu0 0
        %4829 = vmatpush1.bf16.msra.mxu0 0
        %4830 = vmatprep.subr.bf16.mxu0 0
        %4831 = vmatpush1.bf16.msra.mxu0 0
        %4832 = vmatprep.subr.bf16.mxu0 0
        %4833 = vmatpush1.bf16.msra.mxu0 0
        %4834 = vmatprep.subr.bf16.mxu0 0
        %4835 = vmatpush1.bf16.msra.mxu0 0
        %4836 = vmatprep.subr.bf16.mxu0 0
        %4837 = vmatpush1.bf16.msra.mxu0 0
        %4838 = vmatprep.subr.bf16.mxu0 0
        %4839 = vmatpush1.bf16.msra.mxu0 0
        %4840 = vmatprep.subr.bf16.mxu0 0
        %4841 = vmatpush1.bf16.msra.mxu0 0
        %4842 = vmatprep.subr.bf16.mxu0 0
        %4843 = vmatpush1.bf16.msra.mxu0 %v4823
        %4844 = vmatprep.subr.bf16.mxu0 0
        %4845 = vmatpush2.bf16.msra.mxu0 0
        %4846 = vmatprep.subr.bf16.mxu0 0
        %4847 = vmatpush2.bf16.msra.mxu0 0
        %4848 = vmatprep.subr.bf16.mxu0 0
        %4849 = vmatpush2.bf16.msra.mxu0 0
        %4850 = vmatprep.subr.bf16.mxu0 0
        %4851 = vmatpush2.bf16.msra.mxu0 0
        %4852 = vmatprep.subr.bf16.mxu0 0
        %4853 = vmatpush2.bf16.msra.mxu0 0
        %4854 = vmatprep.subr.bf16.mxu0 0
        %4855 = vmatpush2.bf16.msra.mxu0 0
        %4856 = vmatprep.subr.bf16.mxu0 0
        %4857 = vmatpush2.bf16.msra.mxu0 0
        %4858 = vmatprep.subr.bf16.mxu0 0
        %4859 = vmatpush2.bf16.msra.mxu0 0
        %4860 = vmatprep.mubr.bf16.mxu0 0
        %4861 = vmatmul.mubr.bf16.gmra.mxu0 %v4826
        %v4862 = vpop.f32.mrf.mxu0
        %v4863 = vadd.f32 0.0, %v4862
        %v4864 = vpop.f32.mrf.mxu0
        %v4865 = vpop.f32.mrf.mxu0
        %v4866 = vadd.f32 0.0, %v4865
        %v4867 = vpop.f32.mrf.mxu0
        %4868 = vdwg.mxu0
        %4869 = vrot.lane.b32.xlu0 %v1212, 80
        %v4870 = vpop.permute.xlu0 %4869
        %v4873 = vsel %vm629, %v4585, 0
        %4875 = vmatprep.subr.bf16.mxu0 0
        %4876 = vmatpush1.bf16.msra.mxu0 0
        %4877 = vmatprep.subr.bf16.mxu0 0
        %4878 = vmatpush1.bf16.msra.mxu0 0
        %4879 = vmatprep.subr.bf16.mxu0 0
        %4880 = vmatpush1.bf16.msra.mxu0 0
        %4881 = vmatprep.subr.bf16.mxu0 0
        %4882 = vmatpush1.bf16.msra.mxu0 0
        %4883 = vmatprep.subr.bf16.mxu0 0
        %4884 = vmatpush1.bf16.msra.mxu0 0
        %4885 = vmatprep.subr.bf16.mxu0 0
        %4886 = vmatpush1.bf16.msra.mxu0 0
        %4887 = vmatprep.subr.bf16.mxu0 0
        %4888 = vmatpush1.bf16.msra.mxu0 0
        %4889 = vmatprep.subr.bf16.mxu0 0
        %4890 = vmatpush1.bf16.msra.mxu0 %v4870
        %4891 = vmatprep.subr.bf16.mxu0 0
        %4892 = vmatpush2.bf16.msra.mxu0 0
        %4893 = vmatprep.subr.bf16.mxu0 0
        %4894 = vmatpush2.bf16.msra.mxu0 0
        %4895 = vmatprep.subr.bf16.mxu0 0
        %4896 = vmatpush2.bf16.msra.mxu0 0
        %4897 = vmatprep.subr.bf16.mxu0 0
        %4898 = vmatpush2.bf16.msra.mxu0 0
        %4899 = vmatprep.subr.bf16.mxu0 0
        %4900 = vmatpush2.bf16.msra.mxu0 0
        %4901 = vmatprep.subr.bf16.mxu0 0
        %4902 = vmatpush2.bf16.msra.mxu0 0
        %4903 = vmatprep.subr.bf16.mxu0 0
        %4904 = vmatpush2.bf16.msra.mxu0 0
        %4905 = vmatprep.subr.bf16.mxu0 0
        %4906 = vmatpush2.bf16.msra.mxu0 0
        %4907 = vmatprep.mubr.bf16.mxu0 0
        %4908 = vmatmul.mubr.bf16.gmra.mxu0 %v4873
        %v4909 = vpop.f32.mrf.mxu0
        %v4910 = vadd.f32 0.0, %v4909
        %v4911 = vpop.f32.mrf.mxu0
        %v4912 = vpop.f32.mrf.mxu0
        %v4913 = vadd.f32 0.0, %v4912
        %v4914 = vpop.f32.mrf.mxu0
        %4915 = vdwg.mxu0
        %4916 = vrot.lane.b32.xlu0 %v1213, 80
        %v4917 = vpop.permute.xlu0 %4916
        %v4920 = vsel %vm629, %v4586, 0
        %4922 = vmatprep.subr.bf16.mxu0 0
        %4923 = vmatpush1.bf16.msra.mxu0 0
        %4924 = vmatprep.subr.bf16.mxu0 0
        %4925 = vmatpush1.bf16.msra.mxu0 0
        %4926 = vmatprep.subr.bf16.mxu0 0
        %4927 = vmatpush1.bf16.msra.mxu0 0
        %4928 = vmatprep.subr.bf16.mxu0 0
        %4929 = vmatpush1.bf16.msra.mxu0 0
        %4930 = vmatprep.subr.bf16.mxu0 0
        %4931 = vmatpush1.bf16.msra.mxu0 0
        %4932 = vmatprep.subr.bf16.mxu0 0
        %4933 = vmatpush1.bf16.msra.mxu0 0
        %4934 = vmatprep.subr.bf16.mxu0 0
        %4935 = vmatpush1.bf16.msra.mxu0 0
        %4936 = vmatprep.subr.bf16.mxu0 0
        %4937 = vmatpush1.bf16.msra.mxu0 %v4917
        %4938 = vmatprep.subr.bf16.mxu0 0
        %4939 = vmatpush2.bf16.msra.mxu0 0
        %4940 = vmatprep.subr.bf16.mxu0 0
        %4941 = vmatpush2.bf16.msra.mxu0 0
        %4942 = vmatprep.subr.bf16.mxu0 0
        %4943 = vmatpush2.bf16.msra.mxu0 0
        %4944 = vmatprep.subr.bf16.mxu0 0
        %4945 = vmatpush2.bf16.msra.mxu0 0
        %4946 = vmatprep.subr.bf16.mxu0 0
        %4947 = vmatpush2.bf16.msra.mxu0 0
        %4948 = vmatprep.subr.bf16.mxu0 0
        %4949 = vmatpush2.bf16.msra.mxu0 0
        %4950 = vmatprep.subr.bf16.mxu0 0
        %4951 = vmatpush2.bf16.msra.mxu0 0
        %4952 = vmatprep.subr.bf16.mxu0 0
        %4953 = vmatpush2.bf16.msra.mxu0 0
        %4954 = vmatprep.mubr.bf16.mxu0 0
        %4955 = vmatmul.mubr.bf16.gmra.mxu0 %v4920
        %v4956 = vpop.f32.mrf.mxu0
        %v4957 = vadd.f32 0.0, %v4956
        %v4958 = vpop.f32.mrf.mxu0
        %v4959 = vpop.f32.mrf.mxu0
        %v4960 = vadd.f32 0.0, %v4959
        %v4961 = vpop.f32.mrf.mxu0
        %4962 = vdwg.mxu0
        %v4963 = vpack.c.bf16 %v4631, %v4628
        %v4964 = vpack.c.bf16 %v4678, %v4675
        %v4965 = vpack.c.bf16 %v4725, %v4722
        %v4966 = vpack.c.bf16 %v4772, %v4769
        %v4967 = vpack.c.bf16 %v4819, %v4816
        %v4968 = vpack.c.bf16 %v4866, %v4863
        %v4969 = vpack.c.bf16 %v4913, %v4910
        %v4970 = vpack.c.bf16 %v4960, %v4957
        %v4973 = vunpack.c.l.b16 %v265
        %v4974 = vunpack.c.l.b16 %v266
        %v4975 = vpack.c.b16 %v4974, %v4973
        %v4978 = vsel %vm629, %v4963, 0
        %v4981 = vsel %vm629, %v4964, 0
        %v4984 = vsel %vm629, %v4965, 0
        %v4987 = vsel %vm629, %v4966, 0
        %v4990 = vsel %vm629, %v4967, 0
        %v4993 = vsel %vm629, %v4968, 0
        %v4996 = vsel %vm629, %v4969, 0
        %v4999 = vsel %vm629, %v4970, 0
        %5001 = vmatprep.subr.bf16.mxu0 0
        %5002 = vmatpush1.bf16.msra.mxu0 0
        %5003 = vmatprep.subr.bf16.mxu0 0
        %5004 = vmatpush1.bf16.msra.mxu0 0
        %5005 = vmatprep.subr.bf16.mxu0 0
        %5006 = vmatpush1.bf16.msra.mxu0 0
        %5007 = vmatprep.subr.bf16.mxu0 0
        %5008 = vmatpush1.bf16.msra.mxu0 0
        %5009 = vmatprep.subr.bf16.mxu0 0
        %5010 = vmatpush1.bf16.msra.mxu0 0
        %5011 = vmatprep.subr.bf16.mxu0 0
        %5012 = vmatpush1.bf16.msra.mxu0 0
        %5013 = vmatprep.subr.bf16.mxu0 0
        %5014 = vmatpush1.bf16.msra.mxu0 0
        %5015 = vmatprep.subr.bf16.mxu0 0
        %5016 = vmatpush1.bf16.msra.mxu0 %v4975
        %5017 = vmatprep.subr.bf16.mxu0 0
        %5018 = vmatpush2.bf16.msra.mxu0 0
        %5019 = vmatprep.subr.bf16.mxu0 0
        %5020 = vmatpush2.bf16.msra.mxu0 0
        %5021 = vmatprep.subr.bf16.mxu0 0
        %5022 = vmatpush2.bf16.msra.mxu0 0
        %5023 = vmatprep.subr.bf16.mxu0 0
        %5024 = vmatpush2.bf16.msra.mxu0 0
        %5025 = vmatprep.subr.bf16.mxu0 0
        %5026 = vmatpush2.bf16.msra.mxu0 0
        %5027 = vmatprep.subr.bf16.mxu0 0
        %5028 = vmatpush2.bf16.msra.mxu0 0
        %5029 = vmatprep.subr.bf16.mxu0 0
        %5030 = vmatpush2.bf16.msra.mxu0 0
        %5031 = vmatprep.subr.bf16.mxu0 0
        %5032 = vmatpush2.bf16.msra.mxu0 0
        %5033 = vmatprep.mubr.bf16.mxu0 0
        %5034 = vmatmul.mubr.bf16.gmra.mxu0 %v4978
        %v5035 = vpop.f32.mrf.mxu0
        %v5036 = vadd.f32 0.0, %v5035
        %v5037 = vpop.f32.mrf.mxu0
        %v5038 = vpop.f32.mrf.mxu0
        %v5039 = vadd.f32 0.0, %v5038
        %v5040 = vpop.f32.mrf.mxu0
        %5041 = vmatprep.mubr.bf16.mxu0 0
        %5042 = vmatmul.mubr.bf16.gmra.mxu0 %v4981
        %v5043 = vpop.f32.mrf.mxu0
        %v5044 = vadd.f32 0.0, %v5043
        %v5045 = vpop.f32.mrf.mxu0
        %v5046 = vpop.f32.mrf.mxu0
        %v5047 = vadd.f32 0.0, %v5046
        %v5048 = vpop.f32.mrf.mxu0
        %5049 = vmatprep.mubr.bf16.mxu0 0
        %5050 = vmatmul.mubr.bf16.gmra.mxu0 %v4984
        %v5051 = vpop.f32.mrf.mxu0
        %v5052 = vadd.f32 0.0, %v5051
        %v5053 = vpop.f32.mrf.mxu0
        %v5054 = vpop.f32.mrf.mxu0
        %v5055 = vadd.f32 0.0, %v5054
        %v5056 = vpop.f32.mrf.mxu0
        %5057 = vmatprep.mubr.bf16.mxu0 0
        %5058 = vmatmul.mubr.bf16.gmra.mxu0 %v4987
        %v5059 = vpop.f32.mrf.mxu0
        %v5060 = vadd.f32 0.0, %v5059
        %v5061 = vpop.f32.mrf.mxu0
        %v5062 = vpop.f32.mrf.mxu0
        %v5063 = vadd.f32 0.0, %v5062
        %v5064 = vpop.f32.mrf.mxu0
        %5065 = vmatprep.mubr.bf16.mxu0 0
        %5066 = vmatmul.mubr.bf16.gmra.mxu0 %v4990
        %v5067 = vpop.f32.mrf.mxu0
        %v5068 = vadd.f32 0.0, %v5067
        %v5069 = vpop.f32.mrf.mxu0
        %v5070 = vpop.f32.mrf.mxu0
        %v5071 = vadd.f32 0.0, %v5070
        %v5072 = vpop.f32.mrf.mxu0
        %5073 = vmatprep.mubr.bf16.mxu0 0
        %5074 = vmatmul.mubr.bf16.gmra.mxu0 %v4993
        %v5075 = vpop.f32.mrf.mxu0
        %v5076 = vadd.f32 0.0, %v5075
        %v5077 = vpop.f32.mrf.mxu0
        %v5078 = vpop.f32.mrf.mxu0
        %v5079 = vadd.f32 0.0, %v5078
        %v5080 = vpop.f32.mrf.mxu0
        %5081 = vmatprep.mubr.bf16.mxu0 0
        %5082 = vmatmul.mubr.bf16.gmra.mxu0 %v4996
        %v5083 = vpop.f32.mrf.mxu0
        %v5084 = vadd.f32 0.0, %v5083
        %v5085 = vpop.f32.mrf.mxu0
        %v5086 = vpop.f32.mrf.mxu0
        %v5087 = vadd.f32 0.0, %v5086
        %v5088 = vpop.f32.mrf.mxu0
        %5089 = vmatprep.mubr.bf16.mxu0 0
        %5090 = vmatmul.mubr.bf16.gmra.mxu0 %v4999
        %v5091 = vpop.f32.mrf.mxu0
        %v5092 = vadd.f32 0.0, %v5091
        %v5093 = vpop.f32.mrf.mxu0
        %v5094 = vpop.f32.mrf.mxu0
        %v5095 = vadd.f32 0.0, %v5094
        %v5096 = vpop.f32.mrf.mxu0
        %5097 = vdwg.mxu0
        %v5098 = vadd.f32 %v3963, %v5036
        %v5099 = vadd.f32 %v3964, %v5039
        %v5100 = vadd.f32 %v3965, %v5044
        %v5101 = vadd.f32 %v3966, %v5047
        %v5102 = vadd.f32 %v3967, %v5052
        %v5103 = vadd.f32 %v3968, %v5055
        %v5104 = vadd.f32 %v3969, %v5060
        %v5105 = vadd.f32 %v3970, %v5063
        %v5106 = vadd.f32 %v3971, %v5068
        %v5107 = vadd.f32 %v3972, %v5071
        %v5108 = vadd.f32 %v3973, %v5076
        %v5109 = vadd.f32 %v3974, %v5079
        %v5110 = vadd.f32 %v3975, %v5084
        %v5111 = vadd.f32 %v3976, %v5087
        %v5112 = vadd.f32 %v3977, %v5092
        %v5113 = vadd.f32 %v3978, %v5095
        %5114 = vrot.lane.b32.xlu0 %v613, 64
        %v5115 = vpop.permute.xlu0 %5114
        %5116 = vrot.lane.b32.xlu0 %v621, 64
        %v5117 = vpop.permute.xlu0 %5116
        %v5119 = vsel %vm629, %v5115, 0
        %v5122 = vsel %vm629, %v5117, 0
        %5124 = vmatprep.subr.bf16.mxu0 0
        %5125 = vmatpush1.bf16.xpose.msra.mxu0 0
        %5126 = vmatprep.subr.bf16.mxu0 0
        %5127 = vmatpush1.bf16.xpose.msra.mxu0 0
        %5128 = vmatprep.subr.bf16.mxu0 0
        %5129 = vmatpush1.bf16.xpose.msra.mxu0 0
        %5130 = vmatprep.subr.bf16.mxu0 0
        %5131 = vmatpush1.bf16.xpose.msra.mxu0 0
        %5132 = vmatprep.subr.bf16.mxu0 0
        %5133 = vmatpush1.bf16.xpose.msra.mxu0 0
        %5134 = vmatprep.subr.bf16.mxu0 0
        %5135 = vmatpush1.bf16.xpose.msra.mxu0 0
        %5136 = vmatprep.subr.bf16.mxu0 0
        %5137 = vmatpush1.bf16.xpose.msra.mxu0 0
        %5138 = vmatprep.subr.bf16.mxu0 0
        %5139 = vmatpush1.bf16.xpose.msra.mxu0 %v5122
        %5140 = vmatprep.subr.bf16.mxu0 0
        %5141 = vmatpush2.bf16.xpose.msra.mxu0 0
        %5142 = vmatprep.subr.bf16.mxu0 0
        %5143 = vmatpush2.bf16.xpose.msra.mxu0 0
        %5144 = vmatprep.subr.bf16.mxu0 0
        %5145 = vmatpush2.bf16.xpose.msra.mxu0 0
        %5146 = vmatprep.subr.bf16.mxu0 0
        %5147 = vmatpush2.bf16.xpose.msra.mxu0 0
        %5148 = vmatprep.subr.bf16.mxu0 0
        %5149 = vmatpush2.bf16.xpose.msra.mxu0 0
        %5150 = vmatprep.subr.bf16.mxu0 0
        %5151 = vmatpush2.bf16.xpose.msra.mxu0 0
        %5152 = vmatprep.subr.bf16.mxu0 0
        %5153 = vmatpush2.bf16.xpose.msra.mxu0 0
        %5154 = vmatprep.subr.bf16.mxu0 0
        %5155 = vmatpush2.bf16.xpose.msra.mxu0 0
        %5156 = vmatprep.mubr.bf16.mxu0 0
        %5157 = vmatmul.mubr.bf16.gmra.mxu0 %v5119
        %v5158 = vpop.f32.mrf.mxu0
        %v5159 = vadd.f32 0.0, %v5158
        %v5160 = vpop.f32.mrf.mxu0
        %v5161 = vpop.f32.mrf.mxu0
        %v5162 = vadd.f32 0.0, %v5161
        %v5163 = vpop.f32.mrf.mxu0
        %5164 = vdwg.mxu0
        %5165 = vrot.lane.b32.xlu0 %v614, 64
        %v5166 = vpop.permute.xlu0 %5165
        %5167 = vrot.lane.b32.xlu0 %v622, 64
        %v5168 = vpop.permute.xlu0 %5167
        %v5170 = vsel %vm629, %v5166, 0
        %v5173 = vsel %vm629, %v5168, 0
        %5175 = vmatprep.subr.bf16.mxu0 0
        %5176 = vmatpush1.bf16.xpose.msra.mxu0 0
        %5177 = vmatprep.subr.bf16.mxu0 0
        %5178 = vmatpush1.bf16.xpose.msra.mxu0 0
        %5179 = vmatprep.subr.bf16.mxu0 0
        %5180 = vmatpush1.bf16.xpose.msra.mxu0 0
        %5181 = vmatprep.subr.bf16.mxu0 0
        %5182 = vmatpush1.bf16.xpose.msra.mxu0 0
        %5183 = vmatprep.subr.bf16.mxu0 0
        %5184 = vmatpush1.bf16.xpose.msra.mxu0 0
        %5185 = vmatprep.subr.bf16.mxu0 0
        %5186 = vmatpush1.bf16.xpose.msra.mxu0 0
        %5187 = vmatprep.subr.bf16.mxu0 0
        %5188 = vmatpush1.bf16.xpose.msra.mxu0 0
        %5189 = vmatprep.subr.bf16.mxu0 0
        %5190 = vmatpush1.bf16.xpose.msra.mxu0 %v5173
        %5191 = vmatprep.subr.bf16.mxu0 0
        %5192 = vmatpush2.bf16.xpose.msra.mxu0 0
        %5193 = vmatprep.subr.bf16.mxu0 0
        %5194 = vmatpush2.bf16.xpose.msra.mxu0 0
        %5195 = vmatprep.subr.bf16.mxu0 0
        %5196 = vmatpush2.bf16.xpose.msra.mxu0 0
        %5197 = vmatprep.subr.bf16.mxu0 0
        %5198 = vmatpush2.bf16.xpose.msra.mxu0 0
        %5199 = vmatprep.subr.bf16.mxu0 0
        %5200 = vmatpush2.bf16.xpose.msra.mxu0 0
        %5201 = vmatprep.subr.bf16.mxu0 0
        %5202 = vmatpush2.bf16.xpose.msra.mxu0 0
        %5203 = vmatprep.subr.bf16.mxu0 0
        %5204 = vmatpush2.bf16.xpose.msra.mxu0 0
        %5205 = vmatprep.subr.bf16.mxu0 0
        %5206 = vmatpush2.bf16.xpose.msra.mxu0 0
        %5207 = vmatprep.mubr.bf16.mxu0 0
        %5208 = vmatmul.mubr.bf16.gmra.mxu0 %v5170
        %v5209 = vpop.f32.mrf.mxu0
        %v5210 = vadd.f32 0.0, %v5209
        %v5211 = vpop.f32.mrf.mxu0
        %v5212 = vpop.f32.mrf.mxu0
        %v5213 = vadd.f32 0.0, %v5212
        %v5214 = vpop.f32.mrf.mxu0
        %5215 = vdwg.mxu0
        %5216 = vrot.lane.b32.xlu0 %v615, 64
        %v5217 = vpop.permute.xlu0 %5216
        %5218 = vrot.lane.b32.xlu0 %v623, 64
        %v5219 = vpop.permute.xlu0 %5218
        %v5221 = vsel %vm629, %v5217, 0
        %v5224 = vsel %vm629, %v5219, 0
        %5226 = vmatprep.subr.bf16.mxu0 0
        %5227 = vmatpush1.bf16.xpose.msra.mxu0 0
        %5228 = vmatprep.subr.bf16.mxu0 0
        %5229 = vmatpush1.bf16.xpose.msra.mxu0 0
        %5230 = vmatprep.subr.bf16.mxu0 0
        %5231 = vmatpush1.bf16.xpose.msra.mxu0 0
        %5232 = vmatprep.subr.bf16.mxu0 0
        %5233 = vmatpush1.bf16.xpose.msra.mxu0 0
        %5234 = vmatprep.subr.bf16.mxu0 0
        %5235 = vmatpush1.bf16.xpose.msra.mxu0 0
        %5236 = vmatprep.subr.bf16.mxu0 0
        %5237 = vmatpush1.bf16.xpose.msra.mxu0 0
        %5238 = vmatprep.subr.bf16.mxu0 0
        %5239 = vmatpush1.bf16.xpose.msra.mxu0 0
        %5240 = vmatprep.subr.bf16.mxu0 0
        %5241 = vmatpush1.bf16.xpose.msra.mxu0 %v5224
        %5242 = vmatprep.subr.bf16.mxu0 0
        %5243 = vmatpush2.bf16.xpose.msra.mxu0 0
        %5244 = vmatprep.subr.bf16.mxu0 0
        %5245 = vmatpush2.bf16.xpose.msra.mxu0 0
        %5246 = vmatprep.subr.bf16.mxu0 0
        %5247 = vmatpush2.bf16.xpose.msra.mxu0 0
        %5248 = vmatprep.subr.bf16.mxu0 0
        %5249 = vmatpush2.bf16.xpose.msra.mxu0 0
        %5250 = vmatprep.subr.bf16.mxu0 0
        %5251 = vmatpush2.bf16.xpose.msra.mxu0 0
        %5252 = vmatprep.subr.bf16.mxu0 0
        %5253 = vmatpush2.bf16.xpose.msra.mxu0 0
        %5254 = vmatprep.subr.bf16.mxu0 0
        %5255 = vmatpush2.bf16.xpose.msra.mxu0 0
        %5256 = vmatprep.subr.bf16.mxu0 0
        %5257 = vmatpush2.bf16.xpose.msra.mxu0 0
        %5258 = vmatprep.mubr.bf16.mxu0 0
        %5259 = vmatmul.mubr.bf16.gmra.mxu0 %v5221
        %v5260 = vpop.f32.mrf.mxu0
        %v5261 = vadd.f32 0.0, %v5260
        %v5262 = vpop.f32.mrf.mxu0
        %v5263 = vpop.f32.mrf.mxu0
        %v5264 = vadd.f32 0.0, %v5263
        %v5265 = vpop.f32.mrf.mxu0
        %5266 = vdwg.mxu0
        %5267 = vrot.lane.b32.xlu0 %v616, 64
        %v5268 = vpop.permute.xlu0 %5267
        %5269 = vrot.lane.b32.xlu0 %v624, 64
        %v5270 = vpop.permute.xlu0 %5269
        %v5272 = vsel %vm629, %v5268, 0
        %v5275 = vsel %vm629, %v5270, 0
        %5277 = vmatprep.subr.bf16.mxu0 0
        %5278 = vmatpush1.bf16.xpose.msra.mxu0 0
        %5279 = vmatprep.subr.bf16.mxu0 0
        %5280 = vmatpush1.bf16.xpose.msra.mxu0 0
        %5281 = vmatprep.subr.bf16.mxu0 0
        %5282 = vmatpush1.bf16.xpose.msra.mxu0 0
        %5283 = vmatprep.subr.bf16.mxu0 0
        %5284 = vmatpush1.bf16.xpose.msra.mxu0 0
        %5285 = vmatprep.subr.bf16.mxu0 0
        %5286 = vmatpush1.bf16.xpose.msra.mxu0 0
        %5287 = vmatprep.subr.bf16.mxu0 0
        %5288 = vmatpush1.bf16.xpose.msra.mxu0 0
        %5289 = vmatprep.subr.bf16.mxu0 0
        %5290 = vmatpush1.bf16.xpose.msra.mxu0 0
        %5291 = vmatprep.subr.bf16.mxu0 0
        %5292 = vmatpush1.bf16.xpose.msra.mxu0 %v5275
        %5293 = vmatprep.subr.bf16.mxu0 0
        %5294 = vmatpush2.bf16.xpose.msra.mxu0 0
        %5295 = vmatprep.subr.bf16.mxu0 0
        %5296 = vmatpush2.bf16.xpose.msra.mxu0 0
        %5297 = vmatprep.subr.bf16.mxu0 0
        %5298 = vmatpush2.bf16.xpose.msra.mxu0 0
        %5299 = vmatprep.subr.bf16.mxu0 0
        %5300 = vmatpush2.bf16.xpose.msra.mxu0 0
        %5301 = vmatprep.subr.bf16.mxu0 0
        %5302 = vmatpush2.bf16.xpose.msra.mxu0 0
        %5303 = vmatprep.subr.bf16.mxu0 0
        %5304 = vmatpush2.bf16.xpose.msra.mxu0 0
        %5305 = vmatprep.subr.bf16.mxu0 0
        %5306 = vmatpush2.bf16.xpose.msra.mxu0 0
        %5307 = vmatprep.subr.bf16.mxu0 0
        %5308 = vmatpush2.bf16.xpose.msra.mxu0 0
        %5309 = vmatprep.mubr.bf16.mxu0 0
        %5310 = vmatmul.mubr.bf16.gmra.mxu0 %v5272
        %v5311 = vpop.f32.mrf.mxu0
        %v5312 = vadd.f32 0.0, %v5311
        %v5313 = vpop.f32.mrf.mxu0
        %v5314 = vpop.f32.mrf.mxu0
        %v5315 = vadd.f32 0.0, %v5314
        %v5316 = vpop.f32.mrf.mxu0
        %5317 = vdwg.mxu0
        %5318 = vrot.lane.b32.xlu0 %v617, 64
        %v5319 = vpop.permute.xlu0 %5318
        %5320 = vrot.lane.b32.xlu0 %v625, 64
        %v5321 = vpop.permute.xlu0 %5320
        %v5323 = vsel %vm629, %v5319, 0
        %v5326 = vsel %vm629, %v5321, 0
        %5328 = vmatprep.subr.bf16.mxu0 0
        %5329 = vmatpush1.bf16.xpose.msra.mxu0 0
        %5330 = vmatprep.subr.bf16.mxu0 0
        %5331 = vmatpush1.bf16.xpose.msra.mxu0 0
        %5332 = vmatprep.subr.bf16.mxu0 0
        %5333 = vmatpush1.bf16.xpose.msra.mxu0 0
        %5334 = vmatprep.subr.bf16.mxu0 0
        %5335 = vmatpush1.bf16.xpose.msra.mxu0 0
        %5336 = vmatprep.subr.bf16.mxu0 0
        %5337 = vmatpush1.bf16.xpose.msra.mxu0 0
        %5338 = vmatprep.subr.bf16.mxu0 0
        %5339 = vmatpush1.bf16.xpose.msra.mxu0 0
        %5340 = vmatprep.subr.bf16.mxu0 0
        %5341 = vmatpush1.bf16.xpose.msra.mxu0 0
        %5342 = vmatprep.subr.bf16.mxu0 0
        %5343 = vmatpush1.bf16.xpose.msra.mxu0 %v5326
        %5344 = vmatprep.subr.bf16.mxu0 0
        %5345 = vmatpush2.bf16.xpose.msra.mxu0 0
        %5346 = vmatprep.subr.bf16.mxu0 0
        %5347 = vmatpush2.bf16.xpose.msra.mxu0 0
        %5348 = vmatprep.subr.bf16.mxu0 0
        %5349 = vmatpush2.bf16.xpose.msra.mxu0 0
        %5350 = vmatprep.subr.bf16.mxu0 0
        %5351 = vmatpush2.bf16.xpose.msra.mxu0 0
        %5352 = vmatprep.subr.bf16.mxu0 0
        %5353 = vmatpush2.bf16.xpose.msra.mxu0 0
        %5354 = vmatprep.subr.bf16.mxu0 0
        %5355 = vmatpush2.bf16.xpose.msra.mxu0 0
        %5356 = vmatprep.subr.bf16.mxu0 0
        %5357 = vmatpush2.bf16.xpose.msra.mxu0 0
        %5358 = vmatprep.subr.bf16.mxu0 0
        %5359 = vmatpush2.bf16.xpose.msra.mxu0 0
        %5360 = vmatprep.mubr.bf16.mxu0 0
        %5361 = vmatmul.mubr.bf16.gmra.mxu0 %v5323
        %v5362 = vpop.f32.mrf.mxu0
        %v5363 = vadd.f32 0.0, %v5362
        %v5364 = vpop.f32.mrf.mxu0
        %v5365 = vpop.f32.mrf.mxu0
        %v5366 = vadd.f32 0.0, %v5365
        %v5367 = vpop.f32.mrf.mxu0
        %5368 = vdwg.mxu0
        %5369 = vrot.lane.b32.xlu0 %v618, 64
        %v5370 = vpop.permute.xlu0 %5369
        %5371 = vrot.lane.b32.xlu0 %v626, 64
        %v5372 = vpop.permute.xlu0 %5371
        %v5374 = vsel %vm629, %v5370, 0
        %v5377 = vsel %vm629, %v5372, 0
        %5379 = vmatprep.subr.bf16.mxu0 0
        %5380 = vmatpush1.bf16.xpose.msra.mxu0 0
        %5381 = vmatprep.subr.bf16.mxu0 0
        %5382 = vmatpush1.bf16.xpose.msra.mxu0 0
        %5383 = vmatprep.subr.bf16.mxu0 0
        %5384 = vmatpush1.bf16.xpose.msra.mxu0 0
        %5385 = vmatprep.subr.bf16.mxu0 0
        %5386 = vmatpush1.bf16.xpose.msra.mxu0 0
        %5387 = vmatprep.subr.bf16.mxu0 0
        %5388 = vmatpush1.bf16.xpose.msra.mxu0 0
        %5389 = vmatprep.subr.bf16.mxu0 0
        %5390 = vmatpush1.bf16.xpose.msra.mxu0 0
        %5391 = vmatprep.subr.bf16.mxu0 0
        %5392 = vmatpush1.bf16.xpose.msra.mxu0 0
        %5393 = vmatprep.subr.bf16.mxu0 0
        %5394 = vmatpush1.bf16.xpose.msra.mxu0 %v5377
        %5395 = vmatprep.subr.bf16.mxu0 0
        %5396 = vmatpush2.bf16.xpose.msra.mxu0 0
        %5397 = vmatprep.subr.bf16.mxu0 0
        %5398 = vmatpush2.bf16.xpose.msra.mxu0 0
        %5399 = vmatprep.subr.bf16.mxu0 0
        %5400 = vmatpush2.bf16.xpose.msra.mxu0 0
        %5401 = vmatprep.subr.bf16.mxu0 0
        %5402 = vmatpush2.bf16.xpose.msra.mxu0 0
        %5403 = vmatprep.subr.bf16.mxu0 0
        %5404 = vmatpush2.bf16.xpose.msra.mxu0 0
        %5405 = vmatprep.subr.bf16.mxu0 0
        %5406 = vmatpush2.bf16.xpose.msra.mxu0 0
        %5407 = vmatprep.subr.bf16.mxu0 0
        %5408 = vmatpush2.bf16.xpose.msra.mxu0 0
        %5409 = vmatprep.subr.bf16.mxu0 0
        %5410 = vmatpush2.bf16.xpose.msra.mxu0 0
        %5411 = vmatprep.mubr.bf16.mxu0 0
        %5412 = vmatmul.mubr.bf16.gmra.mxu0 %v5374
        %v5413 = vpop.f32.mrf.mxu0
        %v5414 = vadd.f32 0.0, %v5413
        %v5415 = vpop.f32.mrf.mxu0
        %v5416 = vpop.f32.mrf.mxu0
        %v5417 = vadd.f32 0.0, %v5416
        %v5418 = vpop.f32.mrf.mxu0
        %5419 = vdwg.mxu0
        %5420 = vrot.lane.b32.xlu0 %v619, 64
        %v5421 = vpop.permute.xlu0 %5420
        %5422 = vrot.lane.b32.xlu0 %v627, 64
        %v5423 = vpop.permute.xlu0 %5422
        %v5425 = vsel %vm629, %v5421, 0
        %v5428 = vsel %vm629, %v5423, 0
        %5430 = vmatprep.subr.bf16.mxu0 0
        %5431 = vmatpush1.bf16.xpose.msra.mxu0 0
        %5432 = vmatprep.subr.bf16.mxu0 0
        %5433 = vmatpush1.bf16.xpose.msra.mxu0 0
        %5434 = vmatprep.subr.bf16.mxu0 0
        %5435 = vmatpush1.bf16.xpose.msra.mxu0 0
        %5436 = vmatprep.subr.bf16.mxu0 0
        %5437 = vmatpush1.bf16.xpose.msra.mxu0 0
        %5438 = vmatprep.subr.bf16.mxu0 0
        %5439 = vmatpush1.bf16.xpose.msra.mxu0 0
        %5440 = vmatprep.subr.bf16.mxu0 0
        %5441 = vmatpush1.bf16.xpose.msra.mxu0 0
        %5442 = vmatprep.subr.bf16.mxu0 0
        %5443 = vmatpush1.bf16.xpose.msra.mxu0 0
        %5444 = vmatprep.subr.bf16.mxu0 0
        %5445 = vmatpush1.bf16.xpose.msra.mxu0 %v5428
        %5446 = vmatprep.subr.bf16.mxu0 0
        %5447 = vmatpush2.bf16.xpose.msra.mxu0 0
        %5448 = vmatprep.subr.bf16.mxu0 0
        %5449 = vmatpush2.bf16.xpose.msra.mxu0 0
        %5450 = vmatprep.subr.bf16.mxu0 0
        %5451 = vmatpush2.bf16.xpose.msra.mxu0 0
        %5452 = vmatprep.subr.bf16.mxu0 0
        %5453 = vmatpush2.bf16.xpose.msra.mxu0 0
        %5454 = vmatprep.subr.bf16.mxu0 0
        %5455 = vmatpush2.bf16.xpose.msra.mxu0 0
        %5456 = vmatprep.subr.bf16.mxu0 0
        %5457 = vmatpush2.bf16.xpose.msra.mxu0 0
        %5458 = vmatprep.subr.bf16.mxu0 0
        %5459 = vmatpush2.bf16.xpose.msra.mxu0 0
        %5460 = vmatprep.subr.bf16.mxu0 0
        %5461 = vmatpush2.bf16.xpose.msra.mxu0 0
        %5462 = vmatprep.mubr.bf16.mxu0 0
        %5463 = vmatmul.mubr.bf16.gmra.mxu0 %v5425
        %v5464 = vpop.f32.mrf.mxu0
        %v5465 = vadd.f32 0.0, %v5464
        %v5466 = vpop.f32.mrf.mxu0
        %v5467 = vpop.f32.mrf.mxu0
        %v5468 = vadd.f32 0.0, %v5467
        %v5469 = vpop.f32.mrf.mxu0
        %5470 = vdwg.mxu0
        %5471 = vrot.lane.b32.xlu0 %v620, 64
        %v5472 = vpop.permute.xlu0 %5471
        %5473 = vrot.lane.b32.xlu0 %v628, 64
        %v5474 = vpop.permute.xlu0 %5473
        %v5476 = vsel %vm629, %v5472, 0
        %v5479 = vsel %vm629, %v5474, 0
        %5481 = vmatprep.subr.bf16.mxu0 0
        %5482 = vmatpush1.bf16.xpose.msra.mxu0 0
        %5483 = vmatprep.subr.bf16.mxu0 0
        %5484 = vmatpush1.bf16.xpose.msra.mxu0 0
        %5485 = vmatprep.subr.bf16.mxu0 0
        %5486 = vmatpush1.bf16.xpose.msra.mxu0 0
        %5487 = vmatprep.subr.bf16.mxu0 0
        %5488 = vmatpush1.bf16.xpose.msra.mxu0 0
        %5489 = vmatprep.subr.bf16.mxu0 0
        %5490 = vmatpush1.bf16.xpose.msra.mxu0 0
        %5491 = vmatprep.subr.bf16.mxu0 0
        %5492 = vmatpush1.bf16.xpose.msra.mxu0 0
        %5493 = vmatprep.subr.bf16.mxu0 0
        %5494 = vmatpush1.bf16.xpose.msra.mxu0 0
        %5495 = vmatprep.subr.bf16.mxu0 0
        %5496 = vmatpush1.bf16.xpose.msra.mxu0 %v5479
        %5497 = vmatprep.subr.bf16.mxu0 0
        %5498 = vmatpush2.bf16.xpose.msra.mxu0 0
        %5499 = vmatprep.subr.bf16.mxu0 0
        %5500 = vmatpush2.bf16.xpose.msra.mxu0 0
        %5501 = vmatprep.subr.bf16.mxu0 0
        %5502 = vmatpush2.bf16.xpose.msra.mxu0 0
        %5503 = vmatprep.subr.bf16.mxu0 0
        %5504 = vmatpush2.bf16.xpose.msra.mxu0 0
        %5505 = vmatprep.subr.bf16.mxu0 0
        %5506 = vmatpush2.bf16.xpose.msra.mxu0 0
        %5507 = vmatprep.subr.bf16.mxu0 0
        %5508 = vmatpush2.bf16.xpose.msra.mxu0 0
        %5509 = vmatprep.subr.bf16.mxu0 0
        %5510 = vmatpush2.bf16.xpose.msra.mxu0 0
        %5511 = vmatprep.subr.bf16.mxu0 0
        %5512 = vmatpush2.bf16.xpose.msra.mxu0 0
        %5513 = vmatprep.mubr.bf16.mxu0 0
        %5514 = vmatmul.mubr.bf16.gmra.mxu0 %v5476
        %v5515 = vpop.f32.mrf.mxu0
        %v5516 = vadd.f32 0.0, %v5515
        %v5517 = vpop.f32.mrf.mxu0
        %v5518 = vpop.f32.mrf.mxu0
        %v5519 = vadd.f32 0.0, %v5518
        %v5520 = vpop.f32.mrf.mxu0
        %5521 = vdwg.mxu0
        %v5522 = vmul.f32 %v5159, 0.25
        %v5523 = vmul.f32 %v5162, 0.25
        %v5524 = vmul.f32 %v5210, 0.25
        %v5525 = vmul.f32 %v5213, 0.25
        %v5526 = vmul.f32 %v5261, 0.25
        %v5527 = vmul.f32 %v5264, 0.25
        %v5528 = vmul.f32 %v5312, 0.25
        %v5529 = vmul.f32 %v5315, 0.25
        %v5530 = vmul.f32 %v5363, 0.25
        %v5531 = vmul.f32 %v5366, 0.25
        %v5532 = vmul.f32 %v5414, 0.25
        %v5533 = vmul.f32 %v5417, 0.25
        %v5534 = vmul.f32 %v5465, 0.25
        %v5535 = vmul.f32 %v5468, 0.25
        %v5536 = vmul.f32 %v5516, 0.25
        %v5537 = vmul.f32 %v5519, 0.25
        %v5538 = vsel %vm629, %v5522, -inf
        %5539 = vmax.xlane.f32.xlu0 %v5538
        %v5540 = vpop.xlane.xlu0 %5539
        %v5541 = vsel %vm629, %v5523, -inf
        %5542 = vmax.xlane.f32.xlu0 %v5541
        %v5543 = vpop.xlane.xlu0 %5542
        %v5544 = vsel %vm629, %v5524, -inf
        %5545 = vmax.xlane.f32.xlu0 %v5544
        %v5546 = vpop.xlane.xlu0 %5545
        %v5547 = vsel %vm629, %v5525, -inf
        %5548 = vmax.xlane.f32.xlu0 %v5547
        %v5549 = vpop.xlane.xlu0 %5548
        %v5550 = vsel %vm629, %v5526, -inf
        %5551 = vmax.xlane.f32.xlu0 %v5550
        %v5552 = vpop.xlane.xlu0 %5551
        %v5553 = vsel %vm629, %v5527, -inf
        %5554 = vmax.xlane.f32.xlu0 %v5553
        %v5555 = vpop.xlane.xlu0 %5554
        %v5556 = vsel %vm629, %v5528, -inf
        %5557 = vmax.xlane.f32.xlu0 %v5556
        %v5558 = vpop.xlane.xlu0 %5557
        %v5559 = vsel %vm629, %v5529, -inf
        %5560 = vmax.xlane.f32.xlu0 %v5559
        %v5561 = vpop.xlane.xlu0 %5560
        %v5562 = vsel %vm629, %v5530, -inf
        %5563 = vmax.xlane.f32.xlu0 %v5562
        %v5564 = vpop.xlane.xlu0 %5563
        %v5565 = vsel %vm629, %v5531, -inf
        %5566 = vmax.xlane.f32.xlu0 %v5565
        %v5567 = vpop.xlane.xlu0 %5566
        %v5568 = vsel %vm629, %v5532, -inf
        %5569 = vmax.xlane.f32.xlu0 %v5568
        %v5570 = vpop.xlane.xlu0 %5569
        %v5571 = vsel %vm629, %v5533, -inf
        %5572 = vmax.xlane.f32.xlu0 %v5571
        %v5573 = vpop.xlane.xlu0 %5572
        %v5574 = vsel %vm629, %v5534, -inf
        %5575 = vmax.xlane.f32.xlu0 %v5574
        %v5576 = vpop.xlane.xlu0 %5575
        %v5577 = vsel %vm629, %v5535, -inf
        %5578 = vmax.xlane.f32.xlu0 %v5577
        %v5579 = vpop.xlane.xlu0 %5578
        %v5580 = vsel %vm629, %v5536, -inf
        %5581 = vmax.xlane.f32.xlu0 %v5580
        %v5582 = vpop.xlane.xlu0 %5581
        %v5583 = vsel %vm629, %v5537, -inf
        %5584 = vmax.xlane.f32.xlu0 %v5583
        %v5585 = vpop.xlane.xlu0 %5584
        %v5586 = vsub.f32 %v5522, %v5540
        %v5587 = vsub.f32 %v5523, %v5543
        %v5588 = vsub.f32 %v5524, %v5546
        %v5589 = vsub.f32 %v5525, %v5549
        %v5590 = vsub.f32 %v5526, %v5552
        %v5591 = vsub.f32 %v5527, %v5555
        %v5592 = vsub.f32 %v5528, %v5558
        %v5593 = vsub.f32 %v5529, %v5561
        %v5594 = vsub.f32 %v5530, %v5564
        %v5595 = vsub.f32 %v5531, %v5567
        %v5596 = vsub.f32 %v5532, %v5570
        %v5597 = vsub.f32 %v5533, %v5573
        %v5598 = vsub.f32 %v5534, %v5576
        %v5599 = vsub.f32 %v5535, %v5579
        %v5600 = vsub.f32 %v5536, %v5582
        %v5601 = vsub.f32 %v5537, %v5585
        %v5602 = vmul.f32 %v5586, 1.442695
        %v5603 = vpow.pop %v5602
        %v5604 = vmul.f32 %v5587, 1.442695
        %v5605 = vpow.pop %v5604
        %v5606 = vmul.f32 %v5588, 1.442695
        %v5607 = vpow.pop %v5606
        %v5608 = vmul.f32 %v5589, 1.442695
        %v5609 = vpow.pop %v5608
        %v5610 = vmul.f32 %v5590, 1.442695
        %v5611 = vpow.pop %v5610
        %v5612 = vmul.f32 %v5591, 1.442695
        %v5613 = vpow.pop %v5612
        %v5614 = vmul.f32 %v5592, 1.442695
        %v5615 = vpow.pop %v5614
        %v5616 = vmul.f32 %v5593, 1.442695
        %v5617 = vpow.pop %v5616
        %v5618 = vmul.f32 %v5594, 1.442695
        %v5619 = vpow.pop %v5618
        %v5620 = vmul.f32 %v5595, 1.442695
        %v5621 = vpow.pop %v5620
        %v5622 = vmul.f32 %v5596, 1.442695
        %v5623 = vpow.pop %v5622
        %v5624 = vmul.f32 %v5597, 1.442695
        %v5625 = vpow.pop %v5624
        %v5626 = vmul.f32 %v5598, 1.442695
        %v5627 = vpow.pop %v5626
        %v5628 = vmul.f32 %v5599, 1.442695
        %v5629 = vpow.pop %v5628
        %v5630 = vmul.f32 %v5600, 1.442695
        %v5631 = vpow.pop %v5630
        %v5632 = vmul.f32 %v5601, 1.442695
        %v5633 = vpow.pop %v5632
        %v5634 = vsel %vm629, %v5603, 0.0
        %5635 = vadd.xlane.f32.xlu0 %v5634
        %v5636 = vpop.xlane.xlu0 %5635
        %v5637 = vsel %vm629, %v5605, 0.0
        %5638 = vadd.xlane.f32.xlu0 %v5637
        %v5639 = vpop.xlane.xlu0 %5638
        %v5640 = vsel %vm629, %v5607, 0.0
        %5641 = vadd.xlane.f32.xlu0 %v5640
        %v5642 = vpop.xlane.xlu0 %5641
        %v5643 = vsel %vm629, %v5609, 0.0
        %5644 = vadd.xlane.f32.xlu0 %v5643
        %v5645 = vpop.xlane.xlu0 %5644
        %v5646 = vsel %vm629, %v5611, 0.0
        %5647 = vadd.xlane.f32.xlu0 %v5646
        %v5648 = vpop.xlane.xlu0 %5647
        %v5649 = vsel %vm629, %v5613, 0.0
        %5650 = vadd.xlane.f32.xlu0 %v5649
        %v5651 = vpop.xlane.xlu0 %5650
        %v5652 = vsel %vm629, %v5615, 0.0
        %5653 = vadd.xlane.f32.xlu0 %v5652
        %v5654 = vpop.xlane.xlu0 %5653
        %v5655 = vsel %vm629, %v5617, 0.0
        %5656 = vadd.xlane.f32.xlu0 %v5655
        %v5657 = vpop.xlane.xlu0 %5656
        %v5658 = vsel %vm629, %v5619, 0.0
        %5659 = vadd.xlane.f32.xlu0 %v5658
        %v5660 = vpop.xlane.xlu0 %5659
        %v5661 = vsel %vm629, %v5621, 0.0
        %5662 = vadd.xlane.f32.xlu0 %v5661
        %v5663 = vpop.xlane.xlu0 %5662
        %v5664 = vsel %vm629, %v5623, 0.0
        %5665 = vadd.xlane.f32.xlu0 %v5664
        %v5666 = vpop.xlane.xlu0 %5665
        %v5667 = vsel %vm629, %v5625, 0.0
        %5668 = vadd.xlane.f32.xlu0 %v5667
        %v5669 = vpop.xlane.xlu0 %5668
        %v5670 = vsel %vm629, %v5627, 0.0
        %5671 = vadd.xlane.f32.xlu0 %v5670
        %v5672 = vpop.xlane.xlu0 %5671
        %v5673 = vsel %vm629, %v5629, 0.0
        %5674 = vadd.xlane.f32.xlu0 %v5673
        %v5675 = vpop.xlane.xlu0 %5674
        %v5676 = vsel %vm629, %v5631, 0.0
        %5677 = vadd.xlane.f32.xlu0 %v5676
        %v5678 = vpop.xlane.xlu0 %5677
        %v5679 = vsel %vm629, %v5633, 0.0
        %5680 = vadd.xlane.f32.xlu0 %v5679
        %v5681 = vpop.xlane.xlu0 %5680
        %v5682 = vrcp.pop %v5636
        %v5683 = vrcp.pop %v5639
        %v5684 = vrcp.pop %v5642
        %v5685 = vrcp.pop %v5645
        %v5686 = vrcp.pop %v5648
        %v5687 = vrcp.pop %v5651
        %v5688 = vrcp.pop %v5654
        %v5689 = vrcp.pop %v5657
        %v5690 = vrcp.pop %v5660
        %v5691 = vrcp.pop %v5663
        %v5692 = vrcp.pop %v5666
        %v5693 = vrcp.pop %v5669
        %v5694 = vrcp.pop %v5672
        %v5695 = vrcp.pop %v5675
        %v5696 = vrcp.pop %v5678
        %v5697 = vrcp.pop %v5681
        %v5698 = vmul.f32 %v5603, %v5682
        %v5699 = vmul.f32 %v5605, %v5683
        %v5700 = vmul.f32 %v5607, %v5684
        %v5701 = vmul.f32 %v5609, %v5685
        %v5702 = vmul.f32 %v5611, %v5686
        %v5703 = vmul.f32 %v5613, %v5687
        %v5704 = vmul.f32 %v5615, %v5688
        %v5705 = vmul.f32 %v5617, %v5689
        %v5706 = vmul.f32 %v5619, %v5690
        %v5707 = vmul.f32 %v5621, %v5691
        %v5708 = vmul.f32 %v5623, %v5692
        %v5709 = vmul.f32 %v5625, %v5693
        %v5710 = vmul.f32 %v5627, %v5694
        %v5711 = vmul.f32 %v5629, %v5695
        %v5712 = vmul.f32 %v5631, %v5696
        %v5713 = vmul.f32 %v5633, %v5697
        %v5714 = vpack.c.bf16 %v5699, %v5698
        %v5715 = vpack.c.bf16 %v5701, %v5700
        %v5716 = vpack.c.bf16 %v5703, %v5702
        %v5717 = vpack.c.bf16 %v5705, %v5704
        %v5718 = vpack.c.bf16 %v5707, %v5706
        %v5719 = vpack.c.bf16 %v5709, %v5708
        %v5720 = vpack.c.bf16 %v5711, %v5710
        %v5721 = vpack.c.bf16 %v5713, %v5712
        %5722 = vrot.lane.b32.xlu0 %v1206, 64
        %v5723 = vpop.permute.xlu0 %5722
        %v5726 = vsel %vm629, %v5714, 0
        %5728 = vmatprep.subr.bf16.mxu0 0
        %5729 = vmatpush1.bf16.msra.mxu0 0
        %5730 = vmatprep.subr.bf16.mxu0 0
        %5731 = vmatpush1.bf16.msra.mxu0 0
        %5732 = vmatprep.subr.bf16.mxu0 0
        %5733 = vmatpush1.bf16.msra.mxu0 0
        %5734 = vmatprep.subr.bf16.mxu0 0
        %5735 = vmatpush1.bf16.msra.mxu0 0
        %5736 = vmatprep.subr.bf16.mxu0 0
        %5737 = vmatpush1.bf16.msra.mxu0 0
        %5738 = vmatprep.subr.bf16.mxu0 0
        %5739 = vmatpush1.bf16.msra.mxu0 0
        %5740 = vmatprep.subr.bf16.mxu0 0
        %5741 = vmatpush1.bf16.msra.mxu0 0
        %5742 = vmatprep.subr.bf16.mxu0 0
        %5743 = vmatpush1.bf16.msra.mxu0 %v5723
        %5744 = vmatprep.subr.bf16.mxu0 0
        %5745 = vmatpush2.bf16.msra.mxu0 0
        %5746 = vmatprep.subr.bf16.mxu0 0
        %5747 = vmatpush2.bf16.msra.mxu0 0
        %5748 = vmatprep.subr.bf16.mxu0 0
        %5749 = vmatpush2.bf16.msra.mxu0 0
        %5750 = vmatprep.subr.bf16.mxu0 0
        %5751 = vmatpush2.bf16.msra.mxu0 0
        %5752 = vmatprep.subr.bf16.mxu0 0
        %5753 = vmatpush2.bf16.msra.mxu0 0
        %5754 = vmatprep.subr.bf16.mxu0 0
        %5755 = vmatpush2.bf16.msra.mxu0 0
        %5756 = vmatprep.subr.bf16.mxu0 0
        %5757 = vmatpush2.bf16.msra.mxu0 0
        %5758 = vmatprep.subr.bf16.mxu0 0
        %5759 = vmatpush2.bf16.msra.mxu0 0
        %5760 = vmatprep.mubr.bf16.mxu0 0
        %5761 = vmatmul.mubr.bf16.gmra.mxu0 %v5726
        %v5762 = vpop.f32.mrf.mxu0
        %v5763 = vadd.f32 0.0, %v5762
        %v5764 = vpop.f32.mrf.mxu0
        %v5765 = vpop.f32.mrf.mxu0
        %v5766 = vadd.f32 0.0, %v5765
        %v5767 = vpop.f32.mrf.mxu0
        %5768 = vdwg.mxu0
        %5769 = vrot.lane.b32.xlu0 %v1207, 64
        %v5770 = vpop.permute.xlu0 %5769
        %v5773 = vsel %vm629, %v5715, 0
        %5775 = vmatprep.subr.bf16.mxu0 0
        %5776 = vmatpush1.bf16.msra.mxu0 0
        %5777 = vmatprep.subr.bf16.mxu0 0
        %5778 = vmatpush1.bf16.msra.mxu0 0
        %5779 = vmatprep.subr.bf16.mxu0 0
        %5780 = vmatpush1.bf16.msra.mxu0 0
        %5781 = vmatprep.subr.bf16.mxu0 0
        %5782 = vmatpush1.bf16.msra.mxu0 0
        %5783 = vmatprep.subr.bf16.mxu0 0
        %5784 = vmatpush1.bf16.msra.mxu0 0
        %5785 = vmatprep.subr.bf16.mxu0 0
        %5786 = vmatpush1.bf16.msra.mxu0 0
        %5787 = vmatprep.subr.bf16.mxu0 0
        %5788 = vmatpush1.bf16.msra.mxu0 0
        %5789 = vmatprep.subr.bf16.mxu0 0
        %5790 = vmatpush1.bf16.msra.mxu0 %v5770
        %5791 = vmatprep.subr.bf16.mxu0 0
        %5792 = vmatpush2.bf16.msra.mxu0 0
        %5793 = vmatprep.subr.bf16.mxu0 0
        %5794 = vmatpush2.bf16.msra.mxu0 0
        %5795 = vmatprep.subr.bf16.mxu0 0
        %5796 = vmatpush2.bf16.msra.mxu0 0
        %5797 = vmatprep.subr.bf16.mxu0 0
        %5798 = vmatpush2.bf16.msra.mxu0 0
        %5799 = vmatprep.subr.bf16.mxu0 0
        %5800 = vmatpush2.bf16.msra.mxu0 0
        %5801 = vmatprep.subr.bf16.mxu0 0
        %5802 = vmatpush2.bf16.msra.mxu0 0
        %5803 = vmatprep.subr.bf16.mxu0 0
        %5804 = vmatpush2.bf16.msra.mxu0 0
        %5805 = vmatprep.subr.bf16.mxu0 0
        %5806 = vmatpush2.bf16.msra.mxu0 0
        %5807 = vmatprep.mubr.bf16.mxu0 0
        %5808 = vmatmul.mubr.bf16.gmra.mxu0 %v5773
        %v5809 = vpop.f32.mrf.mxu0
        %v5810 = vadd.f32 0.0, %v5809
        %v5811 = vpop.f32.mrf.mxu0
        %v5812 = vpop.f32.mrf.mxu0
        %v5813 = vadd.f32 0.0, %v5812
        %v5814 = vpop.f32.mrf.mxu0
        %5815 = vdwg.mxu0
        %5816 = vrot.lane.b32.xlu0 %v1208, 64
        %v5817 = vpop.permute.xlu0 %5816
        %v5820 = vsel %vm629, %v5716, 0
        %5822 = vmatprep.subr.bf16.mxu0 0
        %5823 = vmatpush1.bf16.msra.mxu0 0
        %5824 = vmatprep.subr.bf16.mxu0 0
        %5825 = vmatpush1.bf16.msra.mxu0 0
        %5826 = vmatprep.subr.bf16.mxu0 0
        %5827 = vmatpush1.bf16.msra.mxu0 0
        %5828 = vmatprep.subr.bf16.mxu0 0
        %5829 = vmatpush1.bf16.msra.mxu0 0
        %5830 = vmatprep.subr.bf16.mxu0 0
        %5831 = vmatpush1.bf16.msra.mxu0 0
        %5832 = vmatprep.subr.bf16.mxu0 0
        %5833 = vmatpush1.bf16.msra.mxu0 0
        %5834 = vmatprep.subr.bf16.mxu0 0
        %5835 = vmatpush1.bf16.msra.mxu0 0
        %5836 = vmatprep.subr.bf16.mxu0 0
        %5837 = vmatpush1.bf16.msra.mxu0 %v5817
        %5838 = vmatprep.subr.bf16.mxu0 0
        %5839 = vmatpush2.bf16.msra.mxu0 0
        %5840 = vmatprep.subr.bf16.mxu0 0
        %5841 = vmatpush2.bf16.msra.mxu0 0
        %5842 = vmatprep.subr.bf16.mxu0 0
        %5843 = vmatpush2.bf16.msra.mxu0 0
        %5844 = vmatprep.subr.bf16.mxu0 0
        %5845 = vmatpush2.bf16.msra.mxu0 0
        %5846 = vmatprep.subr.bf16.mxu0 0
        %5847 = vmatpush2.bf16.msra.mxu0 0
        %5848 = vmatprep.subr.bf16.mxu0 0
        %5849 = vmatpush2.bf16.msra.mxu0 0
        %5850 = vmatprep.subr.bf16.mxu0 0
        %5851 = vmatpush2.bf16.msra.mxu0 0
        %5852 = vmatprep.subr.bf16.mxu0 0
        %5853 = vmatpush2.bf16.msra.mxu0 0
        %5854 = vmatprep.mubr.bf16.mxu0 0
        %5855 = vmatmul.mubr.bf16.gmra.mxu0 %v5820
        %v5856 = vpop.f32.mrf.mxu0
        %v5857 = vadd.f32 0.0, %v5856
        %v5858 = vpop.f32.mrf.mxu0
        %v5859 = vpop.f32.mrf.mxu0
        %v5860 = vadd.f32 0.0, %v5859
        %v5861 = vpop.f32.mrf.mxu0
        %5862 = vdwg.mxu0
        %5863 = vrot.lane.b32.xlu0 %v1209, 64
        %v5864 = vpop.permute.xlu0 %5863
        %v5867 = vsel %vm629, %v5717, 0
        %5869 = vmatprep.subr.bf16.mxu0 0
        %5870 = vmatpush1.bf16.msra.mxu0 0
        %5871 = vmatprep.subr.bf16.mxu0 0
        %5872 = vmatpush1.bf16.msra.mxu0 0
        %5873 = vmatprep.subr.bf16.mxu0 0
        %5874 = vmatpush1.bf16.msra.mxu0 0
        %5875 = vmatprep.subr.bf16.mxu0 0
        %5876 = vmatpush1.bf16.msra.mxu0 0
        %5877 = vmatprep.subr.bf16.mxu0 0
        %5878 = vmatpush1.bf16.msra.mxu0 0
        %5879 = vmatprep.subr.bf16.mxu0 0
        %5880 = vmatpush1.bf16.msra.mxu0 0
        %5881 = vmatprep.subr.bf16.mxu0 0
        %5882 = vmatpush1.bf16.msra.mxu0 0
        %5883 = vmatprep.subr.bf16.mxu0 0
        %5884 = vmatpush1.bf16.msra.mxu0 %v5864
        %5885 = vmatprep.subr.bf16.mxu0 0
        %5886 = vmatpush2.bf16.msra.mxu0 0
        %5887 = vmatprep.subr.bf16.mxu0 0
        %5888 = vmatpush2.bf16.msra.mxu0 0
        %5889 = vmatprep.subr.bf16.mxu0 0
        %5890 = vmatpush2.bf16.msra.mxu0 0
        %5891 = vmatprep.subr.bf16.mxu0 0
        %5892 = vmatpush2.bf16.msra.mxu0 0
        %5893 = vmatprep.subr.bf16.mxu0 0
        %5894 = vmatpush2.bf16.msra.mxu0 0
        %5895 = vmatprep.subr.bf16.mxu0 0
        %5896 = vmatpush2.bf16.msra.mxu0 0
        %5897 = vmatprep.subr.bf16.mxu0 0
        %5898 = vmatpush2.bf16.msra.mxu0 0
        %5899 = vmatprep.subr.bf16.mxu0 0
        %5900 = vmatpush2.bf16.msra.mxu0 0
        %5901 = vmatprep.mubr.bf16.mxu0 0
        %5902 = vmatmul.mubr.bf16.gmra.mxu0 %v5867
        %v5903 = vpop.f32.mrf.mxu0
        %v5904 = vadd.f32 0.0, %v5903
        %v5905 = vpop.f32.mrf.mxu0
        %v5906 = vpop.f32.mrf.mxu0
        %v5907 = vadd.f32 0.0, %v5906
        %v5908 = vpop.f32.mrf.mxu0
        %5909 = vdwg.mxu0
        %5910 = vrot.lane.b32.xlu0 %v1210, 64
        %v5911 = vpop.permute.xlu0 %5910
        %v5914 = vsel %vm629, %v5718, 0
        %5916 = vmatprep.subr.bf16.mxu0 0
        %5917 = vmatpush1.bf16.msra.mxu0 0
        %5918 = vmatprep.subr.bf16.mxu0 0
        %5919 = vmatpush1.bf16.msra.mxu0 0
        %5920 = vmatprep.subr.bf16.mxu0 0
        %5921 = vmatpush1.bf16.msra.mxu0 0
        %5922 = vmatprep.subr.bf16.mxu0 0
        %5923 = vmatpush1.bf16.msra.mxu0 0
        %5924 = vmatprep.subr.bf16.mxu0 0
        %5925 = vmatpush1.bf16.msra.mxu0 0
        %5926 = vmatprep.subr.bf16.mxu0 0
        %5927 = vmatpush1.bf16.msra.mxu0 0
        %5928 = vmatprep.subr.bf16.mxu0 0
        %5929 = vmatpush1.bf16.msra.mxu0 0
        %5930 = vmatprep.subr.bf16.mxu0 0
        %5931 = vmatpush1.bf16.msra.mxu0 %v5911
        %5932 = vmatprep.subr.bf16.mxu0 0
        %5933 = vmatpush2.bf16.msra.mxu0 0
        %5934 = vmatprep.subr.bf16.mxu0 0
        %5935 = vmatpush2.bf16.msra.mxu0 0
        %5936 = vmatprep.subr.bf16.mxu0 0
        %5937 = vmatpush2.bf16.msra.mxu0 0
        %5938 = vmatprep.subr.bf16.mxu0 0
        %5939 = vmatpush2.bf16.msra.mxu0 0
        %5940 = vmatprep.subr.bf16.mxu0 0
        %5941 = vmatpush2.bf16.msra.mxu0 0
        %5942 = vmatprep.subr.bf16.mxu0 0
        %5943 = vmatpush2.bf16.msra.mxu0 0
        %5944 = vmatprep.subr.bf16.mxu0 0
        %5945 = vmatpush2.bf16.msra.mxu0 0
        %5946 = vmatprep.subr.bf16.mxu0 0
        %5947 = vmatpush2.bf16.msra.mxu0 0
        %5948 = vmatprep.mubr.bf16.mxu0 0
        %5949 = vmatmul.mubr.bf16.gmra.mxu0 %v5914
        %v5950 = vpop.f32.mrf.mxu0
        %v5951 = vadd.f32 0.0, %v5950
        %v5952 = vpop.f32.mrf.mxu0
        %v5953 = vpop.f32.mrf.mxu0
        %v5954 = vadd.f32 0.0, %v5953
        %v5955 = vpop.f32.mrf.mxu0
        %5956 = vdwg.mxu0
        %5957 = vrot.lane.b32.xlu0 %v1211, 64
        %v5958 = vpop.permute.xlu0 %5957
        %v5961 = vsel %vm629, %v5719, 0
        %5963 = vmatprep.subr.bf16.mxu0 0
        %5964 = vmatpush1.bf16.msra.mxu0 0
        %5965 = vmatprep.subr.bf16.mxu0 0
        %5966 = vmatpush1.bf16.msra.mxu0 0
        %5967 = vmatprep.subr.bf16.mxu0 0
        %5968 = vmatpush1.bf16.msra.mxu0 0
        %5969 = vmatprep.subr.bf16.mxu0 0
        %5970 = vmatpush1.bf16.msra.mxu0 0
        %5971 = vmatprep.subr.bf16.mxu0 0
        %5972 = vmatpush1.bf16.msra.mxu0 0
        %5973 = vmatprep.subr.bf16.mxu0 0
        %5974 = vmatpush1.bf16.msra.mxu0 0
        %5975 = vmatprep.subr.bf16.mxu0 0
        %5976 = vmatpush1.bf16.msra.mxu0 0
        %5977 = vmatprep.subr.bf16.mxu0 0
        %5978 = vmatpush1.bf16.msra.mxu0 %v5958
        %5979 = vmatprep.subr.bf16.mxu0 0
        %5980 = vmatpush2.bf16.msra.mxu0 0
        %5981 = vmatprep.subr.bf16.mxu0 0
        %5982 = vmatpush2.bf16.msra.mxu0 0
        %5983 = vmatprep.subr.bf16.mxu0 0
        %5984 = vmatpush2.bf16.msra.mxu0 0
        %5985 = vmatprep.subr.bf16.mxu0 0
        %5986 = vmatpush2.bf16.msra.mxu0 0
        %5987 = vmatprep.subr.bf16.mxu0 0
        %5988 = vmatpush2.bf16.msra.mxu0 0
        %5989 = vmatprep.subr.bf16.mxu0 0
        %5990 = vmatpush2.bf16.msra.mxu0 0
        %5991 = vmatprep.subr.bf16.mxu0 0
        %5992 = vmatpush2.bf16.msra.mxu0 0
        %5993 = vmatprep.subr.bf16.mxu0 0
        %5994 = vmatpush2.bf16.msra.mxu0 0
        %5995 = vmatprep.mubr.bf16.mxu0 0
        %5996 = vmatmul.mubr.bf16.gmra.mxu0 %v5961
        %v5997 = vpop.f32.mrf.mxu0
        %v5998 = vadd.f32 0.0, %v5997
        %v5999 = vpop.f32.mrf.mxu0
        %v6000 = vpop.f32.mrf.mxu0
        %v6001 = vadd.f32 0.0, %v6000
        %v6002 = vpop.f32.mrf.mxu0
        %6003 = vdwg.mxu0
        %6004 = vrot.lane.b32.xlu0 %v1212, 64
        %v6005 = vpop.permute.xlu0 %6004
        %v6008 = vsel %vm629, %v5720, 0
        %6010 = vmatprep.subr.bf16.mxu0 0
        %6011 = vmatpush1.bf16.msra.mxu0 0
        %6012 = vmatprep.subr.bf16.mxu0 0
        %6013 = vmatpush1.bf16.msra.mxu0 0
        %6014 = vmatprep.subr.bf16.mxu0 0
        %6015 = vmatpush1.bf16.msra.mxu0 0
        %6016 = vmatprep.subr.bf16.mxu0 0
        %6017 = vmatpush1.bf16.msra.mxu0 0
        %6018 = vmatprep.subr.bf16.mxu0 0
        %6019 = vmatpush1.bf16.msra.mxu0 0
        %6020 = vmatprep.subr.bf16.mxu0 0
        %6021 = vmatpush1.bf16.msra.mxu0 0
        %6022 = vmatprep.subr.bf16.mxu0 0
        %6023 = vmatpush1.bf16.msra.mxu0 0
        %6024 = vmatprep.subr.bf16.mxu0 0
        %6025 = vmatpush1.bf16.msra.mxu0 %v6005
        %6026 = vmatprep.subr.bf16.mxu0 0
        %6027 = vmatpush2.bf16.msra.mxu0 0
        %6028 = vmatprep.subr.bf16.mxu0 0
        %6029 = vmatpush2.bf16.msra.mxu0 0
        %6030 = vmatprep.subr.bf16.mxu0 0
        %6031 = vmatpush2.bf16.msra.mxu0 0
        %6032 = vmatprep.subr.bf16.mxu0 0
        %6033 = vmatpush2.bf16.msra.mxu0 0
        %6034 = vmatprep.subr.bf16.mxu0 0
        %6035 = vmatpush2.bf16.msra.mxu0 0
        %6036 = vmatprep.subr.bf16.mxu0 0
        %6037 = vmatpush2.bf16.msra.mxu0 0
        %6038 = vmatprep.subr.bf16.mxu0 0
        %6039 = vmatpush2.bf16.msra.mxu0 0
        %6040 = vmatprep.subr.bf16.mxu0 0
        %6041 = vmatpush2.bf16.msra.mxu0 0
        %6042 = vmatprep.mubr.bf16.mxu0 0
        %6043 = vmatmul.mubr.bf16.gmra.mxu0 %v6008
        %v6044 = vpop.f32.mrf.mxu0
        %v6045 = vadd.f32 0.0, %v6044
        %v6046 = vpop.f32.mrf.mxu0
        %v6047 = vpop.f32.mrf.mxu0
        %v6048 = vadd.f32 0.0, %v6047
        %v6049 = vpop.f32.mrf.mxu0
        %6050 = vdwg.mxu0
        %6051 = vrot.lane.b32.xlu0 %v1213, 64
        %v6052 = vpop.permute.xlu0 %6051
        %v6055 = vsel %vm629, %v5721, 0
        %6057 = vmatprep.subr.bf16.mxu0 0
        %6058 = vmatpush1.bf16.msra.mxu0 0
        %6059 = vmatprep.subr.bf16.mxu0 0
        %6060 = vmatpush1.bf16.msra.mxu0 0
        %6061 = vmatprep.subr.bf16.mxu0 0
        %6062 = vmatpush1.bf16.msra.mxu0 0
        %6063 = vmatprep.subr.bf16.mxu0 0
        %6064 = vmatpush1.bf16.msra.mxu0 0
        %6065 = vmatprep.subr.bf16.mxu0 0
        %6066 = vmatpush1.bf16.msra.mxu0 0
        %6067 = vmatprep.subr.bf16.mxu0 0
        %6068 = vmatpush1.bf16.msra.mxu0 0
        %6069 = vmatprep.subr.bf16.mxu0 0
        %6070 = vmatpush1.bf16.msra.mxu0 0
        %6071 = vmatprep.subr.bf16.mxu0 0
        %6072 = vmatpush1.bf16.msra.mxu0 %v6052
        %6073 = vmatprep.subr.bf16.mxu0 0
        %6074 = vmatpush2.bf16.msra.mxu0 0
        %6075 = vmatprep.subr.bf16.mxu0 0
        %6076 = vmatpush2.bf16.msra.mxu0 0
        %6077 = vmatprep.subr.bf16.mxu0 0
        %6078 = vmatpush2.bf16.msra.mxu0 0
        %6079 = vmatprep.subr.bf16.mxu0 0
        %6080 = vmatpush2.bf16.msra.mxu0 0
        %6081 = vmatprep.subr.bf16.mxu0 0
        %6082 = vmatpush2.bf16.msra.mxu0 0
        %6083 = vmatprep.subr.bf16.mxu0 0
        %6084 = vmatpush2.bf16.msra.mxu0 0
        %6085 = vmatprep.subr.bf16.mxu0 0
        %6086 = vmatpush2.bf16.msra.mxu0 0
        %6087 = vmatprep.subr.bf16.mxu0 0
        %6088 = vmatpush2.bf16.msra.mxu0 0
        %6089 = vmatprep.mubr.bf16.mxu0 0
        %6090 = vmatmul.mubr.bf16.gmra.mxu0 %v6055
        %v6091 = vpop.f32.mrf.mxu0
        %v6092 = vadd.f32 0.0, %v6091
        %v6093 = vpop.f32.mrf.mxu0
        %v6094 = vpop.f32.mrf.mxu0
        %v6095 = vadd.f32 0.0, %v6094
        %v6096 = vpop.f32.mrf.mxu0
        %6097 = vdwg.mxu0
        %v6098 = vpack.c.bf16 %v5766, %v5763
        %v6099 = vpack.c.bf16 %v5813, %v5810
        %v6100 = vpack.c.bf16 %v5860, %v5857
        %v6101 = vpack.c.bf16 %v5907, %v5904
        %v6102 = vpack.c.bf16 %v5954, %v5951
        %v6103 = vpack.c.bf16 %v6001, %v5998
        %v6104 = vpack.c.bf16 %v6048, %v6045
        %v6105 = vpack.c.bf16 %v6095, %v6092
        %v6108 = vunpack.c.l.b16 %v267
        %v6109 = vunpack.c.l.b16 %v268
        %v6110 = vpack.c.b16 %v6109, %v6108
        %v6113 = vsel %vm629, %v6098, 0
        %v6116 = vsel %vm629, %v6099, 0
        %v6119 = vsel %vm629, %v6100, 0
        %v6122 = vsel %vm629, %v6101, 0
        %v6125 = vsel %vm629, %v6102, 0
        %v6128 = vsel %vm629, %v6103, 0
        %v6131 = vsel %vm629, %v6104, 0
        %v6134 = vsel %vm629, %v6105, 0
        %6136 = vmatprep.subr.bf16.mxu0 0
        %6137 = vmatpush1.bf16.msra.mxu0 0
        %6138 = vmatprep.subr.bf16.mxu0 0
        %6139 = vmatpush1.bf16.msra.mxu0 0
        %6140 = vmatprep.subr.bf16.mxu0 0
        %6141 = vmatpush1.bf16.msra.mxu0 0
        %6142 = vmatprep.subr.bf16.mxu0 0
        %6143 = vmatpush1.bf16.msra.mxu0 0
        %6144 = vmatprep.subr.bf16.mxu0 0
        %6145 = vmatpush1.bf16.msra.mxu0 0
        %6146 = vmatprep.subr.bf16.mxu0 0
        %6147 = vmatpush1.bf16.msra.mxu0 0
        %6148 = vmatprep.subr.bf16.mxu0 0
        %6149 = vmatpush1.bf16.msra.mxu0 0
        %6150 = vmatprep.subr.bf16.mxu0 0
        %6151 = vmatpush1.bf16.msra.mxu0 %v6110
        %6152 = vmatprep.subr.bf16.mxu0 0
        %6153 = vmatpush2.bf16.msra.mxu0 0
        %6154 = vmatprep.subr.bf16.mxu0 0
        %6155 = vmatpush2.bf16.msra.mxu0 0
        %6156 = vmatprep.subr.bf16.mxu0 0
        %6157 = vmatpush2.bf16.msra.mxu0 0
        %6158 = vmatprep.subr.bf16.mxu0 0
        %6159 = vmatpush2.bf16.msra.mxu0 0
        %6160 = vmatprep.subr.bf16.mxu0 0
        %6161 = vmatpush2.bf16.msra.mxu0 0
        %6162 = vmatprep.subr.bf16.mxu0 0
        %6163 = vmatpush2.bf16.msra.mxu0 0
        %6164 = vmatprep.subr.bf16.mxu0 0
        %6165 = vmatpush2.bf16.msra.mxu0 0
        %6166 = vmatprep.subr.bf16.mxu0 0
        %6167 = vmatpush2.bf16.msra.mxu0 0
        %6168 = vmatprep.mubr.bf16.mxu0 0
        %6169 = vmatmul.mubr.bf16.gmra.mxu0 %v6113
        %v6170 = vpop.f32.mrf.mxu0
        %v6171 = vadd.f32 0.0, %v6170
        %v6172 = vpop.f32.mrf.mxu0
        %v6173 = vpop.f32.mrf.mxu0
        %v6174 = vadd.f32 0.0, %v6173
        %v6175 = vpop.f32.mrf.mxu0
        %6176 = vmatprep.mubr.bf16.mxu0 0
        %6177 = vmatmul.mubr.bf16.gmra.mxu0 %v6116
        %v6178 = vpop.f32.mrf.mxu0
        %v6179 = vadd.f32 0.0, %v6178
        %v6180 = vpop.f32.mrf.mxu0
        %v6181 = vpop.f32.mrf.mxu0
        %v6182 = vadd.f32 0.0, %v6181
        %v6183 = vpop.f32.mrf.mxu0
        %6184 = vmatprep.mubr.bf16.mxu0 0
        %6185 = vmatmul.mubr.bf16.gmra.mxu0 %v6119
        %v6186 = vpop.f32.mrf.mxu0
        %v6187 = vadd.f32 0.0, %v6186
        %v6188 = vpop.f32.mrf.mxu0
        %v6189 = vpop.f32.mrf.mxu0
        %v6190 = vadd.f32 0.0, %v6189
        %v6191 = vpop.f32.mrf.mxu0
        %6192 = vmatprep.mubr.bf16.mxu0 0
        %6193 = vmatmul.mubr.bf16.gmra.mxu0 %v6122
        %v6194 = vpop.f32.mrf.mxu0
        %v6195 = vadd.f32 0.0, %v6194
        %v6196 = vpop.f32.mrf.mxu0
        %v6197 = vpop.f32.mrf.mxu0
        %v6198 = vadd.f32 0.0, %v6197
        %v6199 = vpop.f32.mrf.mxu0
        %6200 = vmatprep.mubr.bf16.mxu0 0
        %6201 = vmatmul.mubr.bf16.gmra.mxu0 %v6125
        %v6202 = vpop.f32.mrf.mxu0
        %v6203 = vadd.f32 0.0, %v6202
        %v6204 = vpop.f32.mrf.mxu0
        %v6205 = vpop.f32.mrf.mxu0
        %v6206 = vadd.f32 0.0, %v6205
        %v6207 = vpop.f32.mrf.mxu0
        %6208 = vmatprep.mubr.bf16.mxu0 0
        %6209 = vmatmul.mubr.bf16.gmra.mxu0 %v6128
        %v6210 = vpop.f32.mrf.mxu0
        %v6211 = vadd.f32 0.0, %v6210
        %v6212 = vpop.f32.mrf.mxu0
        %v6213 = vpop.f32.mrf.mxu0
        %v6214 = vadd.f32 0.0, %v6213
        %v6215 = vpop.f32.mrf.mxu0
        %6216 = vmatprep.mubr.bf16.mxu0 0
        %6217 = vmatmul.mubr.bf16.gmra.mxu0 %v6131
        %v6218 = vpop.f32.mrf.mxu0
        %v6219 = vadd.f32 0.0, %v6218
        %v6220 = vpop.f32.mrf.mxu0
        %v6221 = vpop.f32.mrf.mxu0
        %v6222 = vadd.f32 0.0, %v6221
        %v6223 = vpop.f32.mrf.mxu0
        %6224 = vmatprep.mubr.bf16.mxu0 0
        %6225 = vmatmul.mubr.bf16.gmra.mxu0 %v6134
        %v6226 = vpop.f32.mrf.mxu0
        %v6227 = vadd.f32 0.0, %v6226
        %v6228 = vpop.f32.mrf.mxu0
        %v6229 = vpop.f32.mrf.mxu0
        %v6230 = vadd.f32 0.0, %v6229
        %v6231 = vpop.f32.mrf.mxu0
        %6232 = vdwg.mxu0
        %v6233 = vadd.f32 %v5098, %v6171
        %v6234 = vadd.f32 %v5099, %v6174
        %v6235 = vadd.f32 %v5100, %v6179
        %v6236 = vadd.f32 %v5101, %v6182
        %v6237 = vadd.f32 %v5102, %v6187
        %v6238 = vadd.f32 %v5103, %v6190
        %v6239 = vadd.f32 %v5104, %v6195
        %v6240 = vadd.f32 %v5105, %v6198
        %v6241 = vadd.f32 %v5106, %v6203
        %v6242 = vadd.f32 %v5107, %v6206
        %v6243 = vadd.f32 %v5108, %v6211
        %v6244 = vadd.f32 %v5109, %v6214
        %v6245 = vadd.f32 %v5110, %v6219
        %v6246 = vadd.f32 %v5111, %v6222
        %v6247 = vadd.f32 %v5112, %v6227
        %v6248 = vadd.f32 %v5113, %v6230
        %6249 = vrot.lane.b32.xlu0 %v613, 48
        %v6250 = vpop.permute.xlu0 %6249
        %6251 = vrot.lane.b32.xlu0 %v621, 48
        %v6252 = vpop.permute.xlu0 %6251
        %v6254 = vsel %vm629, %v6250, 0
        %v6257 = vsel %vm629, %v6252, 0
        %6259 = vmatprep.subr.bf16.mxu0 0
        %6260 = vmatpush1.bf16.xpose.msra.mxu0 0
        %6261 = vmatprep.subr.bf16.mxu0 0
        %6262 = vmatpush1.bf16.xpose.msra.mxu0 0
        %6263 = vmatprep.subr.bf16.mxu0 0
        %6264 = vmatpush1.bf16.xpose.msra.mxu0 0
        %6265 = vmatprep.subr.bf16.mxu0 0
        %6266 = vmatpush1.bf16.xpose.msra.mxu0 0
        %6267 = vmatprep.subr.bf16.mxu0 0
        %6268 = vmatpush1.bf16.xpose.msra.mxu0 0
        %6269 = vmatprep.subr.bf16.mxu0 0
        %6270 = vmatpush1.bf16.xpose.msra.mxu0 0
        %6271 = vmatprep.subr.bf16.mxu0 0
        %6272 = vmatpush1.bf16.xpose.msra.mxu0 0
        %6273 = vmatprep.subr.bf16.mxu0 0
        %6274 = vmatpush1.bf16.xpose.msra.mxu0 %v6257
        %6275 = vmatprep.subr.bf16.mxu0 0
        %6276 = vmatpush2.bf16.xpose.msra.mxu0 0
        %6277 = vmatprep.subr.bf16.mxu0 0
        %6278 = vmatpush2.bf16.xpose.msra.mxu0 0
        %6279 = vmatprep.subr.bf16.mxu0 0
        %6280 = vmatpush2.bf16.xpose.msra.mxu0 0
        %6281 = vmatprep.subr.bf16.mxu0 0
        %6282 = vmatpush2.bf16.xpose.msra.mxu0 0
        %6283 = vmatprep.subr.bf16.mxu0 0
        %6284 = vmatpush2.bf16.xpose.msra.mxu0 0
        %6285 = vmatprep.subr.bf16.mxu0 0
        %6286 = vmatpush2.bf16.xpose.msra.mxu0 0
        %6287 = vmatprep.subr.bf16.mxu0 0
        %6288 = vmatpush2.bf16.xpose.msra.mxu0 0
        %6289 = vmatprep.subr.bf16.mxu0 0
        %6290 = vmatpush2.bf16.xpose.msra.mxu0 0
        %6291 = vmatprep.mubr.bf16.mxu0 0
        %6292 = vmatmul.mubr.bf16.gmra.mxu0 %v6254
        %v6293 = vpop.f32.mrf.mxu0
        %v6294 = vadd.f32 0.0, %v6293
        %v6295 = vpop.f32.mrf.mxu0
        %v6296 = vpop.f32.mrf.mxu0
        %v6297 = vadd.f32 0.0, %v6296
        %v6298 = vpop.f32.mrf.mxu0
        %6299 = vdwg.mxu0
        %6300 = vrot.lane.b32.xlu0 %v614, 48
        %v6301 = vpop.permute.xlu0 %6300
        %6302 = vrot.lane.b32.xlu0 %v622, 48
        %v6303 = vpop.permute.xlu0 %6302
        %v6305 = vsel %vm629, %v6301, 0
        %v6308 = vsel %vm629, %v6303, 0
        %6310 = vmatprep.subr.bf16.mxu0 0
        %6311 = vmatpush1.bf16.xpose.msra.mxu0 0
        %6312 = vmatprep.subr.bf16.mxu0 0
        %6313 = vmatpush1.bf16.xpose.msra.mxu0 0
        %6314 = vmatprep.subr.bf16.mxu0 0
        %6315 = vmatpush1.bf16.xpose.msra.mxu0 0
        %6316 = vmatprep.subr.bf16.mxu0 0
        %6317 = vmatpush1.bf16.xpose.msra.mxu0 0
        %6318 = vmatprep.subr.bf16.mxu0 0
        %6319 = vmatpush1.bf16.xpose.msra.mxu0 0
        %6320 = vmatprep.subr.bf16.mxu0 0
        %6321 = vmatpush1.bf16.xpose.msra.mxu0 0
        %6322 = vmatprep.subr.bf16.mxu0 0
        %6323 = vmatpush1.bf16.xpose.msra.mxu0 0
        %6324 = vmatprep.subr.bf16.mxu0 0
        %6325 = vmatpush1.bf16.xpose.msra.mxu0 %v6308
        %6326 = vmatprep.subr.bf16.mxu0 0
        %6327 = vmatpush2.bf16.xpose.msra.mxu0 0
        %6328 = vmatprep.subr.bf16.mxu0 0
        %6329 = vmatpush2.bf16.xpose.msra.mxu0 0
        %6330 = vmatprep.subr.bf16.mxu0 0
        %6331 = vmatpush2.bf16.xpose.msra.mxu0 0
        %6332 = vmatprep.subr.bf16.mxu0 0
        %6333 = vmatpush2.bf16.xpose.msra.mxu0 0
        %6334 = vmatprep.subr.bf16.mxu0 0
        %6335 = vmatpush2.bf16.xpose.msra.mxu0 0
        %6336 = vmatprep.subr.bf16.mxu0 0
        %6337 = vmatpush2.bf16.xpose.msra.mxu0 0
        %6338 = vmatprep.subr.bf16.mxu0 0
        %6339 = vmatpush2.bf16.xpose.msra.mxu0 0
        %6340 = vmatprep.subr.bf16.mxu0 0
        %6341 = vmatpush2.bf16.xpose.msra.mxu0 0
        %6342 = vmatprep.mubr.bf16.mxu0 0
        %6343 = vmatmul.mubr.bf16.gmra.mxu0 %v6305
        %v6344 = vpop.f32.mrf.mxu0
        %v6345 = vadd.f32 0.0, %v6344
        %v6346 = vpop.f32.mrf.mxu0
        %v6347 = vpop.f32.mrf.mxu0
        %v6348 = vadd.f32 0.0, %v6347
        %v6349 = vpop.f32.mrf.mxu0
        %6350 = vdwg.mxu0
        %6351 = vrot.lane.b32.xlu0 %v615, 48
        %v6352 = vpop.permute.xlu0 %6351
        %6353 = vrot.lane.b32.xlu0 %v623, 48
        %v6354 = vpop.permute.xlu0 %6353
        %v6356 = vsel %vm629, %v6352, 0
        %v6359 = vsel %vm629, %v6354, 0
        %6361 = vmatprep.subr.bf16.mxu0 0
        %6362 = vmatpush1.bf16.xpose.msra.mxu0 0
        %6363 = vmatprep.subr.bf16.mxu0 0
        %6364 = vmatpush1.bf16.xpose.msra.mxu0 0
        %6365 = vmatprep.subr.bf16.mxu0 0
        %6366 = vmatpush1.bf16.xpose.msra.mxu0 0
        %6367 = vmatprep.subr.bf16.mxu0 0
        %6368 = vmatpush1.bf16.xpose.msra.mxu0 0
        %6369 = vmatprep.subr.bf16.mxu0 0
        %6370 = vmatpush1.bf16.xpose.msra.mxu0 0
        %6371 = vmatprep.subr.bf16.mxu0 0
        %6372 = vmatpush1.bf16.xpose.msra.mxu0 0
        %6373 = vmatprep.subr.bf16.mxu0 0
        %6374 = vmatpush1.bf16.xpose.msra.mxu0 0
        %6375 = vmatprep.subr.bf16.mxu0 0
        %6376 = vmatpush1.bf16.xpose.msra.mxu0 %v6359
        %6377 = vmatprep.subr.bf16.mxu0 0
        %6378 = vmatpush2.bf16.xpose.msra.mxu0 0
        %6379 = vmatprep.subr.bf16.mxu0 0
        %6380 = vmatpush2.bf16.xpose.msra.mxu0 0
        %6381 = vmatprep.subr.bf16.mxu0 0
        %6382 = vmatpush2.bf16.xpose.msra.mxu0 0
        %6383 = vmatprep.subr.bf16.mxu0 0
        %6384 = vmatpush2.bf16.xpose.msra.mxu0 0
        %6385 = vmatprep.subr.bf16.mxu0 0
        %6386 = vmatpush2.bf16.xpose.msra.mxu0 0
        %6387 = vmatprep.subr.bf16.mxu0 0
        %6388 = vmatpush2.bf16.xpose.msra.mxu0 0
        %6389 = vmatprep.subr.bf16.mxu0 0
        %6390 = vmatpush2.bf16.xpose.msra.mxu0 0
        %6391 = vmatprep.subr.bf16.mxu0 0
        %6392 = vmatpush2.bf16.xpose.msra.mxu0 0
        %6393 = vmatprep.mubr.bf16.mxu0 0
        %6394 = vmatmul.mubr.bf16.gmra.mxu0 %v6356
        %v6395 = vpop.f32.mrf.mxu0
        %v6396 = vadd.f32 0.0, %v6395
        %v6397 = vpop.f32.mrf.mxu0
        %v6398 = vpop.f32.mrf.mxu0
        %v6399 = vadd.f32 0.0, %v6398
        %v6400 = vpop.f32.mrf.mxu0
        %6401 = vdwg.mxu0
        %6402 = vrot.lane.b32.xlu0 %v616, 48
        %v6403 = vpop.permute.xlu0 %6402
        %6404 = vrot.lane.b32.xlu0 %v624, 48
        %v6405 = vpop.permute.xlu0 %6404
        %v6407 = vsel %vm629, %v6403, 0
        %v6410 = vsel %vm629, %v6405, 0
        %6412 = vmatprep.subr.bf16.mxu0 0
        %6413 = vmatpush1.bf16.xpose.msra.mxu0 0
        %6414 = vmatprep.subr.bf16.mxu0 0
        %6415 = vmatpush1.bf16.xpose.msra.mxu0 0
        %6416 = vmatprep.subr.bf16.mxu0 0
        %6417 = vmatpush1.bf16.xpose.msra.mxu0 0
        %6418 = vmatprep.subr.bf16.mxu0 0
        %6419 = vmatpush1.bf16.xpose.msra.mxu0 0
        %6420 = vmatprep.subr.bf16.mxu0 0
        %6421 = vmatpush1.bf16.xpose.msra.mxu0 0
        %6422 = vmatprep.subr.bf16.mxu0 0
        %6423 = vmatpush1.bf16.xpose.msra.mxu0 0
        %6424 = vmatprep.subr.bf16.mxu0 0
        %6425 = vmatpush1.bf16.xpose.msra.mxu0 0
        %6426 = vmatprep.subr.bf16.mxu0 0
        %6427 = vmatpush1.bf16.xpose.msra.mxu0 %v6410
        %6428 = vmatprep.subr.bf16.mxu0 0
        %6429 = vmatpush2.bf16.xpose.msra.mxu0 0
        %6430 = vmatprep.subr.bf16.mxu0 0
        %6431 = vmatpush2.bf16.xpose.msra.mxu0 0
        %6432 = vmatprep.subr.bf16.mxu0 0
        %6433 = vmatpush2.bf16.xpose.msra.mxu0 0
        %6434 = vmatprep.subr.bf16.mxu0 0
        %6435 = vmatpush2.bf16.xpose.msra.mxu0 0
        %6436 = vmatprep.subr.bf16.mxu0 0
        %6437 = vmatpush2.bf16.xpose.msra.mxu0 0
        %6438 = vmatprep.subr.bf16.mxu0 0
        %6439 = vmatpush2.bf16.xpose.msra.mxu0 0
        %6440 = vmatprep.subr.bf16.mxu0 0
        %6441 = vmatpush2.bf16.xpose.msra.mxu0 0
        %6442 = vmatprep.subr.bf16.mxu0 0
        %6443 = vmatpush2.bf16.xpose.msra.mxu0 0
        %6444 = vmatprep.mubr.bf16.mxu0 0
        %6445 = vmatmul.mubr.bf16.gmra.mxu0 %v6407
        %v6446 = vpop.f32.mrf.mxu0
        %v6447 = vadd.f32 0.0, %v6446
        %v6448 = vpop.f32.mrf.mxu0
        %v6449 = vpop.f32.mrf.mxu0
        %v6450 = vadd.f32 0.0, %v6449
        %v6451 = vpop.f32.mrf.mxu0
        %6452 = vdwg.mxu0
        %6453 = vrot.lane.b32.xlu0 %v617, 48
        %v6454 = vpop.permute.xlu0 %6453
        %6455 = vrot.lane.b32.xlu0 %v625, 48
        %v6456 = vpop.permute.xlu0 %6455
        %v6458 = vsel %vm629, %v6454, 0
        %v6461 = vsel %vm629, %v6456, 0
        %6463 = vmatprep.subr.bf16.mxu0 0
        %6464 = vmatpush1.bf16.xpose.msra.mxu0 0
        %6465 = vmatprep.subr.bf16.mxu0 0
        %6466 = vmatpush1.bf16.xpose.msra.mxu0 0
        %6467 = vmatprep.subr.bf16.mxu0 0
        %6468 = vmatpush1.bf16.xpose.msra.mxu0 0
        %6469 = vmatprep.subr.bf16.mxu0 0
        %6470 = vmatpush1.bf16.xpose.msra.mxu0 0
        %6471 = vmatprep.subr.bf16.mxu0 0
        %6472 = vmatpush1.bf16.xpose.msra.mxu0 0
        %6473 = vmatprep.subr.bf16.mxu0 0
        %6474 = vmatpush1.bf16.xpose.msra.mxu0 0
        %6475 = vmatprep.subr.bf16.mxu0 0
        %6476 = vmatpush1.bf16.xpose.msra.mxu0 0
        %6477 = vmatprep.subr.bf16.mxu0 0
        %6478 = vmatpush1.bf16.xpose.msra.mxu0 %v6461
        %6479 = vmatprep.subr.bf16.mxu0 0
        %6480 = vmatpush2.bf16.xpose.msra.mxu0 0
        %6481 = vmatprep.subr.bf16.mxu0 0
        %6482 = vmatpush2.bf16.xpose.msra.mxu0 0
        %6483 = vmatprep.subr.bf16.mxu0 0
        %6484 = vmatpush2.bf16.xpose.msra.mxu0 0
        %6485 = vmatprep.subr.bf16.mxu0 0
        %6486 = vmatpush2.bf16.xpose.msra.mxu0 0
        %6487 = vmatprep.subr.bf16.mxu0 0
        %6488 = vmatpush2.bf16.xpose.msra.mxu0 0
        %6489 = vmatprep.subr.bf16.mxu0 0
        %6490 = vmatpush2.bf16.xpose.msra.mxu0 0
        %6491 = vmatprep.subr.bf16.mxu0 0
        %6492 = vmatpush2.bf16.xpose.msra.mxu0 0
        %6493 = vmatprep.subr.bf16.mxu0 0
        %6494 = vmatpush2.bf16.xpose.msra.mxu0 0
        %6495 = vmatprep.mubr.bf16.mxu0 0
        %6496 = vmatmul.mubr.bf16.gmra.mxu0 %v6458
        %v6497 = vpop.f32.mrf.mxu0
        %v6498 = vadd.f32 0.0, %v6497
        %v6499 = vpop.f32.mrf.mxu0
        %v6500 = vpop.f32.mrf.mxu0
        %v6501 = vadd.f32 0.0, %v6500
        %v6502 = vpop.f32.mrf.mxu0
        %6503 = vdwg.mxu0
        %6504 = vrot.lane.b32.xlu0 %v618, 48
        %v6505 = vpop.permute.xlu0 %6504
        %6506 = vrot.lane.b32.xlu0 %v626, 48
        %v6507 = vpop.permute.xlu0 %6506
        %v6509 = vsel %vm629, %v6505, 0
        %v6512 = vsel %vm629, %v6507, 0
        %6514 = vmatprep.subr.bf16.mxu0 0
        %6515 = vmatpush1.bf16.xpose.msra.mxu0 0
        %6516 = vmatprep.subr.bf16.mxu0 0
        %6517 = vmatpush1.bf16.xpose.msra.mxu0 0
        %6518 = vmatprep.subr.bf16.mxu0 0
        %6519 = vmatpush1.bf16.xpose.msra.mxu0 0
        %6520 = vmatprep.subr.bf16.mxu0 0
        %6521 = vmatpush1.bf16.xpose.msra.mxu0 0
        %6522 = vmatprep.subr.bf16.mxu0 0
        %6523 = vmatpush1.bf16.xpose.msra.mxu0 0
        %6524 = vmatprep.subr.bf16.mxu0 0
        %6525 = vmatpush1.bf16.xpose.msra.mxu0 0
        %6526 = vmatprep.subr.bf16.mxu0 0
        %6527 = vmatpush1.bf16.xpose.msra.mxu0 0
        %6528 = vmatprep.subr.bf16.mxu0 0
        %6529 = vmatpush1.bf16.xpose.msra.mxu0 %v6512
        %6530 = vmatprep.subr.bf16.mxu0 0
        %6531 = vmatpush2.bf16.xpose.msra.mxu0 0
        %6532 = vmatprep.subr.bf16.mxu0 0
        %6533 = vmatpush2.bf16.xpose.msra.mxu0 0
        %6534 = vmatprep.subr.bf16.mxu0 0
        %6535 = vmatpush2.bf16.xpose.msra.mxu0 0
        %6536 = vmatprep.subr.bf16.mxu0 0
        %6537 = vmatpush2.bf16.xpose.msra.mxu0 0
        %6538 = vmatprep.subr.bf16.mxu0 0
        %6539 = vmatpush2.bf16.xpose.msra.mxu0 0
        %6540 = vmatprep.subr.bf16.mxu0 0
        %6541 = vmatpush2.bf16.xpose.msra.mxu0 0
        %6542 = vmatprep.subr.bf16.mxu0 0
        %6543 = vmatpush2.bf16.xpose.msra.mxu0 0
        %6544 = vmatprep.subr.bf16.mxu0 0
        %6545 = vmatpush2.bf16.xpose.msra.mxu0 0
        %6546 = vmatprep.mubr.bf16.mxu0 0
        %6547 = vmatmul.mubr.bf16.gmra.mxu0 %v6509
        %v6548 = vpop.f32.mrf.mxu0
        %v6549 = vadd.f32 0.0, %v6548
        %v6550 = vpop.f32.mrf.mxu0
        %v6551 = vpop.f32.mrf.mxu0
        %v6552 = vadd.f32 0.0, %v6551
        %v6553 = vpop.f32.mrf.mxu0
        %6554 = vdwg.mxu0
        %6555 = vrot.lane.b32.xlu0 %v619, 48
        %v6556 = vpop.permute.xlu0 %6555
        %6557 = vrot.lane.b32.xlu0 %v627, 48
        %v6558 = vpop.permute.xlu0 %6557
        %v6560 = vsel %vm629, %v6556, 0
        %v6563 = vsel %vm629, %v6558, 0
        %6565 = vmatprep.subr.bf16.mxu0 0
        %6566 = vmatpush1.bf16.xpose.msra.mxu0 0
        %6567 = vmatprep.subr.bf16.mxu0 0
        %6568 = vmatpush1.bf16.xpose.msra.mxu0 0
        %6569 = vmatprep.subr.bf16.mxu0 0
        %6570 = vmatpush1.bf16.xpose.msra.mxu0 0
        %6571 = vmatprep.subr.bf16.mxu0 0
        %6572 = vmatpush1.bf16.xpose.msra.mxu0 0
        %6573 = vmatprep.subr.bf16.mxu0 0
        %6574 = vmatpush1.bf16.xpose.msra.mxu0 0
        %6575 = vmatprep.subr.bf16.mxu0 0
        %6576 = vmatpush1.bf16.xpose.msra.mxu0 0
        %6577 = vmatprep.subr.bf16.mxu0 0
        %6578 = vmatpush1.bf16.xpose.msra.mxu0 0
        %6579 = vmatprep.subr.bf16.mxu0 0
        %6580 = vmatpush1.bf16.xpose.msra.mxu0 %v6563
        %6581 = vmatprep.subr.bf16.mxu0 0
        %6582 = vmatpush2.bf16.xpose.msra.mxu0 0
        %6583 = vmatprep.subr.bf16.mxu0 0
        %6584 = vmatpush2.bf16.xpose.msra.mxu0 0
        %6585 = vmatprep.subr.bf16.mxu0 0
        %6586 = vmatpush2.bf16.xpose.msra.mxu0 0
        %6587 = vmatprep.subr.bf16.mxu0 0
        %6588 = vmatpush2.bf16.xpose.msra.mxu0 0
        %6589 = vmatprep.subr.bf16.mxu0 0
        %6590 = vmatpush2.bf16.xpose.msra.mxu0 0
        %6591 = vmatprep.subr.bf16.mxu0 0
        %6592 = vmatpush2.bf16.xpose.msra.mxu0 0
        %6593 = vmatprep.subr.bf16.mxu0 0
        %6594 = vmatpush2.bf16.xpose.msra.mxu0 0
        %6595 = vmatprep.subr.bf16.mxu0 0
        %6596 = vmatpush2.bf16.xpose.msra.mxu0 0
        %6597 = vmatprep.mubr.bf16.mxu0 0
        %6598 = vmatmul.mubr.bf16.gmra.mxu0 %v6560
        %v6599 = vpop.f32.mrf.mxu0
        %v6600 = vadd.f32 0.0, %v6599
        %v6601 = vpop.f32.mrf.mxu0
        %v6602 = vpop.f32.mrf.mxu0
        %v6603 = vadd.f32 0.0, %v6602
        %v6604 = vpop.f32.mrf.mxu0
        %6605 = vdwg.mxu0
        %6606 = vrot.lane.b32.xlu0 %v620, 48
        %v6607 = vpop.permute.xlu0 %6606
        %6608 = vrot.lane.b32.xlu0 %v628, 48
        %v6609 = vpop.permute.xlu0 %6608
        %v6611 = vsel %vm629, %v6607, 0
        %v6614 = vsel %vm629, %v6609, 0
        %6616 = vmatprep.subr.bf16.mxu0 0
        %6617 = vmatpush1.bf16.xpose.msra.mxu0 0
        %6618 = vmatprep.subr.bf16.mxu0 0
        %6619 = vmatpush1.bf16.xpose.msra.mxu0 0
        %6620 = vmatprep.subr.bf16.mxu0 0
        %6621 = vmatpush1.bf16.xpose.msra.mxu0 0
        %6622 = vmatprep.subr.bf16.mxu0 0
        %6623 = vmatpush1.bf16.xpose.msra.mxu0 0
        %6624 = vmatprep.subr.bf16.mxu0 0
        %6625 = vmatpush1.bf16.xpose.msra.mxu0 0
        %6626 = vmatprep.subr.bf16.mxu0 0
        %6627 = vmatpush1.bf16.xpose.msra.mxu0 0
        %6628 = vmatprep.subr.bf16.mxu0 0
        %6629 = vmatpush1.bf16.xpose.msra.mxu0 0
        %6630 = vmatprep.subr.bf16.mxu0 0
        %6631 = vmatpush1.bf16.xpose.msra.mxu0 %v6614
        %6632 = vmatprep.subr.bf16.mxu0 0
        %6633 = vmatpush2.bf16.xpose.msra.mxu0 0
        %6634 = vmatprep.subr.bf16.mxu0 0
        %6635 = vmatpush2.bf16.xpose.msra.mxu0 0
        %6636 = vmatprep.subr.bf16.mxu0 0
        %6637 = vmatpush2.bf16.xpose.msra.mxu0 0
        %6638 = vmatprep.subr.bf16.mxu0 0
        %6639 = vmatpush2.bf16.xpose.msra.mxu0 0
        %6640 = vmatprep.subr.bf16.mxu0 0
        %6641 = vmatpush2.bf16.xpose.msra.mxu0 0
        %6642 = vmatprep.subr.bf16.mxu0 0
        %6643 = vmatpush2.bf16.xpose.msra.mxu0 0
        %6644 = vmatprep.subr.bf16.mxu0 0
        %6645 = vmatpush2.bf16.xpose.msra.mxu0 0
        %6646 = vmatprep.subr.bf16.mxu0 0
        %6647 = vmatpush2.bf16.xpose.msra.mxu0 0
        %6648 = vmatprep.mubr.bf16.mxu0 0
        %6649 = vmatmul.mubr.bf16.gmra.mxu0 %v6611
        %v6650 = vpop.f32.mrf.mxu0
        %v6651 = vadd.f32 0.0, %v6650
        %v6652 = vpop.f32.mrf.mxu0
        %v6653 = vpop.f32.mrf.mxu0
        %v6654 = vadd.f32 0.0, %v6653
        %v6655 = vpop.f32.mrf.mxu0
        %6656 = vdwg.mxu0
        %v6657 = vmul.f32 %v6294, 0.25
        %v6658 = vmul.f32 %v6297, 0.25
        %v6659 = vmul.f32 %v6345, 0.25
        %v6660 = vmul.f32 %v6348, 0.25
        %v6661 = vmul.f32 %v6396, 0.25
        %v6662 = vmul.f32 %v6399, 0.25
        %v6663 = vmul.f32 %v6447, 0.25
        %v6664 = vmul.f32 %v6450, 0.25
        %v6665 = vmul.f32 %v6498, 0.25
        %v6666 = vmul.f32 %v6501, 0.25
        %v6667 = vmul.f32 %v6549, 0.25
        %v6668 = vmul.f32 %v6552, 0.25
        %v6669 = vmul.f32 %v6600, 0.25
        %v6670 = vmul.f32 %v6603, 0.25
        %v6671 = vmul.f32 %v6651, 0.25
        %v6672 = vmul.f32 %v6654, 0.25
        %v6673 = vsel %vm629, %v6657, -inf
        %6674 = vmax.xlane.f32.xlu0 %v6673
        %v6675 = vpop.xlane.xlu0 %6674
        %v6676 = vsel %vm629, %v6658, -inf
        %6677 = vmax.xlane.f32.xlu0 %v6676
        %v6678 = vpop.xlane.xlu0 %6677
        %v6679 = vsel %vm629, %v6659, -inf
        %6680 = vmax.xlane.f32.xlu0 %v6679
        %v6681 = vpop.xlane.xlu0 %6680
        %v6682 = vsel %vm629, %v6660, -inf
        %6683 = vmax.xlane.f32.xlu0 %v6682
        %v6684 = vpop.xlane.xlu0 %6683
        %v6685 = vsel %vm629, %v6661, -inf
        %6686 = vmax.xlane.f32.xlu0 %v6685
        %v6687 = vpop.xlane.xlu0 %6686
        %v6688 = vsel %vm629, %v6662, -inf
        %6689 = vmax.xlane.f32.xlu0 %v6688
        %v6690 = vpop.xlane.xlu0 %6689
        %v6691 = vsel %vm629, %v6663, -inf
        %6692 = vmax.xlane.f32.xlu0 %v6691
        %v6693 = vpop.xlane.xlu0 %6692
        %v6694 = vsel %vm629, %v6664, -inf
        %6695 = vmax.xlane.f32.xlu0 %v6694
        %v6696 = vpop.xlane.xlu0 %6695
        %v6697 = vsel %vm629, %v6665, -inf
        %6698 = vmax.xlane.f32.xlu0 %v6697
        %v6699 = vpop.xlane.xlu0 %6698
        %v6700 = vsel %vm629, %v6666, -inf
        %6701 = vmax.xlane.f32.xlu0 %v6700
        %v6702 = vpop.xlane.xlu0 %6701
        %v6703 = vsel %vm629, %v6667, -inf
        %6704 = vmax.xlane.f32.xlu0 %v6703
        %v6705 = vpop.xlane.xlu0 %6704
        %v6706 = vsel %vm629, %v6668, -inf
        %6707 = vmax.xlane.f32.xlu0 %v6706
        %v6708 = vpop.xlane.xlu0 %6707
        %v6709 = vsel %vm629, %v6669, -inf
        %6710 = vmax.xlane.f32.xlu0 %v6709
        %v6711 = vpop.xlane.xlu0 %6710
        %v6712 = vsel %vm629, %v6670, -inf
        %6713 = vmax.xlane.f32.xlu0 %v6712
        %v6714 = vpop.xlane.xlu0 %6713
        %v6715 = vsel %vm629, %v6671, -inf
        %6716 = vmax.xlane.f32.xlu0 %v6715
        %v6717 = vpop.xlane.xlu0 %6716
        %v6718 = vsel %vm629, %v6672, -inf
        %6719 = vmax.xlane.f32.xlu0 %v6718
        %v6720 = vpop.xlane.xlu0 %6719
        %v6721 = vsub.f32 %v6657, %v6675
        %v6722 = vsub.f32 %v6658, %v6678
        %v6723 = vsub.f32 %v6659, %v6681
        %v6724 = vsub.f32 %v6660, %v6684
        %v6725 = vsub.f32 %v6661, %v6687
        %v6726 = vsub.f32 %v6662, %v6690
        %v6727 = vsub.f32 %v6663, %v6693
        %v6728 = vsub.f32 %v6664, %v6696
        %v6729 = vsub.f32 %v6665, %v6699
        %v6730 = vsub.f32 %v6666, %v6702
        %v6731 = vsub.f32 %v6667, %v6705
        %v6732 = vsub.f32 %v6668, %v6708
        %v6733 = vsub.f32 %v6669, %v6711
        %v6734 = vsub.f32 %v6670, %v6714
        %v6735 = vsub.f32 %v6671, %v6717
        %v6736 = vsub.f32 %v6672, %v6720
        %v6737 = vmul.f32 %v6721, 1.442695
        %v6738 = vpow.pop %v6737
        %v6739 = vmul.f32 %v6722, 1.442695
        %v6740 = vpow.pop %v6739
        %v6741 = vmul.f32 %v6723, 1.442695
        %v6742 = vpow.pop %v6741
        %v6743 = vmul.f32 %v6724, 1.442695
        %v6744 = vpow.pop %v6743
        %v6745 = vmul.f32 %v6725, 1.442695
        %v6746 = vpow.pop %v6745
        %v6747 = vmul.f32 %v6726, 1.442695
        %v6748 = vpow.pop %v6747
        %v6749 = vmul.f32 %v6727, 1.442695
        %v6750 = vpow.pop %v6749
        %v6751 = vmul.f32 %v6728, 1.442695
        %v6752 = vpow.pop %v6751
        %v6753 = vmul.f32 %v6729, 1.442695
        %v6754 = vpow.pop %v6753
        %v6755 = vmul.f32 %v6730, 1.442695
        %v6756 = vpow.pop %v6755
        %v6757 = vmul.f32 %v6731, 1.442695
        %v6758 = vpow.pop %v6757
        %v6759 = vmul.f32 %v6732, 1.442695
        %v6760 = vpow.pop %v6759
        %v6761 = vmul.f32 %v6733, 1.442695
        %v6762 = vpow.pop %v6761
        %v6763 = vmul.f32 %v6734, 1.442695
        %v6764 = vpow.pop %v6763
        %v6765 = vmul.f32 %v6735, 1.442695
        %v6766 = vpow.pop %v6765
        %v6767 = vmul.f32 %v6736, 1.442695
        %v6768 = vpow.pop %v6767
        %v6769 = vsel %vm629, %v6738, 0.0
        %6770 = vadd.xlane.f32.xlu0 %v6769
        %v6771 = vpop.xlane.xlu0 %6770
        %v6772 = vsel %vm629, %v6740, 0.0
        %6773 = vadd.xlane.f32.xlu0 %v6772
        %v6774 = vpop.xlane.xlu0 %6773
        %v6775 = vsel %vm629, %v6742, 0.0
        %6776 = vadd.xlane.f32.xlu0 %v6775
        %v6777 = vpop.xlane.xlu0 %6776
        %v6778 = vsel %vm629, %v6744, 0.0
        %6779 = vadd.xlane.f32.xlu0 %v6778
        %v6780 = vpop.xlane.xlu0 %6779
        %v6781 = vsel %vm629, %v6746, 0.0
        %6782 = vadd.xlane.f32.xlu0 %v6781
        %v6783 = vpop.xlane.xlu0 %6782
        %v6784 = vsel %vm629, %v6748, 0.0
        %6785 = vadd.xlane.f32.xlu0 %v6784
        %v6786 = vpop.xlane.xlu0 %6785
        %v6787 = vsel %vm629, %v6750, 0.0
        %6788 = vadd.xlane.f32.xlu0 %v6787
        %v6789 = vpop.xlane.xlu0 %6788
        %v6790 = vsel %vm629, %v6752, 0.0
        %6791 = vadd.xlane.f32.xlu0 %v6790
        %v6792 = vpop.xlane.xlu0 %6791
        %v6793 = vsel %vm629, %v6754, 0.0
        %6794 = vadd.xlane.f32.xlu0 %v6793
        %v6795 = vpop.xlane.xlu0 %6794
        %v6796 = vsel %vm629, %v6756, 0.0
        %6797 = vadd.xlane.f32.xlu0 %v6796
        %v6798 = vpop.xlane.xlu0 %6797
        %v6799 = vsel %vm629, %v6758, 0.0
        %6800 = vadd.xlane.f32.xlu0 %v6799
        %v6801 = vpop.xlane.xlu0 %6800
        %v6802 = vsel %vm629, %v6760, 0.0
        %6803 = vadd.xlane.f32.xlu0 %v6802
        %v6804 = vpop.xlane.xlu0 %6803
        %v6805 = vsel %vm629, %v6762, 0.0
        %6806 = vadd.xlane.f32.xlu0 %v6805
        %v6807 = vpop.xlane.xlu0 %6806
        %v6808 = vsel %vm629, %v6764, 0.0
        %6809 = vadd.xlane.f32.xlu0 %v6808
        %v6810 = vpop.xlane.xlu0 %6809
        %v6811 = vsel %vm629, %v6766, 0.0
        %6812 = vadd.xlane.f32.xlu0 %v6811
        %v6813 = vpop.xlane.xlu0 %6812
        %v6814 = vsel %vm629, %v6768, 0.0
        %6815 = vadd.xlane.f32.xlu0 %v6814
        %v6816 = vpop.xlane.xlu0 %6815
        %v6817 = vrcp.pop %v6771
        %v6818 = vrcp.pop %v6774
        %v6819 = vrcp.pop %v6777
        %v6820 = vrcp.pop %v6780
        %v6821 = vrcp.pop %v6783
        %v6822 = vrcp.pop %v6786
        %v6823 = vrcp.pop %v6789
        %v6824 = vrcp.pop %v6792
        %v6825 = vrcp.pop %v6795
        %v6826 = vrcp.pop %v6798
        %v6827 = vrcp.pop %v6801
        %v6828 = vrcp.pop %v6804
        %v6829 = vrcp.pop %v6807
        %v6830 = vrcp.pop %v6810
        %v6831 = vrcp.pop %v6813
        %v6832 = vrcp.pop %v6816
        %v6833 = vmul.f32 %v6738, %v6817
        %v6834 = vmul.f32 %v6740, %v6818
        %v6835 = vmul.f32 %v6742, %v6819
        %v6836 = vmul.f32 %v6744, %v6820
        %v6837 = vmul.f32 %v6746, %v6821
        %v6838 = vmul.f32 %v6748, %v6822
        %v6839 = vmul.f32 %v6750, %v6823
        %v6840 = vmul.f32 %v6752, %v6824
        %v6841 = vmul.f32 %v6754, %v6825
        %v6842 = vmul.f32 %v6756, %v6826
        %v6843 = vmul.f32 %v6758, %v6827
        %v6844 = vmul.f32 %v6760, %v6828
        %v6845 = vmul.f32 %v6762, %v6829
        %v6846 = vmul.f32 %v6764, %v6830
        %v6847 = vmul.f32 %v6766, %v6831
        %v6848 = vmul.f32 %v6768, %v6832
        %v6849 = vpack.c.bf16 %v6834, %v6833
        %v6850 = vpack.c.bf16 %v6836, %v6835
        %v6851 = vpack.c.bf16 %v6838, %v6837
        %v6852 = vpack.c.bf16 %v6840, %v6839
        %v6853 = vpack.c.bf16 %v6842, %v6841
        %v6854 = vpack.c.bf16 %v6844, %v6843
        %v6855 = vpack.c.bf16 %v6846, %v6845
        %v6856 = vpack.c.bf16 %v6848, %v6847
        %6857 = vrot.lane.b32.xlu0 %v1206, 48
        %v6858 = vpop.permute.xlu0 %6857
        %v6861 = vsel %vm629, %v6849, 0
        %6863 = vmatprep.subr.bf16.mxu0 0
        %6864 = vmatpush1.bf16.msra.mxu0 0
        %6865 = vmatprep.subr.bf16.mxu0 0
        %6866 = vmatpush1.bf16.msra.mxu0 0
        %6867 = vmatprep.subr.bf16.mxu0 0
        %6868 = vmatpush1.bf16.msra.mxu0 0
        %6869 = vmatprep.subr.bf16.mxu0 0
        %6870 = vmatpush1.bf16.msra.mxu0 0
        %6871 = vmatprep.subr.bf16.mxu0 0
        %6872 = vmatpush1.bf16.msra.mxu0 0
        %6873 = vmatprep.subr.bf16.mxu0 0
        %6874 = vmatpush1.bf16.msra.mxu0 0
        %6875 = vmatprep.subr.bf16.mxu0 0
        %6876 = vmatpush1.bf16.msra.mxu0 0
        %6877 = vmatprep.subr.bf16.mxu0 0
        %6878 = vmatpush1.bf16.msra.mxu0 %v6858
        %6879 = vmatprep.subr.bf16.mxu0 0
        %6880 = vmatpush2.bf16.msra.mxu0 0
        %6881 = vmatprep.subr.bf16.mxu0 0
        %6882 = vmatpush2.bf16.msra.mxu0 0
        %6883 = vmatprep.subr.bf16.mxu0 0
        %6884 = vmatpush2.bf16.msra.mxu0 0
        %6885 = vmatprep.subr.bf16.mxu0 0
        %6886 = vmatpush2.bf16.msra.mxu0 0
        %6887 = vmatprep.subr.bf16.mxu0 0
        %6888 = vmatpush2.bf16.msra.mxu0 0
        %6889 = vmatprep.subr.bf16.mxu0 0
        %6890 = vmatpush2.bf16.msra.mxu0 0
        %6891 = vmatprep.subr.bf16.mxu0 0
        %6892 = vmatpush2.bf16.msra.mxu0 0
        %6893 = vmatprep.subr.bf16.mxu0 0
        %6894 = vmatpush2.bf16.msra.mxu0 0
        %6895 = vmatprep.mubr.bf16.mxu0 0
        %6896 = vmatmul.mubr.bf16.gmra.mxu0 %v6861
        %v6897 = vpop.f32.mrf.mxu0
        %v6898 = vadd.f32 0.0, %v6897
        %v6899 = vpop.f32.mrf.mxu0
        %v6900 = vpop.f32.mrf.mxu0
        %v6901 = vadd.f32 0.0, %v6900
        %v6902 = vpop.f32.mrf.mxu0
        %6903 = vdwg.mxu0
        %6904 = vrot.lane.b32.xlu0 %v1207, 48
        %v6905 = vpop.permute.xlu0 %6904
        %v6908 = vsel %vm629, %v6850, 0
        %6910 = vmatprep.subr.bf16.mxu0 0
        %6911 = vmatpush1.bf16.msra.mxu0 0
        %6912 = vmatprep.subr.bf16.mxu0 0
        %6913 = vmatpush1.bf16.msra.mxu0 0
        %6914 = vmatprep.subr.bf16.mxu0 0
        %6915 = vmatpush1.bf16.msra.mxu0 0
        %6916 = vmatprep.subr.bf16.mxu0 0
        %6917 = vmatpush1.bf16.msra.mxu0 0
        %6918 = vmatprep.subr.bf16.mxu0 0
        %6919 = vmatpush1.bf16.msra.mxu0 0
        %6920 = vmatprep.subr.bf16.mxu0 0
        %6921 = vmatpush1.bf16.msra.mxu0 0
        %6922 = vmatprep.subr.bf16.mxu0 0
        %6923 = vmatpush1.bf16.msra.mxu0 0
        %6924 = vmatprep.subr.bf16.mxu0 0
        %6925 = vmatpush1.bf16.msra.mxu0 %v6905
        %6926 = vmatprep.subr.bf16.mxu0 0
        %6927 = vmatpush2.bf16.msra.mxu0 0
        %6928 = vmatprep.subr.bf16.mxu0 0
        %6929 = vmatpush2.bf16.msra.mxu0 0
        %6930 = vmatprep.subr.bf16.mxu0 0
        %6931 = vmatpush2.bf16.msra.mxu0 0
        %6932 = vmatprep.subr.bf16.mxu0 0
        %6933 = vmatpush2.bf16.msra.mxu0 0
        %6934 = vmatprep.subr.bf16.mxu0 0
        %6935 = vmatpush2.bf16.msra.mxu0 0
        %6936 = vmatprep.subr.bf16.mxu0 0
        %6937 = vmatpush2.bf16.msra.mxu0 0
        %6938 = vmatprep.subr.bf16.mxu0 0
        %6939 = vmatpush2.bf16.msra.mxu0 0
        %6940 = vmatprep.subr.bf16.mxu0 0
        %6941 = vmatpush2.bf16.msra.mxu0 0
        %6942 = vmatprep.mubr.bf16.mxu0 0
        %6943 = vmatmul.mubr.bf16.gmra.mxu0 %v6908
        %v6944 = vpop.f32.mrf.mxu0
        %v6945 = vadd.f32 0.0, %v6944
        %v6946 = vpop.f32.mrf.mxu0
        %v6947 = vpop.f32.mrf.mxu0
        %v6948 = vadd.f32 0.0, %v6947
        %v6949 = vpop.f32.mrf.mxu0
        %6950 = vdwg.mxu0
        %6951 = vrot.lane.b32.xlu0 %v1208, 48
        %v6952 = vpop.permute.xlu0 %6951
        %v6955 = vsel %vm629, %v6851, 0
        %6957 = vmatprep.subr.bf16.mxu0 0
        %6958 = vmatpush1.bf16.msra.mxu0 0
        %6959 = vmatprep.subr.bf16.mxu0 0
        %6960 = vmatpush1.bf16.msra.mxu0 0
        %6961 = vmatprep.subr.bf16.mxu0 0
        %6962 = vmatpush1.bf16.msra.mxu0 0
        %6963 = vmatprep.subr.bf16.mxu0 0
        %6964 = vmatpush1.bf16.msra.mxu0 0
        %6965 = vmatprep.subr.bf16.mxu0 0
        %6966 = vmatpush1.bf16.msra.mxu0 0
        %6967 = vmatprep.subr.bf16.mxu0 0
        %6968 = vmatpush1.bf16.msra.mxu0 0
        %6969 = vmatprep.subr.bf16.mxu0 0
        %6970 = vmatpush1.bf16.msra.mxu0 0
        %6971 = vmatprep.subr.bf16.mxu0 0
        %6972 = vmatpush1.bf16.msra.mxu0 %v6952
        %6973 = vmatprep.subr.bf16.mxu0 0
        %6974 = vmatpush2.bf16.msra.mxu0 0
        %6975 = vmatprep.subr.bf16.mxu0 0
        %6976 = vmatpush2.bf16.msra.mxu0 0
        %6977 = vmatprep.subr.bf16.mxu0 0
        %6978 = vmatpush2.bf16.msra.mxu0 0
        %6979 = vmatprep.subr.bf16.mxu0 0
        %6980 = vmatpush2.bf16.msra.mxu0 0
        %6981 = vmatprep.subr.bf16.mxu0 0
        %6982 = vmatpush2.bf16.msra.mxu0 0
        %6983 = vmatprep.subr.bf16.mxu0 0
        %6984 = vmatpush2.bf16.msra.mxu0 0
        %6985 = vmatprep.subr.bf16.mxu0 0
        %6986 = vmatpush2.bf16.msra.mxu0 0
        %6987 = vmatprep.subr.bf16.mxu0 0
        %6988 = vmatpush2.bf16.msra.mxu0 0
        %6989 = vmatprep.mubr.bf16.mxu0 0
        %6990 = vmatmul.mubr.bf16.gmra.mxu0 %v6955
        %v6991 = vpop.f32.mrf.mxu0
        %v6992 = vadd.f32 0.0, %v6991
        %v6993 = vpop.f32.mrf.mxu0
        %v6994 = vpop.f32.mrf.mxu0
        %v6995 = vadd.f32 0.0, %v6994
        %v6996 = vpop.f32.mrf.mxu0
        %6997 = vdwg.mxu0
        %6998 = vrot.lane.b32.xlu0 %v1209, 48
        %v6999 = vpop.permute.xlu0 %6998
        %v7002 = vsel %vm629, %v6852, 0
        %7004 = vmatprep.subr.bf16.mxu0 0
        %7005 = vmatpush1.bf16.msra.mxu0 0
        %7006 = vmatprep.subr.bf16.mxu0 0
        %7007 = vmatpush1.bf16.msra.mxu0 0
        %7008 = vmatprep.subr.bf16.mxu0 0
        %7009 = vmatpush1.bf16.msra.mxu0 0
        %7010 = vmatprep.subr.bf16.mxu0 0
        %7011 = vmatpush1.bf16.msra.mxu0 0
        %7012 = vmatprep.subr.bf16.mxu0 0
        %7013 = vmatpush1.bf16.msra.mxu0 0
        %7014 = vmatprep.subr.bf16.mxu0 0
        %7015 = vmatpush1.bf16.msra.mxu0 0
        %7016 = vmatprep.subr.bf16.mxu0 0
        %7017 = vmatpush1.bf16.msra.mxu0 0
        %7018 = vmatprep.subr.bf16.mxu0 0
        %7019 = vmatpush1.bf16.msra.mxu0 %v6999
        %7020 = vmatprep.subr.bf16.mxu0 0
        %7021 = vmatpush2.bf16.msra.mxu0 0
        %7022 = vmatprep.subr.bf16.mxu0 0
        %7023 = vmatpush2.bf16.msra.mxu0 0
        %7024 = vmatprep.subr.bf16.mxu0 0
        %7025 = vmatpush2.bf16.msra.mxu0 0
        %7026 = vmatprep.subr.bf16.mxu0 0
        %7027 = vmatpush2.bf16.msra.mxu0 0
        %7028 = vmatprep.subr.bf16.mxu0 0
        %7029 = vmatpush2.bf16.msra.mxu0 0
        %7030 = vmatprep.subr.bf16.mxu0 0
        %7031 = vmatpush2.bf16.msra.mxu0 0
        %7032 = vmatprep.subr.bf16.mxu0 0
        %7033 = vmatpush2.bf16.msra.mxu0 0
        %7034 = vmatprep.subr.bf16.mxu0 0
        %7035 = vmatpush2.bf16.msra.mxu0 0
        %7036 = vmatprep.mubr.bf16.mxu0 0
        %7037 = vmatmul.mubr.bf16.gmra.mxu0 %v7002
        %v7038 = vpop.f32.mrf.mxu0
        %v7039 = vadd.f32 0.0, %v7038
        %v7040 = vpop.f32.mrf.mxu0
        %v7041 = vpop.f32.mrf.mxu0
        %v7042 = vadd.f32 0.0, %v7041
        %v7043 = vpop.f32.mrf.mxu0
        %7044 = vdwg.mxu0
        %7045 = vrot.lane.b32.xlu0 %v1210, 48
        %v7046 = vpop.permute.xlu0 %7045
        %v7049 = vsel %vm629, %v6853, 0
        %7051 = vmatprep.subr.bf16.mxu0 0
        %7052 = vmatpush1.bf16.msra.mxu0 0
        %7053 = vmatprep.subr.bf16.mxu0 0
        %7054 = vmatpush1.bf16.msra.mxu0 0
        %7055 = vmatprep.subr.bf16.mxu0 0
        %7056 = vmatpush1.bf16.msra.mxu0 0
        %7057 = vmatprep.subr.bf16.mxu0 0
        %7058 = vmatpush1.bf16.msra.mxu0 0
        %7059 = vmatprep.subr.bf16.mxu0 0
        %7060 = vmatpush1.bf16.msra.mxu0 0
        %7061 = vmatprep.subr.bf16.mxu0 0
        %7062 = vmatpush1.bf16.msra.mxu0 0
        %7063 = vmatprep.subr.bf16.mxu0 0
        %7064 = vmatpush1.bf16.msra.mxu0 0
        %7065 = vmatprep.subr.bf16.mxu0 0
        %7066 = vmatpush1.bf16.msra.mxu0 %v7046
        %7067 = vmatprep.subr.bf16.mxu0 0
        %7068 = vmatpush2.bf16.msra.mxu0 0
        %7069 = vmatprep.subr.bf16.mxu0 0
        %7070 = vmatpush2.bf16.msra.mxu0 0
        %7071 = vmatprep.subr.bf16.mxu0 0
        %7072 = vmatpush2.bf16.msra.mxu0 0
        %7073 = vmatprep.subr.bf16.mxu0 0
        %7074 = vmatpush2.bf16.msra.mxu0 0
        %7075 = vmatprep.subr.bf16.mxu0 0
        %7076 = vmatpush2.bf16.msra.mxu0 0
        %7077 = vmatprep.subr.bf16.mxu0 0
        %7078 = vmatpush2.bf16.msra.mxu0 0
        %7079 = vmatprep.subr.bf16.mxu0 0
        %7080 = vmatpush2.bf16.msra.mxu0 0
        %7081 = vmatprep.subr.bf16.mxu0 0
        %7082 = vmatpush2.bf16.msra.mxu0 0
        %7083 = vmatprep.mubr.bf16.mxu0 0
        %7084 = vmatmul.mubr.bf16.gmra.mxu0 %v7049
        %v7085 = vpop.f32.mrf.mxu0
        %v7086 = vadd.f32 0.0, %v7085
        %v7087 = vpop.f32.mrf.mxu0
        %v7088 = vpop.f32.mrf.mxu0
        %v7089 = vadd.f32 0.0, %v7088
        %v7090 = vpop.f32.mrf.mxu0
        %7091 = vdwg.mxu0
        %7092 = vrot.lane.b32.xlu0 %v1211, 48
        %v7093 = vpop.permute.xlu0 %7092
        %v7096 = vsel %vm629, %v6854, 0
        %7098 = vmatprep.subr.bf16.mxu0 0
        %7099 = vmatpush1.bf16.msra.mxu0 0
        %7100 = vmatprep.subr.bf16.mxu0 0
        %7101 = vmatpush1.bf16.msra.mxu0 0
        %7102 = vmatprep.subr.bf16.mxu0 0
        %7103 = vmatpush1.bf16.msra.mxu0 0
        %7104 = vmatprep.subr.bf16.mxu0 0
        %7105 = vmatpush1.bf16.msra.mxu0 0
        %7106 = vmatprep.subr.bf16.mxu0 0
        %7107 = vmatpush1.bf16.msra.mxu0 0
        %7108 = vmatprep.subr.bf16.mxu0 0
        %7109 = vmatpush1.bf16.msra.mxu0 0
        %7110 = vmatprep.subr.bf16.mxu0 0
        %7111 = vmatpush1.bf16.msra.mxu0 0
        %7112 = vmatprep.subr.bf16.mxu0 0
        %7113 = vmatpush1.bf16.msra.mxu0 %v7093
        %7114 = vmatprep.subr.bf16.mxu0 0
        %7115 = vmatpush2.bf16.msra.mxu0 0
        %7116 = vmatprep.subr.bf16.mxu0 0
        %7117 = vmatpush2.bf16.msra.mxu0 0
        %7118 = vmatprep.subr.bf16.mxu0 0
        %7119 = vmatpush2.bf16.msra.mxu0 0
        %7120 = vmatprep.subr.bf16.mxu0 0
        %7121 = vmatpush2.bf16.msra.mxu0 0
        %7122 = vmatprep.subr.bf16.mxu0 0
        %7123 = vmatpush2.bf16.msra.mxu0 0
        %7124 = vmatprep.subr.bf16.mxu0 0
        %7125 = vmatpush2.bf16.msra.mxu0 0
        %7126 = vmatprep.subr.bf16.mxu0 0
        %7127 = vmatpush2.bf16.msra.mxu0 0
        %7128 = vmatprep.subr.bf16.mxu0 0
        %7129 = vmatpush2.bf16.msra.mxu0 0
        %7130 = vmatprep.mubr.bf16.mxu0 0
        %7131 = vmatmul.mubr.bf16.gmra.mxu0 %v7096
        %v7132 = vpop.f32.mrf.mxu0
        %v7133 = vadd.f32 0.0, %v7132
        %v7134 = vpop.f32.mrf.mxu0
        %v7135 = vpop.f32.mrf.mxu0
        %v7136 = vadd.f32 0.0, %v7135
        %v7137 = vpop.f32.mrf.mxu0
        %7138 = vdwg.mxu0
        %7139 = vrot.lane.b32.xlu0 %v1212, 48
        %v7140 = vpop.permute.xlu0 %7139
        %v7143 = vsel %vm629, %v6855, 0
        %7145 = vmatprep.subr.bf16.mxu0 0
        %7146 = vmatpush1.bf16.msra.mxu0 0
        %7147 = vmatprep.subr.bf16.mxu0 0
        %7148 = vmatpush1.bf16.msra.mxu0 0
        %7149 = vmatprep.subr.bf16.mxu0 0
        %7150 = vmatpush1.bf16.msra.mxu0 0
        %7151 = vmatprep.subr.bf16.mxu0 0
        %7152 = vmatpush1.bf16.msra.mxu0 0
        %7153 = vmatprep.subr.bf16.mxu0 0
        %7154 = vmatpush1.bf16.msra.mxu0 0
        %7155 = vmatprep.subr.bf16.mxu0 0
        %7156 = vmatpush1.bf16.msra.mxu0 0
        %7157 = vmatprep.subr.bf16.mxu0 0
        %7158 = vmatpush1.bf16.msra.mxu0 0
        %7159 = vmatprep.subr.bf16.mxu0 0
        %7160 = vmatpush1.bf16.msra.mxu0 %v7140
        %7161 = vmatprep.subr.bf16.mxu0 0
        %7162 = vmatpush2.bf16.msra.mxu0 0
        %7163 = vmatprep.subr.bf16.mxu0 0
        %7164 = vmatpush2.bf16.msra.mxu0 0
        %7165 = vmatprep.subr.bf16.mxu0 0
        %7166 = vmatpush2.bf16.msra.mxu0 0
        %7167 = vmatprep.subr.bf16.mxu0 0
        %7168 = vmatpush2.bf16.msra.mxu0 0
        %7169 = vmatprep.subr.bf16.mxu0 0
        %7170 = vmatpush2.bf16.msra.mxu0 0
        %7171 = vmatprep.subr.bf16.mxu0 0
        %7172 = vmatpush2.bf16.msra.mxu0 0
        %7173 = vmatprep.subr.bf16.mxu0 0
        %7174 = vmatpush2.bf16.msra.mxu0 0
        %7175 = vmatprep.subr.bf16.mxu0 0
        %7176 = vmatpush2.bf16.msra.mxu0 0
        %7177 = vmatprep.mubr.bf16.mxu0 0
        %7178 = vmatmul.mubr.bf16.gmra.mxu0 %v7143
        %v7179 = vpop.f32.mrf.mxu0
        %v7180 = vadd.f32 0.0, %v7179
        %v7181 = vpop.f32.mrf.mxu0
        %v7182 = vpop.f32.mrf.mxu0
        %v7183 = vadd.f32 0.0, %v7182
        %v7184 = vpop.f32.mrf.mxu0
        %7185 = vdwg.mxu0
        %7186 = vrot.lane.b32.xlu0 %v1213, 48
        %v7187 = vpop.permute.xlu0 %7186
        %v7190 = vsel %vm629, %v6856, 0
        %7192 = vmatprep.subr.bf16.mxu0 0
        %7193 = vmatpush1.bf16.msra.mxu0 0
        %7194 = vmatprep.subr.bf16.mxu0 0
        %7195 = vmatpush1.bf16.msra.mxu0 0
        %7196 = vmatprep.subr.bf16.mxu0 0
        %7197 = vmatpush1.bf16.msra.mxu0 0
        %7198 = vmatprep.subr.bf16.mxu0 0
        %7199 = vmatpush1.bf16.msra.mxu0 0
        %7200 = vmatprep.subr.bf16.mxu0 0
        %7201 = vmatpush1.bf16.msra.mxu0 0
        %7202 = vmatprep.subr.bf16.mxu0 0
        %7203 = vmatpush1.bf16.msra.mxu0 0
        %7204 = vmatprep.subr.bf16.mxu0 0
        %7205 = vmatpush1.bf16.msra.mxu0 0
        %7206 = vmatprep.subr.bf16.mxu0 0
        %7207 = vmatpush1.bf16.msra.mxu0 %v7187
        %7208 = vmatprep.subr.bf16.mxu0 0
        %7209 = vmatpush2.bf16.msra.mxu0 0
        %7210 = vmatprep.subr.bf16.mxu0 0
        %7211 = vmatpush2.bf16.msra.mxu0 0
        %7212 = vmatprep.subr.bf16.mxu0 0
        %7213 = vmatpush2.bf16.msra.mxu0 0
        %7214 = vmatprep.subr.bf16.mxu0 0
        %7215 = vmatpush2.bf16.msra.mxu0 0
        %7216 = vmatprep.subr.bf16.mxu0 0
        %7217 = vmatpush2.bf16.msra.mxu0 0
        %7218 = vmatprep.subr.bf16.mxu0 0
        %7219 = vmatpush2.bf16.msra.mxu0 0
        %7220 = vmatprep.subr.bf16.mxu0 0
        %7221 = vmatpush2.bf16.msra.mxu0 0
        %7222 = vmatprep.subr.bf16.mxu0 0
        %7223 = vmatpush2.bf16.msra.mxu0 0
        %7224 = vmatprep.mubr.bf16.mxu0 0
        %7225 = vmatmul.mubr.bf16.gmra.mxu0 %v7190
        %v7226 = vpop.f32.mrf.mxu0
        %v7227 = vadd.f32 0.0, %v7226
        %v7228 = vpop.f32.mrf.mxu0
        %v7229 = vpop.f32.mrf.mxu0
        %v7230 = vadd.f32 0.0, %v7229
        %v7231 = vpop.f32.mrf.mxu0
        %7232 = vdwg.mxu0
        %v7233 = vpack.c.bf16 %v6901, %v6898
        %v7234 = vpack.c.bf16 %v6948, %v6945
        %v7235 = vpack.c.bf16 %v6995, %v6992
        %v7236 = vpack.c.bf16 %v7042, %v7039
        %v7237 = vpack.c.bf16 %v7089, %v7086
        %v7238 = vpack.c.bf16 %v7136, %v7133
        %v7239 = vpack.c.bf16 %v7183, %v7180
        %v7240 = vpack.c.bf16 %v7230, %v7227
        %v7243 = vunpack.c.l.b16 %v269
        %v7244 = vunpack.c.l.b16 %v270
        %v7245 = vpack.c.b16 %v7244, %v7243
        %v7248 = vsel %vm629, %v7233, 0
        %v7251 = vsel %vm629, %v7234, 0
        %v7254 = vsel %vm629, %v7235, 0
        %v7257 = vsel %vm629, %v7236, 0
        %v7260 = vsel %vm629, %v7237, 0
        %v7263 = vsel %vm629, %v7238, 0
        %v7266 = vsel %vm629, %v7239, 0
        %v7269 = vsel %vm629, %v7240, 0
        %7271 = vmatprep.subr.bf16.mxu0 0
        %7272 = vmatpush1.bf16.msra.mxu0 0
        %7273 = vmatprep.subr.bf16.mxu0 0
        %7274 = vmatpush1.bf16.msra.mxu0 0
        %7275 = vmatprep.subr.bf16.mxu0 0
        %7276 = vmatpush1.bf16.msra.mxu0 0
        %7277 = vmatprep.subr.bf16.mxu0 0
        %7278 = vmatpush1.bf16.msra.mxu0 0
        %7279 = vmatprep.subr.bf16.mxu0 0
        %7280 = vmatpush1.bf16.msra.mxu0 0
        %7281 = vmatprep.subr.bf16.mxu0 0
        %7282 = vmatpush1.bf16.msra.mxu0 0
        %7283 = vmatprep.subr.bf16.mxu0 0
        %7284 = vmatpush1.bf16.msra.mxu0 0
        %7285 = vmatprep.subr.bf16.mxu0 0
        %7286 = vmatpush1.bf16.msra.mxu0 %v7245
        %7287 = vmatprep.subr.bf16.mxu0 0
        %7288 = vmatpush2.bf16.msra.mxu0 0
        %7289 = vmatprep.subr.bf16.mxu0 0
        %7290 = vmatpush2.bf16.msra.mxu0 0
        %7291 = vmatprep.subr.bf16.mxu0 0
        %7292 = vmatpush2.bf16.msra.mxu0 0
        %7293 = vmatprep.subr.bf16.mxu0 0
        %7294 = vmatpush2.bf16.msra.mxu0 0
        %7295 = vmatprep.subr.bf16.mxu0 0
        %7296 = vmatpush2.bf16.msra.mxu0 0
        %7297 = vmatprep.subr.bf16.mxu0 0
        %7298 = vmatpush2.bf16.msra.mxu0 0
        %7299 = vmatprep.subr.bf16.mxu0 0
        %7300 = vmatpush2.bf16.msra.mxu0 0
        %7301 = vmatprep.subr.bf16.mxu0 0
        %7302 = vmatpush2.bf16.msra.mxu0 0
        %7303 = vmatprep.mubr.bf16.mxu0 0
        %7304 = vmatmul.mubr.bf16.gmra.mxu0 %v7248
        %v7305 = vpop.f32.mrf.mxu0
        %v7306 = vadd.f32 0.0, %v7305
        %v7307 = vpop.f32.mrf.mxu0
        %v7308 = vpop.f32.mrf.mxu0
        %v7309 = vadd.f32 0.0, %v7308
        %v7310 = vpop.f32.mrf.mxu0
        %7311 = vmatprep.mubr.bf16.mxu0 0
        %7312 = vmatmul.mubr.bf16.gmra.mxu0 %v7251
        %v7313 = vpop.f32.mrf.mxu0
        %v7314 = vadd.f32 0.0, %v7313
        %v7315 = vpop.f32.mrf.mxu0
        %v7316 = vpop.f32.mrf.mxu0
        %v7317 = vadd.f32 0.0, %v7316
        %v7318 = vpop.f32.mrf.mxu0
        %7319 = vmatprep.mubr.bf16.mxu0 0
        %7320 = vmatmul.mubr.bf16.gmra.mxu0 %v7254
        %v7321 = vpop.f32.mrf.mxu0
        %v7322 = vadd.f32 0.0, %v7321
        %v7323 = vpop.f32.mrf.mxu0
        %v7324 = vpop.f32.mrf.mxu0
        %v7325 = vadd.f32 0.0, %v7324
        %v7326 = vpop.f32.mrf.mxu0
        %7327 = vmatprep.mubr.bf16.mxu0 0
        %7328 = vmatmul.mubr.bf16.gmra.mxu0 %v7257
        %v7329 = vpop.f32.mrf.mxu0
        %v7330 = vadd.f32 0.0, %v7329
        %v7331 = vpop.f32.mrf.mxu0
        %v7332 = vpop.f32.mrf.mxu0
        %v7333 = vadd.f32 0.0, %v7332
        %v7334 = vpop.f32.mrf.mxu0
        %7335 = vmatprep.mubr.bf16.mxu0 0
        %7336 = vmatmul.mubr.bf16.gmra.mxu0 %v7260
        %v7337 = vpop.f32.mrf.mxu0
        %v7338 = vadd.f32 0.0, %v7337
        %v7339 = vpop.f32.mrf.mxu0
        %v7340 = vpop.f32.mrf.mxu0
        %v7341 = vadd.f32 0.0, %v7340
        %v7342 = vpop.f32.mrf.mxu0
        %7343 = vmatprep.mubr.bf16.mxu0 0
        %7344 = vmatmul.mubr.bf16.gmra.mxu0 %v7263
        %v7345 = vpop.f32.mrf.mxu0
        %v7346 = vadd.f32 0.0, %v7345
        %v7347 = vpop.f32.mrf.mxu0
        %v7348 = vpop.f32.mrf.mxu0
        %v7349 = vadd.f32 0.0, %v7348
        %v7350 = vpop.f32.mrf.mxu0
        %7351 = vmatprep.mubr.bf16.mxu0 0
        %7352 = vmatmul.mubr.bf16.gmra.mxu0 %v7266
        %v7353 = vpop.f32.mrf.mxu0
        %v7354 = vadd.f32 0.0, %v7353
        %v7355 = vpop.f32.mrf.mxu0
        %v7356 = vpop.f32.mrf.mxu0
        %v7357 = vadd.f32 0.0, %v7356
        %v7358 = vpop.f32.mrf.mxu0
        %7359 = vmatprep.mubr.bf16.mxu0 0
        %7360 = vmatmul.mubr.bf16.gmra.mxu0 %v7269
        %v7361 = vpop.f32.mrf.mxu0
        %v7362 = vadd.f32 0.0, %v7361
        %v7363 = vpop.f32.mrf.mxu0
        %v7364 = vpop.f32.mrf.mxu0
        %v7365 = vadd.f32 0.0, %v7364
        %v7366 = vpop.f32.mrf.mxu0
        %7367 = vdwg.mxu0
        %v7368 = vadd.f32 %v6233, %v7306
        %v7369 = vadd.f32 %v6234, %v7309
        %v7370 = vadd.f32 %v6235, %v7314
        %v7371 = vadd.f32 %v6236, %v7317
        %v7372 = vadd.f32 %v6237, %v7322
        %v7373 = vadd.f32 %v6238, %v7325
        %v7374 = vadd.f32 %v6239, %v7330
        %v7375 = vadd.f32 %v6240, %v7333
        %v7376 = vadd.f32 %v6241, %v7338
        %v7377 = vadd.f32 %v6242, %v7341
        %v7378 = vadd.f32 %v6243, %v7346
        %v7379 = vadd.f32 %v6244, %v7349
        %v7380 = vadd.f32 %v6245, %v7354
        %v7381 = vadd.f32 %v6246, %v7357
        %v7382 = vadd.f32 %v6247, %v7362
        %v7383 = vadd.f32 %v6248, %v7365
        %7384 = vrot.lane.b32.xlu0 %v613, 32
        %v7385 = vpop.permute.xlu0 %7384
        %7386 = vrot.lane.b32.xlu0 %v621, 32
        %v7387 = vpop.permute.xlu0 %7386
        %v7389 = vsel %vm629, %v7385, 0
        %v7392 = vsel %vm629, %v7387, 0
        %7394 = vmatprep.subr.bf16.mxu0 0
        %7395 = vmatpush1.bf16.xpose.msra.mxu0 0
        %7396 = vmatprep.subr.bf16.mxu0 0
        %7397 = vmatpush1.bf16.xpose.msra.mxu0 0
        %7398 = vmatprep.subr.bf16.mxu0 0
        %7399 = vmatpush1.bf16.xpose.msra.mxu0 0
        %7400 = vmatprep.subr.bf16.mxu0 0
        %7401 = vmatpush1.bf16.xpose.msra.mxu0 0
        %7402 = vmatprep.subr.bf16.mxu0 0
        %7403 = vmatpush1.bf16.xpose.msra.mxu0 0
        %7404 = vmatprep.subr.bf16.mxu0 0
        %7405 = vmatpush1.bf16.xpose.msra.mxu0 0
        %7406 = vmatprep.subr.bf16.mxu0 0
        %7407 = vmatpush1.bf16.xpose.msra.mxu0 0
        %7408 = vmatprep.subr.bf16.mxu0 0
        %7409 = vmatpush1.bf16.xpose.msra.mxu0 %v7392
        %7410 = vmatprep.subr.bf16.mxu0 0
        %7411 = vmatpush2.bf16.xpose.msra.mxu0 0
        %7412 = vmatprep.subr.bf16.mxu0 0
        %7413 = vmatpush2.bf16.xpose.msra.mxu0 0
        %7414 = vmatprep.subr.bf16.mxu0 0
        %7415 = vmatpush2.bf16.xpose.msra.mxu0 0
        %7416 = vmatprep.subr.bf16.mxu0 0
        %7417 = vmatpush2.bf16.xpose.msra.mxu0 0
        %7418 = vmatprep.subr.bf16.mxu0 0
        %7419 = vmatpush2.bf16.xpose.msra.mxu0 0
        %7420 = vmatprep.subr.bf16.mxu0 0
        %7421 = vmatpush2.bf16.xpose.msra.mxu0 0
        %7422 = vmatprep.subr.bf16.mxu0 0
        %7423 = vmatpush2.bf16.xpose.msra.mxu0 0
        %7424 = vmatprep.subr.bf16.mxu0 0
        %7425 = vmatpush2.bf16.xpose.msra.mxu0 0
        %7426 = vmatprep.mubr.bf16.mxu0 0
        %7427 = vmatmul.mubr.bf16.gmra.mxu0 %v7389
        %v7428 = vpop.f32.mrf.mxu0
        %v7429 = vadd.f32 0.0, %v7428
        %v7430 = vpop.f32.mrf.mxu0
        %v7431 = vpop.f32.mrf.mxu0
        %v7432 = vadd.f32 0.0, %v7431
        %v7433 = vpop.f32.mrf.mxu0
        %7434 = vdwg.mxu0
        %7435 = vrot.lane.b32.xlu0 %v614, 32
        %v7436 = vpop.permute.xlu0 %7435
        %7437 = vrot.lane.b32.xlu0 %v622, 32
        %v7438 = vpop.permute.xlu0 %7437
        %v7440 = vsel %vm629, %v7436, 0
        %v7443 = vsel %vm629, %v7438, 0
        %7445 = vmatprep.subr.bf16.mxu0 0
        %7446 = vmatpush1.bf16.xpose.msra.mxu0 0
        %7447 = vmatprep.subr.bf16.mxu0 0
        %7448 = vmatpush1.bf16.xpose.msra.mxu0 0
        %7449 = vmatprep.subr.bf16.mxu0 0
        %7450 = vmatpush1.bf16.xpose.msra.mxu0 0
        %7451 = vmatprep.subr.bf16.mxu0 0
        %7452 = vmatpush1.bf16.xpose.msra.mxu0 0
        %7453 = vmatprep.subr.bf16.mxu0 0
        %7454 = vmatpush1.bf16.xpose.msra.mxu0 0
        %7455 = vmatprep.subr.bf16.mxu0 0
        %7456 = vmatpush1.bf16.xpose.msra.mxu0 0
        %7457 = vmatprep.subr.bf16.mxu0 0
        %7458 = vmatpush1.bf16.xpose.msra.mxu0 0
        %7459 = vmatprep.subr.bf16.mxu0 0
        %7460 = vmatpush1.bf16.xpose.msra.mxu0 %v7443
        %7461 = vmatprep.subr.bf16.mxu0 0
        %7462 = vmatpush2.bf16.xpose.msra.mxu0 0
        %7463 = vmatprep.subr.bf16.mxu0 0
        %7464 = vmatpush2.bf16.xpose.msra.mxu0 0
        %7465 = vmatprep.subr.bf16.mxu0 0
        %7466 = vmatpush2.bf16.xpose.msra.mxu0 0
        %7467 = vmatprep.subr.bf16.mxu0 0
        %7468 = vmatpush2.bf16.xpose.msra.mxu0 0
        %7469 = vmatprep.subr.bf16.mxu0 0
        %7470 = vmatpush2.bf16.xpose.msra.mxu0 0
        %7471 = vmatprep.subr.bf16.mxu0 0
        %7472 = vmatpush2.bf16.xpose.msra.mxu0 0
        %7473 = vmatprep.subr.bf16.mxu0 0
        %7474 = vmatpush2.bf16.xpose.msra.mxu0 0
        %7475 = vmatprep.subr.bf16.mxu0 0
        %7476 = vmatpush2.bf16.xpose.msra.mxu0 0
        %7477 = vmatprep.mubr.bf16.mxu0 0
        %7478 = vmatmul.mubr.bf16.gmra.mxu0 %v7440
        %v7479 = vpop.f32.mrf.mxu0
        %v7480 = vadd.f32 0.0, %v7479
        %v7481 = vpop.f32.mrf.mxu0
        %v7482 = vpop.f32.mrf.mxu0
        %v7483 = vadd.f32 0.0, %v7482
        %v7484 = vpop.f32.mrf.mxu0
        %7485 = vdwg.mxu0
        %7486 = vrot.lane.b32.xlu0 %v615, 32
        %v7487 = vpop.permute.xlu0 %7486
        %7488 = vrot.lane.b32.xlu0 %v623, 32
        %v7489 = vpop.permute.xlu0 %7488
        %v7491 = vsel %vm629, %v7487, 0
        %v7494 = vsel %vm629, %v7489, 0
        %7496 = vmatprep.subr.bf16.mxu0 0
        %7497 = vmatpush1.bf16.xpose.msra.mxu0 0
        %7498 = vmatprep.subr.bf16.mxu0 0
        %7499 = vmatpush1.bf16.xpose.msra.mxu0 0
        %7500 = vmatprep.subr.bf16.mxu0 0
        %7501 = vmatpush1.bf16.xpose.msra.mxu0 0
        %7502 = vmatprep.subr.bf16.mxu0 0
        %7503 = vmatpush1.bf16.xpose.msra.mxu0 0
        %7504 = vmatprep.subr.bf16.mxu0 0
        %7505 = vmatpush1.bf16.xpose.msra.mxu0 0
        %7506 = vmatprep.subr.bf16.mxu0 0
        %7507 = vmatpush1.bf16.xpose.msra.mxu0 0
        %7508 = vmatprep.subr.bf16.mxu0 0
        %7509 = vmatpush1.bf16.xpose.msra.mxu0 0
        %7510 = vmatprep.subr.bf16.mxu0 0
        %7511 = vmatpush1.bf16.xpose.msra.mxu0 %v7494
        %7512 = vmatprep.subr.bf16.mxu0 0
        %7513 = vmatpush2.bf16.xpose.msra.mxu0 0
        %7514 = vmatprep.subr.bf16.mxu0 0
        %7515 = vmatpush2.bf16.xpose.msra.mxu0 0
        %7516 = vmatprep.subr.bf16.mxu0 0
        %7517 = vmatpush2.bf16.xpose.msra.mxu0 0
        %7518 = vmatprep.subr.bf16.mxu0 0
        %7519 = vmatpush2.bf16.xpose.msra.mxu0 0
        %7520 = vmatprep.subr.bf16.mxu0 0
        %7521 = vmatpush2.bf16.xpose.msra.mxu0 0
        %7522 = vmatprep.subr.bf16.mxu0 0
        %7523 = vmatpush2.bf16.xpose.msra.mxu0 0
        %7524 = vmatprep.subr.bf16.mxu0 0
        %7525 = vmatpush2.bf16.xpose.msra.mxu0 0
        %7526 = vmatprep.subr.bf16.mxu0 0
        %7527 = vmatpush2.bf16.xpose.msra.mxu0 0
        %7528 = vmatprep.mubr.bf16.mxu0 0
        %7529 = vmatmul.mubr.bf16.gmra.mxu0 %v7491
        %v7530 = vpop.f32.mrf.mxu0
        %v7531 = vadd.f32 0.0, %v7530
        %v7532 = vpop.f32.mrf.mxu0
        %v7533 = vpop.f32.mrf.mxu0
        %v7534 = vadd.f32 0.0, %v7533
        %v7535 = vpop.f32.mrf.mxu0
        %7536 = vdwg.mxu0
        %7537 = vrot.lane.b32.xlu0 %v616, 32
        %v7538 = vpop.permute.xlu0 %7537
        %7539 = vrot.lane.b32.xlu0 %v624, 32
        %v7540 = vpop.permute.xlu0 %7539
        %v7542 = vsel %vm629, %v7538, 0
        %v7545 = vsel %vm629, %v7540, 0
        %7547 = vmatprep.subr.bf16.mxu0 0
        %7548 = vmatpush1.bf16.xpose.msra.mxu0 0
        %7549 = vmatprep.subr.bf16.mxu0 0
        %7550 = vmatpush1.bf16.xpose.msra.mxu0 0
        %7551 = vmatprep.subr.bf16.mxu0 0
        %7552 = vmatpush1.bf16.xpose.msra.mxu0 0
        %7553 = vmatprep.subr.bf16.mxu0 0
        %7554 = vmatpush1.bf16.xpose.msra.mxu0 0
        %7555 = vmatprep.subr.bf16.mxu0 0
        %7556 = vmatpush1.bf16.xpose.msra.mxu0 0
        %7557 = vmatprep.subr.bf16.mxu0 0
        %7558 = vmatpush1.bf16.xpose.msra.mxu0 0
        %7559 = vmatprep.subr.bf16.mxu0 0
        %7560 = vmatpush1.bf16.xpose.msra.mxu0 0
        %7561 = vmatprep.subr.bf16.mxu0 0
        %7562 = vmatpush1.bf16.xpose.msra.mxu0 %v7545
        %7563 = vmatprep.subr.bf16.mxu0 0
        %7564 = vmatpush2.bf16.xpose.msra.mxu0 0
        %7565 = vmatprep.subr.bf16.mxu0 0
        %7566 = vmatpush2.bf16.xpose.msra.mxu0 0
        %7567 = vmatprep.subr.bf16.mxu0 0
        %7568 = vmatpush2.bf16.xpose.msra.mxu0 0
        %7569 = vmatprep.subr.bf16.mxu0 0
        %7570 = vmatpush2.bf16.xpose.msra.mxu0 0
        %7571 = vmatprep.subr.bf16.mxu0 0
        %7572 = vmatpush2.bf16.xpose.msra.mxu0 0
        %7573 = vmatprep.subr.bf16.mxu0 0
        %7574 = vmatpush2.bf16.xpose.msra.mxu0 0
        %7575 = vmatprep.subr.bf16.mxu0 0
        %7576 = vmatpush2.bf16.xpose.msra.mxu0 0
        %7577 = vmatprep.subr.bf16.mxu0 0
        %7578 = vmatpush2.bf16.xpose.msra.mxu0 0
        %7579 = vmatprep.mubr.bf16.mxu0 0
        %7580 = vmatmul.mubr.bf16.gmra.mxu0 %v7542
        %v7581 = vpop.f32.mrf.mxu0
        %v7582 = vadd.f32 0.0, %v7581
        %v7583 = vpop.f32.mrf.mxu0
        %v7584 = vpop.f32.mrf.mxu0
        %v7585 = vadd.f32 0.0, %v7584
        %v7586 = vpop.f32.mrf.mxu0
        %7587 = vdwg.mxu0
        %7588 = vrot.lane.b32.xlu0 %v617, 32
        %v7589 = vpop.permute.xlu0 %7588
        %7590 = vrot.lane.b32.xlu0 %v625, 32
        %v7591 = vpop.permute.xlu0 %7590
        %v7593 = vsel %vm629, %v7589, 0
        %v7596 = vsel %vm629, %v7591, 0
        %7598 = vmatprep.subr.bf16.mxu0 0
        %7599 = vmatpush1.bf16.xpose.msra.mxu0 0
        %7600 = vmatprep.subr.bf16.mxu0 0
        %7601 = vmatpush1.bf16.xpose.msra.mxu0 0
        %7602 = vmatprep.subr.bf16.mxu0 0
        %7603 = vmatpush1.bf16.xpose.msra.mxu0 0
        %7604 = vmatprep.subr.bf16.mxu0 0
        %7605 = vmatpush1.bf16.xpose.msra.mxu0 0
        %7606 = vmatprep.subr.bf16.mxu0 0
        %7607 = vmatpush1.bf16.xpose.msra.mxu0 0
        %7608 = vmatprep.subr.bf16.mxu0 0
        %7609 = vmatpush1.bf16.xpose.msra.mxu0 0
        %7610 = vmatprep.subr.bf16.mxu0 0
        %7611 = vmatpush1.bf16.xpose.msra.mxu0 0
        %7612 = vmatprep.subr.bf16.mxu0 0
        %7613 = vmatpush1.bf16.xpose.msra.mxu0 %v7596
        %7614 = vmatprep.subr.bf16.mxu0 0
        %7615 = vmatpush2.bf16.xpose.msra.mxu0 0
        %7616 = vmatprep.subr.bf16.mxu0 0
        %7617 = vmatpush2.bf16.xpose.msra.mxu0 0
        %7618 = vmatprep.subr.bf16.mxu0 0
        %7619 = vmatpush2.bf16.xpose.msra.mxu0 0
        %7620 = vmatprep.subr.bf16.mxu0 0
        %7621 = vmatpush2.bf16.xpose.msra.mxu0 0
        %7622 = vmatprep.subr.bf16.mxu0 0
        %7623 = vmatpush2.bf16.xpose.msra.mxu0 0
        %7624 = vmatprep.subr.bf16.mxu0 0
        %7625 = vmatpush2.bf16.xpose.msra.mxu0 0
        %7626 = vmatprep.subr.bf16.mxu0 0
        %7627 = vmatpush2.bf16.xpose.msra.mxu0 0
        %7628 = vmatprep.subr.bf16.mxu0 0
        %7629 = vmatpush2.bf16.xpose.msra.mxu0 0
        %7630 = vmatprep.mubr.bf16.mxu0 0
        %7631 = vmatmul.mubr.bf16.gmra.mxu0 %v7593
        %v7632 = vpop.f32.mrf.mxu0
        %v7633 = vadd.f32 0.0, %v7632
        %v7634 = vpop.f32.mrf.mxu0
        %v7635 = vpop.f32.mrf.mxu0
        %v7636 = vadd.f32 0.0, %v7635
        %v7637 = vpop.f32.mrf.mxu0
        %7638 = vdwg.mxu0
        %7639 = vrot.lane.b32.xlu0 %v618, 32
        %v7640 = vpop.permute.xlu0 %7639
        %7641 = vrot.lane.b32.xlu0 %v626, 32
        %v7642 = vpop.permute.xlu0 %7641
        %v7644 = vsel %vm629, %v7640, 0
        %v7647 = vsel %vm629, %v7642, 0
        %7649 = vmatprep.subr.bf16.mxu0 0
        %7650 = vmatpush1.bf16.xpose.msra.mxu0 0
        %7651 = vmatprep.subr.bf16.mxu0 0
        %7652 = vmatpush1.bf16.xpose.msra.mxu0 0
        %7653 = vmatprep.subr.bf16.mxu0 0
        %7654 = vmatpush1.bf16.xpose.msra.mxu0 0
        %7655 = vmatprep.subr.bf16.mxu0 0
        %7656 = vmatpush1.bf16.xpose.msra.mxu0 0
        %7657 = vmatprep.subr.bf16.mxu0 0
        %7658 = vmatpush1.bf16.xpose.msra.mxu0 0
        %7659 = vmatprep.subr.bf16.mxu0 0
        %7660 = vmatpush1.bf16.xpose.msra.mxu0 0
        %7661 = vmatprep.subr.bf16.mxu0 0
        %7662 = vmatpush1.bf16.xpose.msra.mxu0 0
        %7663 = vmatprep.subr.bf16.mxu0 0
        %7664 = vmatpush1.bf16.xpose.msra.mxu0 %v7647
        %7665 = vmatprep.subr.bf16.mxu0 0
        %7666 = vmatpush2.bf16.xpose.msra.mxu0 0
        %7667 = vmatprep.subr.bf16.mxu0 0
        %7668 = vmatpush2.bf16.xpose.msra.mxu0 0
        %7669 = vmatprep.subr.bf16.mxu0 0
        %7670 = vmatpush2.bf16.xpose.msra.mxu0 0
        %7671 = vmatprep.subr.bf16.mxu0 0
        %7672 = vmatpush2.bf16.xpose.msra.mxu0 0
        %7673 = vmatprep.subr.bf16.mxu0 0
        %7674 = vmatpush2.bf16.xpose.msra.mxu0 0
        %7675 = vmatprep.subr.bf16.mxu0 0
        %7676 = vmatpush2.bf16.xpose.msra.mxu0 0
        %7677 = vmatprep.subr.bf16.mxu0 0
        %7678 = vmatpush2.bf16.xpose.msra.mxu0 0
        %7679 = vmatprep.subr.bf16.mxu0 0
        %7680 = vmatpush2.bf16.xpose.msra.mxu0 0
        %7681 = vmatprep.mubr.bf16.mxu0 0
        %7682 = vmatmul.mubr.bf16.gmra.mxu0 %v7644
        %v7683 = vpop.f32.mrf.mxu0
        %v7684 = vadd.f32 0.0, %v7683
        %v7685 = vpop.f32.mrf.mxu0
        %v7686 = vpop.f32.mrf.mxu0
        %v7687 = vadd.f32 0.0, %v7686
        %v7688 = vpop.f32.mrf.mxu0
        %7689 = vdwg.mxu0
        %7690 = vrot.lane.b32.xlu0 %v619, 32
        %v7691 = vpop.permute.xlu0 %7690
        %7692 = vrot.lane.b32.xlu0 %v627, 32
        %v7693 = vpop.permute.xlu0 %7692
        %v7695 = vsel %vm629, %v7691, 0
        %v7698 = vsel %vm629, %v7693, 0
        %7700 = vmatprep.subr.bf16.mxu0 0
        %7701 = vmatpush1.bf16.xpose.msra.mxu0 0
        %7702 = vmatprep.subr.bf16.mxu0 0
        %7703 = vmatpush1.bf16.xpose.msra.mxu0 0
        %7704 = vmatprep.subr.bf16.mxu0 0
        %7705 = vmatpush1.bf16.xpose.msra.mxu0 0
        %7706 = vmatprep.subr.bf16.mxu0 0
        %7707 = vmatpush1.bf16.xpose.msra.mxu0 0
        %7708 = vmatprep.subr.bf16.mxu0 0
        %7709 = vmatpush1.bf16.xpose.msra.mxu0 0
        %7710 = vmatprep.subr.bf16.mxu0 0
        %7711 = vmatpush1.bf16.xpose.msra.mxu0 0
        %7712 = vmatprep.subr.bf16.mxu0 0
        %7713 = vmatpush1.bf16.xpose.msra.mxu0 0
        %7714 = vmatprep.subr.bf16.mxu0 0
        %7715 = vmatpush1.bf16.xpose.msra.mxu0 %v7698
        %7716 = vmatprep.subr.bf16.mxu0 0
        %7717 = vmatpush2.bf16.xpose.msra.mxu0 0
        %7718 = vmatprep.subr.bf16.mxu0 0
        %7719 = vmatpush2.bf16.xpose.msra.mxu0 0
        %7720 = vmatprep.subr.bf16.mxu0 0
        %7721 = vmatpush2.bf16.xpose.msra.mxu0 0
        %7722 = vmatprep.subr.bf16.mxu0 0
        %7723 = vmatpush2.bf16.xpose.msra.mxu0 0
        %7724 = vmatprep.subr.bf16.mxu0 0
        %7725 = vmatpush2.bf16.xpose.msra.mxu0 0
        %7726 = vmatprep.subr.bf16.mxu0 0
        %7727 = vmatpush2.bf16.xpose.msra.mxu0 0
        %7728 = vmatprep.subr.bf16.mxu0 0
        %7729 = vmatpush2.bf16.xpose.msra.mxu0 0
        %7730 = vmatprep.subr.bf16.mxu0 0
        %7731 = vmatpush2.bf16.xpose.msra.mxu0 0
        %7732 = vmatprep.mubr.bf16.mxu0 0
        %7733 = vmatmul.mubr.bf16.gmra.mxu0 %v7695
        %v7734 = vpop.f32.mrf.mxu0
        %v7735 = vadd.f32 0.0, %v7734
        %v7736 = vpop.f32.mrf.mxu0
        %v7737 = vpop.f32.mrf.mxu0
        %v7738 = vadd.f32 0.0, %v7737
        %v7739 = vpop.f32.mrf.mxu0
        %7740 = vdwg.mxu0
        %7741 = vrot.lane.b32.xlu0 %v620, 32
        %v7742 = vpop.permute.xlu0 %7741
        %7743 = vrot.lane.b32.xlu0 %v628, 32
        %v7744 = vpop.permute.xlu0 %7743
        %v7746 = vsel %vm629, %v7742, 0
        %v7749 = vsel %vm629, %v7744, 0
        %7751 = vmatprep.subr.bf16.mxu0 0
        %7752 = vmatpush1.bf16.xpose.msra.mxu0 0
        %7753 = vmatprep.subr.bf16.mxu0 0
        %7754 = vmatpush1.bf16.xpose.msra.mxu0 0
        %7755 = vmatprep.subr.bf16.mxu0 0
        %7756 = vmatpush1.bf16.xpose.msra.mxu0 0
        %7757 = vmatprep.subr.bf16.mxu0 0
        %7758 = vmatpush1.bf16.xpose.msra.mxu0 0
        %7759 = vmatprep.subr.bf16.mxu0 0
        %7760 = vmatpush1.bf16.xpose.msra.mxu0 0
        %7761 = vmatprep.subr.bf16.mxu0 0
        %7762 = vmatpush1.bf16.xpose.msra.mxu0 0
        %7763 = vmatprep.subr.bf16.mxu0 0
        %7764 = vmatpush1.bf16.xpose.msra.mxu0 0
        %7765 = vmatprep.subr.bf16.mxu0 0
        %7766 = vmatpush1.bf16.xpose.msra.mxu0 %v7749
        %7767 = vmatprep.subr.bf16.mxu0 0
        %7768 = vmatpush2.bf16.xpose.msra.mxu0 0
        %7769 = vmatprep.subr.bf16.mxu0 0
        %7770 = vmatpush2.bf16.xpose.msra.mxu0 0
        %7771 = vmatprep.subr.bf16.mxu0 0
        %7772 = vmatpush2.bf16.xpose.msra.mxu0 0
        %7773 = vmatprep.subr.bf16.mxu0 0
        %7774 = vmatpush2.bf16.xpose.msra.mxu0 0
        %7775 = vmatprep.subr.bf16.mxu0 0
        %7776 = vmatpush2.bf16.xpose.msra.mxu0 0
        %7777 = vmatprep.subr.bf16.mxu0 0
        %7778 = vmatpush2.bf16.xpose.msra.mxu0 0
        %7779 = vmatprep.subr.bf16.mxu0 0
        %7780 = vmatpush2.bf16.xpose.msra.mxu0 0
        %7781 = vmatprep.subr.bf16.mxu0 0
        %7782 = vmatpush2.bf16.xpose.msra.mxu0 0
        %7783 = vmatprep.mubr.bf16.mxu0 0
        %7784 = vmatmul.mubr.bf16.gmra.mxu0 %v7746
        %v7785 = vpop.f32.mrf.mxu0
        %v7786 = vadd.f32 0.0, %v7785
        %v7787 = vpop.f32.mrf.mxu0
        %v7788 = vpop.f32.mrf.mxu0
        %v7789 = vadd.f32 0.0, %v7788
        %v7790 = vpop.f32.mrf.mxu0
        %7791 = vdwg.mxu0
        %v7792 = vmul.f32 %v7429, 0.25
        %v7793 = vmul.f32 %v7432, 0.25
        %v7794 = vmul.f32 %v7480, 0.25
        %v7795 = vmul.f32 %v7483, 0.25
        %v7796 = vmul.f32 %v7531, 0.25
        %v7797 = vmul.f32 %v7534, 0.25
        %v7798 = vmul.f32 %v7582, 0.25
        %v7799 = vmul.f32 %v7585, 0.25
        %v7800 = vmul.f32 %v7633, 0.25
        %v7801 = vmul.f32 %v7636, 0.25
        %v7802 = vmul.f32 %v7684, 0.25
        %v7803 = vmul.f32 %v7687, 0.25
        %v7804 = vmul.f32 %v7735, 0.25
        %v7805 = vmul.f32 %v7738, 0.25
        %v7806 = vmul.f32 %v7786, 0.25
        %v7807 = vmul.f32 %v7789, 0.25
        %v7808 = vsel %vm629, %v7792, -inf
        %7809 = vmax.xlane.f32.xlu0 %v7808
        %v7810 = vpop.xlane.xlu0 %7809
        %v7811 = vsel %vm629, %v7793, -inf
        %7812 = vmax.xlane.f32.xlu0 %v7811
        %v7813 = vpop.xlane.xlu0 %7812
        %v7814 = vsel %vm629, %v7794, -inf
        %7815 = vmax.xlane.f32.xlu0 %v7814
        %v7816 = vpop.xlane.xlu0 %7815
        %v7817 = vsel %vm629, %v7795, -inf
        %7818 = vmax.xlane.f32.xlu0 %v7817
        %v7819 = vpop.xlane.xlu0 %7818
        %v7820 = vsel %vm629, %v7796, -inf
        %7821 = vmax.xlane.f32.xlu0 %v7820
        %v7822 = vpop.xlane.xlu0 %7821
        %v7823 = vsel %vm629, %v7797, -inf
        %7824 = vmax.xlane.f32.xlu0 %v7823
        %v7825 = vpop.xlane.xlu0 %7824
        %v7826 = vsel %vm629, %v7798, -inf
        %7827 = vmax.xlane.f32.xlu0 %v7826
        %v7828 = vpop.xlane.xlu0 %7827
        %v7829 = vsel %vm629, %v7799, -inf
        %7830 = vmax.xlane.f32.xlu0 %v7829
        %v7831 = vpop.xlane.xlu0 %7830
        %v7832 = vsel %vm629, %v7800, -inf
        %7833 = vmax.xlane.f32.xlu0 %v7832
        %v7834 = vpop.xlane.xlu0 %7833
        %v7835 = vsel %vm629, %v7801, -inf
        %7836 = vmax.xlane.f32.xlu0 %v7835
        %v7837 = vpop.xlane.xlu0 %7836
        %v7838 = vsel %vm629, %v7802, -inf
        %7839 = vmax.xlane.f32.xlu0 %v7838
        %v7840 = vpop.xlane.xlu0 %7839
        %v7841 = vsel %vm629, %v7803, -inf
        %7842 = vmax.xlane.f32.xlu0 %v7841
        %v7843 = vpop.xlane.xlu0 %7842
        %v7844 = vsel %vm629, %v7804, -inf
        %7845 = vmax.xlane.f32.xlu0 %v7844
        %v7846 = vpop.xlane.xlu0 %7845
        %v7847 = vsel %vm629, %v7805, -inf
        %7848 = vmax.xlane.f32.xlu0 %v7847
        %v7849 = vpop.xlane.xlu0 %7848
        %v7850 = vsel %vm629, %v7806, -inf
        %7851 = vmax.xlane.f32.xlu0 %v7850
        %v7852 = vpop.xlane.xlu0 %7851
        %v7853 = vsel %vm629, %v7807, -inf
        %7854 = vmax.xlane.f32.xlu0 %v7853
        %v7855 = vpop.xlane.xlu0 %7854
        %v7856 = vsub.f32 %v7792, %v7810
        %v7857 = vsub.f32 %v7793, %v7813
        %v7858 = vsub.f32 %v7794, %v7816
        %v7859 = vsub.f32 %v7795, %v7819
        %v7860 = vsub.f32 %v7796, %v7822
        %v7861 = vsub.f32 %v7797, %v7825
        %v7862 = vsub.f32 %v7798, %v7828
        %v7863 = vsub.f32 %v7799, %v7831
        %v7864 = vsub.f32 %v7800, %v7834
        %v7865 = vsub.f32 %v7801, %v7837
        %v7866 = vsub.f32 %v7802, %v7840
        %v7867 = vsub.f32 %v7803, %v7843
        %v7868 = vsub.f32 %v7804, %v7846
        %v7869 = vsub.f32 %v7805, %v7849
        %v7870 = vsub.f32 %v7806, %v7852
        %v7871 = vsub.f32 %v7807, %v7855
        %v7872 = vmul.f32 %v7856, 1.442695
        %v7873 = vpow.pop %v7872
        %v7874 = vmul.f32 %v7857, 1.442695
        %v7875 = vpow.pop %v7874
        %v7876 = vmul.f32 %v7858, 1.442695
        %v7877 = vpow.pop %v7876
        %v7878 = vmul.f32 %v7859, 1.442695
        %v7879 = vpow.pop %v7878
        %v7880 = vmul.f32 %v7860, 1.442695
        %v7881 = vpow.pop %v7880
        %v7882 = vmul.f32 %v7861, 1.442695
        %v7883 = vpow.pop %v7882
        %v7884 = vmul.f32 %v7862, 1.442695
        %v7885 = vpow.pop %v7884
        %v7886 = vmul.f32 %v7863, 1.442695
        %v7887 = vpow.pop %v7886
        %v7888 = vmul.f32 %v7864, 1.442695
        %v7889 = vpow.pop %v7888
        %v7890 = vmul.f32 %v7865, 1.442695
        %v7891 = vpow.pop %v7890
        %v7892 = vmul.f32 %v7866, 1.442695
        %v7893 = vpow.pop %v7892
        %v7894 = vmul.f32 %v7867, 1.442695
        %v7895 = vpow.pop %v7894
        %v7896 = vmul.f32 %v7868, 1.442695
        %v7897 = vpow.pop %v7896
        %v7898 = vmul.f32 %v7869, 1.442695
        %v7899 = vpow.pop %v7898
        %v7900 = vmul.f32 %v7870, 1.442695
        %v7901 = vpow.pop %v7900
        %v7902 = vmul.f32 %v7871, 1.442695
        %v7903 = vpow.pop %v7902
        %v7904 = vsel %vm629, %v7873, 0.0
        %7905 = vadd.xlane.f32.xlu0 %v7904
        %v7906 = vpop.xlane.xlu0 %7905
        %v7907 = vsel %vm629, %v7875, 0.0
        %7908 = vadd.xlane.f32.xlu0 %v7907
        %v7909 = vpop.xlane.xlu0 %7908
        %v7910 = vsel %vm629, %v7877, 0.0
        %7911 = vadd.xlane.f32.xlu0 %v7910
        %v7912 = vpop.xlane.xlu0 %7911
        %v7913 = vsel %vm629, %v7879, 0.0
        %7914 = vadd.xlane.f32.xlu0 %v7913
        %v7915 = vpop.xlane.xlu0 %7914
        %v7916 = vsel %vm629, %v7881, 0.0
        %7917 = vadd.xlane.f32.xlu0 %v7916
        %v7918 = vpop.xlane.xlu0 %7917
        %v7919 = vsel %vm629, %v7883, 0.0
        %7920 = vadd.xlane.f32.xlu0 %v7919
        %v7921 = vpop.xlane.xlu0 %7920
        %v7922 = vsel %vm629, %v7885, 0.0
        %7923 = vadd.xlane.f32.xlu0 %v7922
        %v7924 = vpop.xlane.xlu0 %7923
        %v7925 = vsel %vm629, %v7887, 0.0
        %7926 = vadd.xlane.f32.xlu0 %v7925
        %v7927 = vpop.xlane.xlu0 %7926
        %v7928 = vsel %vm629, %v7889, 0.0
        %7929 = vadd.xlane.f32.xlu0 %v7928
        %v7930 = vpop.xlane.xlu0 %7929
        %v7931 = vsel %vm629, %v7891, 0.0
        %7932 = vadd.xlane.f32.xlu0 %v7931
        %v7933 = vpop.xlane.xlu0 %7932
        %v7934 = vsel %vm629, %v7893, 0.0
        %7935 = vadd.xlane.f32.xlu0 %v7934
        %v7936 = vpop.xlane.xlu0 %7935
        %v7937 = vsel %vm629, %v7895, 0.0
        %7938 = vadd.xlane.f32.xlu0 %v7937
        %v7939 = vpop.xlane.xlu0 %7938
        %v7940 = vsel %vm629, %v7897, 0.0
        %7941 = vadd.xlane.f32.xlu0 %v7940
        %v7942 = vpop.xlane.xlu0 %7941
        %v7943 = vsel %vm629, %v7899, 0.0
        %7944 = vadd.xlane.f32.xlu0 %v7943
        %v7945 = vpop.xlane.xlu0 %7944
        %v7946 = vsel %vm629, %v7901, 0.0
        %7947 = vadd.xlane.f32.xlu0 %v7946
        %v7948 = vpop.xlane.xlu0 %7947
        %v7949 = vsel %vm629, %v7903, 0.0
        %7950 = vadd.xlane.f32.xlu0 %v7949
        %v7951 = vpop.xlane.xlu0 %7950
        %v7952 = vrcp.pop %v7906
        %v7953 = vrcp.pop %v7909
        %v7954 = vrcp.pop %v7912
        %v7955 = vrcp.pop %v7915
        %v7956 = vrcp.pop %v7918
        %v7957 = vrcp.pop %v7921
        %v7958 = vrcp.pop %v7924
        %v7959 = vrcp.pop %v7927
        %v7960 = vrcp.pop %v7930
        %v7961 = vrcp.pop %v7933
        %v7962 = vrcp.pop %v7936
        %v7963 = vrcp.pop %v7939
        %v7964 = vrcp.pop %v7942
        %v7965 = vrcp.pop %v7945
        %v7966 = vrcp.pop %v7948
        %v7967 = vrcp.pop %v7951
        %v7968 = vmul.f32 %v7873, %v7952
        %v7969 = vmul.f32 %v7875, %v7953
        %v7970 = vmul.f32 %v7877, %v7954
        %v7971 = vmul.f32 %v7879, %v7955
        %v7972 = vmul.f32 %v7881, %v7956
        %v7973 = vmul.f32 %v7883, %v7957
        %v7974 = vmul.f32 %v7885, %v7958
        %v7975 = vmul.f32 %v7887, %v7959
        %v7976 = vmul.f32 %v7889, %v7960
        %v7977 = vmul.f32 %v7891, %v7961
        %v7978 = vmul.f32 %v7893, %v7962
        %v7979 = vmul.f32 %v7895, %v7963
        %v7980 = vmul.f32 %v7897, %v7964
        %v7981 = vmul.f32 %v7899, %v7965
        %v7982 = vmul.f32 %v7901, %v7966
        %v7983 = vmul.f32 %v7903, %v7967
        %v7984 = vpack.c.bf16 %v7969, %v7968
        %v7985 = vpack.c.bf16 %v7971, %v7970
        %v7986 = vpack.c.bf16 %v7973, %v7972
        %v7987 = vpack.c.bf16 %v7975, %v7974
        %v7988 = vpack.c.bf16 %v7977, %v7976
        %v7989 = vpack.c.bf16 %v7979, %v7978
        %v7990 = vpack.c.bf16 %v7981, %v7980
        %v7991 = vpack.c.bf16 %v7983, %v7982
        %7992 = vrot.lane.b32.xlu0 %v1206, 32
        %v7993 = vpop.permute.xlu0 %7992
        %v7996 = vsel %vm629, %v7984, 0
        %7998 = vmatprep.subr.bf16.mxu0 0
        %7999 = vmatpush1.bf16.msra.mxu0 0
        %8000 = vmatprep.subr.bf16.mxu0 0
        %8001 = vmatpush1.bf16.msra.mxu0 0
        %8002 = vmatprep.subr.bf16.mxu0 0
        %8003 = vmatpush1.bf16.msra.mxu0 0
        %8004 = vmatprep.subr.bf16.mxu0 0
        %8005 = vmatpush1.bf16.msra.mxu0 0
        %8006 = vmatprep.subr.bf16.mxu0 0
        %8007 = vmatpush1.bf16.msra.mxu0 0
        %8008 = vmatprep.subr.bf16.mxu0 0
        %8009 = vmatpush1.bf16.msra.mxu0 0
        %8010 = vmatprep.subr.bf16.mxu0 0
        %8011 = vmatpush1.bf16.msra.mxu0 0
        %8012 = vmatprep.subr.bf16.mxu0 0
        %8013 = vmatpush1.bf16.msra.mxu0 %v7993
        %8014 = vmatprep.subr.bf16.mxu0 0
        %8015 = vmatpush2.bf16.msra.mxu0 0
        %8016 = vmatprep.subr.bf16.mxu0 0
        %8017 = vmatpush2.bf16.msra.mxu0 0
        %8018 = vmatprep.subr.bf16.mxu0 0
        %8019 = vmatpush2.bf16.msra.mxu0 0
        %8020 = vmatprep.subr.bf16.mxu0 0
        %8021 = vmatpush2.bf16.msra.mxu0 0
        %8022 = vmatprep.subr.bf16.mxu0 0
        %8023 = vmatpush2.bf16.msra.mxu0 0
        %8024 = vmatprep.subr.bf16.mxu0 0
        %8025 = vmatpush2.bf16.msra.mxu0 0
        %8026 = vmatprep.subr.bf16.mxu0 0
        %8027 = vmatpush2.bf16.msra.mxu0 0
        %8028 = vmatprep.subr.bf16.mxu0 0
        %8029 = vmatpush2.bf16.msra.mxu0 0
        %8030 = vmatprep.mubr.bf16.mxu0 0
        %8031 = vmatmul.mubr.bf16.gmra.mxu0 %v7996
        %v8032 = vpop.f32.mrf.mxu0
        %v8033 = vadd.f32 0.0, %v8032
        %v8034 = vpop.f32.mrf.mxu0
        %v8035 = vpop.f32.mrf.mxu0
        %v8036 = vadd.f32 0.0, %v8035
        %v8037 = vpop.f32.mrf.mxu0
        %8038 = vdwg.mxu0
        %8039 = vrot.lane.b32.xlu0 %v1207, 32
        %v8040 = vpop.permute.xlu0 %8039
        %v8043 = vsel %vm629, %v7985, 0
        %8045 = vmatprep.subr.bf16.mxu0 0
        %8046 = vmatpush1.bf16.msra.mxu0 0
        %8047 = vmatprep.subr.bf16.mxu0 0
        %8048 = vmatpush1.bf16.msra.mxu0 0
        %8049 = vmatprep.subr.bf16.mxu0 0
        %8050 = vmatpush1.bf16.msra.mxu0 0
        %8051 = vmatprep.subr.bf16.mxu0 0
        %8052 = vmatpush1.bf16.msra.mxu0 0
        %8053 = vmatprep.subr.bf16.mxu0 0
        %8054 = vmatpush1.bf16.msra.mxu0 0
        %8055 = vmatprep.subr.bf16.mxu0 0
        %8056 = vmatpush1.bf16.msra.mxu0 0
        %8057 = vmatprep.subr.bf16.mxu0 0
        %8058 = vmatpush1.bf16.msra.mxu0 0
        %8059 = vmatprep.subr.bf16.mxu0 0
        %8060 = vmatpush1.bf16.msra.mxu0 %v8040
        %8061 = vmatprep.subr.bf16.mxu0 0
        %8062 = vmatpush2.bf16.msra.mxu0 0
        %8063 = vmatprep.subr.bf16.mxu0 0
        %8064 = vmatpush2.bf16.msra.mxu0 0
        %8065 = vmatprep.subr.bf16.mxu0 0
        %8066 = vmatpush2.bf16.msra.mxu0 0
        %8067 = vmatprep.subr.bf16.mxu0 0
        %8068 = vmatpush2.bf16.msra.mxu0 0
        %8069 = vmatprep.subr.bf16.mxu0 0
        %8070 = vmatpush2.bf16.msra.mxu0 0
        %8071 = vmatprep.subr.bf16.mxu0 0
        %8072 = vmatpush2.bf16.msra.mxu0 0
        %8073 = vmatprep.subr.bf16.mxu0 0
        %8074 = vmatpush2.bf16.msra.mxu0 0
        %8075 = vmatprep.subr.bf16.mxu0 0
        %8076 = vmatpush2.bf16.msra.mxu0 0
        %8077 = vmatprep.mubr.bf16.mxu0 0
        %8078 = vmatmul.mubr.bf16.gmra.mxu0 %v8043
        %v8079 = vpop.f32.mrf.mxu0
        %v8080 = vadd.f32 0.0, %v8079
        %v8081 = vpop.f32.mrf.mxu0
        %v8082 = vpop.f32.mrf.mxu0
        %v8083 = vadd.f32 0.0, %v8082
        %v8084 = vpop.f32.mrf.mxu0
        %8085 = vdwg.mxu0
        %8086 = vrot.lane.b32.xlu0 %v1208, 32
        %v8087 = vpop.permute.xlu0 %8086
        %v8090 = vsel %vm629, %v7986, 0
        %8092 = vmatprep.subr.bf16.mxu0 0
        %8093 = vmatpush1.bf16.msra.mxu0 0
        %8094 = vmatprep.subr.bf16.mxu0 0
        %8095 = vmatpush1.bf16.msra.mxu0 0
        %8096 = vmatprep.subr.bf16.mxu0 0
        %8097 = vmatpush1.bf16.msra.mxu0 0
        %8098 = vmatprep.subr.bf16.mxu0 0
        %8099 = vmatpush1.bf16.msra.mxu0 0
        %8100 = vmatprep.subr.bf16.mxu0 0
        %8101 = vmatpush1.bf16.msra.mxu0 0
        %8102 = vmatprep.subr.bf16.mxu0 0
        %8103 = vmatpush1.bf16.msra.mxu0 0
        %8104 = vmatprep.subr.bf16.mxu0 0
        %8105 = vmatpush1.bf16.msra.mxu0 0
        %8106 = vmatprep.subr.bf16.mxu0 0
        %8107 = vmatpush1.bf16.msra.mxu0 %v8087
        %8108 = vmatprep.subr.bf16.mxu0 0
        %8109 = vmatpush2.bf16.msra.mxu0 0
        %8110 = vmatprep.subr.bf16.mxu0 0
        %8111 = vmatpush2.bf16.msra.mxu0 0
        %8112 = vmatprep.subr.bf16.mxu0 0
        %8113 = vmatpush2.bf16.msra.mxu0 0
        %8114 = vmatprep.subr.bf16.mxu0 0
        %8115 = vmatpush2.bf16.msra.mxu0 0
        %8116 = vmatprep.subr.bf16.mxu0 0
        %8117 = vmatpush2.bf16.msra.mxu0 0
        %8118 = vmatprep.subr.bf16.mxu0 0
        %8119 = vmatpush2.bf16.msra.mxu0 0
        %8120 = vmatprep.subr.bf16.mxu0 0
        %8121 = vmatpush2.bf16.msra.mxu0 0
        %8122 = vmatprep.subr.bf16.mxu0 0
        %8123 = vmatpush2.bf16.msra.mxu0 0
        %8124 = vmatprep.mubr.bf16.mxu0 0
        %8125 = vmatmul.mubr.bf16.gmra.mxu0 %v8090
        %v8126 = vpop.f32.mrf.mxu0
        %v8127 = vadd.f32 0.0, %v8126
        %v8128 = vpop.f32.mrf.mxu0
        %v8129 = vpop.f32.mrf.mxu0
        %v8130 = vadd.f32 0.0, %v8129
        %v8131 = vpop.f32.mrf.mxu0
        %8132 = vdwg.mxu0
        %8133 = vrot.lane.b32.xlu0 %v1209, 32
        %v8134 = vpop.permute.xlu0 %8133
        %v8137 = vsel %vm629, %v7987, 0
        %8139 = vmatprep.subr.bf16.mxu0 0
        %8140 = vmatpush1.bf16.msra.mxu0 0
        %8141 = vmatprep.subr.bf16.mxu0 0
        %8142 = vmatpush1.bf16.msra.mxu0 0
        %8143 = vmatprep.subr.bf16.mxu0 0
        %8144 = vmatpush1.bf16.msra.mxu0 0
        %8145 = vmatprep.subr.bf16.mxu0 0
        %8146 = vmatpush1.bf16.msra.mxu0 0
        %8147 = vmatprep.subr.bf16.mxu0 0
        %8148 = vmatpush1.bf16.msra.mxu0 0
        %8149 = vmatprep.subr.bf16.mxu0 0
        %8150 = vmatpush1.bf16.msra.mxu0 0
        %8151 = vmatprep.subr.bf16.mxu0 0
        %8152 = vmatpush1.bf16.msra.mxu0 0
        %8153 = vmatprep.subr.bf16.mxu0 0
        %8154 = vmatpush1.bf16.msra.mxu0 %v8134
        %8155 = vmatprep.subr.bf16.mxu0 0
        %8156 = vmatpush2.bf16.msra.mxu0 0
        %8157 = vmatprep.subr.bf16.mxu0 0
        %8158 = vmatpush2.bf16.msra.mxu0 0
        %8159 = vmatprep.subr.bf16.mxu0 0
        %8160 = vmatpush2.bf16.msra.mxu0 0
        %8161 = vmatprep.subr.bf16.mxu0 0
        %8162 = vmatpush2.bf16.msra.mxu0 0
        %8163 = vmatprep.subr.bf16.mxu0 0
        %8164 = vmatpush2.bf16.msra.mxu0 0
        %8165 = vmatprep.subr.bf16.mxu0 0
        %8166 = vmatpush2.bf16.msra.mxu0 0
        %8167 = vmatprep.subr.bf16.mxu0 0
        %8168 = vmatpush2.bf16.msra.mxu0 0
        %8169 = vmatprep.subr.bf16.mxu0 0
        %8170 = vmatpush2.bf16.msra.mxu0 0
        %8171 = vmatprep.mubr.bf16.mxu0 0
        %8172 = vmatmul.mubr.bf16.gmra.mxu0 %v8137
        %v8173 = vpop.f32.mrf.mxu0
        %v8174 = vadd.f32 0.0, %v8173
        %v8175 = vpop.f32.mrf.mxu0
        %v8176 = vpop.f32.mrf.mxu0
        %v8177 = vadd.f32 0.0, %v8176
        %v8178 = vpop.f32.mrf.mxu0
        %8179 = vdwg.mxu0
        %8180 = vrot.lane.b32.xlu0 %v1210, 32
        %v8181 = vpop.permute.xlu0 %8180
        %v8184 = vsel %vm629, %v7988, 0
        %8186 = vmatprep.subr.bf16.mxu0 0
        %8187 = vmatpush1.bf16.msra.mxu0 0
        %8188 = vmatprep.subr.bf16.mxu0 0
        %8189 = vmatpush1.bf16.msra.mxu0 0
        %8190 = vmatprep.subr.bf16.mxu0 0
        %8191 = vmatpush1.bf16.msra.mxu0 0
        %8192 = vmatprep.subr.bf16.mxu0 0
        %8193 = vmatpush1.bf16.msra.mxu0 0
        %8194 = vmatprep.subr.bf16.mxu0 0
        %8195 = vmatpush1.bf16.msra.mxu0 0
        %8196 = vmatprep.subr.bf16.mxu0 0
        %8197 = vmatpush1.bf16.msra.mxu0 0
        %8198 = vmatprep.subr.bf16.mxu0 0
        %8199 = vmatpush1.bf16.msra.mxu0 0
        %8200 = vmatprep.subr.bf16.mxu0 0
        %8201 = vmatpush1.bf16.msra.mxu0 %v8181
        %8202 = vmatprep.subr.bf16.mxu0 0
        %8203 = vmatpush2.bf16.msra.mxu0 0
        %8204 = vmatprep.subr.bf16.mxu0 0
        %8205 = vmatpush2.bf16.msra.mxu0 0
        %8206 = vmatprep.subr.bf16.mxu0 0
        %8207 = vmatpush2.bf16.msra.mxu0 0
        %8208 = vmatprep.subr.bf16.mxu0 0
        %8209 = vmatpush2.bf16.msra.mxu0 0
        %8210 = vmatprep.subr.bf16.mxu0 0
        %8211 = vmatpush2.bf16.msra.mxu0 0
        %8212 = vmatprep.subr.bf16.mxu0 0
        %8213 = vmatpush2.bf16.msra.mxu0 0
        %8214 = vmatprep.subr.bf16.mxu0 0
        %8215 = vmatpush2.bf16.msra.mxu0 0
        %8216 = vmatprep.subr.bf16.mxu0 0
        %8217 = vmatpush2.bf16.msra.mxu0 0
        %8218 = vmatprep.mubr.bf16.mxu0 0
        %8219 = vmatmul.mubr.bf16.gmra.mxu0 %v8184
        %v8220 = vpop.f32.mrf.mxu0
        %v8221 = vadd.f32 0.0, %v8220
        %v8222 = vpop.f32.mrf.mxu0
        %v8223 = vpop.f32.mrf.mxu0
        %v8224 = vadd.f32 0.0, %v8223
        %v8225 = vpop.f32.mrf.mxu0
        %8226 = vdwg.mxu0
        %8227 = vrot.lane.b32.xlu0 %v1211, 32
        %v8228 = vpop.permute.xlu0 %8227
        %v8231 = vsel %vm629, %v7989, 0
        %8233 = vmatprep.subr.bf16.mxu0 0
        %8234 = vmatpush1.bf16.msra.mxu0 0
        %8235 = vmatprep.subr.bf16.mxu0 0
        %8236 = vmatpush1.bf16.msra.mxu0 0
        %8237 = vmatprep.subr.bf16.mxu0 0
        %8238 = vmatpush1.bf16.msra.mxu0 0
        %8239 = vmatprep.subr.bf16.mxu0 0
        %8240 = vmatpush1.bf16.msra.mxu0 0
        %8241 = vmatprep.subr.bf16.mxu0 0
        %8242 = vmatpush1.bf16.msra.mxu0 0
        %8243 = vmatprep.subr.bf16.mxu0 0
        %8244 = vmatpush1.bf16.msra.mxu0 0
        %8245 = vmatprep.subr.bf16.mxu0 0
        %8246 = vmatpush1.bf16.msra.mxu0 0
        %8247 = vmatprep.subr.bf16.mxu0 0
        %8248 = vmatpush1.bf16.msra.mxu0 %v8228
        %8249 = vmatprep.subr.bf16.mxu0 0
        %8250 = vmatpush2.bf16.msra.mxu0 0
        %8251 = vmatprep.subr.bf16.mxu0 0
        %8252 = vmatpush2.bf16.msra.mxu0 0
        %8253 = vmatprep.subr.bf16.mxu0 0
        %8254 = vmatpush2.bf16.msra.mxu0 0
        %8255 = vmatprep.subr.bf16.mxu0 0
        %8256 = vmatpush2.bf16.msra.mxu0 0
        %8257 = vmatprep.subr.bf16.mxu0 0
        %8258 = vmatpush2.bf16.msra.mxu0 0
        %8259 = vmatprep.subr.bf16.mxu0 0
        %8260 = vmatpush2.bf16.msra.mxu0 0
        %8261 = vmatprep.subr.bf16.mxu0 0
        %8262 = vmatpush2.bf16.msra.mxu0 0
        %8263 = vmatprep.subr.bf16.mxu0 0
        %8264 = vmatpush2.bf16.msra.mxu0 0
        %8265 = vmatprep.mubr.bf16.mxu0 0
        %8266 = vmatmul.mubr.bf16.gmra.mxu0 %v8231
        %v8267 = vpop.f32.mrf.mxu0
        %v8268 = vadd.f32 0.0, %v8267
        %v8269 = vpop.f32.mrf.mxu0
        %v8270 = vpop.f32.mrf.mxu0
        %v8271 = vadd.f32 0.0, %v8270
        %v8272 = vpop.f32.mrf.mxu0
        %8273 = vdwg.mxu0
        %8274 = vrot.lane.b32.xlu0 %v1212, 32
        %v8275 = vpop.permute.xlu0 %8274
        %v8278 = vsel %vm629, %v7990, 0
        %8280 = vmatprep.subr.bf16.mxu0 0
        %8281 = vmatpush1.bf16.msra.mxu0 0
        %8282 = vmatprep.subr.bf16.mxu0 0
        %8283 = vmatpush1.bf16.msra.mxu0 0
        %8284 = vmatprep.subr.bf16.mxu0 0
        %8285 = vmatpush1.bf16.msra.mxu0 0
        %8286 = vmatprep.subr.bf16.mxu0 0
        %8287 = vmatpush1.bf16.msra.mxu0 0
        %8288 = vmatprep.subr.bf16.mxu0 0
        %8289 = vmatpush1.bf16.msra.mxu0 0
        %8290 = vmatprep.subr.bf16.mxu0 0
        %8291 = vmatpush1.bf16.msra.mxu0 0
        %8292 = vmatprep.subr.bf16.mxu0 0
        %8293 = vmatpush1.bf16.msra.mxu0 0
        %8294 = vmatprep.subr.bf16.mxu0 0
        %8295 = vmatpush1.bf16.msra.mxu0 %v8275
        %8296 = vmatprep.subr.bf16.mxu0 0
        %8297 = vmatpush2.bf16.msra.mxu0 0
        %8298 = vmatprep.subr.bf16.mxu0 0
        %8299 = vmatpush2.bf16.msra.mxu0 0
        %8300 = vmatprep.subr.bf16.mxu0 0
        %8301 = vmatpush2.bf16.msra.mxu0 0
        %8302 = vmatprep.subr.bf16.mxu0 0
        %8303 = vmatpush2.bf16.msra.mxu0 0
        %8304 = vmatprep.subr.bf16.mxu0 0
        %8305 = vmatpush2.bf16.msra.mxu0 0
        %8306 = vmatprep.subr.bf16.mxu0 0
        %8307 = vmatpush2.bf16.msra.mxu0 0
        %8308 = vmatprep.subr.bf16.mxu0 0
        %8309 = vmatpush2.bf16.msra.mxu0 0
        %8310 = vmatprep.subr.bf16.mxu0 0
        %8311 = vmatpush2.bf16.msra.mxu0 0
        %8312 = vmatprep.mubr.bf16.mxu0 0
        %8313 = vmatmul.mubr.bf16.gmra.mxu0 %v8278
        %v8314 = vpop.f32.mrf.mxu0
        %v8315 = vadd.f32 0.0, %v8314
        %v8316 = vpop.f32.mrf.mxu0
        %v8317 = vpop.f32.mrf.mxu0
        %v8318 = vadd.f32 0.0, %v8317
        %v8319 = vpop.f32.mrf.mxu0
        %8320 = vdwg.mxu0
        %8321 = vrot.lane.b32.xlu0 %v1213, 32
        %v8322 = vpop.permute.xlu0 %8321
        %v8325 = vsel %vm629, %v7991, 0
        %8327 = vmatprep.subr.bf16.mxu0 0
        %8328 = vmatpush1.bf16.msra.mxu0 0
        %8329 = vmatprep.subr.bf16.mxu0 0
        %8330 = vmatpush1.bf16.msra.mxu0 0
        %8331 = vmatprep.subr.bf16.mxu0 0
        %8332 = vmatpush1.bf16.msra.mxu0 0
        %8333 = vmatprep.subr.bf16.mxu0 0
        %8334 = vmatpush1.bf16.msra.mxu0 0
        %8335 = vmatprep.subr.bf16.mxu0 0
        %8336 = vmatpush1.bf16.msra.mxu0 0
        %8337 = vmatprep.subr.bf16.mxu0 0
        %8338 = vmatpush1.bf16.msra.mxu0 0
        %8339 = vmatprep.subr.bf16.mxu0 0
        %8340 = vmatpush1.bf16.msra.mxu0 0
        %8341 = vmatprep.subr.bf16.mxu0 0
        %8342 = vmatpush1.bf16.msra.mxu0 %v8322
        %8343 = vmatprep.subr.bf16.mxu0 0
        %8344 = vmatpush2.bf16.msra.mxu0 0
        %8345 = vmatprep.subr.bf16.mxu0 0
        %8346 = vmatpush2.bf16.msra.mxu0 0
        %8347 = vmatprep.subr.bf16.mxu0 0
        %8348 = vmatpush2.bf16.msra.mxu0 0
        %8349 = vmatprep.subr.bf16.mxu0 0
        %8350 = vmatpush2.bf16.msra.mxu0 0
        %8351 = vmatprep.subr.bf16.mxu0 0
        %8352 = vmatpush2.bf16.msra.mxu0 0
        %8353 = vmatprep.subr.bf16.mxu0 0
        %8354 = vmatpush2.bf16.msra.mxu0 0
        %8355 = vmatprep.subr.bf16.mxu0 0
        %8356 = vmatpush2.bf16.msra.mxu0 0
        %8357 = vmatprep.subr.bf16.mxu0 0
        %8358 = vmatpush2.bf16.msra.mxu0 0
        %8359 = vmatprep.mubr.bf16.mxu0 0
        %8360 = vmatmul.mubr.bf16.gmra.mxu0 %v8325
        %v8361 = vpop.f32.mrf.mxu0
        %v8362 = vadd.f32 0.0, %v8361
        %v8363 = vpop.f32.mrf.mxu0
        %v8364 = vpop.f32.mrf.mxu0
        %v8365 = vadd.f32 0.0, %v8364
        %v8366 = vpop.f32.mrf.mxu0
        %8367 = vdwg.mxu0
        %v8368 = vpack.c.bf16 %v8036, %v8033
        %v8369 = vpack.c.bf16 %v8083, %v8080
        %v8370 = vpack.c.bf16 %v8130, %v8127
        %v8371 = vpack.c.bf16 %v8177, %v8174
        %v8372 = vpack.c.bf16 %v8224, %v8221
        %v8373 = vpack.c.bf16 %v8271, %v8268
        %v8374 = vpack.c.bf16 %v8318, %v8315
        %v8375 = vpack.c.bf16 %v8365, %v8362
        %v8378 = vunpack.c.l.b16 %v271
        %v8379 = vunpack.c.l.b16 %v272
        %v8380 = vpack.c.b16 %v8379, %v8378
        %v8383 = vsel %vm629, %v8368, 0
        %v8386 = vsel %vm629, %v8369, 0
        %v8389 = vsel %vm629, %v8370, 0
        %v8392 = vsel %vm629, %v8371, 0
        %v8395 = vsel %vm629, %v8372, 0
        %v8398 = vsel %vm629, %v8373, 0
        %v8401 = vsel %vm629, %v8374, 0
        %v8404 = vsel %vm629, %v8375, 0
        %8406 = vmatprep.subr.bf16.mxu0 0
        %8407 = vmatpush1.bf16.msra.mxu0 0
        %8408 = vmatprep.subr.bf16.mxu0 0
        %8409 = vmatpush1.bf16.msra.mxu0 0
        %8410 = vmatprep.subr.bf16.mxu0 0
        %8411 = vmatpush1.bf16.msra.mxu0 0
        %8412 = vmatprep.subr.bf16.mxu0 0
        %8413 = vmatpush1.bf16.msra.mxu0 0
        %8414 = vmatprep.subr.bf16.mxu0 0
        %8415 = vmatpush1.bf16.msra.mxu0 0
        %8416 = vmatprep.subr.bf16.mxu0 0
        %8417 = vmatpush1.bf16.msra.mxu0 0
        %8418 = vmatprep.subr.bf16.mxu0 0
        %8419 = vmatpush1.bf16.msra.mxu0 0
        %8420 = vmatprep.subr.bf16.mxu0 0
        %8421 = vmatpush1.bf16.msra.mxu0 %v8380
        %8422 = vmatprep.subr.bf16.mxu0 0
        %8423 = vmatpush2.bf16.msra.mxu0 0
        %8424 = vmatprep.subr.bf16.mxu0 0
        %8425 = vmatpush2.bf16.msra.mxu0 0
        %8426 = vmatprep.subr.bf16.mxu0 0
        %8427 = vmatpush2.bf16.msra.mxu0 0
        %8428 = vmatprep.subr.bf16.mxu0 0
        %8429 = vmatpush2.bf16.msra.mxu0 0
        %8430 = vmatprep.subr.bf16.mxu0 0
        %8431 = vmatpush2.bf16.msra.mxu0 0
        %8432 = vmatprep.subr.bf16.mxu0 0
        %8433 = vmatpush2.bf16.msra.mxu0 0
        %8434 = vmatprep.subr.bf16.mxu0 0
        %8435 = vmatpush2.bf16.msra.mxu0 0
        %8436 = vmatprep.subr.bf16.mxu0 0
        %8437 = vmatpush2.bf16.msra.mxu0 0
        %8438 = vmatprep.mubr.bf16.mxu0 0
        %8439 = vmatmul.mubr.bf16.gmra.mxu0 %v8383
        %v8440 = vpop.f32.mrf.mxu0
        %v8441 = vadd.f32 0.0, %v8440
        %v8442 = vpop.f32.mrf.mxu0
        %v8443 = vpop.f32.mrf.mxu0
        %v8444 = vadd.f32 0.0, %v8443
        %v8445 = vpop.f32.mrf.mxu0
        %8446 = vmatprep.mubr.bf16.mxu0 0
        %8447 = vmatmul.mubr.bf16.gmra.mxu0 %v8386
        %v8448 = vpop.f32.mrf.mxu0
        %v8449 = vadd.f32 0.0, %v8448
        %v8450 = vpop.f32.mrf.mxu0
        %v8451 = vpop.f32.mrf.mxu0
        %v8452 = vadd.f32 0.0, %v8451
        %v8453 = vpop.f32.mrf.mxu0
        %8454 = vmatprep.mubr.bf16.mxu0 0
        %8455 = vmatmul.mubr.bf16.gmra.mxu0 %v8389
        %v8456 = vpop.f32.mrf.mxu0
        %v8457 = vadd.f32 0.0, %v8456
        %v8458 = vpop.f32.mrf.mxu0
        %v8459 = vpop.f32.mrf.mxu0
        %v8460 = vadd.f32 0.0, %v8459
        %v8461 = vpop.f32.mrf.mxu0
        %8462 = vmatprep.mubr.bf16.mxu0 0
        %8463 = vmatmul.mubr.bf16.gmra.mxu0 %v8392
        %v8464 = vpop.f32.mrf.mxu0
        %v8465 = vadd.f32 0.0, %v8464
        %v8466 = vpop.f32.mrf.mxu0
        %v8467 = vpop.f32.mrf.mxu0
        %v8468 = vadd.f32 0.0, %v8467
        %v8469 = vpop.f32.mrf.mxu0
        %8470 = vmatprep.mubr.bf16.mxu0 0
        %8471 = vmatmul.mubr.bf16.gmra.mxu0 %v8395
        %v8472 = vpop.f32.mrf.mxu0
        %v8473 = vadd.f32 0.0, %v8472
        %v8474 = vpop.f32.mrf.mxu0
        %v8475 = vpop.f32.mrf.mxu0
        %v8476 = vadd.f32 0.0, %v8475
        %v8477 = vpop.f32.mrf.mxu0
        %8478 = vmatprep.mubr.bf16.mxu0 0
        %8479 = vmatmul.mubr.bf16.gmra.mxu0 %v8398
        %v8480 = vpop.f32.mrf.mxu0
        %v8481 = vadd.f32 0.0, %v8480
        %v8482 = vpop.f32.mrf.mxu0
        %v8483 = vpop.f32.mrf.mxu0
        %v8484 = vadd.f32 0.0, %v8483
        %v8485 = vpop.f32.mrf.mxu0
        %8486 = vmatprep.mubr.bf16.mxu0 0
        %8487 = vmatmul.mubr.bf16.gmra.mxu0 %v8401
        %v8488 = vpop.f32.mrf.mxu0
        %v8489 = vadd.f32 0.0, %v8488
        %v8490 = vpop.f32.mrf.mxu0
        %v8491 = vpop.f32.mrf.mxu0
        %v8492 = vadd.f32 0.0, %v8491
        %v8493 = vpop.f32.mrf.mxu0
        %8494 = vmatprep.mubr.bf16.mxu0 0
        %8495 = vmatmul.mubr.bf16.gmra.mxu0 %v8404
        %v8496 = vpop.f32.mrf.mxu0
        %v8497 = vadd.f32 0.0, %v8496
        %v8498 = vpop.f32.mrf.mxu0
        %v8499 = vpop.f32.mrf.mxu0
        %v8500 = vadd.f32 0.0, %v8499
        %v8501 = vpop.f32.mrf.mxu0
        %8502 = vdwg.mxu0
        %v8503 = vadd.f32 %v7368, %v8441
        %v8504 = vadd.f32 %v7369, %v8444
        %v8505 = vadd.f32 %v7370, %v8449
        %v8506 = vadd.f32 %v7371, %v8452
        %v8507 = vadd.f32 %v7372, %v8457
        %v8508 = vadd.f32 %v7373, %v8460
        %v8509 = vadd.f32 %v7374, %v8465
        %v8510 = vadd.f32 %v7375, %v8468
        %v8511 = vadd.f32 %v7376, %v8473
        %v8512 = vadd.f32 %v7377, %v8476
        %v8513 = vadd.f32 %v7378, %v8481
        %v8514 = vadd.f32 %v7379, %v8484
        %v8515 = vadd.f32 %v7380, %v8489
        %v8516 = vadd.f32 %v7381, %v8492
        %v8517 = vadd.f32 %v7382, %v8497
        %v8518 = vadd.f32 %v7383, %v8500
        %8519 = vrot.lane.b32.xlu0 %v613, 16
        %v8520 = vpop.permute.xlu0 %8519
        %8521 = vrot.lane.b32.xlu0 %v621, 16
        %v8522 = vpop.permute.xlu0 %8521
        %v8524 = vsel %vm629, %v8520, 0
        %v8527 = vsel %vm629, %v8522, 0
        %8529 = vmatprep.subr.bf16.mxu0 0
        %8530 = vmatpush1.bf16.xpose.msra.mxu0 0
        %8531 = vmatprep.subr.bf16.mxu0 0
        %8532 = vmatpush1.bf16.xpose.msra.mxu0 0
        %8533 = vmatprep.subr.bf16.mxu0 0
        %8534 = vmatpush1.bf16.xpose.msra.mxu0 0
        %8535 = vmatprep.subr.bf16.mxu0 0
        %8536 = vmatpush1.bf16.xpose.msra.mxu0 0
        %8537 = vmatprep.subr.bf16.mxu0 0
        %8538 = vmatpush1.bf16.xpose.msra.mxu0 0
        %8539 = vmatprep.subr.bf16.mxu0 0
        %8540 = vmatpush1.bf16.xpose.msra.mxu0 0
        %8541 = vmatprep.subr.bf16.mxu0 0
        %8542 = vmatpush1.bf16.xpose.msra.mxu0 0
        %8543 = vmatprep.subr.bf16.mxu0 0
        %8544 = vmatpush1.bf16.xpose.msra.mxu0 %v8527
        %8545 = vmatprep.subr.bf16.mxu0 0
        %8546 = vmatpush2.bf16.xpose.msra.mxu0 0
        %8547 = vmatprep.subr.bf16.mxu0 0
        %8548 = vmatpush2.bf16.xpose.msra.mxu0 0
        %8549 = vmatprep.subr.bf16.mxu0 0
        %8550 = vmatpush2.bf16.xpose.msra.mxu0 0
        %8551 = vmatprep.subr.bf16.mxu0 0
        %8552 = vmatpush2.bf16.xpose.msra.mxu0 0
        %8553 = vmatprep.subr.bf16.mxu0 0
        %8554 = vmatpush2.bf16.xpose.msra.mxu0 0
        %8555 = vmatprep.subr.bf16.mxu0 0
        %8556 = vmatpush2.bf16.xpose.msra.mxu0 0
        %8557 = vmatprep.subr.bf16.mxu0 0
        %8558 = vmatpush2.bf16.xpose.msra.mxu0 0
        %8559 = vmatprep.subr.bf16.mxu0 0
        %8560 = vmatpush2.bf16.xpose.msra.mxu0 0
        %8561 = vmatprep.mubr.bf16.mxu0 0
        %8562 = vmatmul.mubr.bf16.gmra.mxu0 %v8524
        %v8563 = vpop.f32.mrf.mxu0
        %v8564 = vadd.f32 0.0, %v8563
        %v8565 = vpop.f32.mrf.mxu0
        %v8566 = vpop.f32.mrf.mxu0
        %v8567 = vadd.f32 0.0, %v8566
        %v8568 = vpop.f32.mrf.mxu0
        %8569 = vdwg.mxu0
        %8570 = vrot.lane.b32.xlu0 %v614, 16
        %v8571 = vpop.permute.xlu0 %8570
        %8572 = vrot.lane.b32.xlu0 %v622, 16
        %v8573 = vpop.permute.xlu0 %8572
        %v8575 = vsel %vm629, %v8571, 0
        %v8578 = vsel %vm629, %v8573, 0
        %8580 = vmatprep.subr.bf16.mxu0 0
        %8581 = vmatpush1.bf16.xpose.msra.mxu0 0
        %8582 = vmatprep.subr.bf16.mxu0 0
        %8583 = vmatpush1.bf16.xpose.msra.mxu0 0
        %8584 = vmatprep.subr.bf16.mxu0 0
        %8585 = vmatpush1.bf16.xpose.msra.mxu0 0
        %8586 = vmatprep.subr.bf16.mxu0 0
        %8587 = vmatpush1.bf16.xpose.msra.mxu0 0
        %8588 = vmatprep.subr.bf16.mxu0 0
        %8589 = vmatpush1.bf16.xpose.msra.mxu0 0
        %8590 = vmatprep.subr.bf16.mxu0 0
        %8591 = vmatpush1.bf16.xpose.msra.mxu0 0
        %8592 = vmatprep.subr.bf16.mxu0 0
        %8593 = vmatpush1.bf16.xpose.msra.mxu0 0
        %8594 = vmatprep.subr.bf16.mxu0 0
        %8595 = vmatpush1.bf16.xpose.msra.mxu0 %v8578
        %8596 = vmatprep.subr.bf16.mxu0 0
        %8597 = vmatpush2.bf16.xpose.msra.mxu0 0
        %8598 = vmatprep.subr.bf16.mxu0 0
        %8599 = vmatpush2.bf16.xpose.msra.mxu0 0
        %8600 = vmatprep.subr.bf16.mxu0 0
        %8601 = vmatpush2.bf16.xpose.msra.mxu0 0
        %8602 = vmatprep.subr.bf16.mxu0 0
        %8603 = vmatpush2.bf16.xpose.msra.mxu0 0
        %8604 = vmatprep.subr.bf16.mxu0 0
        %8605 = vmatpush2.bf16.xpose.msra.mxu0 0
        %8606 = vmatprep.subr.bf16.mxu0 0
        %8607 = vmatpush2.bf16.xpose.msra.mxu0 0
        %8608 = vmatprep.subr.bf16.mxu0 0
        %8609 = vmatpush2.bf16.xpose.msra.mxu0 0
        %8610 = vmatprep.subr.bf16.mxu0 0
        %8611 = vmatpush2.bf16.xpose.msra.mxu0 0
        %8612 = vmatprep.mubr.bf16.mxu0 0
        %8613 = vmatmul.mubr.bf16.gmra.mxu0 %v8575
        %v8614 = vpop.f32.mrf.mxu0
        %v8615 = vadd.f32 0.0, %v8614
        %v8616 = vpop.f32.mrf.mxu0
        %v8617 = vpop.f32.mrf.mxu0
        %v8618 = vadd.f32 0.0, %v8617
        %v8619 = vpop.f32.mrf.mxu0
        %8620 = vdwg.mxu0
        %8621 = vrot.lane.b32.xlu0 %v615, 16
        %v8622 = vpop.permute.xlu0 %8621
        %8623 = vrot.lane.b32.xlu0 %v623, 16
        %v8624 = vpop.permute.xlu0 %8623
        %v8626 = vsel %vm629, %v8622, 0
        %v8629 = vsel %vm629, %v8624, 0
        %8631 = vmatprep.subr.bf16.mxu0 0
        %8632 = vmatpush1.bf16.xpose.msra.mxu0 0
        %8633 = vmatprep.subr.bf16.mxu0 0
        %8634 = vmatpush1.bf16.xpose.msra.mxu0 0
        %8635 = vmatprep.subr.bf16.mxu0 0
        %8636 = vmatpush1.bf16.xpose.msra.mxu0 0
        %8637 = vmatprep.subr.bf16.mxu0 0
        %8638 = vmatpush1.bf16.xpose.msra.mxu0 0
        %8639 = vmatprep.subr.bf16.mxu0 0
        %8640 = vmatpush1.bf16.xpose.msra.mxu0 0
        %8641 = vmatprep.subr.bf16.mxu0 0
        %8642 = vmatpush1.bf16.xpose.msra.mxu0 0
        %8643 = vmatprep.subr.bf16.mxu0 0
        %8644 = vmatpush1.bf16.xpose.msra.mxu0 0
        %8645 = vmatprep.subr.bf16.mxu0 0
        %8646 = vmatpush1.bf16.xpose.msra.mxu0 %v8629
        %8647 = vmatprep.subr.bf16.mxu0 0
        %8648 = vmatpush2.bf16.xpose.msra.mxu0 0
        %8649 = vmatprep.subr.bf16.mxu0 0
        %8650 = vmatpush2.bf16.xpose.msra.mxu0 0
        %8651 = vmatprep.subr.bf16.mxu0 0
        %8652 = vmatpush2.bf16.xpose.msra.mxu0 0
        %8653 = vmatprep.subr.bf16.mxu0 0
        %8654 = vmatpush2.bf16.xpose.msra.mxu0 0
        %8655 = vmatprep.subr.bf16.mxu0 0
        %8656 = vmatpush2.bf16.xpose.msra.mxu0 0
        %8657 = vmatprep.subr.bf16.mxu0 0
        %8658 = vmatpush2.bf16.xpose.msra.mxu0 0
        %8659 = vmatprep.subr.bf16.mxu0 0
        %8660 = vmatpush2.bf16.xpose.msra.mxu0 0
        %8661 = vmatprep.subr.bf16.mxu0 0
        %8662 = vmatpush2.bf16.xpose.msra.mxu0 0
        %8663 = vmatprep.mubr.bf16.mxu0 0
        %8664 = vmatmul.mubr.bf16.gmra.mxu0 %v8626
        %v8665 = vpop.f32.mrf.mxu0
        %v8666 = vadd.f32 0.0, %v8665
        %v8667 = vpop.f32.mrf.mxu0
        %v8668 = vpop.f32.mrf.mxu0
        %v8669 = vadd.f32 0.0, %v8668
        %v8670 = vpop.f32.mrf.mxu0
        %8671 = vdwg.mxu0
        %8672 = vrot.lane.b32.xlu0 %v616, 16
        %v8673 = vpop.permute.xlu0 %8672
        %8674 = vrot.lane.b32.xlu0 %v624, 16
        %v8675 = vpop.permute.xlu0 %8674
        %v8677 = vsel %vm629, %v8673, 0
        %v8680 = vsel %vm629, %v8675, 0
        %8682 = vmatprep.subr.bf16.mxu0 0
        %8683 = vmatpush1.bf16.xpose.msra.mxu0 0
        %8684 = vmatprep.subr.bf16.mxu0 0
        %8685 = vmatpush1.bf16.xpose.msra.mxu0 0
        %8686 = vmatprep.subr.bf16.mxu0 0
        %8687 = vmatpush1.bf16.xpose.msra.mxu0 0
        %8688 = vmatprep.subr.bf16.mxu0 0
        %8689 = vmatpush1.bf16.xpose.msra.mxu0 0
        %8690 = vmatprep.subr.bf16.mxu0 0
        %8691 = vmatpush1.bf16.xpose.msra.mxu0 0
        %8692 = vmatprep.subr.bf16.mxu0 0
        %8693 = vmatpush1.bf16.xpose.msra.mxu0 0
        %8694 = vmatprep.subr.bf16.mxu0 0
        %8695 = vmatpush1.bf16.xpose.msra.mxu0 0
        %8696 = vmatprep.subr.bf16.mxu0 0
        %8697 = vmatpush1.bf16.xpose.msra.mxu0 %v8680
        %8698 = vmatprep.subr.bf16.mxu0 0
        %8699 = vmatpush2.bf16.xpose.msra.mxu0 0
        %8700 = vmatprep.subr.bf16.mxu0 0
        %8701 = vmatpush2.bf16.xpose.msra.mxu0 0
        %8702 = vmatprep.subr.bf16.mxu0 0
        %8703 = vmatpush2.bf16.xpose.msra.mxu0 0
        %8704 = vmatprep.subr.bf16.mxu0 0
        %8705 = vmatpush2.bf16.xpose.msra.mxu0 0
        %8706 = vmatprep.subr.bf16.mxu0 0
        %8707 = vmatpush2.bf16.xpose.msra.mxu0 0
        %8708 = vmatprep.subr.bf16.mxu0 0
        %8709 = vmatpush2.bf16.xpose.msra.mxu0 0
        %8710 = vmatprep.subr.bf16.mxu0 0
        %8711 = vmatpush2.bf16.xpose.msra.mxu0 0
        %8712 = vmatprep.subr.bf16.mxu0 0
        %8713 = vmatpush2.bf16.xpose.msra.mxu0 0
        %8714 = vmatprep.mubr.bf16.mxu0 0
        %8715 = vmatmul.mubr.bf16.gmra.mxu0 %v8677
        %v8716 = vpop.f32.mrf.mxu0
        %v8717 = vadd.f32 0.0, %v8716
        %v8718 = vpop.f32.mrf.mxu0
        %v8719 = vpop.f32.mrf.mxu0
        %v8720 = vadd.f32 0.0, %v8719
        %v8721 = vpop.f32.mrf.mxu0
        %8722 = vdwg.mxu0
        %8723 = vrot.lane.b32.xlu0 %v617, 16
        %v8724 = vpop.permute.xlu0 %8723
        %8725 = vrot.lane.b32.xlu0 %v625, 16
        %v8726 = vpop.permute.xlu0 %8725
        %v8728 = vsel %vm629, %v8724, 0
        %v8731 = vsel %vm629, %v8726, 0
        %8733 = vmatprep.subr.bf16.mxu0 0
        %8734 = vmatpush1.bf16.xpose.msra.mxu0 0
        %8735 = vmatprep.subr.bf16.mxu0 0
        %8736 = vmatpush1.bf16.xpose.msra.mxu0 0
        %8737 = vmatprep.subr.bf16.mxu0 0
        %8738 = vmatpush1.bf16.xpose.msra.mxu0 0
        %8739 = vmatprep.subr.bf16.mxu0 0
        %8740 = vmatpush1.bf16.xpose.msra.mxu0 0
        %8741 = vmatprep.subr.bf16.mxu0 0
        %8742 = vmatpush1.bf16.xpose.msra.mxu0 0
        %8743 = vmatprep.subr.bf16.mxu0 0
        %8744 = vmatpush1.bf16.xpose.msra.mxu0 0
        %8745 = vmatprep.subr.bf16.mxu0 0
        %8746 = vmatpush1.bf16.xpose.msra.mxu0 0
        %8747 = vmatprep.subr.bf16.mxu0 0
        %8748 = vmatpush1.bf16.xpose.msra.mxu0 %v8731
        %8749 = vmatprep.subr.bf16.mxu0 0
        %8750 = vmatpush2.bf16.xpose.msra.mxu0 0
        %8751 = vmatprep.subr.bf16.mxu0 0
        %8752 = vmatpush2.bf16.xpose.msra.mxu0 0
        %8753 = vmatprep.subr.bf16.mxu0 0
        %8754 = vmatpush2.bf16.xpose.msra.mxu0 0
        %8755 = vmatprep.subr.bf16.mxu0 0
        %8756 = vmatpush2.bf16.xpose.msra.mxu0 0
        %8757 = vmatprep.subr.bf16.mxu0 0
        %8758 = vmatpush2.bf16.xpose.msra.mxu0 0
        %8759 = vmatprep.subr.bf16.mxu0 0
        %8760 = vmatpush2.bf16.xpose.msra.mxu0 0
        %8761 = vmatprep.subr.bf16.mxu0 0
        %8762 = vmatpush2.bf16.xpose.msra.mxu0 0
        %8763 = vmatprep.subr.bf16.mxu0 0
        %8764 = vmatpush2.bf16.xpose.msra.mxu0 0
        %8765 = vmatprep.mubr.bf16.mxu0 0
        %8766 = vmatmul.mubr.bf16.gmra.mxu0 %v8728
        %v8767 = vpop.f32.mrf.mxu0
        %v8768 = vadd.f32 0.0, %v8767
        %v8769 = vpop.f32.mrf.mxu0
        %v8770 = vpop.f32.mrf.mxu0
        %v8771 = vadd.f32 0.0, %v8770
        %v8772 = vpop.f32.mrf.mxu0
        %8773 = vdwg.mxu0
        %8774 = vrot.lane.b32.xlu0 %v618, 16
        %v8775 = vpop.permute.xlu0 %8774
        %8776 = vrot.lane.b32.xlu0 %v626, 16
        %v8777 = vpop.permute.xlu0 %8776
        %v8779 = vsel %vm629, %v8775, 0
        %v8782 = vsel %vm629, %v8777, 0
        %8784 = vmatprep.subr.bf16.mxu0 0
        %8785 = vmatpush1.bf16.xpose.msra.mxu0 0
        %8786 = vmatprep.subr.bf16.mxu0 0
        %8787 = vmatpush1.bf16.xpose.msra.mxu0 0
        %8788 = vmatprep.subr.bf16.mxu0 0
        %8789 = vmatpush1.bf16.xpose.msra.mxu0 0
        %8790 = vmatprep.subr.bf16.mxu0 0
        %8791 = vmatpush1.bf16.xpose.msra.mxu0 0
        %8792 = vmatprep.subr.bf16.mxu0 0
        %8793 = vmatpush1.bf16.xpose.msra.mxu0 0
        %8794 = vmatprep.subr.bf16.mxu0 0
        %8795 = vmatpush1.bf16.xpose.msra.mxu0 0
        %8796 = vmatprep.subr.bf16.mxu0 0
        %8797 = vmatpush1.bf16.xpose.msra.mxu0 0
        %8798 = vmatprep.subr.bf16.mxu0 0
        %8799 = vmatpush1.bf16.xpose.msra.mxu0 %v8782
        %8800 = vmatprep.subr.bf16.mxu0 0
        %8801 = vmatpush2.bf16.xpose.msra.mxu0 0
        %8802 = vmatprep.subr.bf16.mxu0 0
        %8803 = vmatpush2.bf16.xpose.msra.mxu0 0
        %8804 = vmatprep.subr.bf16.mxu0 0
        %8805 = vmatpush2.bf16.xpose.msra.mxu0 0
        %8806 = vmatprep.subr.bf16.mxu0 0
        %8807 = vmatpush2.bf16.xpose.msra.mxu0 0
        %8808 = vmatprep.subr.bf16.mxu0 0
        %8809 = vmatpush2.bf16.xpose.msra.mxu0 0
        %8810 = vmatprep.subr.bf16.mxu0 0
        %8811 = vmatpush2.bf16.xpose.msra.mxu0 0
        %8812 = vmatprep.subr.bf16.mxu0 0
        %8813 = vmatpush2.bf16.xpose.msra.mxu0 0
        %8814 = vmatprep.subr.bf16.mxu0 0
        %8815 = vmatpush2.bf16.xpose.msra.mxu0 0
        %8816 = vmatprep.mubr.bf16.mxu0 0
        %8817 = vmatmul.mubr.bf16.gmra.mxu0 %v8779
        %v8818 = vpop.f32.mrf.mxu0
        %v8819 = vadd.f32 0.0, %v8818
        %v8820 = vpop.f32.mrf.mxu0
        %v8821 = vpop.f32.mrf.mxu0
        %v8822 = vadd.f32 0.0, %v8821
        %v8823 = vpop.f32.mrf.mxu0
        %8824 = vdwg.mxu0
        %8825 = vrot.lane.b32.xlu0 %v619, 16
        %v8826 = vpop.permute.xlu0 %8825
        %8827 = vrot.lane.b32.xlu0 %v627, 16
        %v8828 = vpop.permute.xlu0 %8827
        %v8830 = vsel %vm629, %v8826, 0
        %v8833 = vsel %vm629, %v8828, 0
        %8835 = vmatprep.subr.bf16.mxu0 0
        %8836 = vmatpush1.bf16.xpose.msra.mxu0 0
        %8837 = vmatprep.subr.bf16.mxu0 0
        %8838 = vmatpush1.bf16.xpose.msra.mxu0 0
        %8839 = vmatprep.subr.bf16.mxu0 0
        %8840 = vmatpush1.bf16.xpose.msra.mxu0 0
        %8841 = vmatprep.subr.bf16.mxu0 0
        %8842 = vmatpush1.bf16.xpose.msra.mxu0 0
        %8843 = vmatprep.subr.bf16.mxu0 0
        %8844 = vmatpush1.bf16.xpose.msra.mxu0 0
        %8845 = vmatprep.subr.bf16.mxu0 0
        %8846 = vmatpush1.bf16.xpose.msra.mxu0 0
        %8847 = vmatprep.subr.bf16.mxu0 0
        %8848 = vmatpush1.bf16.xpose.msra.mxu0 0
        %8849 = vmatprep.subr.bf16.mxu0 0
        %8850 = vmatpush1.bf16.xpose.msra.mxu0 %v8833
        %8851 = vmatprep.subr.bf16.mxu0 0
        %8852 = vmatpush2.bf16.xpose.msra.mxu0 0
        %8853 = vmatprep.subr.bf16.mxu0 0
        %8854 = vmatpush2.bf16.xpose.msra.mxu0 0
        %8855 = vmatprep.subr.bf16.mxu0 0
        %8856 = vmatpush2.bf16.xpose.msra.mxu0 0
        %8857 = vmatprep.subr.bf16.mxu0 0
        %8858 = vmatpush2.bf16.xpose.msra.mxu0 0
        %8859 = vmatprep.subr.bf16.mxu0 0
        %8860 = vmatpush2.bf16.xpose.msra.mxu0 0
        %8861 = vmatprep.subr.bf16.mxu0 0
        %8862 = vmatpush2.bf16.xpose.msra.mxu0 0
        %8863 = vmatprep.subr.bf16.mxu0 0
        %8864 = vmatpush2.bf16.xpose.msra.mxu0 0
        %8865 = vmatprep.subr.bf16.mxu0 0
        %8866 = vmatpush2.bf16.xpose.msra.mxu0 0
        %8867 = vmatprep.mubr.bf16.mxu0 0
        %8868 = vmatmul.mubr.bf16.gmra.mxu0 %v8830
        %v8869 = vpop.f32.mrf.mxu0
        %v8870 = vadd.f32 0.0, %v8869
        %v8871 = vpop.f32.mrf.mxu0
        %v8872 = vpop.f32.mrf.mxu0
        %v8873 = vadd.f32 0.0, %v8872
        %v8874 = vpop.f32.mrf.mxu0
        %8875 = vdwg.mxu0
        %8876 = vrot.lane.b32.xlu0 %v620, 16
        %v8877 = vpop.permute.xlu0 %8876
        %8878 = vrot.lane.b32.xlu0 %v628, 16
        %v8879 = vpop.permute.xlu0 %8878
        %v8881 = vsel %vm629, %v8877, 0
        %v8884 = vsel %vm629, %v8879, 0
        %8886 = vmatprep.subr.bf16.mxu0 0
        %8887 = vmatpush1.bf16.xpose.msra.mxu0 0
        %8888 = vmatprep.subr.bf16.mxu0 0
        %8889 = vmatpush1.bf16.xpose.msra.mxu0 0
        %8890 = vmatprep.subr.bf16.mxu0 0
        %8891 = vmatpush1.bf16.xpose.msra.mxu0 0
        %8892 = vmatprep.subr.bf16.mxu0 0
        %8893 = vmatpush1.bf16.xpose.msra.mxu0 0
        %8894 = vmatprep.subr.bf16.mxu0 0
        %8895 = vmatpush1.bf16.xpose.msra.mxu0 0
        %8896 = vmatprep.subr.bf16.mxu0 0
        %8897 = vmatpush1.bf16.xpose.msra.mxu0 0
        %8898 = vmatprep.subr.bf16.mxu0 0
        %8899 = vmatpush1.bf16.xpose.msra.mxu0 0
        %8900 = vmatprep.subr.bf16.mxu0 0
        %8901 = vmatpush1.bf16.xpose.msra.mxu0 %v8884
        %8902 = vmatprep.subr.bf16.mxu0 0
        %8903 = vmatpush2.bf16.xpose.msra.mxu0 0
        %8904 = vmatprep.subr.bf16.mxu0 0
        %8905 = vmatpush2.bf16.xpose.msra.mxu0 0
        %8906 = vmatprep.subr.bf16.mxu0 0
        %8907 = vmatpush2.bf16.xpose.msra.mxu0 0
        %8908 = vmatprep.subr.bf16.mxu0 0
        %8909 = vmatpush2.bf16.xpose.msra.mxu0 0
        %8910 = vmatprep.subr.bf16.mxu0 0
        %8911 = vmatpush2.bf16.xpose.msra.mxu0 0
        %8912 = vmatprep.subr.bf16.mxu0 0
        %8913 = vmatpush2.bf16.xpose.msra.mxu0 0
        %8914 = vmatprep.subr.bf16.mxu0 0
        %8915 = vmatpush2.bf16.xpose.msra.mxu0 0
        %8916 = vmatprep.subr.bf16.mxu0 0
        %8917 = vmatpush2.bf16.xpose.msra.mxu0 0
        %8918 = vmatprep.mubr.bf16.mxu0 0
        %8919 = vmatmul.mubr.bf16.gmra.mxu0 %v8881
        %v8920 = vpop.f32.mrf.mxu0
        %v8921 = vadd.f32 0.0, %v8920
        %v8922 = vpop.f32.mrf.mxu0
        %v8923 = vpop.f32.mrf.mxu0
        %v8924 = vadd.f32 0.0, %v8923
        %v8925 = vpop.f32.mrf.mxu0
        %8926 = vdwg.mxu0
        %v8927 = vmul.f32 %v8564, 0.25
        %v8928 = vmul.f32 %v8567, 0.25
        %v8929 = vmul.f32 %v8615, 0.25
        %v8930 = vmul.f32 %v8618, 0.25
        %v8931 = vmul.f32 %v8666, 0.25
        %v8932 = vmul.f32 %v8669, 0.25
        %v8933 = vmul.f32 %v8717, 0.25
        %v8934 = vmul.f32 %v8720, 0.25
        %v8935 = vmul.f32 %v8768, 0.25
        %v8936 = vmul.f32 %v8771, 0.25
        %v8937 = vmul.f32 %v8819, 0.25
        %v8938 = vmul.f32 %v8822, 0.25
        %v8939 = vmul.f32 %v8870, 0.25
        %v8940 = vmul.f32 %v8873, 0.25
        %v8941 = vmul.f32 %v8921, 0.25
        %v8942 = vmul.f32 %v8924, 0.25
        %v8943 = vsel %vm629, %v8927, -inf
        %8944 = vmax.xlane.f32.xlu0 %v8943
        %v8945 = vpop.xlane.xlu0 %8944
        %v8946 = vsel %vm629, %v8928, -inf
        %8947 = vmax.xlane.f32.xlu0 %v8946
        %v8948 = vpop.xlane.xlu0 %8947
        %v8949 = vsel %vm629, %v8929, -inf
        %8950 = vmax.xlane.f32.xlu0 %v8949
        %v8951 = vpop.xlane.xlu0 %8950
        %v8952 = vsel %vm629, %v8930, -inf
        %8953 = vmax.xlane.f32.xlu0 %v8952
        %v8954 = vpop.xlane.xlu0 %8953
        %v8955 = vsel %vm629, %v8931, -inf
        %8956 = vmax.xlane.f32.xlu0 %v8955
        %v8957 = vpop.xlane.xlu0 %8956
        %v8958 = vsel %vm629, %v8932, -inf
        %8959 = vmax.xlane.f32.xlu0 %v8958
        %v8960 = vpop.xlane.xlu0 %8959
        %v8961 = vsel %vm629, %v8933, -inf
        %8962 = vmax.xlane.f32.xlu0 %v8961
        %v8963 = vpop.xlane.xlu0 %8962
        %v8964 = vsel %vm629, %v8934, -inf
        %8965 = vmax.xlane.f32.xlu0 %v8964
        %v8966 = vpop.xlane.xlu0 %8965
        %v8967 = vsel %vm629, %v8935, -inf
        %8968 = vmax.xlane.f32.xlu0 %v8967
        %v8969 = vpop.xlane.xlu0 %8968
        %v8970 = vsel %vm629, %v8936, -inf
        %8971 = vmax.xlane.f32.xlu0 %v8970
        %v8972 = vpop.xlane.xlu0 %8971
        %v8973 = vsel %vm629, %v8937, -inf
        %8974 = vmax.xlane.f32.xlu0 %v8973
        %v8975 = vpop.xlane.xlu0 %8974
        %v8976 = vsel %vm629, %v8938, -inf
        %8977 = vmax.xlane.f32.xlu0 %v8976
        %v8978 = vpop.xlane.xlu0 %8977
        %v8979 = vsel %vm629, %v8939, -inf
        %8980 = vmax.xlane.f32.xlu0 %v8979
        %v8981 = vpop.xlane.xlu0 %8980
        %v8982 = vsel %vm629, %v8940, -inf
        %8983 = vmax.xlane.f32.xlu0 %v8982
        %v8984 = vpop.xlane.xlu0 %8983
        %v8985 = vsel %vm629, %v8941, -inf
        %8986 = vmax.xlane.f32.xlu0 %v8985
        %v8987 = vpop.xlane.xlu0 %8986
        %v8988 = vsel %vm629, %v8942, -inf
        %8989 = vmax.xlane.f32.xlu0 %v8988
        %v8990 = vpop.xlane.xlu0 %8989
        %v8991 = vsub.f32 %v8927, %v8945
        %v8992 = vsub.f32 %v8928, %v8948
        %v8993 = vsub.f32 %v8929, %v8951
        %v8994 = vsub.f32 %v8930, %v8954
        %v8995 = vsub.f32 %v8931, %v8957
        %v8996 = vsub.f32 %v8932, %v8960
        %v8997 = vsub.f32 %v8933, %v8963
        %v8998 = vsub.f32 %v8934, %v8966
        %v8999 = vsub.f32 %v8935, %v8969
        %v9000 = vsub.f32 %v8936, %v8972
        %v9001 = vsub.f32 %v8937, %v8975
        %v9002 = vsub.f32 %v8938, %v8978
        %v9003 = vsub.f32 %v8939, %v8981
        %v9004 = vsub.f32 %v8940, %v8984
        %v9005 = vsub.f32 %v8941, %v8987
        %v9006 = vsub.f32 %v8942, %v8990
        %v9007 = vmul.f32 %v8991, 1.442695
        %v9008 = vpow.pop %v9007
        %v9009 = vmul.f32 %v8992, 1.442695
        %v9010 = vpow.pop %v9009
        %v9011 = vmul.f32 %v8993, 1.442695
        %v9012 = vpow.pop %v9011
        %v9013 = vmul.f32 %v8994, 1.442695
        %v9014 = vpow.pop %v9013
        %v9015 = vmul.f32 %v8995, 1.442695
        %v9016 = vpow.pop %v9015
        %v9017 = vmul.f32 %v8996, 1.442695
        %v9018 = vpow.pop %v9017
        %v9019 = vmul.f32 %v8997, 1.442695
        %v9020 = vpow.pop %v9019
        %v9021 = vmul.f32 %v8998, 1.442695
        %v9022 = vpow.pop %v9021
        %v9023 = vmul.f32 %v8999, 1.442695
        %v9024 = vpow.pop %v9023
        %v9025 = vmul.f32 %v9000, 1.442695
        %v9026 = vpow.pop %v9025
        %v9027 = vmul.f32 %v9001, 1.442695
        %v9028 = vpow.pop %v9027
        %v9029 = vmul.f32 %v9002, 1.442695
        %v9030 = vpow.pop %v9029
        %v9031 = vmul.f32 %v9003, 1.442695
        %v9032 = vpow.pop %v9031
        %v9033 = vmul.f32 %v9004, 1.442695
        %v9034 = vpow.pop %v9033
        %v9035 = vmul.f32 %v9005, 1.442695
        %v9036 = vpow.pop %v9035
        %v9037 = vmul.f32 %v9006, 1.442695
        %v9038 = vpow.pop %v9037
        %v9039 = vsel %vm629, %v9008, 0.0
        %9040 = vadd.xlane.f32.xlu0 %v9039
        %v9041 = vpop.xlane.xlu0 %9040
        %v9042 = vsel %vm629, %v9010, 0.0
        %9043 = vadd.xlane.f32.xlu0 %v9042
        %v9044 = vpop.xlane.xlu0 %9043
        %v9045 = vsel %vm629, %v9012, 0.0
        %9046 = vadd.xlane.f32.xlu0 %v9045
        %v9047 = vpop.xlane.xlu0 %9046
        %v9048 = vsel %vm629, %v9014, 0.0
        %9049 = vadd.xlane.f32.xlu0 %v9048
        %v9050 = vpop.xlane.xlu0 %9049
        %v9051 = vsel %vm629, %v9016, 0.0
        %9052 = vadd.xlane.f32.xlu0 %v9051
        %v9053 = vpop.xlane.xlu0 %9052
        %v9054 = vsel %vm629, %v9018, 0.0
        %9055 = vadd.xlane.f32.xlu0 %v9054
        %v9056 = vpop.xlane.xlu0 %9055
        %v9057 = vsel %vm629, %v9020, 0.0
        %9058 = vadd.xlane.f32.xlu0 %v9057
        %v9059 = vpop.xlane.xlu0 %9058
        %v9060 = vsel %vm629, %v9022, 0.0
        %9061 = vadd.xlane.f32.xlu0 %v9060
        %v9062 = vpop.xlane.xlu0 %9061
        %v9063 = vsel %vm629, %v9024, 0.0
        %9064 = vadd.xlane.f32.xlu0 %v9063
        %v9065 = vpop.xlane.xlu0 %9064
        %v9066 = vsel %vm629, %v9026, 0.0
        %9067 = vadd.xlane.f32.xlu0 %v9066
        %v9068 = vpop.xlane.xlu0 %9067
        %v9069 = vsel %vm629, %v9028, 0.0
        %9070 = vadd.xlane.f32.xlu0 %v9069
        %v9071 = vpop.xlane.xlu0 %9070
        %v9072 = vsel %vm629, %v9030, 0.0
        %9073 = vadd.xlane.f32.xlu0 %v9072
        %v9074 = vpop.xlane.xlu0 %9073
        %v9075 = vsel %vm629, %v9032, 0.0
        %9076 = vadd.xlane.f32.xlu0 %v9075
        %v9077 = vpop.xlane.xlu0 %9076
        %v9078 = vsel %vm629, %v9034, 0.0
        %9079 = vadd.xlane.f32.xlu0 %v9078
        %v9080 = vpop.xlane.xlu0 %9079
        %v9081 = vsel %vm629, %v9036, 0.0
        %9082 = vadd.xlane.f32.xlu0 %v9081
        %v9083 = vpop.xlane.xlu0 %9082
        %v9084 = vsel %vm629, %v9038, 0.0
        %9085 = vadd.xlane.f32.xlu0 %v9084
        %v9086 = vpop.xlane.xlu0 %9085
        %v9087 = vrcp.pop %v9041
        %v9088 = vrcp.pop %v9044
        %v9089 = vrcp.pop %v9047
        %v9090 = vrcp.pop %v9050
        %v9091 = vrcp.pop %v9053
        %v9092 = vrcp.pop %v9056
        %v9093 = vrcp.pop %v9059
        %v9094 = vrcp.pop %v9062
        %v9095 = vrcp.pop %v9065
        %v9096 = vrcp.pop %v9068
        %v9097 = vrcp.pop %v9071
        %v9098 = vrcp.pop %v9074
        %v9099 = vrcp.pop %v9077
        %v9100 = vrcp.pop %v9080
        %v9101 = vrcp.pop %v9083
        %v9102 = vrcp.pop %v9086
        %v9103 = vmul.f32 %v9008, %v9087
        %v9104 = vmul.f32 %v9010, %v9088
        %v9105 = vmul.f32 %v9012, %v9089
        %v9106 = vmul.f32 %v9014, %v9090
        %v9107 = vmul.f32 %v9016, %v9091
        %v9108 = vmul.f32 %v9018, %v9092
        %v9109 = vmul.f32 %v9020, %v9093
        %v9110 = vmul.f32 %v9022, %v9094
        %v9111 = vmul.f32 %v9024, %v9095
        %v9112 = vmul.f32 %v9026, %v9096
        %v9113 = vmul.f32 %v9028, %v9097
        %v9114 = vmul.f32 %v9030, %v9098
        %v9115 = vmul.f32 %v9032, %v9099
        %v9116 = vmul.f32 %v9034, %v9100
        %v9117 = vmul.f32 %v9036, %v9101
        %v9118 = vmul.f32 %v9038, %v9102
        %v9119 = vpack.c.bf16 %v9104, %v9103
        %v9120 = vpack.c.bf16 %v9106, %v9105
        %v9121 = vpack.c.bf16 %v9108, %v9107
        %v9122 = vpack.c.bf16 %v9110, %v9109
        %v9123 = vpack.c.bf16 %v9112, %v9111
        %v9124 = vpack.c.bf16 %v9114, %v9113
        %v9125 = vpack.c.bf16 %v9116, %v9115
        %v9126 = vpack.c.bf16 %v9118, %v9117
        %9127 = vrot.lane.b32.xlu0 %v1206, 16
        %v9128 = vpop.permute.xlu0 %9127
        %v9131 = vsel %vm629, %v9119, 0
        %9133 = vmatprep.subr.bf16.mxu0 0
        %9134 = vmatpush1.bf16.msra.mxu0 0
        %9135 = vmatprep.subr.bf16.mxu0 0
        %9136 = vmatpush1.bf16.msra.mxu0 0
        %9137 = vmatprep.subr.bf16.mxu0 0
        %9138 = vmatpush1.bf16.msra.mxu0 0
        %9139 = vmatprep.subr.bf16.mxu0 0
        %9140 = vmatpush1.bf16.msra.mxu0 0
        %9141 = vmatprep.subr.bf16.mxu0 0
        %9142 = vmatpush1.bf16.msra.mxu0 0
        %9143 = vmatprep.subr.bf16.mxu0 0
        %9144 = vmatpush1.bf16.msra.mxu0 0
        %9145 = vmatprep.subr.bf16.mxu0 0
        %9146 = vmatpush1.bf16.msra.mxu0 0
        %9147 = vmatprep.subr.bf16.mxu0 0
        %9148 = vmatpush1.bf16.msra.mxu0 %v9128
        %9149 = vmatprep.subr.bf16.mxu0 0
        %9150 = vmatpush2.bf16.msra.mxu0 0
        %9151 = vmatprep.subr.bf16.mxu0 0
        %9152 = vmatpush2.bf16.msra.mxu0 0
        %9153 = vmatprep.subr.bf16.mxu0 0
        %9154 = vmatpush2.bf16.msra.mxu0 0
        %9155 = vmatprep.subr.bf16.mxu0 0
        %9156 = vmatpush2.bf16.msra.mxu0 0
        %9157 = vmatprep.subr.bf16.mxu0 0
        %9158 = vmatpush2.bf16.msra.mxu0 0
        %9159 = vmatprep.subr.bf16.mxu0 0
        %9160 = vmatpush2.bf16.msra.mxu0 0
        %9161 = vmatprep.subr.bf16.mxu0 0
        %9162 = vmatpush2.bf16.msra.mxu0 0
        %9163 = vmatprep.subr.bf16.mxu0 0
        %9164 = vmatpush2.bf16.msra.mxu0 0
        %9165 = vmatprep.mubr.bf16.mxu0 0
        %9166 = vmatmul.mubr.bf16.gmra.mxu0 %v9131
        %v9167 = vpop.f32.mrf.mxu0
        %v9168 = vadd.f32 0.0, %v9167
        %v9169 = vpop.f32.mrf.mxu0
        %v9170 = vpop.f32.mrf.mxu0
        %v9171 = vadd.f32 0.0, %v9170
        %v9172 = vpop.f32.mrf.mxu0
        %9173 = vdwg.mxu0
        %9174 = vrot.lane.b32.xlu0 %v1207, 16
        %v9175 = vpop.permute.xlu0 %9174
        %v9178 = vsel %vm629, %v9120, 0
        %9180 = vmatprep.subr.bf16.mxu0 0
        %9181 = vmatpush1.bf16.msra.mxu0 0
        %9182 = vmatprep.subr.bf16.mxu0 0
        %9183 = vmatpush1.bf16.msra.mxu0 0
        %9184 = vmatprep.subr.bf16.mxu0 0
        %9185 = vmatpush1.bf16.msra.mxu0 0
        %9186 = vmatprep.subr.bf16.mxu0 0
        %9187 = vmatpush1.bf16.msra.mxu0 0
        %9188 = vmatprep.subr.bf16.mxu0 0
        %9189 = vmatpush1.bf16.msra.mxu0 0
        %9190 = vmatprep.subr.bf16.mxu0 0
        %9191 = vmatpush1.bf16.msra.mxu0 0
        %9192 = vmatprep.subr.bf16.mxu0 0
        %9193 = vmatpush1.bf16.msra.mxu0 0
        %9194 = vmatprep.subr.bf16.mxu0 0
        %9195 = vmatpush1.bf16.msra.mxu0 %v9175
        %9196 = vmatprep.subr.bf16.mxu0 0
        %9197 = vmatpush2.bf16.msra.mxu0 0
        %9198 = vmatprep.subr.bf16.mxu0 0
        %9199 = vmatpush2.bf16.msra.mxu0 0
        %9200 = vmatprep.subr.bf16.mxu0 0
        %9201 = vmatpush2.bf16.msra.mxu0 0
        %9202 = vmatprep.subr.bf16.mxu0 0
        %9203 = vmatpush2.bf16.msra.mxu0 0
        %9204 = vmatprep.subr.bf16.mxu0 0
        %9205 = vmatpush2.bf16.msra.mxu0 0
        %9206 = vmatprep.subr.bf16.mxu0 0
        %9207 = vmatpush2.bf16.msra.mxu0 0
        %9208 = vmatprep.subr.bf16.mxu0 0
        %9209 = vmatpush2.bf16.msra.mxu0 0
        %9210 = vmatprep.subr.bf16.mxu0 0
        %9211 = vmatpush2.bf16.msra.mxu0 0
        %9212 = vmatprep.mubr.bf16.mxu0 0
        %9213 = vmatmul.mubr.bf16.gmra.mxu0 %v9178
        %v9214 = vpop.f32.mrf.mxu0
        %v9215 = vadd.f32 0.0, %v9214
        %v9216 = vpop.f32.mrf.mxu0
        %v9217 = vpop.f32.mrf.mxu0
        %v9218 = vadd.f32 0.0, %v9217
        %v9219 = vpop.f32.mrf.mxu0
        %9220 = vdwg.mxu0
        %9221 = vrot.lane.b32.xlu0 %v1208, 16
        %v9222 = vpop.permute.xlu0 %9221
        %v9225 = vsel %vm629, %v9121, 0
        %9227 = vmatprep.subr.bf16.mxu0 0
        %9228 = vmatpush1.bf16.msra.mxu0 0
        %9229 = vmatprep.subr.bf16.mxu0 0
        %9230 = vmatpush1.bf16.msra.mxu0 0
        %9231 = vmatprep.subr.bf16.mxu0 0
        %9232 = vmatpush1.bf16.msra.mxu0 0
        %9233 = vmatprep.subr.bf16.mxu0 0
        %9234 = vmatpush1.bf16.msra.mxu0 0
        %9235 = vmatprep.subr.bf16.mxu0 0
        %9236 = vmatpush1.bf16.msra.mxu0 0
        %9237 = vmatprep.subr.bf16.mxu0 0
        %9238 = vmatpush1.bf16.msra.mxu0 0
        %9239 = vmatprep.subr.bf16.mxu0 0
        %9240 = vmatpush1.bf16.msra.mxu0 0
        %9241 = vmatprep.subr.bf16.mxu0 0
        %9242 = vmatpush1.bf16.msra.mxu0 %v9222
        %9243 = vmatprep.subr.bf16.mxu0 0
        %9244 = vmatpush2.bf16.msra.mxu0 0
        %9245 = vmatprep.subr.bf16.mxu0 0
        %9246 = vmatpush2.bf16.msra.mxu0 0
        %9247 = vmatprep.subr.bf16.mxu0 0
        %9248 = vmatpush2.bf16.msra.mxu0 0
        %9249 = vmatprep.subr.bf16.mxu0 0
        %9250 = vmatpush2.bf16.msra.mxu0 0
        %9251 = vmatprep.subr.bf16.mxu0 0
        %9252 = vmatpush2.bf16.msra.mxu0 0
        %9253 = vmatprep.subr.bf16.mxu0 0
        %9254 = vmatpush2.bf16.msra.mxu0 0
        %9255 = vmatprep.subr.bf16.mxu0 0
        %9256 = vmatpush2.bf16.msra.mxu0 0
        %9257 = vmatprep.subr.bf16.mxu0 0
        %9258 = vmatpush2.bf16.msra.mxu0 0
        %9259 = vmatprep.mubr.bf16.mxu0 0
        %9260 = vmatmul.mubr.bf16.gmra.mxu0 %v9225
        %v9261 = vpop.f32.mrf.mxu0
        %v9262 = vadd.f32 0.0, %v9261
        %v9263 = vpop.f32.mrf.mxu0
        %v9264 = vpop.f32.mrf.mxu0
        %v9265 = vadd.f32 0.0, %v9264
        %v9266 = vpop.f32.mrf.mxu0
        %9267 = vdwg.mxu0
        %9268 = vrot.lane.b32.xlu0 %v1209, 16
        %v9269 = vpop.permute.xlu0 %9268
        %v9272 = vsel %vm629, %v9122, 0
        %9274 = vmatprep.subr.bf16.mxu0 0
        %9275 = vmatpush1.bf16.msra.mxu0 0
        %9276 = vmatprep.subr.bf16.mxu0 0
        %9277 = vmatpush1.bf16.msra.mxu0 0
        %9278 = vmatprep.subr.bf16.mxu0 0
        %9279 = vmatpush1.bf16.msra.mxu0 0
        %9280 = vmatprep.subr.bf16.mxu0 0
        %9281 = vmatpush1.bf16.msra.mxu0 0
        %9282 = vmatprep.subr.bf16.mxu0 0
        %9283 = vmatpush1.bf16.msra.mxu0 0
        %9284 = vmatprep.subr.bf16.mxu0 0
        %9285 = vmatpush1.bf16.msra.mxu0 0
        %9286 = vmatprep.subr.bf16.mxu0 0
        %9287 = vmatpush1.bf16.msra.mxu0 0
        %9288 = vmatprep.subr.bf16.mxu0 0
        %9289 = vmatpush1.bf16.msra.mxu0 %v9269
        %9290 = vmatprep.subr.bf16.mxu0 0
        %9291 = vmatpush2.bf16.msra.mxu0 0
        %9292 = vmatprep.subr.bf16.mxu0 0
        %9293 = vmatpush2.bf16.msra.mxu0 0
        %9294 = vmatprep.subr.bf16.mxu0 0
        %9295 = vmatpush2.bf16.msra.mxu0 0
        %9296 = vmatprep.subr.bf16.mxu0 0
        %9297 = vmatpush2.bf16.msra.mxu0 0
        %9298 = vmatprep.subr.bf16.mxu0 0
        %9299 = vmatpush2.bf16.msra.mxu0 0
        %9300 = vmatprep.subr.bf16.mxu0 0
        %9301 = vmatpush2.bf16.msra.mxu0 0
        %9302 = vmatprep.subr.bf16.mxu0 0
        %9303 = vmatpush2.bf16.msra.mxu0 0
        %9304 = vmatprep.subr.bf16.mxu0 0
        %9305 = vmatpush2.bf16.msra.mxu0 0
        %9306 = vmatprep.mubr.bf16.mxu0 0
        %9307 = vmatmul.mubr.bf16.gmra.mxu0 %v9272
        %v9308 = vpop.f32.mrf.mxu0
        %v9309 = vadd.f32 0.0, %v9308
        %v9310 = vpop.f32.mrf.mxu0
        %v9311 = vpop.f32.mrf.mxu0
        %v9312 = vadd.f32 0.0, %v9311
        %v9313 = vpop.f32.mrf.mxu0
        %9314 = vdwg.mxu0
        %9315 = vrot.lane.b32.xlu0 %v1210, 16
        %v9316 = vpop.permute.xlu0 %9315
        %v9319 = vsel %vm629, %v9123, 0
        %9321 = vmatprep.subr.bf16.mxu0 0
        %9322 = vmatpush1.bf16.msra.mxu0 0
        %9323 = vmatprep.subr.bf16.mxu0 0
        %9324 = vmatpush1.bf16.msra.mxu0 0
        %9325 = vmatprep.subr.bf16.mxu0 0
        %9326 = vmatpush1.bf16.msra.mxu0 0
        %9327 = vmatprep.subr.bf16.mxu0 0
        %9328 = vmatpush1.bf16.msra.mxu0 0
        %9329 = vmatprep.subr.bf16.mxu0 0
        %9330 = vmatpush1.bf16.msra.mxu0 0
        %9331 = vmatprep.subr.bf16.mxu0 0
        %9332 = vmatpush1.bf16.msra.mxu0 0
        %9333 = vmatprep.subr.bf16.mxu0 0
        %9334 = vmatpush1.bf16.msra.mxu0 0
        %9335 = vmatprep.subr.bf16.mxu0 0
        %9336 = vmatpush1.bf16.msra.mxu0 %v9316
        %9337 = vmatprep.subr.bf16.mxu0 0
        %9338 = vmatpush2.bf16.msra.mxu0 0
        %9339 = vmatprep.subr.bf16.mxu0 0
        %9340 = vmatpush2.bf16.msra.mxu0 0
        %9341 = vmatprep.subr.bf16.mxu0 0
        %9342 = vmatpush2.bf16.msra.mxu0 0
        %9343 = vmatprep.subr.bf16.mxu0 0
        %9344 = vmatpush2.bf16.msra.mxu0 0
        %9345 = vmatprep.subr.bf16.mxu0 0
        %9346 = vmatpush2.bf16.msra.mxu0 0
        %9347 = vmatprep.subr.bf16.mxu0 0
        %9348 = vmatpush2.bf16.msra.mxu0 0
        %9349 = vmatprep.subr.bf16.mxu0 0
        %9350 = vmatpush2.bf16.msra.mxu0 0
        %9351 = vmatprep.subr.bf16.mxu0 0
        %9352 = vmatpush2.bf16.msra.mxu0 0
        %9353 = vmatprep.mubr.bf16.mxu0 0
        %9354 = vmatmul.mubr.bf16.gmra.mxu0 %v9319
        %v9355 = vpop.f32.mrf.mxu0
        %v9356 = vadd.f32 0.0, %v9355
        %v9357 = vpop.f32.mrf.mxu0
        %v9358 = vpop.f32.mrf.mxu0
        %v9359 = vadd.f32 0.0, %v9358
        %v9360 = vpop.f32.mrf.mxu0
        %9361 = vdwg.mxu0
        %9362 = vrot.lane.b32.xlu0 %v1211, 16
        %v9363 = vpop.permute.xlu0 %9362
        %v9366 = vsel %vm629, %v9124, 0
        %9368 = vmatprep.subr.bf16.mxu0 0
        %9369 = vmatpush1.bf16.msra.mxu0 0
        %9370 = vmatprep.subr.bf16.mxu0 0
        %9371 = vmatpush1.bf16.msra.mxu0 0
        %9372 = vmatprep.subr.bf16.mxu0 0
        %9373 = vmatpush1.bf16.msra.mxu0 0
        %9374 = vmatprep.subr.bf16.mxu0 0
        %9375 = vmatpush1.bf16.msra.mxu0 0
        %9376 = vmatprep.subr.bf16.mxu0 0
        %9377 = vmatpush1.bf16.msra.mxu0 0
        %9378 = vmatprep.subr.bf16.mxu0 0
        %9379 = vmatpush1.bf16.msra.mxu0 0
        %9380 = vmatprep.subr.bf16.mxu0 0
        %9381 = vmatpush1.bf16.msra.mxu0 0
        %9382 = vmatprep.subr.bf16.mxu0 0
        %9383 = vmatpush1.bf16.msra.mxu0 %v9363
        %9384 = vmatprep.subr.bf16.mxu0 0
        %9385 = vmatpush2.bf16.msra.mxu0 0
        %9386 = vmatprep.subr.bf16.mxu0 0
        %9387 = vmatpush2.bf16.msra.mxu0 0
        %9388 = vmatprep.subr.bf16.mxu0 0
        %9389 = vmatpush2.bf16.msra.mxu0 0
        %9390 = vmatprep.subr.bf16.mxu0 0
        %9391 = vmatpush2.bf16.msra.mxu0 0
        %9392 = vmatprep.subr.bf16.mxu0 0
        %9393 = vmatpush2.bf16.msra.mxu0 0
        %9394 = vmatprep.subr.bf16.mxu0 0
        %9395 = vmatpush2.bf16.msra.mxu0 0
        %9396 = vmatprep.subr.bf16.mxu0 0
        %9397 = vmatpush2.bf16.msra.mxu0 0
        %9398 = vmatprep.subr.bf16.mxu0 0
        %9399 = vmatpush2.bf16.msra.mxu0 0
        %9400 = vmatprep.mubr.bf16.mxu0 0
        %9401 = vmatmul.mubr.bf16.gmra.mxu0 %v9366
        %v9402 = vpop.f32.mrf.mxu0
        %v9403 = vadd.f32 0.0, %v9402
        %v9404 = vpop.f32.mrf.mxu0
        %v9405 = vpop.f32.mrf.mxu0
        %v9406 = vadd.f32 0.0, %v9405
        %v9407 = vpop.f32.mrf.mxu0
        %9408 = vdwg.mxu0
        %9409 = vrot.lane.b32.xlu0 %v1212, 16
        %v9410 = vpop.permute.xlu0 %9409
        %v9413 = vsel %vm629, %v9125, 0
        %9415 = vmatprep.subr.bf16.mxu0 0
        %9416 = vmatpush1.bf16.msra.mxu0 0
        %9417 = vmatprep.subr.bf16.mxu0 0
        %9418 = vmatpush1.bf16.msra.mxu0 0
        %9419 = vmatprep.subr.bf16.mxu0 0
        %9420 = vmatpush1.bf16.msra.mxu0 0
        %9421 = vmatprep.subr.bf16.mxu0 0
        %9422 = vmatpush1.bf16.msra.mxu0 0
        %9423 = vmatprep.subr.bf16.mxu0 0
        %9424 = vmatpush1.bf16.msra.mxu0 0
        %9425 = vmatprep.subr.bf16.mxu0 0
        %9426 = vmatpush1.bf16.msra.mxu0 0
        %9427 = vmatprep.subr.bf16.mxu0 0
        %9428 = vmatpush1.bf16.msra.mxu0 0
        %9429 = vmatprep.subr.bf16.mxu0 0
        %9430 = vmatpush1.bf16.msra.mxu0 %v9410
        %9431 = vmatprep.subr.bf16.mxu0 0
        %9432 = vmatpush2.bf16.msra.mxu0 0
        %9433 = vmatprep.subr.bf16.mxu0 0
        %9434 = vmatpush2.bf16.msra.mxu0 0
        %9435 = vmatprep.subr.bf16.mxu0 0
        %9436 = vmatpush2.bf16.msra.mxu0 0
        %9437 = vmatprep.subr.bf16.mxu0 0
        %9438 = vmatpush2.bf16.msra.mxu0 0
        %9439 = vmatprep.subr.bf16.mxu0 0
        %9440 = vmatpush2.bf16.msra.mxu0 0
        %9441 = vmatprep.subr.bf16.mxu0 0
        %9442 = vmatpush2.bf16.msra.mxu0 0
        %9443 = vmatprep.subr.bf16.mxu0 0
        %9444 = vmatpush2.bf16.msra.mxu0 0
        %9445 = vmatprep.subr.bf16.mxu0 0
        %9446 = vmatpush2.bf16.msra.mxu0 0
        %9447 = vmatprep.mubr.bf16.mxu0 0
        %9448 = vmatmul.mubr.bf16.gmra.mxu0 %v9413
        %v9449 = vpop.f32.mrf.mxu0
        %v9450 = vadd.f32 0.0, %v9449
        %v9451 = vpop.f32.mrf.mxu0
        %v9452 = vpop.f32.mrf.mxu0
        %v9453 = vadd.f32 0.0, %v9452
        %v9454 = vpop.f32.mrf.mxu0
        %9455 = vdwg.mxu0
        %9456 = vrot.lane.b32.xlu0 %v1213, 16
        %v9457 = vpop.permute.xlu0 %9456
        %v9460 = vsel %vm629, %v9126, 0
        %9462 = vmatprep.subr.bf16.mxu0 0
        %9463 = vmatpush1.bf16.msra.mxu0 0
        %9464 = vmatprep.subr.bf16.mxu0 0
        %9465 = vmatpush1.bf16.msra.mxu0 0
        %9466 = vmatprep.subr.bf16.mxu0 0
        %9467 = vmatpush1.bf16.msra.mxu0 0
        %9468 = vmatprep.subr.bf16.mxu0 0
        %9469 = vmatpush1.bf16.msra.mxu0 0
        %9470 = vmatprep.subr.bf16.mxu0 0
        %9471 = vmatpush1.bf16.msra.mxu0 0
        %9472 = vmatprep.subr.bf16.mxu0 0
        %9473 = vmatpush1.bf16.msra.mxu0 0
        %9474 = vmatprep.subr.bf16.mxu0 0
        %9475 = vmatpush1.bf16.msra.mxu0 0
        %9476 = vmatprep.subr.bf16.mxu0 0
        %9477 = vmatpush1.bf16.msra.mxu0 %v9457
        %9478 = vmatprep.subr.bf16.mxu0 0
        %9479 = vmatpush2.bf16.msra.mxu0 0
        %9480 = vmatprep.subr.bf16.mxu0 0
        %9481 = vmatpush2.bf16.msra.mxu0 0
        %9482 = vmatprep.subr.bf16.mxu0 0
        %9483 = vmatpush2.bf16.msra.mxu0 0
        %9484 = vmatprep.subr.bf16.mxu0 0
        %9485 = vmatpush2.bf16.msra.mxu0 0
        %9486 = vmatprep.subr.bf16.mxu0 0
        %9487 = vmatpush2.bf16.msra.mxu0 0
        %9488 = vmatprep.subr.bf16.mxu0 0
        %9489 = vmatpush2.bf16.msra.mxu0 0
        %9490 = vmatprep.subr.bf16.mxu0 0
        %9491 = vmatpush2.bf16.msra.mxu0 0
        %9492 = vmatprep.subr.bf16.mxu0 0
        %9493 = vmatpush2.bf16.msra.mxu0 0
        %9494 = vmatprep.mubr.bf16.mxu0 0
        %9495 = vmatmul.mubr.bf16.gmra.mxu0 %v9460
        %v9496 = vpop.f32.mrf.mxu0
        %v9497 = vadd.f32 0.0, %v9496
        %v9498 = vpop.f32.mrf.mxu0
        %v9499 = vpop.f32.mrf.mxu0
        %v9500 = vadd.f32 0.0, %v9499
        %v9501 = vpop.f32.mrf.mxu0
        %9502 = vdwg.mxu0
        %v9503 = vpack.c.bf16 %v9171, %v9168
        %v9504 = vpack.c.bf16 %v9218, %v9215
        %v9505 = vpack.c.bf16 %v9265, %v9262
        %v9506 = vpack.c.bf16 %v9312, %v9309
        %v9507 = vpack.c.bf16 %v9359, %v9356
        %v9508 = vpack.c.bf16 %v9406, %v9403
        %v9509 = vpack.c.bf16 %v9453, %v9450
        %v9510 = vpack.c.bf16 %v9500, %v9497
        %v9513 = vunpack.c.l.b16 %v273
        %v9514 = vunpack.c.l.b16 %v274
        %v9515 = vpack.c.b16 %v9514, %v9513
        %v9518 = vsel %vm629, %v9503, 0
        %v9521 = vsel %vm629, %v9504, 0
        %v9524 = vsel %vm629, %v9505, 0
        %v9527 = vsel %vm629, %v9506, 0
        %v9530 = vsel %vm629, %v9507, 0
        %v9533 = vsel %vm629, %v9508, 0
        %v9536 = vsel %vm629, %v9509, 0
        %v9539 = vsel %vm629, %v9510, 0
        %9541 = vmatprep.subr.bf16.mxu0 0
        %9542 = vmatpush1.bf16.msra.mxu0 0
        %9543 = vmatprep.subr.bf16.mxu0 0
        %9544 = vmatpush1.bf16.msra.mxu0 0
        %9545 = vmatprep.subr.bf16.mxu0 0
        %9546 = vmatpush1.bf16.msra.mxu0 0
        %9547 = vmatprep.subr.bf16.mxu0 0
        %9548 = vmatpush1.bf16.msra.mxu0 0
        %9549 = vmatprep.subr.bf16.mxu0 0
        %9550 = vmatpush1.bf16.msra.mxu0 0
        %9551 = vmatprep.subr.bf16.mxu0 0
        %9552 = vmatpush1.bf16.msra.mxu0 0
        %9553 = vmatprep.subr.bf16.mxu0 0
        %9554 = vmatpush1.bf16.msra.mxu0 0
        %9555 = vmatprep.subr.bf16.mxu0 0
        %9556 = vmatpush1.bf16.msra.mxu0 %v9515
        %9557 = vmatprep.subr.bf16.mxu0 0
        %9558 = vmatpush2.bf16.msra.mxu0 0
        %9559 = vmatprep.subr.bf16.mxu0 0
        %9560 = vmatpush2.bf16.msra.mxu0 0
        %9561 = vmatprep.subr.bf16.mxu0 0
        %9562 = vmatpush2.bf16.msra.mxu0 0
        %9563 = vmatprep.subr.bf16.mxu0 0
        %9564 = vmatpush2.bf16.msra.mxu0 0
        %9565 = vmatprep.subr.bf16.mxu0 0
        %9566 = vmatpush2.bf16.msra.mxu0 0
        %9567 = vmatprep.subr.bf16.mxu0 0
        %9568 = vmatpush2.bf16.msra.mxu0 0
        %9569 = vmatprep.subr.bf16.mxu0 0
        %9570 = vmatpush2.bf16.msra.mxu0 0
        %9571 = vmatprep.subr.bf16.mxu0 0
        %9572 = vmatpush2.bf16.msra.mxu0 0
        %9573 = vmatprep.mubr.bf16.mxu0 0
        %9574 = vmatmul.mubr.bf16.gmra.mxu0 %v9518
        %v9575 = vpop.f32.mrf.mxu0
        %v9576 = vadd.f32 0.0, %v9575
        %v9577 = vpop.f32.mrf.mxu0
        %v9578 = vpop.f32.mrf.mxu0
        %v9579 = vadd.f32 0.0, %v9578
        %v9580 = vpop.f32.mrf.mxu0
        %9581 = vmatprep.mubr.bf16.mxu0 0
        %9582 = vmatmul.mubr.bf16.gmra.mxu0 %v9521
        %v9583 = vpop.f32.mrf.mxu0
        %v9584 = vadd.f32 0.0, %v9583
        %v9585 = vpop.f32.mrf.mxu0
        %v9586 = vpop.f32.mrf.mxu0
        %v9587 = vadd.f32 0.0, %v9586
        %v9588 = vpop.f32.mrf.mxu0
        %9589 = vmatprep.mubr.bf16.mxu0 0
        %9590 = vmatmul.mubr.bf16.gmra.mxu0 %v9524
        %v9591 = vpop.f32.mrf.mxu0
        %v9592 = vadd.f32 0.0, %v9591
        %v9593 = vpop.f32.mrf.mxu0
        %v9594 = vpop.f32.mrf.mxu0
        %v9595 = vadd.f32 0.0, %v9594
        %v9596 = vpop.f32.mrf.mxu0
        %9597 = vmatprep.mubr.bf16.mxu0 0
        %9598 = vmatmul.mubr.bf16.gmra.mxu0 %v9527
        %v9599 = vpop.f32.mrf.mxu0
        %v9600 = vadd.f32 0.0, %v9599
        %v9601 = vpop.f32.mrf.mxu0
        %v9602 = vpop.f32.mrf.mxu0
        %v9603 = vadd.f32 0.0, %v9602
        %v9604 = vpop.f32.mrf.mxu0
        %9605 = vmatprep.mubr.bf16.mxu0 0
        %9606 = vmatmul.mubr.bf16.gmra.mxu0 %v9530
        %v9607 = vpop.f32.mrf.mxu0
        %v9608 = vadd.f32 0.0, %v9607
        %v9609 = vpop.f32.mrf.mxu0
        %v9610 = vpop.f32.mrf.mxu0
        %v9611 = vadd.f32 0.0, %v9610
        %v9612 = vpop.f32.mrf.mxu0
        %9613 = vmatprep.mubr.bf16.mxu0 0
        %9614 = vmatmul.mubr.bf16.gmra.mxu0 %v9533
        %v9615 = vpop.f32.mrf.mxu0
        %v9616 = vadd.f32 0.0, %v9615
        %v9617 = vpop.f32.mrf.mxu0
        %v9618 = vpop.f32.mrf.mxu0
        %v9619 = vadd.f32 0.0, %v9618
        %v9620 = vpop.f32.mrf.mxu0
        %9621 = vmatprep.mubr.bf16.mxu0 0
        %9622 = vmatmul.mubr.bf16.gmra.mxu0 %v9536
        %v9623 = vpop.f32.mrf.mxu0
        %v9624 = vadd.f32 0.0, %v9623
        %v9625 = vpop.f32.mrf.mxu0
        %v9626 = vpop.f32.mrf.mxu0
        %v9627 = vadd.f32 0.0, %v9626
        %v9628 = vpop.f32.mrf.mxu0
        %9629 = vmatprep.mubr.bf16.mxu0 0
        %9630 = vmatmul.mubr.bf16.gmra.mxu0 %v9539
        %v9631 = vpop.f32.mrf.mxu0
        %v9632 = vadd.f32 0.0, %v9631
        %v9633 = vpop.f32.mrf.mxu0
        %v9634 = vpop.f32.mrf.mxu0
        %v9635 = vadd.f32 0.0, %v9634
        %v9636 = vpop.f32.mrf.mxu0
        %9637 = vdwg.mxu0
        %v9638 = vadd.f32 %v8503, %v9576
        %v9639 = vadd.f32 %v8504, %v9579
        %v9640 = vadd.f32 %v8505, %v9584
        %v9641 = vadd.f32 %v8506, %v9587
        %v9642 = vadd.f32 %v8507, %v9592
        %v9643 = vadd.f32 %v8508, %v9595
        %v9644 = vadd.f32 %v8509, %v9600
        %v9645 = vadd.f32 %v8510, %v9603
        %v9646 = vadd.f32 %v8511, %v9608
        %v9647 = vadd.f32 %v8512, %v9611
        %v9648 = vadd.f32 %v8513, %v9616
        %v9649 = vadd.f32 %v8514, %v9619
        %v9650 = vadd.f32 %v8515, %v9624
        %v9651 = vadd.f32 %v8516, %v9627
        %v9652 = vadd.f32 %v8517, %v9632
        %v9653 = vadd.f32 %v8518, %v9635
        %v9654 = vld [vmem:[%s3] sm:$0x1]
        %v9656 = vlaneseq
        %v9657 = vshrl.u32 %v9656, 7
        %v9658 = vsub.s32 0, %v9657
        %v9659 = vrot.slane %v9654, %v9658
        %v9661 = vadd.f32 %v9638, %v9659
        %v9662 = vadd.f32 %v9639, %v9659
        %v9663 = vadd.f32 %v9640, %v9659
        %v9664 = vadd.f32 %v9641, %v9659
        %v9665 = vadd.f32 %v9642, %v9659
        %v9666 = vadd.f32 %v9643, %v9659
        %v9667 = vadd.f32 %v9644, %v9659
        %v9668 = vadd.f32 %v9645, %v9659
        %v9669 = vadd.f32 %v9646, %v9659
        %v9670 = vadd.f32 %v9647, %v9659
        %v9671 = vadd.f32 %v9648, %v9659
        %v9672 = vadd.f32 %v9649, %v9659
        %v9673 = vadd.f32 %v9650, %v9659
        %v9674 = vadd.f32 %v9651, %v9659
        %v9675 = vadd.f32 %v9652, %v9659
        %v9676 = vadd.f32 %v9653, %v9659
        %9677 = vst [vmem:[%s193] sm:$0xff] %v9661
        %9678 = vst [vmem:[%s193 + $0x8] sm:$0xff] %v9662
        %9679 = vst [vmem:[%s193 + $0x10] sm:$0xff] %v9663
        %9680 = vst [vmem:[%s193 + $0x18] sm:$0xff] %v9664
        %9681 = vst [vmem:[%s193 + $0x20] sm:$0xff] %v9665
        %9682 = vst [vmem:[%s193 + $0x28] sm:$0xff] %v9666
        %9683 = vst [vmem:[%s193 + $0x30] sm:$0xff] %v9667
        %9684 = vst [vmem:[%s193 + $0x38] sm:$0xff] %v9668
        %9685 = vst [vmem:[%s193 + $0x40] sm:$0xff] %v9669
        %9686 = vst [vmem:[%s193 + $0x48] sm:$0xff] %v9670
        %9687 = vst [vmem:[%s193 + $0x50] sm:$0xff] %v9671
        %9688 = vst [vmem:[%s193 + $0x58] sm:$0xff] %v9672
        %9689 = vst [vmem:[%s193 + $0x60] sm:$0xff] %v9673
        %9690 = vst [vmem:[%s193 + $0x68] sm:$0xff] %v9674
        %9691 = vst [vmem:[%s193 + $0x70] sm:$0xff] %v9675
        %9692 = vst [vmem:[%s193 + $0x78] sm:$0xff] %v9676
        %s9693 = sand.u32 %s115, 1
        %s9694 = scalar_lea.sflag [#allocation3], %s9693
        %s9695 = sand.u32 %s115, 1
        %s9696 = smul.addr %s9695, 128
        %s9697 = scalar_lea.vmem [#allocation2], %s9696
        // Predicated region
        $region37: #{attention_forward.1} parent=35 // pred_check
          %p9698 = pneg %p125
        $region38: #{attention_forward.1} parent=35 // pred_check_branch
          %9700 = sbr.rel (%p9698) target = $region40
        $region39: #{attention_forward.1} parent=35 // pred_region
          %s9701 = smul.u32 8, %s18
          %s9703 = ssub.s32 2048, 2048
          %9704 = vsyncadd %s9694, %s9703
          %s9705 = smul.addr %s9701, 2
          %s9706 = smul.addr %s9705, 128
          %s9707 = scalar_lea.hbm %s4, %s9706
          %s9708 = sshll.u32 %s9697, 4
          %s9709 = int_to_ptr.vmem [resolvable:$true] %s9708
          %9714 = dma.vmem_to_hbm [thread:$0]  %s9709, 2048, %s9707, %s9694, 128, 128, 8
        $region40: #{attention_forward.1} parent=35 // pred_fallthru
          _
      $region36: #{attention_forward.1} parent=5 // pred_fallthru
        _
      %p9715 = scmp.le.s32.totalorder 2, %s13
      // Predicated region
      $region41: #{attention_forward.1} parent=5 // pred_check
        %p9716 = pneg %p9715
      $region42: #{attention_forward.1} parent=5 // pred_check_branch
        %9718 = sbr.rel (%p9716) target = $region44
      $region43: #{attention_forward.1} parent=5 // pred_region
        %s9719 = ssub.s32 %s13, 2
        // Predicated region
        $region45: #{attention_forward.1} parent=43 // pred_check
          %p9720 = pneg %p131
        $region46: #{attention_forward.1} parent=43 // pred_check_branch
          %9722 = sbr.rel (%p9720) target = $region48
        $region47: #{attention_forward.1} parent=43 // pred_region
          %s9723 = sand.u32 %s116, 1
          %s9724 = scalar_lea.sflag [#allocation3], %s9723
          %s9725 = sand.u32 %s116, 1
          %s9726 = smul.addr %s9725, 128
          %s9727 = scalar_lea.vmem [#allocation2], %s9726
          %9728 = dma.done %s9724, 2048
        $region48: #{attention_forward.1} parent=43 // pred_fallthru
          _
      $region44: #{attention_forward.1} parent=5 // pred_fallthru
        _
    $region6: #{attention_forward.1} parent=1 // loop_footer
      %s17 = sadd.s32 1, %s13
    $region7: #{attention_forward.1} parent=1 // loop_footer_branch
      %12 = sbr.rel target = $region3
    $region8: #{attention_forward.1} parent=1 // loop_exit
      _
    %9729 = vsyncpa [#allocation3], 1
    %s9730 = scalar_lea.sflag [#allocation3], 1
    %9731 = vsyncpa %s9730, 1

</llo_original>
